<compile_context>
chip_gen: v6e
topology: v6e:2x2x1
jax: 0.10.0
libtpu: 0.0.40
codegen_flags: <defaults>
</compile_context>

<pallas_src>
import functools
import math

import jax
import jax.numpy as jnp
from jax import lax
from jax.experimental import pallas as pl
from jax.experimental.pallas import tpu as pltpu

TM = 512                        # row tile for row-parallel kernels
VMEM_LIMIT = 32 * 1024 * 1024   # explicit scoped-VMEM limit (raises v5e's 16 MiB default)


def _cp(*sem):
    return pltpu.CompilerParams(dimension_semantics=sem, vmem_limit_bytes=VMEM_LIMIT)


def _row_tiles(M):
    """Return (padded_M, row_tile, pad). Uses one full block when M <= TM (no padding)."""
    if M <= TM:
        return M, M, 0
    pad = (-M) % TM
    return M + pad, TM, pad


def _act(y, kind):
    if kind == "relu":
        return jnp.maximum(y, 0.0)
    if kind == "swish":
        return y * (1.0 / (1.0 + jnp.exp(-y)))
    if kind == "tanh":
        return jnp.tanh(y)
    return y


# ---------------------------------------------------------------------------
# Pallas kernels
# ---------------------------------------------------------------------------
def _linear_kernel(x_ref, w_ref, b_ref, o_ref, *, act):
    x = x_ref[...].astype(jnp.bfloat16)
    y = jnp.dot(x, w_ref[...], preferred_element_type=jnp.float32)
    y = y + b_ref[...].astype(jnp.float32)
    o_ref[...] = _act(y, act).astype(o_ref.dtype)


def pallas_linear(x, w, b, act="none", out_dtype=jnp.float32):
    """y = act(x @ w + b).  w:(K,N) bf16."""
    M, K = x.shape
    N = w.shape[1]
    Mp, tm, pad = _row_tiles(M)
    if pad:
        x = jnp.pad(x, ((0, pad), (0, 0)))
    out = pl.pallas_call(
        functools.partial(_linear_kernel, act=act),
        out_shape=jax.ShapeDtypeStruct((Mp, N), out_dtype),
        grid=(Mp // tm,),
        in_specs=[pl.BlockSpec((tm, K), lambda i: (i, 0)),
                  pl.BlockSpec((K, N), lambda i: (0, 0)),
                  pl.BlockSpec((1, N), lambda i: (0, 0))],
        out_specs=pl.BlockSpec((tm, N), lambda i: (i, 0)),
        compiler_params=_cp("parallel"),
    )(x, w, b.reshape(1, N))
    return out[:M] if pad else out


def _layernorm_kernel(x_ref, g_ref, b_ref, o_ref, *, eps):
    x = x_ref[...].astype(jnp.float32)
    mean = jnp.mean(x, axis=-1, keepdims=True)
    xc = x - mean
    var = jnp.mean(xc * xc, axis=-1, keepdims=True)
    o_ref[...] = (xc * lax.rsqrt(var + eps) * g_ref[...] + b_ref[...]).astype(o_ref.dtype)


def pallas_layernorm(x, gamma, beta, eps=1e-5):
    M, D = x.shape
    Mp, tm, pad = _row_tiles(M)
    if pad:
        x = jnp.pad(x, ((0, pad), (0, 0)))
    out = pl.pallas_call(
        functools.partial(_layernorm_kernel, eps=eps),
        out_shape=jax.ShapeDtypeStruct((Mp, D), jnp.float32),
        grid=(Mp // tm,),
        in_specs=[pl.BlockSpec((tm, D), lambda i: (i, 0)),
                  pl.BlockSpec((1, D), lambda i: (0, 0)),
                  pl.BlockSpec((1, D), lambda i: (0, 0))],
        out_specs=pl.BlockSpec((tm, D), lambda i: (i, 0)),
        compiler_params=_cp("parallel"),
    )(x, gamma.reshape(1, D), beta.reshape(1, D))
    return out[:M] if pad else out


def _ln_linear_kernel(x_ref, g_ref, b_ref, w_ref, bias_ref, *o_refs, eps, glu, splits):
    x = x_ref[...].astype(jnp.float32)
    mean = jnp.mean(x, axis=-1, keepdims=True)
    xc = x - mean
    var = jnp.mean(xc * xc, axis=-1, keepdims=True)
    y = xc * lax.rsqrt(var + eps) * g_ref[...] + b_ref[...]
    h = jnp.dot(y.astype(jnp.bfloat16), w_ref[...], preferred_element_type=jnp.float32)
    h = h + bias_ref[...]
    if glu:
        half = h.shape[-1] // 2
        h = h[:, :half] * (1.0 / (1.0 + jnp.exp(-h[:, half:])))
        o_refs[0][...] = h.astype(o_refs[0].dtype)
    else:
        off = 0
        for r, n in zip(o_refs, splits):
            r[...] = h[:, off:off + n].astype(r.dtype)
            off += n


def pallas_ln_linear(x, g, b, w, bias, *, glu=False, splits=None, out_dtype=jnp.float32):
    """Fused LayerNorm + Linear.  Optional GLU over output channels, or N-way output split."""
    M, K = x.shape
    N = w.shape[1]
    Mp, tm, pad = _row_tiles(M)
    if pad:
        x = jnp.pad(x, ((0, pad), (0, 0)))
    if glu:
        out_n = [N // 2]
    elif splits is None:
        out_n = [N]
    else:
        out_n = list(splits)
    outs = pl.pallas_call(
        functools.partial(_ln_linear_kernel, eps=1e-5, glu=glu, splits=out_n),
        out_shape=tuple(jax.ShapeDtypeStruct((Mp, n), out_dtype) for n in out_n),
        grid=(Mp // tm,),
        in_specs=[pl.BlockSpec((tm, K), lambda i: (i, 0)),
                  pl.BlockSpec((1, K), lambda i: (0, 0)),
                  pl.BlockSpec((1, K), lambda i: (0, 0)),
                  pl.BlockSpec((K, N), lambda i: (0, 0)),
                  pl.BlockSpec((1, N), lambda i: (0, 0))],
        out_specs=tuple(pl.BlockSpec((tm, n), lambda i: (i, 0)) for n in out_n),
        compiler_params=_cp("parallel"),
    )(x, g.reshape(1, K), b.reshape(1, K), w, bias.reshape(1, N))
    if not isinstance(outs, (list, tuple)):
        outs = (outs,)
    if pad:
        outs = tuple(o[:M] for o in outs)
    return outs[0] if len(outs) == 1 else tuple(outs)


def _ff_module_kernel(x_ref, g_ref, b_ref, w1_ref, b1_ref, w2_ref, b2_ref, *rest,
                      eps, final_ln):
    if final_ln:
        fg_ref, fb_ref, o_ref = rest
    else:
        (o_ref,) = rest
    x = x_ref[...].astype(jnp.float32)
    mean = jnp.mean(x, axis=-1, keepdims=True)
    xc = x - mean
    var = jnp.mean(xc * xc, axis=-1, keepdims=True)
    y = xc * lax.rsqrt(var + eps) * g_ref[...] + b_ref[...]
    h = jnp.dot(y.astype(jnp.bfloat16), w1_ref[...],
                preferred_element_type=jnp.float32) + b1_ref[...]
    h = h * (1.0 / (1.0 + jnp.exp(-h)))                                    # Swish
    z = jnp.dot(h.astype(jnp.bfloat16), w2_ref[...],
                preferred_element_type=jnp.float32) + b2_ref[...]
    out = x + 0.5 * z                                                      # half-step residual
    if final_ln:
        mean2 = jnp.mean(out, axis=-1, keepdims=True)
        oc = out - mean2
        var2 = jnp.mean(oc * oc, axis=-1, keepdims=True)
        out = oc * lax.rsqrt(var2 + eps) * fg_ref[...] + fb_ref[...]
    o_ref[...] = out.astype(o_ref.dtype)


def pallas_ff_module(x, g, b, w1, b1, w2, b2, final_ln=None):
    """Whole Conformer feed-forward module (LN -> W1 -> Swish -> W2 -> 0.5*res [-> LN])."""
    M, C = x.shape
    lu = w1.shape[1]
    Mp, tm, pad = _row_tiles(M)
    if pad:
        x = jnp.pad(x, ((0, pad), (0, 0)))
    in_specs = [pl.BlockSpec((tm, C), lambda i: (i, 0)),
                pl.BlockSpec((1, C), lambda i: (0, 0)),
                pl.BlockSpec((1, C), lambda i: (0, 0)),
                pl.BlockSpec((C, lu), lambda i: (0, 0)),
                pl.BlockSpec((1, lu), lambda i: (0, 0)),
                pl.BlockSpec((lu, C), lambda i: (0, 0)),
                pl.BlockSpec((1, C), lambda i: (0, 0))]
    args = [x, g.reshape(1, C), b.reshape(1, C), w1, b1.reshape(1, lu), w2, b2.reshape(1, C)]
    if final_ln is not None:
        fg, fb = final_ln
        in_specs += [pl.BlockSpec((1, C), lambda i: (0, 0)),
                     pl.BlockSpec((1, C), lambda i: (0, 0))]
        args += [fg.reshape(1, C), fb.reshape(1, C)]
    out = pl.pallas_call(
        functools.partial(_ff_module_kernel, eps=1e-5, final_ln=final_ln is not None),
        out_shape=jax.ShapeDtypeStruct((Mp, C), jnp.float32),
        grid=(Mp // tm,),
        in_specs=in_specs,
        out_specs=pl.BlockSpec((tm, C), lambda i: (i, 0)),
        compiler_params=_cp("parallel"),
    )(*args)
    return out[:M] if pad else out


def _mhsa_kernel(q_ref, k_ref, v_ref, p_ref, bu_ref, bv_ref, wo_ref, bo_ref, r_ref,
                 o_ref, *, H, dk, scale):
    q = q_ref[0].astype(jnp.float32)                            # (T, C)
    qu = (q + bu_ref[...].astype(jnp.float32)).astype(jnp.bfloat16)
    qv = (q + bv_ref[...].astype(jnp.float32)).astype(jnp.bfloat16)
    k = k_ref[0]                                                # (T, C) bf16
    v = v_ref[0]                                                # (T, C) bf16
    p = p_ref[...]                                              # (T, C) bf16
    wo = wo_ref[...]                                            # (C, C) bf16
    # start from residual + out-proj bias; per-head context is folded via ctx_h @ Wo_h
    acc = r_ref[0].astype(jnp.float32) + bo_ref[...].astype(jnp.float32)
    for h in range(H):
        sl = slice(h * dk, (h + 1) * dk)
        s = lax.dot_general(qu[:, sl], k[:, sl], (((1,), (1,)), ((), ())),
                            preferred_element_type=jnp.float32)
        s = s + lax.dot_general(qv[:, sl], p[:, sl], (((1,), (1,)), ((), ())),
                                preferred_element_type=jnp.float32)
        s = s * scale
        m = jnp.max(s, axis=-1, keepdims=True)
        e = jnp.exp(s - m)
        inv = pl.reciprocal(jnp.sum(e, axis=-1, keepdims=True), approx=True)
        attn = (e * inv).astype(jnp.bfloat16)
        ctx_h = jnp.dot(attn, v[:, sl], preferred_element_type=jnp.float32)   # (T, dk)
        acc = acc + jnp.dot(ctx_h.astype(jnp.bfloat16), wo[sl, :],
                            preferred_element_type=jnp.float32)
    o_ref[...] = acc[None].astype(o_ref.dtype)


def pallas_mhsa(q, k, v, p, bias_u, bias_v, wo, bo, res, H):
    """Rel-pos MHSA core + output projection + residual, in (B, T, C) layout."""
    B, T, C = q.shape
    dk = C // H
    scale = 1.0 / math.sqrt(dk)
    spec_b = pl.BlockSpec((1, T, C), lambda b: (b, 0, 0))
    return pl.pallas_call(
        functools.partial(_mhsa_kernel, H=H, dk=dk, scale=scale),
        out_shape=jax.ShapeDtypeStruct((B, T, C), jnp.float32),
        grid=(B,),
        in_specs=[spec_b, spec_b, spec_b,
                  pl.BlockSpec((T, C), lambda b: (0, 0)),
                  pl.BlockSpec((1, C), lambda b: (0, 0)),
                  pl.BlockSpec((1, C), lambda b: (0, 0)),
                  pl.BlockSpec((C, C), lambda b: (0, 0)),
                  pl.BlockSpec((1, C), lambda b: (0, 0)),
                  spec_b],
        out_specs=spec_b,
        compiler_params=_cp("parallel"),
    )(q, k, v, p, bias_u.reshape(1, C), bias_v.reshape(1, C), wo, bo.reshape(1, C), res)


def _conv_module_kernel(x_ref, w_ref, b_ref, sc_ref, sh_ref, pw_ref, pb_ref, r_ref,
                        o_ref, *, ksize, T):
    C = x_ref.shape[2]
    w = w_ref[...].astype(jnp.float32)                          # (K, C)
    acc = jnp.zeros((T, C), jnp.float32)
    for kk in range(ksize):
        # slice the ref per tap (avoids realignment copies of a materialized value)
        acc = acc + x_ref[0, kk:kk + T, :].astype(jnp.float32) * w[kk:kk + 1, :]
    acc = acc + b_ref[...]
    acc = acc * sc_ref[...] + sh_ref[...]                       # eval-mode BatchNorm1d affine
    acc = acc * (1.0 / (1.0 + jnp.exp(-acc)))                   # Swish
    z = jnp.dot(acc.astype(jnp.bfloat16), pw_ref[...],
                preferred_element_type=jnp.float32)             # pointwise conv2
    z = z + pb_ref[...] + r_ref[0].astype(jnp.float32)          # bias + residual
    o_ref[...] = z[None].astype(o_ref.dtype)


def pallas_conv_module(y, dw_w, dw_b, bn_scale, bn_shift, pw2_w, pw2_b, res, pad):
    """Depthwise Conv1d + BN + Swish + pointwise conv2 + residual, fused.  y:(B,T,C) bf16."""
    B, T, C = res.shape
    K = dw_w.shape[0]
    yp = jnp.pad(y, ((0, 0), (pad, pad), (0, 0)))
    Tp = T + 2 * pad
    return pl.pallas_call(
        functools.partial(_conv_module_kernel, ksize=K, T=T),
        out_shape=jax.ShapeDtypeStruct((B, T, C), jnp.float32),
        grid=(B,),
        in_specs=[pl.BlockSpec((1, Tp, C), lambda i: (i, 0, 0)),
                  pl.BlockSpec((K, C), lambda i: (0, 0)),
                  pl.BlockSpec((1, C), lambda i: (0, 0)),
                  pl.BlockSpec((1, C), lambda i: (0, 0)),
                  pl.BlockSpec((1, C), lambda i: (0, 0)),
                  pl.BlockSpec((C, C), lambda i: (0, 0)),
                  pl.BlockSpec((1, C), lambda i: (0, 0)),
                  pl.BlockSpec((1, T, C), lambda i: (i, 0, 0))],
        out_specs=pl.BlockSpec((1, T, C), lambda i: (i, 0, 0)),
        compiler_params=_cp("parallel"),
    )(yp, dw_w, dw_b.reshape(1, C), bn_scale.reshape(1, C), bn_shift.reshape(1, C),
      pw2_w, pw2_b.reshape(1, C), res)


def _asp_kernel(x_ref, wx_ref, wm_ref, ws_ref, tb_ref, sc_ref, sh_ref, wc_ref, cb_ref,
                mean_ref, std_ref, *, eps):
    x = x_ref[0].astype(jnp.float32)                            # (L, C)
    # global-context uniform statistics (mask is all-ones)
    gm = jnp.mean(x, axis=0, keepdims=True)                     # (1, C)
    gv = jnp.mean((x - gm) ** 2, axis=0, keepdims=True)
    gs = jnp.sqrt(jnp.maximum(gv, eps))
    # TDNN on [x | mean | std] via three weight slabs (no (L, 3C) materialization)
    h = jnp.dot(x.astype(jnp.bfloat16), wx_ref[...], preferred_element_type=jnp.float32)
    h = h + jnp.dot(gm.astype(jnp.bfloat16), wm_ref[...], preferred_element_type=jnp.float32)
    h = h + jnp.dot(gs.astype(jnp.bfloat16), ws_ref[...], preferred_element_type=jnp.float32)
    h = h + tb_ref[...]
    h = jnp.maximum(h, 0.0)                                     # ReLU
    h = h * sc_ref[...] + sh_ref[...]                           # eval-mode BatchNorm1d affine
    h = jnp.tanh(h)
    lg = jnp.dot(h.astype(jnp.bfloat16), wc_ref[...],
                 preferred_element_type=jnp.float32) + cb_ref[...]   # (L, C) attention logits
    m = jnp.max(lg, axis=0, keepdims=True)
    e = jnp.exp(lg - m)
    inv = pl.reciprocal(jnp.sum(e, axis=0, keepdims=True), approx=True)
    w = e * inv                                                 # softmax over time
    mean = jnp.sum(w * x, axis=0, keepdims=True)
    var = jnp.sum(w * (x - mean) ** 2, axis=0, keepdims=True)
    mean_ref[...] = mean[None].astype(mean_ref.dtype)
    std_ref[...] = jnp.sqrt(jnp.maximum(var, eps))[None].astype(std_ref.dtype)


def pallas_asp(xs, wx, wm, ws, tdnn_b, bn_sc, bn_sh, wc, cb, eps=1e-12):
    """Fused AttentiveStatisticsPooling (global_context=True) in (B, L, C) layout."""
    B, L, C = xs.shape
    A = wx.shape[1]
    spec_in = pl.BlockSpec((1, L, C), lambda b: (b, 0, 0))
    spec_out = pl.BlockSpec((1, 1, C), lambda b: (b, 0, 0))
    mean, std = pl.pallas_call(
        functools.partial(_asp_kernel, eps=eps),
        out_shape=(jax.ShapeDtypeStruct((B, 1, C), jnp.float32),
                   jax.ShapeDtypeStruct((B, 1, C), jnp.float32)),
        grid=(B,),
        in_specs=[spec_in,
                  pl.BlockSpec((C, A), lambda b: (0, 0)),
                  pl.BlockSpec((C, A), lambda b: (0, 0)),
                  pl.BlockSpec((C, A), lambda b: (0, 0)),
                  pl.BlockSpec((1, A), lambda b: (0, 0)),
                  pl.BlockSpec((1, A), lambda b: (0, 0)),
                  pl.BlockSpec((1, A), lambda b: (0, 0)),
                  pl.BlockSpec((A, C), lambda b: (0, 0)),
                  pl.BlockSpec((1, C), lambda b: (0, 0))],
        out_specs=(spec_out, spec_out),
        compiler_params=_cp("parallel"),
    )(xs, wx, wm, ws, tdnn_b.reshape(1, A), bn_sc.reshape(1, A), bn_sh.reshape(1, A),
      wc, cb.reshape(1, C))
    return mean, std


# ---------------------------------------------------------------------------
# Model config / parameters
# ---------------------------------------------------------------------------
class Cfg:
    def __init__(self, n_mels, d_model, heads, num_blocks, linear_units,
                 cnn_kernel, att_channels, emb_dim):
        self.n_mels = n_mels
        self.d_model = d_model
        self.heads = heads
        self.d_k = d_model // heads
        self.num_blocks = num_blocks
        self.linear_units = linear_units
        self.cnn_kernel = cnn_kernel
        self.att_channels = att_channels
        self.emb_dim = emb_dim
        self.freq_sub = (n_mels - 1) // 2 - 2      # freq dim after Conv2dSubsampling2


def init_params(key, cfg):
    keys = iter(jax.random.split(key, 512))
    nk = lambda: next(keys)
    # Linear / matmul weights are stored pre-transposed (K, N) and in bf16 for the MXU.
    Wb = lambda k_, n_: (0.05 * jax.random.normal(nk(), (k_, n_))).astype(jnp.bfloat16)
    Wf = lambda *s: (0.05 * jax.random.normal(nk(), s)).astype(jnp.float32)
    bvec = lambda n: (0.01 * jax.random.normal(nk(), (n,))).astype(jnp.float32)
    gamma = lambda n: (1.0 + 0.1 * jax.random.normal(nk(), (n,))).astype(jnp.float32)
    beta = lambda n: (0.1 * jax.random.normal(nk(), (n,))).astype(jnp.float32)

    d, lu, h, dkh = cfg.d_model, cfg.linear_units, cfg.heads, cfg.d_k
    p = {
        "sub_conv1_w": Wb(1 * 3 * 3, d), "sub_conv1_b": bvec(d),
        "sub_conv2_w": Wb(d * 3 * 3, d), "sub_conv2_b": bvec(d),
        "sub_out_w": Wb(d * cfg.freq_sub, d), "sub_out_b": bvec(d),
        "after_norm_g": gamma(d), "after_norm_b": beta(d),
        "tdnn_w": Wb(3 * d, cfg.att_channels), "tdnn_b": bvec(cfg.att_channels),
        "tdnn_bn_g": gamma(cfg.att_channels), "tdnn_bn_b": beta(cfg.att_channels),
        "pool_conv_w": Wb(cfg.att_channels, d), "pool_conv_b": bvec(d),
        "bn_g": gamma(2 * d), "bn_b": beta(2 * d),
        "fc_w": Wb(2 * d, cfg.emb_dim), "fc_b": bvec(cfg.emb_dim),
    }
    blocks = []
    for _ in range(cfg.num_blocks):
        blocks.append({
            "ln_ffm_g": gamma(d), "ln_ffm_b": beta(d),
            "ffm_w1": Wb(d, lu), "ffm_b1": bvec(lu),
            "ffm_w2": Wb(lu, d), "ffm_b2": bvec(d),
            "ln_mha_g": gamma(d), "ln_mha_b": beta(d),
            "attn_wqkv": Wb(d, 3 * d), "attn_bqkv": bvec(3 * d),   # fused Q|K|V projection
            "attn_wo": Wb(d, d), "attn_bo": bvec(d),
            "attn_wpos": Wb(d, d),                                  # linear_pos has no bias
            "pos_bias_u": Wf(h, dkh), "pos_bias_v": Wf(h, dkh),
            "ln_conv_g": gamma(d), "ln_conv_b": beta(d),
            "pw1_w": Wb(d, 2 * d), "pw1_b": bvec(2 * d),
            "dw_w": Wf(cfg.cnn_kernel, d), "dw_b": bvec(d),
            "cbn_g": gamma(d), "cbn_b": beta(d),
            "pw2_w": Wb(d, d), "pw2_b": bvec(d),
            "ln_ff_g": gamma(d), "ln_ff_b": beta(d),
            "ff_w1": Wb(d, lu), "ff_b1": bvec(lu),
            "ff_w2": Wb(lu, d), "ff_b2": bvec(d),
            "ln_final_g": gamma(d), "ln_final_b": beta(d),
        })
    p["blocks"] = blocks
    return p


def sinusoid_pe(length, d_model):
    pos = jnp.arange(length, dtype=jnp.float32)[:, None]
    div = jnp.exp(jnp.arange(0, d_model, 2, dtype=jnp.float32)
                  * (-math.log(10000.0) / d_model))
    pe = jnp.zeros((length, d_model), jnp.float32)
    pe = pe.at[:, 0::2].set(jnp.sin(pos * div))
    pe = pe.at[:, 1::2].set(jnp.cos(pos * div))
    return pe


# ---------------------------------------------------------------------------
# Forward pass (thin JAX glue around fused Pallas kernels)
# ---------------------------------------------------------------------------
def conformer_block(xs, pos_emb, p, cfg):
    B, T, C = xs.shape
    H = cfg.heads
    M = B * T
    x2 = xs.reshape(M, C)

    # ---- macaron feed-forward (fully fused: LN + W1 + Swish + W2 + 0.5*res) ----
    x2 = pallas_ff_module(x2, p["ln_ffm_g"], p["ln_ffm_b"],
                          p["ffm_w1"], p["ffm_b1"], p["ffm_w2"], p["ffm_b2"])

    # ---- relative-position MHSA: fused LN+QKV (bf16 out), fused attn+out-proj+res ----
    q, k, v = pallas_ln_linear(x2, p["ln_mha_g"], p["ln_mha_b"],
                               p["attn_wqkv"], p["attn_bqkv"], splits=(C, C, C),
                               out_dtype=jnp.bfloat16)
    pe = pallas_linear(pos_emb, p["attn_wpos"], jnp.zeros((C,), jnp.float32),
                       out_dtype=jnp.bfloat16)
    x2 = pallas_mhsa(q.reshape(B, T, C), k.reshape(B, T, C), v.reshape(B, T, C),
                     pe, p["pos_bias_u"], p["pos_bias_v"],
                     p["attn_wo"], p["attn_bo"], x2.reshape(B, T, C), H).reshape(M, C)

    # ---- convolution module (LN + pw1 + GLU fused; dwconv + BN + Swish + pw2 + res fused) ----
    y = pallas_ln_linear(x2, p["ln_conv_g"], p["ln_conv_b"],
                         p["pw1_w"], p["pw1_b"], glu=True, out_dtype=jnp.bfloat16)
    x2 = pallas_conv_module(y.reshape(B, T, C), p["dw_w"], p["dw_b"],
                            p["cbn_g"] / math.sqrt(1.0 + 1e-5), p["cbn_b"],
                            p["pw2_w"], p["pw2_b"], x2.reshape(B, T, C),
                            pad=(cfg.cnn_kernel - 1) // 2).reshape(M, C)

    # ---- feed-forward + final block LayerNorm (fused) ----
    x2 = pallas_ff_module(x2, p["ln_ff_g"], p["ln_ff_b"],
                          p["ff_w1"], p["ff_b1"], p["ff_w2"], p["ff_b2"],
                          final_ln=(p["ln_final_g"], p["ln_final_b"]))
    return x2.reshape(B, T, C)


def conformer_forward(feat, params, cfg):
    B = feat.shape[0]
    C = cfg.d_model
    x = jnp.squeeze(feat, 1)                  # (B, n_mels, T)
    x = jnp.transpose(x, (0, 2, 1))           # (B, T, n_mels) == feat.squeeze(1).permute(0,2,1)
    T, D = x.shape[1], x.shape[2]
    # lens = full length -> all masks valid; masking is a no-op throughout.

    # -------- Conv2dSubsampling2 (im2col + Pallas matmul; intermediates in bf16) --------
    T1 = (T - 3) // 2 + 1
    D1 = (D - 3) // 2 + 1
    cols = []
    for kh in range(3):
        for kw in range(3):
            cols.append(x[:, kh:kh + 2 * (T1 - 1) + 1:2, kw:kw + 2 * (D1 - 1) + 1:2])
    patches = jnp.stack(cols, axis=-1).reshape(B * T1 * D1, 9).astype(jnp.bfloat16)
    h = pallas_linear(patches, params["sub_conv1_w"], params["sub_conv1_b"], act="relu",
                      out_dtype=jnp.bfloat16)
    h = h.reshape(B, T1, D1, C)

    T2, D2 = T1 - 2, D1 - 2
    cols = []
    for kh in range(3):
        for kw in range(3):
            cols.append(h[:, kh:kh + T2, kw:kw + D2, :])
    patches = jnp.stack(cols, axis=-1).reshape(B * T2 * D2, C * 9)
    h = pallas_linear(patches, params["sub_conv2_w"], params["sub_conv2_b"], act="relu",
                      out_dtype=jnp.bfloat16)
    h = h.reshape(B, T2, D2, C)
    h = jnp.transpose(h, (0, 1, 3, 2)).reshape(B * T2, C * D2)          # (b, t, c*f) as PyTorch

    # Fold the RelPositionalEncoding x * sqrt(d_model) scale into the sub_out projection.
    xscale = math.sqrt(C)
    w_out = (params["sub_out_w"].astype(jnp.float32) * xscale).astype(jnp.bfloat16)
    b_out = params["sub_out_b"] * xscale
    xs = pallas_linear(h, w_out, b_out).reshape(B, T2, C)
    pos_emb = sinusoid_pe(T2, C)

    # -------- Conformer encoder blocks + after_norm --------
    for bp in params["blocks"]:
        xs = conformer_block(xs, pos_emb, bp, cfg)
    xs = pallas_layernorm(xs.reshape(B * T2, C),
                          params["after_norm_g"], params["after_norm_b"]).reshape(B, T2, C)

    # -------- AttentiveStatisticsPooling (global_context=True), fully fused per batch ----
    wx = params["tdnn_w"][:C]            # weight slab acting on x
    wm = params["tdnn_w"][C:2 * C]       # weight slab acting on global mean
    ws = params["tdnn_w"][2 * C:]        # weight slab acting on global std
    mean, std = pallas_asp(xs, wx, wm, ws, params["tdnn_b"],
                           params["tdnn_bn_g"] / math.sqrt(1.0 + 1e-5), params["tdnn_bn_b"],
                           params["pool_conv_w"], params["pool_conv_b"])
    pooled = jnp.concatenate([mean[:, 0, :], std[:, 0, :]], axis=-1)    # (B, 2C)

    # -------- BatchNorm1d(2C) (eval) folded into the final Linear --------
    s = params["bn_g"] / math.sqrt(1.0 + 1e-5)
    fc_w = (s[:, None] * params["fc_w"].astype(jnp.float32)).astype(jnp.bfloat16)
    fc_b = params["fc_b"] + params["bn_b"] @ params["fc_w"].astype(jnp.float32)
    out = pallas_linear(pooled, fc_w, fc_b)                             # (B, emb)
    return out


# ---------------------------------------------------------------------------
if __name__ == "__main__":
    cfg = Cfg(n_mels=16, d_model=32, heads=4, num_blocks=2, linear_units=64,
              cnn_kernel=15, att_channels=16, emb_dim=16)
    key = jax.random.PRNGKey(0)
    pkey, xkey = jax.random.split(key)
    params = init_params(pkey, cfg)

    B, T = 2, 32
    feat = jax.random.normal(xkey, (B, 1, cfg.n_mels, T), dtype=jnp.float32)

    fwd = jax.jit(lambda f: conformer_forward(f, params, cfg))
    out = fwd(feat)
    jax.block_until_ready(out)
    assert out.shape == (B, cfg.emb_dim) and out.dtype == jnp.float32
    assert bool(jnp.all(jnp.isfinite(out)))
    print("KERNEL_OK")
</pallas_src>

<mosaic_0001>
module attributes {stable_mosaic.version = 11 : i64} {
  func.func @_linear_kernel(%arg0: i32, %arg1: memref<210x9xbf16, #tpu.memory_space<vmem>>, %arg2: memref<9x32xbf16, #tpu.memory_space<vmem>>, %arg3: memref<1x32xf32, #tpu.memory_space<vmem>>, %arg4: memref<210x32xbf16, #tpu.memory_space<vmem>>) attributes {dimension_semantics = [#tpu.dimension_semantics<parallel>], iteration_bounds = array<i64: 1>, scalar_prefetch = 0 : i64, scratch_operands = 0 : i64, tpu.core_type = #tpu.core_type<tc>, window_params = [{transform_indices = @transform_0, window_bounds = array<i64: 210, 9>}, {pipeline_mode = #tpu.pipeline_mode<synchronous>, transform_indices = @transform_1, window_bounds = array<i64: 9, 32>}, {pipeline_mode = #tpu.pipeline_mode<synchronous>, transform_indices = @transform_2, window_bounds = array<i64: 1, 32>}, {transform_indices = @transform_3, window_bounds = array<i64: 210, 32>}]} {
    %c0 = arith.constant 0 : index
    %c0_0 = arith.constant 0 : index
    %0 = vector.load %arg1[%c0, %c0_0] : memref<210x9xbf16, #tpu.memory_space<vmem>>, vector<210x9xbf16>
    %c0_1 = arith.constant 0 : index
    %c0_2 = arith.constant 0 : index
    %1 = vector.load %arg2[%c0_1, %c0_2] : memref<9x32xbf16, #tpu.memory_space<vmem>>, vector<9x32xbf16>
    %cst = arith.constant dense<0.000000e+00> : vector<210x32xf32>
    %2 = tpu.matmul %0, %1, %cst {dimension_numbers = #tpu.dot_dimension_numbers<[1], [0], [0], [1], [0, 0, 1, 1], [], []>} : vector<210x9xbf16>, vector<9x32xbf16>, vector<210x32xf32> -> vector<210x32xf32>
    %c0_3 = arith.constant 0 : index
    %c0_4 = arith.constant 0 : index
    %3 = vector.load %arg3[%c0_3, %c0_4] : memref<1x32xf32, #tpu.memory_space<vmem>>, vector<1x32xf32>
    %4 = vector.broadcast %3 : vector<1x32xf32> to vector<210x32xf32>
    %5 = arith.addf %2, %4 : vector<210x32xf32>
    %cst_5 = arith.constant 0.000000e+00 : f32
    %6 = vector.broadcast %cst_5 : f32 to vector<210x32xf32>
    %7 = arith.maximumf %5, %6 : vector<210x32xf32>
    %8 = arith.truncf %7 : vector<210x32xf32> to vector<210x32xbf16>
    %c0_6 = arith.constant 0 : index
    %c0_7 = arith.constant 0 : index
    %9 = vector.load %arg4[%c0_6, %c0_7] : memref<210x32xbf16, #tpu.memory_space<vmem>>, vector<210x32xbf16>
    tpu.vector_store %arg4[%c0_6, %c0_7], %8 {strides = array<i32>} : memref<210x32xbf16, #tpu.memory_space<vmem>>, vector<210x32xbf16>,
    return
  }
  func.func @transform_0(%arg0: i32) -> (i32, i32) {
    %c0_i32 = arith.constant 0 : i32
    %c0_i32_0 = arith.constant 0 : i32
    return %arg0, %c0_i32 : i32, i32
  }
  func.func @transform_1(%arg0: i32) -> (i32, i32) {
    %c0_i32 = arith.constant 0 : i32
    %c0_i32_0 = arith.constant 0 : i32
    %c0_i32_1 = arith.constant 0 : i32
    return %c0_i32, %c0_i32_0 : i32, i32
  }
  func.func @transform_2(%arg0: i32) -> (i32, i32) {
    %c0_i32 = arith.constant 0 : i32
    %c0_i32_0 = arith.constant 0 : i32
    %c0_i32_1 = arith.constant 0 : i32
    return %c0_i32, %c0_i32_0 : i32, i32
  }
  func.func @transform_3(%arg0: i32) -> (i32, i32) {
    %c0_i32 = arith.constant 0 : i32
    %c0_i32_0 = arith.constant 0 : i32
    return %arg0, %c0_i32 : i32, i32
  }
}

module attributes {stable_mosaic.version = 11 : i64} {
  func.func @_linear_kernel(%arg0: i32, %arg1: memref<130x288xbf16, #tpu.memory_space<vmem>>, %arg2: memref<288x32xbf16, #tpu.memory_space<vmem>>, %arg3: memref<1x32xf32, #tpu.memory_space<vmem>>, %arg4: memref<130x32xbf16, #tpu.memory_space<vmem>>) attributes {dimension_semantics = [#tpu.dimension_semantics<parallel>], iteration_bounds = array<i64: 1>, scalar_prefetch = 0 : i64, scratch_operands = 0 : i64, tpu.core_type = #tpu.core_type<tc>, window_params = [{transform_indices = @transform_0, window_bounds = array<i64: 130, 288>}, {pipeline_mode = #tpu.pipeline_mode<synchronous>, transform_indices = @transform_1, window_bounds = array<i64: 288, 32>}, {pipeline_mode = #tpu.pipeline_mode<synchronous>, transform_indices = @transform_2, window_bounds = array<i64: 1, 32>}, {transform_indices = @transform_3, window_bounds = array<i64: 130, 32>}]} {
    %c0 = arith.constant 0 : index
    %c0_0 = arith.constant 0 : index
    %0 = vector.load %arg1[%c0, %c0_0] : memref<130x288xbf16, #tpu.memory_space<vmem>>, vector<130x288xbf16>
    %c0_1 = arith.constant 0 : index
    %c0_2 = arith.constant 0 : index
    %1 = vector.load %arg2[%c0_1, %c0_2] : memref<288x32xbf16, #tpu.memory_space<vmem>>, vector<288x32xbf16>
    %cst = arith.constant dense<0.000000e+00> : vector<130x32xf32>
    %2 = tpu.matmul %0, %1, %cst {dimension_numbers = #tpu.dot_dimension_numbers<[1], [0], [0], [1], [0, 0, 1, 1], [], []>} : vector<130x288xbf16>, vector<288x32xbf16>, vector<130x32xf32> -> vector<130x32xf32>
    %c0_3 = arith.constant 0 : index
    %c0_4 = arith.constant 0 : index
    %3 = vector.load %arg3[%c0_3, %c0_4] : memref<1x32xf32, #tpu.memory_space<vmem>>, vector<1x32xf32>
    %4 = vector.broadcast %3 : vector<1x32xf32> to vector<130x32xf32>
    %5 = arith.addf %2, %4 : vector<130x32xf32>
    %cst_5 = arith.constant 0.000000e+00 : f32
    %6 = vector.broadcast %cst_5 : f32 to vector<130x32xf32>
    %7 = arith.maximumf %5, %6 : vector<130x32xf32>
    %8 = arith.truncf %7 : vector<130x32xf32> to vector<130x32xbf16>
    %c0_6 = arith.constant 0 : index
    %c0_7 = arith.constant 0 : index
    %9 = vector.load %arg4[%c0_6, %c0_7] : memref<130x32xbf16, #tpu.memory_space<vmem>>, vector<130x32xbf16>
    tpu.vector_store %arg4[%c0_6, %c0_7], %8 {strides = array<i32>} : memref<130x32xbf16, #tpu.memory_space<vmem>>, vector<130x32xbf16>,
    return
  }
  func.func @transform_0(%arg0: i32) -> (i32, i32) {
    %c0_i32 = arith.constant 0 : i32
    %c0_i32_0 = arith.constant 0 : i32
    return %arg0, %c0_i32 : i32, i32
  }
  func.func @transform_1(%arg0: i32) -> (i32, i32) {
    %c0_i32 = arith.constant 0 : i32
    %c0_i32_0 = arith.constant 0 : i32
    %c0_i32_1 = arith.constant 0 : i32
    return %c0_i32, %c0_i32_0 : i32, i32
  }
  func.func @transform_2(%arg0: i32) -> (i32, i32) {
    %c0_i32 = arith.constant 0 : i32
    %c0_i32_0 = arith.constant 0 : i32
    %c0_i32_1 = arith.constant 0 : i32
    return %c0_i32, %c0_i32_0 : i32, i32
  }
  func.func @transform_3(%arg0: i32) -> (i32, i32) {
    %c0_i32 = arith.constant 0 : i32
    %c0_i32_0 = arith.constant 0 : i32
    return %arg0, %c0_i32 : i32, i32
  }
}

module attributes {stable_mosaic.version = 11 : i64} {
  func.func @_linear_kernel(%arg0: i32, %arg1: memref<26x160xbf16, #tpu.memory_space<vmem>>, %arg2: memref<160x32xbf16, #tpu.memory_space<vmem>>, %arg3: memref<1x32xf32, #tpu.memory_space<vmem>>, %arg4: memref<26x32xf32, #tpu.memory_space<vmem>>) attributes {dimension_semantics = [#tpu.dimension_semantics<parallel>], iteration_bounds = array<i64: 1>, scalar_prefetch = 0 : i64, scratch_operands = 0 : i64, tpu.core_type = #tpu.core_type<tc>, window_params = [{transform_indices = @transform_0, window_bounds = array<i64: 26, 160>}, {pipeline_mode = #tpu.pipeline_mode<synchronous>, transform_indices = @transform_1, window_bounds = array<i64: 160, 32>}, {pipeline_mode = #tpu.pipeline_mode<synchronous>, transform_indices = @transform_2, window_bounds = array<i64: 1, 32>}, {transform_indices = @transform_3, window_bounds = array<i64: 26, 32>}]} {
    %c0 = arith.constant 0 : index
    %c0_0 = arith.constant 0 : index
    %0 = vector.load %arg1[%c0, %c0_0] : memref<26x160xbf16, #tpu.memory_space<vmem>>, vector<26x160xbf16>
    %c0_1 = arith.constant 0 : index
    %c0_2 = arith.constant 0 : index
    %1 = vector.load %arg2[%c0_1, %c0_2] : memref<160x32xbf16, #tpu.memory_space<vmem>>, vector<160x32xbf16>
    %cst = arith.constant dense<0.000000e+00> : vector<26x32xf32>
    %2 = tpu.matmul %0, %1, %cst {dimension_numbers = #tpu.dot_dimension_numbers<[1], [0], [0], [1], [0, 0, 1, 1], [], []>} : vector<26x160xbf16>, vector<160x32xbf16>, vector<26x32xf32> -> vector<26x32xf32>
    %c0_3 = arith.constant 0 : index
    %c0_4 = arith.constant 0 : index
    %3 = vector.load %arg3[%c0_3, %c0_4] : memref<1x32xf32, #tpu.memory_space<vmem>>, vector<1x32xf32>
    %4 = vector.broadcast %3 : vector<1x32xf32> to vector<26x32xf32>
    %5 = arith.addf %2, %4 : vector<26x32xf32>
    %c0_5 = arith.constant 0 : index
    %c0_6 = arith.constant 0 : index
    %6 = vector.load %arg4[%c0_5, %c0_6] : memref<26x32xf32, #tpu.memory_space<vmem>>, vector<26x32xf32>
    tpu.vector_store %arg4[%c0_5, %c0_6], %5 {strides = array<i32>} : memref<26x32xf32, #tpu.memory_space<vmem>>, vector<26x32xf32>,
    return
  }
  func.func @transform_0(%arg0: i32) -> (i32, i32) {
    %c0_i32 = arith.constant 0 : i32
    %c0_i32_0 = arith.constant 0 : i32
    return %arg0, %c0_i32 : i32, i32
  }
  func.func @transform_1(%arg0: i32) -> (i32, i32) {
    %c0_i32 = arith.constant 0 : i32
    %c0_i32_0 = arith.constant 0 : i32
    %c0_i32_1 = arith.constant 0 : i32
    return %c0_i32, %c0_i32_0 : i32, i32
  }
  func.func @transform_2(%arg0: i32) -> (i32, i32) {
    %c0_i32 = arith.constant 0 : i32
    %c0_i32_0 = arith.constant 0 : i32
    %c0_i32_1 = arith.constant 0 : i32
    return %c0_i32, %c0_i32_0 : i32, i32
  }
  func.func @transform_3(%arg0: i32) -> (i32, i32) {
    %c0_i32 = arith.constant 0 : i32
    %c0_i32_0 = arith.constant 0 : i32
    return %arg0, %c0_i32 : i32, i32
  }
}

module attributes {stable_mosaic.version = 11 : i64} {
  func.func @_ff_module_kernel(%arg0: i32, %arg1: memref<26x32xf32, #tpu.memory_space<vmem>>, %arg2: memref<1x32xf32, #tpu.memory_space<vmem>>, %arg3: memref<1x32xf32, #tpu.memory_space<vmem>>, %arg4: memref<32x64xbf16, #tpu.memory_space<vmem>>, %arg5: memref<1x64xf32, #tpu.memory_space<vmem>>, %arg6: memref<64x32xbf16, #tpu.memory_space<vmem>>, %arg7: memref<1x32xf32, #tpu.memory_space<vmem>>, %arg8: memref<26x32xf32, #tpu.memory_space<vmem>>) attributes {dimension_semantics = [#tpu.dimension_semantics<parallel>], iteration_bounds = array<i64: 1>, scalar_prefetch = 0 : i64, scratch_operands = 0 : i64, tpu.core_type = #tpu.core_type<tc>, window_params = [{transform_indices = @transform_0, window_bounds = array<i64: 26, 32>}, {pipeline_mode = #tpu.pipeline_mode<synchronous>, transform_indices = @transform_1, window_bounds = array<i64: 1, 32>}, {pipeline_mode = #tpu.pipeline_mode<synchronous>, transform_indices = @transform_2, window_bounds = array<i64: 1, 32>}, {pipeline_mode = #tpu.pipeline_mode<synchronous>, transform_indices = @transform_3, window_bounds = array<i64: 32, 64>}, {pipeline_mode = #tpu.pipeline_mode<synchronous>, transform_indices = @transform_4, window_bounds = array<i64: 1, 64>}, {pipeline_mode = #tpu.pipeline_mode<synchronous>, transform_indices = @transform_5, window_bounds = array<i64: 64, 32>}, {pipeline_mode = #tpu.pipeline_mode<synchronous>, transform_indices = @transform_6, window_bounds = array<i64: 1, 32>}, {transform_indices = @transform_7, window_bounds = array<i64: 26, 32>}]} {
    %c0 = arith.constant 0 : index
    %c0_0 = arith.constant 0 : index
    %0 = vector.load %arg1[%c0, %c0_0] : memref<26x32xf32, #tpu.memory_space<vmem>>, vector<26x32xf32>
    %cst = arith.constant dense<0.000000e+00> : vector<26xf32>
    %1 = vector.multi_reduction <add>, %0, %cst [1] : vector<26x32xf32> to vector<26xf32>
    %2 = vector.shape_cast %1 : vector<26xf32> to vector<26x1xf32>
    %cst_1 = arith.constant 3.200000e+01 : f32
    %3 = vector.broadcast %cst_1 : f32 to vector<26x1xf32>
    %4 = arith.divf %2, %3 : vector<26x1xf32>
    %5 = vector.broadcast %4 : vector<26x1xf32> to vector<26x32xf32>
    %6 = arith.subf %0, %5 : vector<26x32xf32>
    %7 = arith.mulf %6, %6 : vector<26x32xf32>
    %cst_2 = arith.constant dense<0.000000e+00> : vector<26xf32>
    %8 = vector.multi_reduction <add>, %7, %cst_2 [1] : vector<26x32xf32> to vector<26xf32>
    %9 = vector.shape_cast %8 : vector<26xf32> to vector<26x1xf32>
    %cst_3 = arith.constant 3.200000e+01 : f32
    %10 = vector.broadcast %cst_3 : f32 to vector<26x1xf32>
    %11 = arith.divf %9, %10 : vector<26x1xf32>
    %cst_4 = arith.constant 9.99999974E-6 : f32
    %12 = vector.broadcast %cst_4 : f32 to vector<26x1xf32>
    %13 = arith.addf %11, %12 : vector<26x1xf32>
    %14 = math.rsqrt %13 : vector<26x1xf32>
    %15 = vector.broadcast %14 : vector<26x1xf32> to vector<26x32xf32>
    %16 = arith.mulf %6, %15 : vector<26x32xf32>
    %c0_5 = arith.constant 0 : index
    %c0_6 = arith.constant 0 : index
    %17 = vector.load %arg2[%c0_5, %c0_6] : memref<1x32xf32, #tpu.memory_space<vmem>>, vector<1x32xf32>
    %18 = vector.broadcast %17 : vector<1x32xf32> to vector<26x32xf32>
    %19 = arith.mulf %16, %18 : vector<26x32xf32>
    %c0_7 = arith.constant 0 : index
    %c0_8 = arith.constant 0 : index
    %20 = vector.load %arg3[%c0_7, %c0_8] : memref<1x32xf32, #tpu.memory_space<vmem>>, vector<1x32xf32>
    %21 = vector.broadcast %20 : vector<1x32xf32> to vector<26x32xf32>
    %22 = arith.addf %19, %21 : vector<26x32xf32>
    %23 = arith.truncf %22 : vector<26x32xf32> to vector<26x32xbf16>
    %c0_9 = arith.constant 0 : index
    %c0_10 = arith.constant 0 : index
    %24 = vector.load %arg4[%c0_9, %c0_10] : memref<32x64xbf16, #tpu.memory_space<vmem>>, vector<32x64xbf16>
    %cst_11 = arith.constant dense<0.000000e+00> : vector<26x64xf32>
    %25 = tpu.matmul %23, %24, %cst_11 {dimension_numbers = #tpu.dot_dimension_numbers<[1], [0], [0], [1], [0, 0, 1, 1], [], []>} : vector<26x32xbf16>, vector<32x64xbf16>, vector<26x64xf32> -> vector<26x64xf32>
    %c0_12 = arith.constant 0 : index
    %c0_13 = arith.constant 0 : index
    %26 = vector.load %arg5[%c0_12, %c0_13] : memref<1x64xf32, #tpu.memory_space<vmem>>, vector<1x64xf32>
    %27 = vector.broadcast %26 : vector<1x64xf32> to vector<26x64xf32>
    %28 = arith.addf %25, %27 : vector<26x64xf32>
    %cst_14 = arith.constant 0.000000e+00 : f32
    %29 = vector.broadcast %cst_14 : f32 to vector<26x64xf32>
    %30 = arith.subf %29, %28 : vector<26x64xf32>
    %31 = math.exp %30 : vector<26x64xf32>
    %cst_15 = arith.constant 1.000000e+00 : f32
    %32 = vector.broadcast %cst_15 : f32 to vector<26x64xf32>
    %33 = arith.addf %32, %31 : vector<26x64xf32>
    %cst_16 = arith.constant 1.000000e+00 : f32
    %34 = vector.broadcast %cst_16 : f32 to vector<26x64xf32>
    %35 = arith.divf %34, %33 : vector<26x64xf32>
    %36 = arith.mulf %28, %35 : vector<26x64xf32>
    %37 = arith.truncf %36 : vector<26x64xf32> to vector<26x64xbf16>
    %c0_17 = arith.constant 0 : index
    %c0_18 = arith.constant 0 : index
    %38 = vector.load %arg6[%c0_17, %c0_18] : memref<64x32xbf16, #tpu.memory_space<vmem>>, vector<64x32xbf16>
    %cst_19 = arith.constant dense<0.000000e+00> : vector<26x32xf32>
    %39 = tpu.matmul %37, %38, %cst_19 {dimension_numbers = #tpu.dot_dimension_numbers<[1], [0], [0], [1], [0, 0, 1, 1], [], []>} : vector<26x64xbf16>, vector<64x32xbf16>, vector<26x32xf32> -> vector<26x32xf32>
    %c0_20 = arith.constant 0 : index
    %c0_21 = arith.constant 0 : index
    %40 = vector.load %arg7[%c0_20, %c0_21] : memref<1x32xf32, #tpu.memory_space<vmem>>, vector<1x32xf32>
    %41 = vector.broadcast %40 : vector<1x32xf32> to vector<26x32xf32>
    %42 = arith.addf %39, %41 : vector<26x32xf32>
    %cst_22 = arith.constant 5.000000e-01 : f32
    %43 = vector.broadcast %cst_22 : f32 to vector<26x32xf32>
    %44 = arith.mulf %43, %42 : vector<26x32xf32>
    %45 = arith.addf %0, %44 : vector<26x32xf32>
    %c0_23 = arith.constant 0 : index
    %c0_24 = arith.constant 0 : index
    %46 = vector.load %arg8[%c0_23, %c0_24] : memref<26x32xf32, #tpu.memory_space<vmem>>, vector<26x32xf32>
    tpu.vector_store %arg8[%c0_23, %c0_24], %45 {strides = array<i32>} : memref<26x32xf32, #tpu.memory_space<vmem>>, vector<26x32xf32>,
    return
  }
  func.func @transform_0(%arg0: i32) -> (i32, i32) {
    %c0_i32 = arith.constant 0 : i32
    %c0_i32_0 = arith.constant 0 : i32
    return %arg0, %c0_i32 : i32, i32
  }
  func.func @transform_1(%arg0: i32) -> (i32, i32) {
    %c0_i32 = arith.constant 0 : i32
    %c0_i32_0 = arith.constant 0 : i32
    %c0_i32_1 = arith.constant 0 : i32
    return %c0_i32, %c0_i32_0 : i32, i32
  }
  func.func @transform_2(%arg0: i32) -> (i32, i32) {
    %c0_i32 = arith.constant 0 : i32
    %c0_i32_0 = arith.constant 0 : i32
    %c0_i32_1 = arith.constant 0 : i32
    return %c0_i32, %c0_i32_0 : i32, i32
  }
  func.func @transform_3(%arg0: i32) -> (i32, i32) {
    %c0_i32 = arith.constant 0 : i32
    %c0_i32_0 = arith.constant 0 : i32
    %c0_i32_1 = arith.constant 0 : i32
    return %c0_i32, %c0_i32_0 : i32, i32
  }
  func.func @transform_4(%arg0: i32) -> (i32, i32) {
    %c0_i32 = arith.constant 0 : i32
    %c0_i32_0 = arith.constant 0 : i32
    %c0_i32_1 = arith.constant 0 : i32
    return %c0_i32, %c0_i32_0 : i32, i32
  }
  func.func @transform_5(%arg0: i32) -> (i32, i32) {
    %c0_i32 = arith.constant 0 : i32
    %c0_i32_0 = arith.constant 0 : i32
    %c0_i32_1 = arith.constant 0 : i32
    return %c0_i32, %c0_i32_0 : i32, i32
  }
  func.func @transform_6(%arg0: i32) -> (i32, i32) {
    %c0_i32 = arith.constant 0 : i32
    %c0_i32_0 = arith.constant 0 : i32
    %c0_i32_1 = arith.constant 0 : i32
    return %c0_i32, %c0_i32_0 : i32, i32
  }
  func.func @transform_7(%arg0: i32) -> (i32, i32) {
    %c0_i32 = arith.constant 0 : i32
    %c0_i32_0 = arith.constant 0 : i32
    return %arg0, %c0_i32 : i32, i32
  }
}

module attributes {stable_mosaic.version = 11 : i64} {
  func.func @_ln_linear_kernel(%arg0: i32, %arg1: memref<26x32xf32, #tpu.memory_space<vmem>>, %arg2: memref<1x32xf32, #tpu.memory_space<vmem>>, %arg3: memref<1x32xf32, #tpu.memory_space<vmem>>, %arg4: memref<32x96xbf16, #tpu.memory_space<vmem>>, %arg5: memref<1x96xf32, #tpu.memory_space<vmem>>, %arg6: memref<26x32xbf16, #tpu.memory_space<vmem>>, %arg7: memref<26x32xbf16, #tpu.memory_space<vmem>>, %arg8: memref<26x32xbf16, #tpu.memory_space<vmem>>) attributes {dimension_semantics = [#tpu.dimension_semantics<parallel>], iteration_bounds = array<i64: 1>, scalar_prefetch = 0 : i64, scratch_operands = 0 : i64, tpu.core_type = #tpu.core_type<tc>, window_params = [{transform_indices = @transform_0, window_bounds = array<i64: 26, 32>}, {pipeline_mode = #tpu.pipeline_mode<synchronous>, transform_indices = @transform_1, window_bounds = array<i64: 1, 32>}, {pipeline_mode = #tpu.pipeline_mode<synchronous>, transform_indices = @transform_2, window_bounds = array<i64: 1, 32>}, {pipeline_mode = #tpu.pipeline_mode<synchronous>, transform_indices = @transform_3, window_bounds = array<i64: 32, 96>}, {pipeline_mode = #tpu.pipeline_mode<synchronous>, transform_indices = @transform_4, window_bounds = array<i64: 1, 96>}, {transform_indices = @transform_5, window_bounds = array<i64: 26, 32>}, {transform_indices = @transform_6, window_bounds = array<i64: 26, 32>}, {transform_indices = @transform_7, window_bounds = array<i64: 26, 32>}]} {
    %c0 = arith.constant 0 : index
    %c0_0 = arith.constant 0 : index
    %0 = vector.load %arg1[%c0, %c0_0] : memref<26x32xf32, #tpu.memory_space<vmem>>, vector<26x32xf32>
    %cst = arith.constant dense<0.000000e+00> : vector<26xf32>
    %1 = vector.multi_reduction <add>, %0, %cst [1] : vector<26x32xf32> to vector<26xf32>
    %2 = vector.shape_cast %1 : vector<26xf32> to vector<26x1xf32>
    %cst_1 = arith.constant 3.200000e+01 : f32
    %3 = vector.broadcast %cst_1 : f32 to vector<26x1xf32>
    %4 = arith.divf %2, %3 : vector<26x1xf32>
    %5 = vector.broadcast %4 : vector<26x1xf32> to vector<26x32xf32>
    %6 = arith.subf %0, %5 : vector<26x32xf32>
    %7 = arith.mulf %6, %6 : vector<26x32xf32>
    %cst_2 = arith.constant dense<0.000000e+00> : vector<26xf32>
    %8 = vector.multi_reduction <add>, %7, %cst_2 [1] : vector<26x32xf32> to vector<26xf32>
    %9 = vector.shape_cast %8 : vector<26xf32> to vector<26x1xf32>
    %cst_3 = arith.constant 3.200000e+01 : f32
    %10 = vector.broadcast %cst_3 : f32 to vector<26x1xf32>
    %11 = arith.divf %9, %10 : vector<26x1xf32>
    %cst_4 = arith.constant 9.99999974E-6 : f32
    %12 = vector.broadcast %cst_4 : f32 to vector<26x1xf32>
    %13 = arith.addf %11, %12 : vector<26x1xf32>
    %14 = math.rsqrt %13 : vector<26x1xf32>
    %15 = vector.broadcast %14 : vector<26x1xf32> to vector<26x32xf32>
    %16 = arith.mulf %6, %15 : vector<26x32xf32>
    %c0_5 = arith.constant 0 : index
    %c0_6 = arith.constant 0 : index
    %17 = vector.load %arg2[%c0_5, %c0_6] : memref<1x32xf32, #tpu.memory_space<vmem>>, vector<1x32xf32>
    %18 = vector.broadcast %17 : vector<1x32xf32> to vector<26x32xf32>
    %19 = arith.mulf %16, %18 : vector<26x32xf32>
    %c0_7 = arith.constant 0 : index
    %c0_8 = arith.constant 0 : index
    %20 = vector.load %arg3[%c0_7, %c0_8] : memref<1x32xf32, #tpu.memory_space<vmem>>, vector<1x32xf32>
    %21 = vector.broadcast %20 : vector<1x32xf32> to vector<26x32xf32>
    %22 = arith.addf %19, %21 : vector<26x32xf32>
    %23 = arith.truncf %22 : vector<26x32xf32> to vector<26x32xbf16>
    %c0_9 = arith.constant 0 : index
    %c0_10 = arith.constant 0 : index
    %24 = vector.load %arg4[%c0_9, %c0_10] : memref<32x96xbf16, #tpu.memory_space<vmem>>, vector<32x96xbf16>
    %cst_11 = arith.constant dense<0.000000e+00> : vector<26x96xf32>
    %25 = tpu.matmul %23, %24, %cst_11 {dimension_numbers = #tpu.dot_dimension_numbers<[1], [0], [0], [1], [0, 0, 1, 1], [], []>} : vector<26x32xbf16>, vector<32x96xbf16>, vector<26x96xf32> -> vector<26x96xf32>
    %c0_12 = arith.constant 0 : index
    %c0_13 = arith.constant 0 : index
    %26 = vector.load %arg5[%c0_12, %c0_13] : memref<1x96xf32, #tpu.memory_space<vmem>>, vector<1x96xf32>
    %27 = vector.broadcast %26 : vector<1x96xf32> to vector<26x96xf32>
    %28 = arith.addf %25, %27 : vector<26x96xf32>
    %29 = vector.extract_strided_slice %28 {offsets = [0, 0], sizes = [26, 32], strides = [1, 1]} : vector<26x96xf32> to vector<26x32xf32>
    %30 = arith.truncf %29 : vector<26x32xf32> to vector<26x32xbf16>
    %c0_14 = arith.constant 0 : index
    %c0_15 = arith.constant 0 : index
    %31 = vector.load %arg6[%c0_14, %c0_15] : memref<26x32xbf16, #tpu.memory_space<vmem>>, vector<26x32xbf16>
    tpu.vector_store %arg6[%c0_14, %c0_15], %30 {strides = array<i32>} : memref<26x32xbf16, #tpu.memory_space<vmem>>, vector<26x32xbf16>,
    %32 = vector.extract_strided_slice %28 {offsets = [0, 32], sizes = [26, 32], strides = [1, 1]} : vector<26x96xf32> to vector<26x32xf32>
    %33 = arith.truncf %32 : vector<26x32xf32> to vector<26x32xbf16>
    %c0_16 = arith.constant 0 : index
    %c0_17 = arith.constant 0 : index
    %34 = vector.load %arg7[%c0_16, %c0_17] : memref<26x32xbf16, #tpu.memory_space<vmem>>, vector<26x32xbf16>
    tpu.vector_store %arg7[%c0_16, %c0_17], %33 {strides = array<i32>} : memref<26x32xbf16, #tpu.memory_space<vmem>>, vector<26x32xbf16>,
    %35 = vector.extract_strided_slice %28 {offsets = [0, 64], sizes = [26, 32], strides = [1, 1]} : vector<26x96xf32> to vector<26x32xf32>
    %36 = arith.truncf %35 : vector<26x32xf32> to vector<26x32xbf16>
    %c0_18 = arith.constant 0 : index
    %c0_19 = arith.constant 0 : index
    %37 = vector.load %arg8[%c0_18, %c0_19] : memref<26x32xbf16, #tpu.memory_space<vmem>>, vector<26x32xbf16>
    tpu.vector_store %arg8[%c0_18, %c0_19], %36 {strides = array<i32>} : memref<26x32xbf16, #tpu.memory_space<vmem>>, vector<26x32xbf16>,
    return
  }
  func.func @transform_0(%arg0: i32) -> (i32, i32) {
    %c0_i32 = arith.constant 0 : i32
    %c0_i32_0 = arith.constant 0 : i32
    return %arg0, %c0_i32 : i32, i32
  }
  func.func @transform_1(%arg0: i32) -> (i32, i32) {
    %c0_i32 = arith.constant 0 : i32
    %c0_i32_0 = arith.constant 0 : i32
    %c0_i32_1 = arith.constant 0 : i32
    return %c0_i32, %c0_i32_0 : i32, i32
  }
  func.func @transform_2(%arg0: i32) -> (i32, i32) {
    %c0_i32 = arith.constant 0 : i32
    %c0_i32_0 = arith.constant 0 : i32
    %c0_i32_1 = arith.constant 0 : i32
    return %c0_i32, %c0_i32_0 : i32, i32
  }
  func.func @transform_3(%arg0: i32) -> (i32, i32) {
    %c0_i32 = arith.constant 0 : i32
    %c0_i32_0 = arith.constant 0 : i32
    %c0_i32_1 = arith.constant 0 : i32
    return %c0_i32, %c0_i32_0 : i32, i32
  }
  func.func @transform_4(%arg0: i32) -> (i32, i32) {
    %c0_i32 = arith.constant 0 : i32
    %c0_i32_0 = arith.constant 0 : i32
    %c0_i32_1 = arith.constant 0 : i32
    return %c0_i32, %c0_i32_0 : i32, i32
  }
  func.func @transform_5(%arg0: i32) -> (i32, i32) {
    %c0_i32 = arith.constant 0 : i32
    %c0_i32_0 = arith.constant 0 : i32
    return %arg0, %c0_i32 : i32, i32
  }
  func.func @transform_6(%arg0: i32) -> (i32, i32) {
    %c0_i32 = arith.constant 0 : i32
    %c0_i32_0 = arith.constant 0 : i32
    return %arg0, %c0_i32 : i32, i32
  }
  func.func @transform_7(%arg0: i32) -> (i32, i32) {
    %c0_i32 = arith.constant 0 : i32
    %c0_i32_0 = arith.constant 0 : i32
    return %arg0, %c0_i32 : i32, i32
  }
}

module attributes {stable_mosaic.version = 11 : i64} {
  func.func @_linear_kernel(%arg0: i32, %arg1: memref<13x32xf32, #tpu.memory_space<vmem>>, %arg2: memref<32x32xbf16, #tpu.memory_space<vmem>>, %arg3: memref<1x32xf32, #tpu.memory_space<vmem>>, %arg4: memref<13x32xbf16, #tpu.memory_space<vmem>>) attributes {dimension_semantics = [#tpu.dimension_semantics<parallel>], iteration_bounds = array<i64: 1>, scalar_prefetch = 0 : i64, scratch_operands = 0 : i64, tpu.core_type = #tpu.core_type<tc>, window_params = [{transform_indices = @transform_0, window_bounds = array<i64: 13, 32>}, {pipeline_mode = #tpu.pipeline_mode<synchronous>, transform_indices = @transform_1, window_bounds = array<i64: 32, 32>}, {pipeline_mode = #tpu.pipeline_mode<synchronous>, transform_indices = @transform_2, window_bounds = array<i64: 1, 32>}, {transform_indices = @transform_3, window_bounds = array<i64: 13, 32>}]} {
    %c0 = arith.constant 0 : index
    %c0_0 = arith.constant 0 : index
    %0 = vector.load %arg1[%c0, %c0_0] : memref<13x32xf32, #tpu.memory_space<vmem>>, vector<13x32xf32>
    %1 = arith.truncf %0 : vector<13x32xf32> to vector<13x32xbf16>
    %c0_1 = arith.constant 0 : index
    %c0_2 = arith.constant 0 : index
    %2 = vector.load %arg2[%c0_1, %c0_2] : memref<32x32xbf16, #tpu.memory_space<vmem>>, vector<32x32xbf16>
    %cst = arith.constant dense<0.000000e+00> : vector<13x32xf32>
    %3 = tpu.matmul %1, %2, %cst {dimension_numbers = #tpu.dot_dimension_numbers<[1], [0], [0], [1], [0, 0, 1, 1], [], []>} : vector<13x32xbf16>, vector<32x32xbf16>, vector<13x32xf32> -> vector<13x32xf32>
    %c0_3 = arith.constant 0 : index
    %c0_4 = arith.constant 0 : index
    %4 = vector.load %arg3[%c0_3, %c0_4] : memref<1x32xf32, #tpu.memory_space<vmem>>, vector<1x32xf32>
    %5 = vector.broadcast %4 : vector<1x32xf32> to vector<13x32xf32>
    %6 = arith.addf %3, %5 : vector<13x32xf32>
    %7 = arith.truncf %6 : vector<13x32xf32> to vector<13x32xbf16>
    %c0_5 = arith.constant 0 : index
    %c0_6 = arith.constant 0 : index
    %8 = vector.load %arg4[%c0_5, %c0_6] : memref<13x32xbf16, #tpu.memory_space<vmem>>, vector<13x32xbf16>
    tpu.vector_store %arg4[%c0_5, %c0_6], %7 {strides = array<i32>} : memref<13x32xbf16, #tpu.memory_space<vmem>>, vector<13x32xbf16>,
    return
  }
  func.func @transform_0(%arg0: i32) -> (i32, i32) {
    %c0_i32 = arith.constant 0 : i32
    %c0_i32_0 = arith.constant 0 : i32
    return %arg0, %c0_i32 : i32, i32
  }
  func.func @transform_1(%arg0: i32) -> (i32, i32) {
    %c0_i32 = arith.constant 0 : i32
    %c0_i32_0 = arith.constant 0 : i32
    %c0_i32_1 = arith.constant 0 : i32
    return %c0_i32, %c0_i32_0 : i32, i32
  }
  func.func @transform_2(%arg0: i32) -> (i32, i32) {
    %c0_i32 = arith.constant 0 : i32
    %c0_i32_0 = arith.constant 0 : i32
    %c0_i32_1 = arith.constant 0 : i32
    return %c0_i32, %c0_i32_0 : i32, i32
  }
  func.func @transform_3(%arg0: i32) -> (i32, i32) {
    %c0_i32 = arith.constant 0 : i32
    %c0_i32_0 = arith.constant 0 : i32
    return %arg0, %c0_i32 : i32, i32
  }
}

module attributes {stable_mosaic.version = 11 : i64} {
  func.func @_mhsa_kernel(%arg0: i32, %arg1: memref<1x13x32xbf16, #tpu.memory_space<vmem>>, %arg2: memref<1x13x32xbf16, #tpu.memory_space<vmem>>, %arg3: memref<1x13x32xbf16, #tpu.memory_space<vmem>>, %arg4: memref<13x32xbf16, #tpu.memory_space<vmem>>, %arg5: memref<1x32xf32, #tpu.memory_space<vmem>>, %arg6: memref<1x32xf32, #tpu.memory_space<vmem>>, %arg7: memref<32x32xbf16, #tpu.memory_space<vmem>>, %arg8: memref<1x32xf32, #tpu.memory_space<vmem>>, %arg9: memref<1x13x32xf32, #tpu.memory_space<vmem>>, %arg10: memref<1x13x32xf32, #tpu.memory_space<vmem>>) attributes {dimension_semantics = [#tpu.dimension_semantics<parallel>], iteration_bounds = array<i64: 2>, scalar_prefetch = 0 : i64, scratch_operands = 0 : i64, tpu.core_type = #tpu.core_type<tc>, window_params = [{transform_indices = @transform_0, window_bounds = array<i64: 1, 13, 32>}, {transform_indices = @transform_1, window_bounds = array<i64: 1, 13, 32>}, {transform_indices = @transform_2, window_bounds = array<i64: 1, 13, 32>}, {pipeline_mode = #tpu.pipeline_mode<synchronous>, transform_indices = @transform_3, window_bounds = array<i64: 13, 32>}, {pipeline_mode = #tpu.pipeline_mode<synchronous>, transform_indices = @transform_4, window_bounds = array<i64: 1, 32>}, {pipeline_mode = #tpu.pipeline_mode<synchronous>, transform_indices = @transform_5, window_bounds = array<i64: 1, 32>}, {pipeline_mode = #tpu.pipeline_mode<synchronous>, transform_indices = @transform_6, window_bounds = array<i64: 32, 32>}, {pipeline_mode = #tpu.pipeline_mode<synchronous>, transform_indices = @transform_7, window_bounds = array<i64: 1, 32>}, {transform_indices = @transform_8, window_bounds = array<i64: 1, 13, 32>}, {transform_indices = @transform_9, window_bounds = array<i64: 1, 13, 32>}]} {
    %c0 = arith.constant 0 : index
    %c0_0 = arith.constant 0 : index
    %c0_1 = arith.constant 0 : index
    %0 = vector.load %arg1[%c0, %c0_0, %c0_1] : memref<1x13x32xbf16, #tpu.memory_space<vmem>>, vector<1x13x32xbf16>
    %1 = vector.shape_cast %0 : vector<1x13x32xbf16> to vector<13x32xbf16>
    %2 = arith.extf %1 : vector<13x32xbf16> to vector<13x32xf32>
    %c0_2 = arith.constant 0 : index
    %c0_3 = arith.constant 0 : index
    %3 = vector.load %arg5[%c0_2, %c0_3] : memref<1x32xf32, #tpu.memory_space<vmem>>, vector<1x32xf32>
    %4 = vector.broadcast %3 : vector<1x32xf32> to vector<13x32xf32>
    %5 = arith.addf %2, %4 : vector<13x32xf32>
    %6 = arith.truncf %5 : vector<13x32xf32> to vector<13x32xbf16>
    %c0_4 = arith.constant 0 : index
    %c0_5 = arith.constant 0 : index
    %7 = vector.load %arg6[%c0_4, %c0_5] : memref<1x32xf32, #tpu.memory_space<vmem>>, vector<1x32xf32>
    %8 = vector.broadcast %7 : vector<1x32xf32> to vector<13x32xf32>
    %9 = arith.addf %2, %8 : vector<13x32xf32>
    %10 = arith.truncf %9 : vector<13x32xf32> to vector<13x32xbf16>
    %c0_6 = arith.constant 0 : index
    %c0_7 = arith.constant 0 : index
    %c0_8 = arith.constant 0 : index
    %11 = vector.load %arg2[%c0_6, %c0_7, %c0_8] : memref<1x13x32xbf16, #tpu.memory_space<vmem>>, vector<1x13x32xbf16>
    %12 = vector.shape_cast %11 : vector<1x13x32xbf16> to vector<13x32xbf16>
    %c0_9 = arith.constant 0 : index
    %c0_10 = arith.constant 0 : index
    %c0_11 = arith.constant 0 : index
    %13 = vector.load %arg3[%c0_9, %c0_10, %c0_11] : memref<1x13x32xbf16, #tpu.memory_space<vmem>>, vector<1x13x32xbf16>
    %14 = vector.shape_cast %13 : vector<1x13x32xbf16> to vector<13x32xbf16>
    %c0_12 = arith.constant 0 : index
    %c0_13 = arith.constant 0 : index
    %15 = vector.load %arg4[%c0_12, %c0_13] : memref<13x32xbf16, #tpu.memory_space<vmem>>, vector<13x32xbf16>
    %c0_14 = arith.constant 0 : index
    %c0_15 = arith.constant 0 : index
    %16 = vector.load %arg7[%c0_14, %c0_15] : memref<32x32xbf16, #tpu.memory_space<vmem>>, vector<32x32xbf16>
    %c0_16 = arith.constant 0 : index
    %c0_17 = arith.constant 0 : index
    %c0_18 = arith.constant 0 : index
    %17 = vector.load %arg9[%c0_16, %c0_17, %c0_18] : memref<1x13x32xf32, #tpu.memory_space<vmem>>, vector<1x13x32xf32>
    %18 = vector.shape_cast %17 : vector<1x13x32xf32> to vector<13x32xf32>
    %c0_19 = arith.constant 0 : index
    %c0_20 = arith.constant 0 : index
    %19 = vector.load %arg8[%c0_19, %c0_20] : memref<1x32xf32, #tpu.memory_space<vmem>>, vector<1x32xf32>
    %20 = vector.broadcast %19 : vector<1x32xf32> to vector<13x32xf32>
    %21 = arith.addf %18, %20 : vector<13x32xf32>
    %22 = vector.extract_strided_slice %6 {offsets = [0, 0], sizes = [13, 8], strides = [1, 1]} : vector<13x32xbf16> to vector<13x8xbf16>
    %23 = vector.extract_strided_slice %12 {offsets = [0, 0], sizes = [13, 8], strides = [1, 1]} : vector<13x32xbf16> to vector<13x8xbf16>
    %cst = arith.constant dense<0.000000e+00> : vector<13x13xf32>
    %24 = tpu.matmul %22, %23, %cst {dimension_numbers = #tpu.dot_dimension_numbers<[1], [1], [0], [0], [0, 0, 1, 0], [], []>} : vector<13x8xbf16>, vector<13x8xbf16>, vector<13x13xf32> -> vector<13x13xf32>
    %25 = vector.extract_strided_slice %10 {offsets = [0, 0], sizes = [13, 8], strides = [1, 1]} : vector<13x32xbf16> to vector<13x8xbf16>
    %26 = vector.extract_strided_slice %15 {offsets = [0, 0], sizes = [13, 8], strides = [1, 1]} : vector<13x32xbf16> to vector<13x8xbf16>
    %cst_21 = arith.constant dense<0.000000e+00> : vector<13x13xf32>
    %27 = tpu.matmul %25, %26, %cst_21 {dimension_numbers = #tpu.dot_dimension_numbers<[1], [1], [0], [0], [0, 0, 1, 0], [], []>} : vector<13x8xbf16>, vector<13x8xbf16>, vector<13x13xf32> -> vector<13x13xf32>
    %28 = arith.addf %24, %27 : vector<13x13xf32>
    %cst_22 = arith.constant 0.353553385 : f32
    %29 = vector.broadcast %cst_22 : f32 to vector<13x13xf32>
    %30 = arith.mulf %28, %29 : vector<13x13xf32>
    %cst_23 = arith.constant dense<0xFF800000> : vector<13xf32>
    %31 = vector.multi_reduction <maximumf>, %30, %cst_23 [1] : vector<13x13xf32> to vector<13xf32>
    %32 = vector.shape_cast %31 : vector<13xf32> to vector<13x1xf32>
    %33 = vector.broadcast %32 : vector<13x1xf32> to vector<13x13xf32>
    %34 = arith.subf %30, %33 : vector<13x13xf32>
    %35 = math.exp %34 : vector<13x13xf32>
    %cst_24 = arith.constant dense<0.000000e+00> : vector<13xf32>
    %36 = vector.multi_reduction <add>, %35, %cst_24 [1] : vector<13x13xf32> to vector<13xf32>
    %37 = vector.shape_cast %36 : vector<13xf32> to vector<13x1xf32>
    %38 = tpu.reciprocal %37 {approx = true} : vector<13x1xf32> -> vector<13x1xf32>
    %39 = vector.broadcast %38 : vector<13x1xf32> to vector<13x13xf32>
    %40 = arith.mulf %35, %39 : vector<13x13xf32>
    %41 = arith.truncf %40 : vector<13x13xf32> to vector<13x13xbf16>
    %42 = vector.extract_strided_slice %14 {offsets = [0, 0], sizes = [13, 8], strides = [1, 1]} : vector<13x32xbf16> to vector<13x8xbf16>
    %cst_25 = arith.constant dense<0.000000e+00> : vector<13x8xf32>
    %43 = tpu.matmul %41, %42, %cst_25 {dimension_numbers = #tpu.dot_dimension_numbers<[1], [0], [0], [1], [0, 0, 1, 1], [], []>} : vector<13x13xbf16>, vector<13x8xbf16>, vector<13x8xf32> -> vector<13x8xf32>
    %44 = arith.truncf %43 : vector<13x8xf32> to vector<13x8xbf16>
    %45 = vector.extract_strided_slice %16 {offsets = [0, 0], sizes = [8, 32], strides = [1, 1]} : vector<32x32xbf16> to vector<8x32xbf16>
    %cst_26 = arith.constant dense<0.000000e+00> : vector<13x32xf32>
    %46 = tpu.matmul %44, %45, %cst_26 {dimension_numbers = #tpu.dot_dimension_numbers<[1], [0], [0], [1], [0, 0, 1, 1], [], []>} : vector<13x8xbf16>, vector<8x32xbf16>, vector<13x32xf32> -> vector<13x32xf32>
    %47 = arith.addf %21, %46 : vector<13x32xf32>
    %48 = vector.extract_strided_slice %6 {offsets = [0, 8], sizes = [13, 8], strides = [1, 1]} : vector<13x32xbf16> to vector<13x8xbf16>
    %49 = vector.extract_strided_slice %12 {offsets = [0, 8], sizes = [13, 8], strides = [1, 1]} : vector<13x32xbf16> to vector<13x8xbf16>
    %cst_27 = arith.constant dense<0.000000e+00> : vector<13x13xf32>
    %50 = tpu.matmul %48, %49, %cst_27 {dimension_numbers = #tpu.dot_dimension_numbers<[1], [1], [0], [0], [0, 0, 1, 0], [], []>} : vector<13x8xbf16>, vector<13x8xbf16>, vector<13x13xf32> -> vector<13x13xf32>
    %51 = vector.extract_strided_slice %10 {offsets = [0, 8], sizes = [13, 8], strides = [1, 1]} : vector<13x32xbf16> to vector<13x8xbf16>
    %52 = vector.extract_strided_slice %15 {offsets = [0, 8], sizes = [13, 8], strides = [1, 1]} : vector<13x32xbf16> to vector<13x8xbf16>
    %cst_28 = arith.constant dense<0.000000e+00> : vector<13x13xf32>
    %53 = tpu.matmul %51, %52, %cst_28 {dimension_numbers = #tpu.dot_dimension_numbers<[1], [1], [0], [0], [0, 0, 1, 0], [], []>} : vector<13x8xbf16>, vector<13x8xbf16>, vector<13x13xf32> -> vector<13x13xf32>
    %54 = arith.addf %50, %53 : vector<13x13xf32>
    %cst_29 = arith.constant 0.353553385 : f32
    %55 = vector.broadcast %cst_29 : f32 to vector<13x13xf32>
    %56 = arith.mulf %54, %55 : vector<13x13xf32>
    %cst_30 = arith.constant dense<0xFF800000> : vector<13xf32>
    %57 = vector.multi_reduction <maximumf>, %56, %cst_30 [1] : vector<13x13xf32> to vector<13xf32>
    %58 = vector.shape_cast %57 : vector<13xf32> to vector<13x1xf32>
    %59 = vector.broadcast %58 : vector<13x1xf32> to vector<13x13xf32>
    %60 = arith.subf %56, %59 : vector<13x13xf32>
    %61 = math.exp %60 : vector<13x13xf32>
    %cst_31 = arith.constant dense<0.000000e+00> : vector<13xf32>
    %62 = vector.multi_reduction <add>, %61, %cst_31 [1] : vector<13x13xf32> to vector<13xf32>
    %63 = vector.shape_cast %62 : vector<13xf32> to vector<13x1xf32>
    %64 = tpu.reciprocal %63 {approx = true} : vector<13x1xf32> -> vector<13x1xf32>
    %65 = vector.broadcast %64 : vector<13x1xf32> to vector<13x13xf32>
    %66 = arith.mulf %61, %65 : vector<13x13xf32>
    %67 = arith.truncf %66 : vector<13x13xf32> to vector<13x13xbf16>
    %68 = vector.extract_strided_slice %14 {offsets = [0, 8], sizes = [13, 8], strides = [1, 1]} : vector<13x32xbf16> to vector<13x8xbf16>
    %cst_32 = arith.constant dense<0.000000e+00> : vector<13x8xf32>
    %69 = tpu.matmul %67, %68, %cst_32 {dimension_numbers = #tpu.dot_dimension_numbers<[1], [0], [0], [1], [0, 0, 1, 1], [], []>} : vector<13x13xbf16>, vector<13x8xbf16>, vector<13x8xf32> -> vector<13x8xf32>
    %70 = arith.truncf %69 : vector<13x8xf32> to vector<13x8xbf16>
    %71 = vector.extract_strided_slice %16 {offsets = [8, 0], sizes = [8, 32], strides = [1, 1]} : vector<32x32xbf16> to vector<8x32xbf16>
    %cst_33 = arith.constant dense<0.000000e+00> : vector<13x32xf32>
    %72 = tpu.matmul %70, %71, %cst_33 {dimension_numbers = #tpu.dot_dimension_numbers<[1], [0], [0], [1], [0, 0, 1, 1], [], []>} : vector<13x8xbf16>, vector<8x32xbf16>, vector<13x32xf32> -> vector<13x32xf32>
    %73 = arith.addf %47, %72 : vector<13x32xf32>
    %74 = vector.extract_strided_slice %6 {offsets = [0, 16], sizes = [13, 8], strides = [1, 1]} : vector<13x32xbf16> to vector<13x8xbf16>
    %75 = vector.extract_strided_slice %12 {offsets = [0, 16], sizes = [13, 8], strides = [1, 1]} : vector<13x32xbf16> to vector<13x8xbf16>
    %cst_34 = arith.constant dense<0.000000e+00> : vector<13x13xf32>
    %76 = tpu.matmul %74, %75, %cst_34 {dimension_numbers = #tpu.dot_dimension_numbers<[1], [1], [0], [0], [0, 0, 1, 0], [], []>} : vector<13x8xbf16>, vector<13x8xbf16>, vector<13x13xf32> -> vector<13x13xf32>
    %77 = vector.extract_strided_slice %10 {offsets = [0, 16], sizes = [13, 8], strides = [1, 1]} : vector<13x32xbf16> to vector<13x8xbf16>
    %78 = vector.extract_strided_slice %15 {offsets = [0, 16], sizes = [13, 8], strides = [1, 1]} : vector<13x32xbf16> to vector<13x8xbf16>
    %cst_35 = arith.constant dense<0.000000e+00> : vector<13x13xf32>
    %79 = tpu.matmul %77, %78, %cst_35 {dimension_numbers = #tpu.dot_dimension_numbers<[1], [1], [0], [0], [0, 0, 1, 0], [], []>} : vector<13x8xbf16>, vector<13x8xbf16>, vector<13x13xf32> -> vector<13x13xf32>
    %80 = arith.addf %76, %79 : vector<13x13xf32>
    %cst_36 = arith.constant 0.353553385 : f32
    %81 = vector.broadcast %cst_36 : f32 to vector<13x13xf32>
    %82 = arith.mulf %80, %81 : vector<13x13xf32>
    %cst_37 = arith.constant dense<0xFF800000> : vector<13xf32>
    %83 = vector.multi_reduction <maximumf>, %82, %cst_37 [1] : vector<13x13xf32> to vector<13xf32>
    %84 = vector.shape_cast %83 : vector<13xf32> to vector<13x1xf32>
    %85 = vector.broadcast %84 : vector<13x1xf32> to vector<13x13xf32>
    %86 = arith.subf %82, %85 : vector<13x13xf32>
    %87 = math.exp %86 : vector<13x13xf32>
    %cst_38 = arith.constant dense<0.000000e+00> : vector<13xf32>
    %88 = vector.multi_reduction <add>, %87, %cst_38 [1] : vector<13x13xf32> to vector<13xf32>
    %89 = vector.shape_cast %88 : vector<13xf32> to vector<13x1xf32>
    %90 = tpu.reciprocal %89 {approx = true} : vector<13x1xf32> -> vector<13x1xf32>
    %91 = vector.broadcast %90 : vector<13x1xf32> to vector<13x13xf32>
    %92 = arith.mulf %87, %91 : vector<13x13xf32>
    %93 = arith.truncf %92 : vector<13x13xf32> to vector<13x13xbf16>
    %94 = vector.extract_strided_slice %14 {offsets = [0, 16], sizes = [13, 8], strides = [1, 1]} : vector<13x32xbf16> to vector<13x8xbf16>
    %cst_39 = arith.constant dense<0.000000e+00> : vector<13x8xf32>
    %95 = tpu.matmul %93, %94, %cst_39 {dimension_numbers = #tpu.dot_dimension_numbers<[1], [0], [0], [1], [0, 0, 1, 1], [], []>} : vector<13x13xbf16>, vector<13x8xbf16>, vector<13x8xf32> -> vector<13x8xf32>
    %96 = arith.truncf %95 : vector<13x8xf32> to vector<13x8xbf16>
    %97 = vector.extract_strided_slice %16 {offsets = [16, 0], sizes = [8, 32], strides = [1, 1]} : vector<32x32xbf16> to vector<8x32xbf16>
    %cst_40 = arith.constant dense<0.000000e+00> : vector<13x32xf32>
    %98 = tpu.matmul %96, %97, %cst_40 {dimension_numbers = #tpu.dot_dimension_numbers<[1], [0], [0], [1], [0, 0, 1, 1], [], []>} : vector<13x8xbf16>, vector<8x32xbf16>, vector<13x32xf32> -> vector<13x32xf32>
    %99 = arith.addf %73, %98 : vector<13x32xf32>
    %100 = vector.extract_strided_slice %6 {offsets = [0, 24], sizes = [13, 8], strides = [1, 1]} : vector<13x32xbf16> to vector<13x8xbf16>
    %101 = vector.extract_strided_slice %12 {offsets = [0, 24], sizes = [13, 8], strides = [1, 1]} : vector<13x32xbf16> to vector<13x8xbf16>
    %cst_41 = arith.constant dense<0.000000e+00> : vector<13x13xf32>
    %102 = tpu.matmul %100, %101, %cst_41 {dimension_numbers = #tpu.dot_dimension_numbers<[1], [1], [0], [0], [0, 0, 1, 0], [], []>} : vector<13x8xbf16>, vector<13x8xbf16>, vector<13x13xf32> -> vector<13x13xf32>
    %103 = vector.extract_strided_slice %10 {offsets = [0, 24], sizes = [13, 8], strides = [1, 1]} : vector<13x32xbf16> to vector<13x8xbf16>
    %104 = vector.extract_strided_slice %15 {offsets = [0, 24], sizes = [13, 8], strides = [1, 1]} : vector<13x32xbf16> to vector<13x8xbf16>
    %cst_42 = arith.constant dense<0.000000e+00> : vector<13x13xf32>
    %105 = tpu.matmul %103, %104, %cst_42 {dimension_numbers = #tpu.dot_dimension_numbers<[1], [1], [0], [0], [0, 0, 1, 0], [], []>} : vector<13x8xbf16>, vector<13x8xbf16>, vector<13x13xf32> -> vector<13x13xf32>
    %106 = arith.addf %102, %105 : vector<13x13xf32>
    %cst_43 = arith.constant 0.353553385 : f32
    %107 = vector.broadcast %cst_43 : f32 to vector<13x13xf32>
    %108 = arith.mulf %106, %107 : vector<13x13xf32>
    %cst_44 = arith.constant dense<0xFF800000> : vector<13xf32>
    %109 = vector.multi_reduction <maximumf>, %108, %cst_44 [1] : vector<13x13xf32> to vector<13xf32>
    %110 = vector.shape_cast %109 : vector<13xf32> to vector<13x1xf32>
    %111 = vector.broadcast %110 : vector<13x1xf32> to vector<13x13xf32>
    %112 = arith.subf %108, %111 : vector<13x13xf32>
    %113 = math.exp %112 : vector<13x13xf32>
    %cst_45 = arith.constant dense<0.000000e+00> : vector<13xf32>
    %114 = vector.multi_reduction <add>, %113, %cst_45 [1] : vector<13x13xf32> to vector<13xf32>
    %115 = vector.shape_cast %114 : vector<13xf32> to vector<13x1xf32>
    %116 = tpu.reciprocal %115 {approx = true} : vector<13x1xf32> -> vector<13x1xf32>
    %117 = vector.broadcast %116 : vector<13x1xf32> to vector<13x13xf32>
    %118 = arith.mulf %113, %117 : vector<13x13xf32>
    %119 = arith.truncf %118 : vector<13x13xf32> to vector<13x13xbf16>
    %120 = vector.extract_strided_slice %14 {offsets = [0, 24], sizes = [13, 8], strides = [1, 1]} : vector<13x32xbf16> to vector<13x8xbf16>
    %cst_46 = arith.constant dense<0.000000e+00> : vector<13x8xf32>
    %121 = tpu.matmul %119, %120, %cst_46 {dimension_numbers = #tpu.dot_dimension_numbers<[1], [0], [0], [1], [0, 0, 1, 1], [], []>} : vector<13x13xbf16>, vector<13x8xbf16>, vector<13x8xf32> -> vector<13x8xf32>
    %122 = arith.truncf %121 : vector<13x8xf32> to vector<13x8xbf16>
    %123 = vector.extract_strided_slice %16 {offsets = [24, 0], sizes = [8, 32], strides = [1, 1]} : vector<32x32xbf16> to vector<8x32xbf16>
    %cst_47 = arith.constant dense<0.000000e+00> : vector<13x32xf32>
    %124 = tpu.matmul %122, %123, %cst_47 {dimension_numbers = #tpu.dot_dimension_numbers<[1], [0], [0], [1], [0, 0, 1, 1], [], []>} : vector<13x8xbf16>, vector<8x32xbf16>, vector<13x32xf32> -> vector<13x32xf32>
    %125 = arith.addf %99, %124 : vector<13x32xf32>
    %126 = vector.shape_cast %125 : vector<13x32xf32> to vector<1x13x32xf32>
    %c0_48 = arith.constant 0 : index
    %c0_49 = arith.constant 0 : index
    %c0_50 = arith.constant 0 : index
    %127 = vector.load %arg10[%c0_48, %c0_49, %c0_50] : memref<1x13x32xf32, #tpu.memory_space<vmem>>, vector<1x13x32xf32>
    tpu.vector_store %arg10[%c0_48, %c0_49, %c0_50], %126 {strides = array<i32>} : memref<1x13x32xf32, #tpu.memory_space<vmem>>, vector<1x13x32xf32>,
    return
  }
  func.func @transform_0(%arg0: i32) -> (i32, i32, i32) {
    %c0_i32 = arith.constant 0 : i32
    %c0_i32_0 = arith.constant 0 : i32
    %c0_i32_1 = arith.constant 0 : i32
    return %arg0, %c0_i32, %c0_i32_0 : i32, i32, i32
  }
  func.func @transform_1(%arg0: i32) -> (i32, i32, i32) {
    %c0_i32 = arith.constant 0 : i32
    %c0_i32_0 = arith.constant 0 : i32
    %c0_i32_1 = arith.constant 0 : i32
    return %arg0, %c0_i32, %c0_i32_0 : i32, i32, i32
  }
  func.func @transform_2(%arg0: i32) -> (i32, i32, i32) {
    %c0_i32 = arith.constant 0 : i32
    %c0_i32_0 = arith.constant 0 : i32
    %c0_i32_1 = arith.constant 0 : i32
    return %arg0, %c0_i32, %c0_i32_0 : i32, i32, i32
  }
  func.func @transform_3(%arg0: i32) -> (i32, i32) {
    %c0_i32 = arith.constant 0 : i32
    %c0_i32_0 = arith.constant 0 : i32
    %c0_i32_1 = arith.constant 0 : i32
    return %c0_i32, %c0_i32_0 : i32, i32
  }
  func.func @transform_4(%arg0: i32) -> (i32, i32) {
    %c0_i32 = arith.constant 0 : i32
    %c0_i32_0 = arith.constant 0 : i32
    %c0_i32_1 = arith.constant 0 : i32
    return %c0_i32, %c0_i32_0 : i32, i32
  }
  func.func @transform_5(%arg0: i32) -> (i32, i32) {
    %c0_i32 = arith.constant 0 : i32
    %c0_i32_0 = arith.constant 0 : i32
    %c0_i32_1 = arith.constant 0 : i32
    return %c0_i32, %c0_i32_0 : i32, i32
  }
  func.func @transform_6(%arg0: i32) -> (i32, i32) {
    %c0_i32 = arith.constant 0 : i32
    %c0_i32_0 = arith.constant 0 : i32
    %c0_i32_1 = arith.constant 0 : i32
    return %c0_i32, %c0_i32_0 : i32, i32
  }
  func.func @transform_7(%arg0: i32) -> (i32, i32) {
    %c0_i32 = arith.constant 0 : i32
    %c0_i32_0 = arith.constant 0 : i32
    %c0_i32_1 = arith.constant 0 : i32
    return %c0_i32, %c0_i32_0 : i32, i32
  }
  func.func @transform_8(%arg0: i32) -> (i32, i32, i32) {
    %c0_i32 = arith.constant 0 : i32
    %c0_i32_0 = arith.constant 0 : i32
    %c0_i32_1 = arith.constant 0 : i32
    return %arg0, %c0_i32, %c0_i32_0 : i32, i32, i32
  }
  func.func @transform_9(%arg0: i32) -> (i32, i32, i32) {
    %c0_i32 = arith.constant 0 : i32
    %c0_i32_0 = arith.constant 0 : i32
    %c0_i32_1 = arith.constant 0 : i32
    return %arg0, %c0_i32, %c0_i32_0 : i32, i32, i32
  }
}

module attributes {stable_mosaic.version = 11 : i64} {
  func.func @_ln_linear_kernel(%arg0: i32, %arg1: memref<26x32xf32, #tpu.memory_space<vmem>>, %arg2: memref<1x32xf32, #tpu.memory_space<vmem>>, %arg3: memref<1x32xf32, #tpu.memory_space<vmem>>, %arg4: memref<32x64xbf16, #tpu.memory_space<vmem>>, %arg5: memref<1x64xf32, #tpu.memory_space<vmem>>, %arg6: memref<26x32xbf16, #tpu.memory_space<vmem>>) attributes {dimension_semantics = [#tpu.dimension_semantics<parallel>], iteration_bounds = array<i64: 1>, scalar_prefetch = 0 : i64, scratch_operands = 0 : i64, tpu.core_type = #tpu.core_type<tc>, window_params = [{transform_indices = @transform_0, window_bounds = array<i64: 26, 32>}, {pipeline_mode = #tpu.pipeline_mode<synchronous>, transform_indices = @transform_1, window_bounds = array<i64: 1, 32>}, {pipeline_mode = #tpu.pipeline_mode<synchronous>, transform_indices = @transform_2, window_bounds = array<i64: 1, 32>}, {pipeline_mode = #tpu.pipeline_mode<synchronous>, transform_indices = @transform_3, window_bounds = array<i64: 32, 64>}, {pipeline_mode = #tpu.pipeline_mode<synchronous>, transform_indices = @transform_4, window_bounds = array<i64: 1, 64>}, {transform_indices = @transform_5, window_bounds = array<i64: 26, 32>}]} {
    %c0 = arith.constant 0 : index
    %c0_0 = arith.constant 0 : index
    %0 = vector.load %arg1[%c0, %c0_0] : memref<26x32xf32, #tpu.memory_space<vmem>>, vector<26x32xf32>
    %cst = arith.constant dense<0.000000e+00> : vector<26xf32>
    %1 = vector.multi_reduction <add>, %0, %cst [1] : vector<26x32xf32> to vector<26xf32>
    %2 = vector.shape_cast %1 : vector<26xf32> to vector<26x1xf32>
    %cst_1 = arith.constant 3.200000e+01 : f32
    %3 = vector.broadcast %cst_1 : f32 to vector<26x1xf32>
    %4 = arith.divf %2, %3 : vector<26x1xf32>
    %5 = vector.broadcast %4 : vector<26x1xf32> to vector<26x32xf32>
    %6 = arith.subf %0, %5 : vector<26x32xf32>
    %7 = arith.mulf %6, %6 : vector<26x32xf32>
    %cst_2 = arith.constant dense<0.000000e+00> : vector<26xf32>
    %8 = vector.multi_reduction <add>, %7, %cst_2 [1] : vector<26x32xf32> to vector<26xf32>
    %9 = vector.shape_cast %8 : vector<26xf32> to vector<26x1xf32>
    %cst_3 = arith.constant 3.200000e+01 : f32
    %10 = vector.broadcast %cst_3 : f32 to vector<26x1xf32>
    %11 = arith.divf %9, %10 : vector<26x1xf32>
    %cst_4 = arith.constant 9.99999974E-6 : f32
    %12 = vector.broadcast %cst_4 : f32 to vector<26x1xf32>
    %13 = arith.addf %11, %12 : vector<26x1xf32>
    %14 = math.rsqrt %13 : vector<26x1xf32>
    %15 = vector.broadcast %14 : vector<26x1xf32> to vector<26x32xf32>
    %16 = arith.mulf %6, %15 : vector<26x32xf32>
    %c0_5 = arith.constant 0 : index
    %c0_6 = arith.constant 0 : index
    %17 = vector.load %arg2[%c0_5, %c0_6] : memref<1x32xf32, #tpu.memory_space<vmem>>, vector<1x32xf32>
    %18 = vector.broadcast %17 : vector<1x32xf32> to vector<26x32xf32>
    %19 = arith.mulf %16, %18 : vector<26x32xf32>
    %c0_7 = arith.constant 0 : index
    %c0_8 = arith.constant 0 : index
    %20 = vector.load %arg3[%c0_7, %c0_8] : memref<1x32xf32, #tpu.memory_space<vmem>>, vector<1x32xf32>
    %21 = vector.broadcast %20 : vector<1x32xf32> to vector<26x32xf32>
    %22 = arith.addf %19, %21 : vector<26x32xf32>
    %23 = arith.truncf %22 : vector<26x32xf32> to vector<26x32xbf16>
    %c0_9 = arith.constant 0 : index
    %c0_10 = arith.constant 0 : index
    %24 = vector.load %arg4[%c0_9, %c0_10] : memref<32x64xbf16, #tpu.memory_space<vmem>>, vector<32x64xbf16>
    %cst_11 = arith.constant dense<0.000000e+00> : vector<26x64xf32>
    %25 = tpu.matmul %23, %24, %cst_11 {dimension_numbers = #tpu.dot_dimension_numbers<[1], [0], [0], [1], [0, 0, 1, 1], [], []>} : vector<26x32xbf16>, vector<32x64xbf16>, vector<26x64xf32> -> vector<26x64xf32>
    %c0_12 = arith.constant 0 : index
    %c0_13 = arith.constant 0 : index
    %26 = vector.load %arg5[%c0_12, %c0_13] : memref<1x64xf32, #tpu.memory_space<vmem>>, vector<1x64xf32>
    %27 = vector.broadcast %26 : vector<1x64xf32> to vector<26x64xf32>
    %28 = arith.addf %25, %27 : vector<26x64xf32>
    %29 = vector.extract_strided_slice %28 {offsets = [0, 0], sizes = [26, 32], strides = [1, 1]} : vector<26x64xf32> to vector<26x32xf32>
    %30 = vector.extract_strided_slice %28 {offsets = [0, 32], sizes = [26, 32], strides = [1, 1]} : vector<26x64xf32> to vector<26x32xf32>
    %cst_14 = arith.constant 0.000000e+00 : f32
    %31 = vector.broadcast %cst_14 : f32 to vector<26x32xf32>
    %32 = arith.subf %31, %30 : vector<26x32xf32>
    %33 = math.exp %32 : vector<26x32xf32>
    %cst_15 = arith.constant 1.000000e+00 : f32
    %34 = vector.broadcast %cst_15 : f32 to vector<26x32xf32>
    %35 = arith.addf %34, %33 : vector<26x32xf32>
    %cst_16 = arith.constant 1.000000e+00 : f32
    %36 = vector.broadcast %cst_16 : f32 to vector<26x32xf32>
    %37 = arith.divf %36, %35 : vector<26x32xf32>
    %38 = arith.mulf %29, %37 : vector<26x32xf32>
    %39 = arith.truncf %38 : vector<26x32xf32> to vector<26x32xbf16>
    %c0_17 = arith.constant 0 : index
    %c0_18 = arith.constant 0 : index
    %40 = vector.load %arg6[%c0_17, %c0_18] : memref<26x32xbf16, #tpu.memory_space<vmem>>, vector<26x32xbf16>
    tpu.vector_store %arg6[%c0_17, %c0_18], %39 {strides = array<i32>} : memref<26x32xbf16, #tpu.memory_space<vmem>>, vector<26x32xbf16>,
    return
  }
  func.func @transform_0(%arg0: i32) -> (i32, i32) {
    %c0_i32 = arith.constant 0 : i32
    %c0_i32_0 = arith.constant 0 : i32
    return %arg0, %c0_i32 : i32, i32
  }
  func.func @transform_1(%arg0: i32) -> (i32, i32) {
    %c0_i32 = arith.constant 0 : i32
    %c0_i32_0 = arith.constant 0 : i32
    %c0_i32_1 = arith.constant 0 : i32
    return %c0_i32, %c0_i32_0 : i32, i32
  }
  func.func @transform_2(%arg0: i32) -> (i32, i32) {
    %c0_i32 = arith.constant 0 : i32
    %c0_i32_0 = arith.constant 0 : i32
    %c0_i32_1 = arith.constant 0 : i32
    return %c0_i32, %c0_i32_0 : i32, i32
  }
  func.func @transform_3(%arg0: i32) -> (i32, i32) {
    %c0_i32 = arith.constant 0 : i32
    %c0_i32_0 = arith.constant 0 : i32
    %c0_i32_1 = arith.constant 0 : i32
    return %c0_i32, %c0_i32_0 : i32, i32
  }
  func.func @transform_4(%arg0: i32) -> (i32, i32) {
    %c0_i32 = arith.constant 0 : i32
    %c0_i32_0 = arith.constant 0 : i32
    %c0_i32_1 = arith.constant 0 : i32
    return %c0_i32, %c0_i32_0 : i32, i32
  }
  func.func @transform_5(%arg0: i32) -> (i32, i32) {
    %c0_i32 = arith.constant 0 : i32
    %c0_i32_0 = arith.constant 0 : i32
    return %arg0, %c0_i32 : i32, i32
  }
}

module attributes {stable_mosaic.version = 11 : i64} {
  func.func @_conv_module_kernel(%arg0: i32, %arg1: memref<1x27x32xbf16, #tpu.memory_space<vmem>>, %arg2: memref<15x32xf32, #tpu.memory_space<vmem>>, %arg3: memref<1x32xf32, #tpu.memory_space<vmem>>, %arg4: memref<1x32xf32, #tpu.memory_space<vmem>>, %arg5: memref<1x32xf32, #tpu.memory_space<vmem>>, %arg6: memref<32x32xbf16, #tpu.memory_space<vmem>>, %arg7: memref<1x32xf32, #tpu.memory_space<vmem>>, %arg8: memref<1x13x32xf32, #tpu.memory_space<vmem>>, %arg9: memref<1x13x32xf32, #tpu.memory_space<vmem>>) attributes {dimension_semantics = [#tpu.dimension_semantics<parallel>], iteration_bounds = array<i64: 2>, scalar_prefetch = 0 : i64, scratch_operands = 0 : i64, tpu.core_type = #tpu.core_type<tc>, window_params = [{transform_indices = @transform_0, window_bounds = array<i64: 1, 27, 32>}, {pipeline_mode = #tpu.pipeline_mode<synchronous>, transform_indices = @transform_1, window_bounds = array<i64: 15, 32>}, {pipeline_mode = #tpu.pipeline_mode<synchronous>, transform_indices = @transform_2, window_bounds = array<i64: 1, 32>}, {pipeline_mode = #tpu.pipeline_mode<synchronous>, transform_indices = @transform_3, window_bounds = array<i64: 1, 32>}, {pipeline_mode = #tpu.pipeline_mode<synchronous>, transform_indices = @transform_4, window_bounds = array<i64: 1, 32>}, {pipeline_mode = #tpu.pipeline_mode<synchronous>, transform_indices = @transform_5, window_bounds = array<i64: 32, 32>}, {pipeline_mode = #tpu.pipeline_mode<synchronous>, transform_indices = @transform_6, window_bounds = array<i64: 1, 32>}, {transform_indices = @transform_7, window_bounds = array<i64: 1, 13, 32>}, {transform_indices = @transform_8, window_bounds = array<i64: 1, 13, 32>}]} {
    %c0 = arith.constant 0 : index
    %c0_0 = arith.constant 0 : index
    %0 = vector.load %arg2[%c0, %c0_0] : memref<15x32xf32, #tpu.memory_space<vmem>>, vector<15x32xf32>
    %cst = arith.constant 0.000000e+00 : f32
    %1 = vector.broadcast %cst : f32 to vector<13x32xf32>
    %c0_1 = arith.constant 0 : index
    %c0_2 = arith.constant 0 : index
    %c0_3 = arith.constant 0 : index
    %2 = vector.load %arg1[%c0_1, %c0_2, %c0_3] : memref<1x27x32xbf16, #tpu.memory_space<vmem>>, vector<1x13x32xbf16>
    %3 = vector.shape_cast %2 : vector<1x13x32xbf16> to vector<13x32xbf16>
    %4 = arith.extf %3 : vector<13x32xbf16> to vector<13x32xf32>
    %5 = vector.extract_strided_slice %0 {offsets = [0, 0], sizes = [1, 32], strides = [1, 1]} : vector<15x32xf32> to vector<1x32xf32>
    %6 = vector.broadcast %5 : vector<1x32xf32> to vector<13x32xf32>
    %7 = arith.mulf %4, %6 : vector<13x32xf32>
    %8 = arith.addf %1, %7 : vector<13x32xf32>
    %c0_4 = arith.constant 0 : index
    %c1 = arith.constant 1 : index
    %c0_5 = arith.constant 0 : index
    %9 = vector.load %arg1[%c0_4, %c1, %c0_5] : memref<1x27x32xbf16, #tpu.memory_space<vmem>>, vector<1x13x32xbf16>
    %10 = vector.shape_cast %9 : vector<1x13x32xbf16> to vector<13x32xbf16>
    %11 = arith.extf %10 : vector<13x32xbf16> to vector<13x32xf32>
    %12 = vector.extract_strided_slice %0 {offsets = [1, 0], sizes = [1, 32], strides = [1, 1]} : vector<15x32xf32> to vector<1x32xf32>
    %13 = vector.broadcast %12 : vector<1x32xf32> to vector<13x32xf32>
    %14 = arith.mulf %11, %13 : vector<13x32xf32>
    %15 = arith.addf %8, %14 : vector<13x32xf32>
    %c0_6 = arith.constant 0 : index
    %c2 = arith.constant 2 : index
    %c0_7 = arith.constant 0 : index
    %16 = vector.load %arg1[%c0_6, %c2, %c0_7] : memref<1x27x32xbf16, #tpu.memory_space<vmem>>, vector<1x13x32xbf16>
    %17 = vector.shape_cast %16 : vector<1x13x32xbf16> to vector<13x32xbf16>
    %18 = arith.extf %17 : vector<13x32xbf16> to vector<13x32xf32>
    %19 = vector.extract_strided_slice %0 {offsets = [2, 0], sizes = [1, 32], strides = [1, 1]} : vector<15x32xf32> to vector<1x32xf32>
    %20 = vector.broadcast %19 : vector<1x32xf32> to vector<13x32xf32>
    %21 = arith.mulf %18, %20 : vector<13x32xf32>
    %22 = arith.addf %15, %21 : vector<13x32xf32>
    %c0_8 = arith.constant 0 : index
    %c3 = arith.constant 3 : index
    %c0_9 = arith.constant 0 : index
    %23 = vector.load %arg1[%c0_8, %c3, %c0_9] : memref<1x27x32xbf16, #tpu.memory_space<vmem>>, vector<1x13x32xbf16>
    %24 = vector.shape_cast %23 : vector<1x13x32xbf16> to vector<13x32xbf16>
    %25 = arith.extf %24 : vector<13x32xbf16> to vector<13x32xf32>
    %26 = vector.extract_strided_slice %0 {offsets = [3, 0], sizes = [1, 32], strides = [1, 1]} : vector<15x32xf32> to vector<1x32xf32>
    %27 = vector.broadcast %26 : vector<1x32xf32> to vector<13x32xf32>
    %28 = arith.mulf %25, %27 : vector<13x32xf32>
    %29 = arith.addf %22, %28 : vector<13x32xf32>
    %c0_10 = arith.constant 0 : index
    %c4 = arith.constant 4 : index
    %c0_11 = arith.constant 0 : index
    %30 = vector.load %arg1[%c0_10, %c4, %c0_11] : memref<1x27x32xbf16, #tpu.memory_space<vmem>>, vector<1x13x32xbf16>
    %31 = vector.shape_cast %30 : vector<1x13x32xbf16> to vector<13x32xbf16>
    %32 = arith.extf %31 : vector<13x32xbf16> to vector<13x32xf32>
    %33 = vector.extract_strided_slice %0 {offsets = [4, 0], sizes = [1, 32], strides = [1, 1]} : vector<15x32xf32> to vector<1x32xf32>
    %34 = vector.broadcast %33 : vector<1x32xf32> to vector<13x32xf32>
    %35 = arith.mulf %32, %34 : vector<13x32xf32>
    %36 = arith.addf %29, %35 : vector<13x32xf32>
    %c0_12 = arith.constant 0 : index
    %c5 = arith.constant 5 : index
    %c0_13 = arith.constant 0 : index
    %37 = vector.load %arg1[%c0_12, %c5, %c0_13] : memref<1x27x32xbf16, #tpu.memory_space<vmem>>, vector<1x13x32xbf16>
    %38 = vector.shape_cast %37 : vector<1x13x32xbf16> to vector<13x32xbf16>
    %39 = arith.extf %38 : vector<13x32xbf16> to vector<13x32xf32>
    %40 = vector.extract_strided_slice %0 {offsets = [5, 0], sizes = [1, 32], strides = [1, 1]} : vector<15x32xf32> to vector<1x32xf32>
    %41 = vector.broadcast %40 : vector<1x32xf32> to vector<13x32xf32>
    %42 = arith.mulf %39, %41 : vector<13x32xf32>
    %43 = arith.addf %36, %42 : vector<13x32xf32>
    %c0_14 = arith.constant 0 : index
    %c6 = arith.constant 6 : index
    %c0_15 = arith.constant 0 : index
    %44 = vector.load %arg1[%c0_14, %c6, %c0_15] : memref<1x27x32xbf16, #tpu.memory_space<vmem>>, vector<1x13x32xbf16>
    %45 = vector.shape_cast %44 : vector<1x13x32xbf16> to vector<13x32xbf16>
    %46 = arith.extf %45 : vector<13x32xbf16> to vector<13x32xf32>
    %47 = vector.extract_strided_slice %0 {offsets = [6, 0], sizes = [1, 32], strides = [1, 1]} : vector<15x32xf32> to vector<1x32xf32>
    %48 = vector.broadcast %47 : vector<1x32xf32> to vector<13x32xf32>
    %49 = arith.mulf %46, %48 : vector<13x32xf32>
    %50 = arith.addf %43, %49 : vector<13x32xf32>
    %c0_16 = arith.constant 0 : index
    %c7 = arith.constant 7 : index
    %c0_17 = arith.constant 0 : index
    %51 = vector.load %arg1[%c0_16, %c7, %c0_17] : memref<1x27x32xbf16, #tpu.memory_space<vmem>>, vector<1x13x32xbf16>
    %52 = vector.shape_cast %51 : vector<1x13x32xbf16> to vector<13x32xbf16>
    %53 = arith.extf %52 : vector<13x32xbf16> to vector<13x32xf32>
    %54 = vector.extract_strided_slice %0 {offsets = [7, 0], sizes = [1, 32], strides = [1, 1]} : vector<15x32xf32> to vector<1x32xf32>
    %55 = vector.broadcast %54 : vector<1x32xf32> to vector<13x32xf32>
    %56 = arith.mulf %53, %55 : vector<13x32xf32>
    %57 = arith.addf %50, %56 : vector<13x32xf32>
    %c0_18 = arith.constant 0 : index
    %c8 = arith.constant 8 : index
    %c0_19 = arith.constant 0 : index
    %58 = vector.load %arg1[%c0_18, %c8, %c0_19] : memref<1x27x32xbf16, #tpu.memory_space<vmem>>, vector<1x13x32xbf16>
    %59 = vector.shape_cast %58 : vector<1x13x32xbf16> to vector<13x32xbf16>
    %60 = arith.extf %59 : vector<13x32xbf16> to vector<13x32xf32>
    %61 = vector.extract_strided_slice %0 {offsets = [8, 0], sizes = [1, 32], strides = [1, 1]} : vector<15x32xf32> to vector<1x32xf32>
    %62 = vector.broadcast %61 : vector<1x32xf32> to vector<13x32xf32>
    %63 = arith.mulf %60, %62 : vector<13x32xf32>
    %64 = arith.addf %57, %63 : vector<13x32xf32>
    %c0_20 = arith.constant 0 : index
    %c9 = arith.constant 9 : index
    %c0_21 = arith.constant 0 : index
    %65 = vector.load %arg1[%c0_20, %c9, %c0_21] : memref<1x27x32xbf16, #tpu.memory_space<vmem>>, vector<1x13x32xbf16>
    %66 = vector.shape_cast %65 : vector<1x13x32xbf16> to vector<13x32xbf16>
    %67 = arith.extf %66 : vector<13x32xbf16> to vector<13x32xf32>
    %68 = vector.extract_strided_slice %0 {offsets = [9, 0], sizes = [1, 32], strides = [1, 1]} : vector<15x32xf32> to vector<1x32xf32>
    %69 = vector.broadcast %68 : vector<1x32xf32> to vector<13x32xf32>
    %70 = arith.mulf %67, %69 : vector<13x32xf32>
    %71 = arith.addf %64, %70 : vector<13x32xf32>
    %c0_22 = arith.constant 0 : index
    %c10 = arith.constant 10 : index
    %c0_23 = arith.constant 0 : index
    %72 = vector.load %arg1[%c0_22, %c10, %c0_23] : memref<1x27x32xbf16, #tpu.memory_space<vmem>>, vector<1x13x32xbf16>
    %73 = vector.shape_cast %72 : vector<1x13x32xbf16> to vector<13x32xbf16>
    %74 = arith.extf %73 : vector<13x32xbf16> to vector<13x32xf32>
    %75 = vector.extract_strided_slice %0 {offsets = [10, 0], sizes = [1, 32], strides = [1, 1]} : vector<15x32xf32> to vector<1x32xf32>
    %76 = vector.broadcast %75 : vector<1x32xf32> to vector<13x32xf32>
    %77 = arith.mulf %74, %76 : vector<13x32xf32>
    %78 = arith.addf %71, %77 : vector<13x32xf32>
    %c0_24 = arith.constant 0 : index
    %c11 = arith.constant 11 : index
    %c0_25 = arith.constant 0 : index
    %79 = vector.load %arg1[%c0_24, %c11, %c0_25] : memref<1x27x32xbf16, #tpu.memory_space<vmem>>, vector<1x13x32xbf16>
    %80 = vector.shape_cast %79 : vector<1x13x32xbf16> to vector<13x32xbf16>
    %81 = arith.extf %80 : vector<13x32xbf16> to vector<13x32xf32>
    %82 = vector.extract_strided_slice %0 {offsets = [11, 0], sizes = [1, 32], strides = [1, 1]} : vector<15x32xf32> to vector<1x32xf32>
    %83 = vector.broadcast %82 : vector<1x32xf32> to vector<13x32xf32>
    %84 = arith.mulf %81, %83 : vector<13x32xf32>
    %85 = arith.addf %78, %84 : vector<13x32xf32>
    %c0_26 = arith.constant 0 : index
    %c12 = arith.constant 12 : index
    %c0_27 = arith.constant 0 : index
    %86 = vector.load %arg1[%c0_26, %c12, %c0_27] : memref<1x27x32xbf16, #tpu.memory_space<vmem>>, vector<1x13x32xbf16>
    %87 = vector.shape_cast %86 : vector<1x13x32xbf16> to vector<13x32xbf16>
    %88 = arith.extf %87 : vector<13x32xbf16> to vector<13x32xf32>
    %89 = vector.extract_strided_slice %0 {offsets = [12, 0], sizes = [1, 32], strides = [1, 1]} : vector<15x32xf32> to vector<1x32xf32>
    %90 = vector.broadcast %89 : vector<1x32xf32> to vector<13x32xf32>
    %91 = arith.mulf %88, %90 : vector<13x32xf32>
    %92 = arith.addf %85, %91 : vector<13x32xf32>
    %c0_28 = arith.constant 0 : index
    %c13 = arith.constant 13 : index
    %c0_29 = arith.constant 0 : index
    %93 = vector.load %arg1[%c0_28, %c13, %c0_29] : memref<1x27x32xbf16, #tpu.memory_space<vmem>>, vector<1x13x32xbf16>
    %94 = vector.shape_cast %93 : vector<1x13x32xbf16> to vector<13x32xbf16>
    %95 = arith.extf %94 : vector<13x32xbf16> to vector<13x32xf32>
    %96 = vector.extract_strided_slice %0 {offsets = [13, 0], sizes = [1, 32], strides = [1, 1]} : vector<15x32xf32> to vector<1x32xf32>
    %97 = vector.broadcast %96 : vector<1x32xf32> to vector<13x32xf32>
    %98 = arith.mulf %95, %97 : vector<13x32xf32>
    %99 = arith.addf %92, %98 : vector<13x32xf32>
    %c0_30 = arith.constant 0 : index
    %c14 = arith.constant 14 : index
    %c0_31 = arith.constant 0 : index
    %100 = vector.load %arg1[%c0_30, %c14, %c0_31] : memref<1x27x32xbf16, #tpu.memory_space<vmem>>, vector<1x13x32xbf16>
    %101 = vector.shape_cast %100 : vector<1x13x32xbf16> to vector<13x32xbf16>
    %102 = arith.extf %101 : vector<13x32xbf16> to vector<13x32xf32>
    %103 = vector.extract_strided_slice %0 {offsets = [14, 0], sizes = [1, 32], strides = [1, 1]} : vector<15x32xf32> to vector<1x32xf32>
    %104 = vector.broadcast %103 : vector<1x32xf32> to vector<13x32xf32>
    %105 = arith.mulf %102, %104 : vector<13x32xf32>
    %106 = arith.addf %99, %105 : vector<13x32xf32>
    %c0_32 = arith.constant 0 : index
    %c0_33 = arith.constant 0 : index
    %107 = vector.load %arg3[%c0_32, %c0_33] : memref<1x32xf32, #tpu.memory_space<vmem>>, vector<1x32xf32>
    %108 = vector.broadcast %107 : vector<1x32xf32> to vector<13x32xf32>
    %109 = arith.addf %106, %108 : vector<13x32xf32>
    %c0_34 = arith.constant 0 : index
    %c0_35 = arith.constant 0 : index
    %110 = vector.load %arg4[%c0_34, %c0_35] : memref<1x32xf32, #tpu.memory_space<vmem>>, vector<1x32xf32>
    %111 = vector.broadcast %110 : vector<1x32xf32> to vector<13x32xf32>
    %112 = arith.mulf %109, %111 : vector<13x32xf32>
    %c0_36 = arith.constant 0 : index
    %c0_37 = arith.constant 0 : index
    %113 = vector.load %arg5[%c0_36, %c0_37] : memref<1x32xf32, #tpu.memory_space<vmem>>, vector<1x32xf32>
    %114 = vector.broadcast %113 : vector<1x32xf32> to vector<13x32xf32>
    %115 = arith.addf %112, %114 : vector<13x32xf32>
    %cst_38 = arith.constant 0.000000e+00 : f32
    %116 = vector.broadcast %cst_38 : f32 to vector<13x32xf32>
    %117 = arith.subf %116, %115 : vector<13x32xf32>
    %118 = math.exp %117 : vector<13x32xf32>
    %cst_39 = arith.constant 1.000000e+00 : f32
    %119 = vector.broadcast %cst_39 : f32 to vector<13x32xf32>
    %120 = arith.addf %119, %118 : vector<13x32xf32>
    %cst_40 = arith.constant 1.000000e+00 : f32
    %121 = vector.broadcast %cst_40 : f32 to vector<13x32xf32>
    %122 = arith.divf %121, %120 : vector<13x32xf32>
    %123 = arith.mulf %115, %122 : vector<13x32xf32>
    %124 = arith.truncf %123 : vector<13x32xf32> to vector<13x32xbf16>
    %c0_41 = arith.constant 0 : index
    %c0_42 = arith.constant 0 : index
    %125 = vector.load %arg6[%c0_41, %c0_42] : memref<32x32xbf16, #tpu.memory_space<vmem>>, vector<32x32xbf16>
    %cst_43 = arith.constant dense<0.000000e+00> : vector<13x32xf32>
    %126 = tpu.matmul %124, %125, %cst_43 {dimension_numbers = #tpu.dot_dimension_numbers<[1], [0], [0], [1], [0, 0, 1, 1], [], []>} : vector<13x32xbf16>, vector<32x32xbf16>, vector<13x32xf32> -> vector<13x32xf32>
    %c0_44 = arith.constant 0 : index
    %c0_45 = arith.constant 0 : index
    %127 = vector.load %arg7[%c0_44, %c0_45] : memref<1x32xf32, #tpu.memory_space<vmem>>, vector<1x32xf32>
    %128 = vector.broadcast %127 : vector<1x32xf32> to vector<13x32xf32>
    %129 = arith.addf %126, %128 : vector<13x32xf32>
    %c0_46 = arith.constant 0 : index
    %c0_47 = arith.constant 0 : index
    %c0_48 = arith.constant 0 : index
    %130 = vector.load %arg8[%c0_46, %c0_47, %c0_48] : memref<1x13x32xf32, #tpu.memory_space<vmem>>, vector<1x13x32xf32>
    %131 = vector.shape_cast %130 : vector<1x13x32xf32> to vector<13x32xf32>
    %132 = arith.addf %129, %131 : vector<13x32xf32>
    %133 = vector.shape_cast %132 : vector<13x32xf32> to vector<1x13x32xf32>
    %c0_49 = arith.constant 0 : index
    %c0_50 = arith.constant 0 : index
    %c0_51 = arith.constant 0 : index
    %134 = vector.load %arg9[%c0_49, %c0_50, %c0_51] : memref<1x13x32xf32, #tpu.memory_space<vmem>>, vector<1x13x32xf32>
    tpu.vector_store %arg9[%c0_49, %c0_50, %c0_51], %133 {strides = array<i32>} : memref<1x13x32xf32, #tpu.memory_space<vmem>>, vector<1x13x32xf32>,
    return
  }
  func.func @transform_0(%arg0: i32) -> (i32, i32, i32) {
    %c0_i32 = arith.constant 0 : i32
    %c0_i32_0 = arith.constant 0 : i32
    %c0_i32_1 = arith.constant 0 : i32
    return %arg0, %c0_i32, %c0_i32_0 : i32, i32, i32
  }
  func.func @transform_1(%arg0: i32) -> (i32, i32) {
    %c0_i32 = arith.constant 0 : i32
    %c0_i32_0 = arith.constant 0 : i32
    %c0_i32_1 = arith.constant 0 : i32
    return %c0_i32, %c0_i32_0 : i32, i32
  }
  func.func @transform_2(%arg0: i32) -> (i32, i32) {
    %c0_i32 = arith.constant 0 : i32
    %c0_i32_0 = arith.constant 0 : i32
    %c0_i32_1 = arith.constant 0 : i32
    return %c0_i32, %c0_i32_0 : i32, i32
  }
  func.func @transform_3(%arg0: i32) -> (i32, i32) {
    %c0_i32 = arith.constant 0 : i32
    %c0_i32_0 = arith.constant 0 : i32
    %c0_i32_1 = arith.constant 0 : i32
    return %c0_i32, %c0_i32_0 : i32, i32
  }
  func.func @transform_4(%arg0: i32) -> (i32, i32) {
    %c0_i32 = arith.constant 0 : i32
    %c0_i32_0 = arith.constant 0 : i32
    %c0_i32_1 = arith.constant 0 : i32
    return %c0_i32, %c0_i32_0 : i32, i32
  }
  func.func @transform_5(%arg0: i32) -> (i32, i32) {
    %c0_i32 = arith.constant 0 : i32
    %c0_i32_0 = arith.constant 0 : i32
    %c0_i32_1 = arith.constant 0 : i32
    return %c0_i32, %c0_i32_0 : i32, i32
  }
  func.func @transform_6(%arg0: i32) -> (i32, i32) {
    %c0_i32 = arith.constant 0 : i32
    %c0_i32_0 = arith.constant 0 : i32
    %c0_i32_1 = arith.constant 0 : i32
    return %c0_i32, %c0_i32_0 : i32, i32
  }
  func.func @transform_7(%arg0: i32) -> (i32, i32, i32) {
    %c0_i32 = arith.constant 0 : i32
    %c0_i32_0 = arith.constant 0 : i32
    %c0_i32_1 = arith.constant 0 : i32
    return %arg0, %c0_i32, %c0_i32_0 : i32, i32, i32
  }
  func.func @transform_8(%arg0: i32) -> (i32, i32, i32) {
    %c0_i32 = arith.constant 0 : i32
    %c0_i32_0 = arith.constant 0 : i32
    %c0_i32_1 = arith.constant 0 : i32
    return %arg0, %c0_i32, %c0_i32_0 : i32, i32, i32
  }
}

module attributes {stable_mosaic.version = 11 : i64} {
  func.func @_ff_module_kernel(%arg0: i32, %arg1: memref<26x32xf32, #tpu.memory_space<vmem>>, %arg2: memref<1x32xf32, #tpu.memory_space<vmem>>, %arg3: memref<1x32xf32, #tpu.memory_space<vmem>>, %arg4: memref<32x64xbf16, #tpu.memory_space<vmem>>, %arg5: memref<1x64xf32, #tpu.memory_space<vmem>>, %arg6: memref<64x32xbf16, #tpu.memory_space<vmem>>, %arg7: memref<1x32xf32, #tpu.memory_space<vmem>>, %arg8: memref<1x32xf32, #tpu.memory_space<vmem>>, %arg9: memref<1x32xf32, #tpu.memory_space<vmem>>, %arg10: memref<26x32xf32, #tpu.memory_space<vmem>>) attributes {dimension_semantics = [#tpu.dimension_semantics<parallel>], iteration_bounds = array<i64: 1>, scalar_prefetch = 0 : i64, scratch_operands = 0 : i64, tpu.core_type = #tpu.core_type<tc>, window_params = [{transform_indices = @transform_0, window_bounds = array<i64: 26, 32>}, {pipeline_mode = #tpu.pipeline_mode<synchronous>, transform_indices = @transform_1, window_bounds = array<i64: 1, 32>}, {pipeline_mode = #tpu.pipeline_mode<synchronous>, transform_indices = @transform_2, window_bounds = array<i64: 1, 32>}, {pipeline_mode = #tpu.pipeline_mode<synchronous>, transform_indices = @transform_3, window_bounds = array<i64: 32, 64>}, {pipeline_mode = #tpu.pipeline_mode<synchronous>, transform_indices = @transform_4, window_bounds = array<i64: 1, 64>}, {pipeline_mode = #tpu.pipeline_mode<synchronous>, transform_indices = @transform_5, window_bounds = array<i64: 64, 32>}, {pipeline_mode = #tpu.pipeline_mode<synchronous>, transform_indices = @transform_6, window_bounds = array<i64: 1, 32>}, {pipeline_mode = #tpu.pipeline_mode<synchronous>, transform_indices = @transform_7, window_bounds = array<i64: 1, 32>}, {pipeline_mode = #tpu.pipeline_mode<synchronous>, transform_indices = @transform_8, window_bounds = array<i64: 1, 32>}, {transform_indices = @transform_9, window_bounds = array<i64: 26, 32>}]} {
    %c0 = arith.constant 0 : index
    %c0_0 = arith.constant 0 : index
    %0 = vector.load %arg1[%c0, %c0_0] : memref<26x32xf32, #tpu.memory_space<vmem>>, vector<26x32xf32>
    %cst = arith.constant dense<0.000000e+00> : vector<26xf32>
    %1 = vector.multi_reduction <add>, %0, %cst [1] : vector<26x32xf32> to vector<26xf32>
    %2 = vector.shape_cast %1 : vector<26xf32> to vector<26x1xf32>
    %cst_1 = arith.constant 3.200000e+01 : f32
    %3 = vector.broadcast %cst_1 : f32 to vector<26x1xf32>
    %4 = arith.divf %2, %3 : vector<26x1xf32>
    %5 = vector.broadcast %4 : vector<26x1xf32> to vector<26x32xf32>
    %6 = arith.subf %0, %5 : vector<26x32xf32>
    %7 = arith.mulf %6, %6 : vector<26x32xf32>
    %cst_2 = arith.constant dense<0.000000e+00> : vector<26xf32>
    %8 = vector.multi_reduction <add>, %7, %cst_2 [1] : vector<26x32xf32> to vector<26xf32>
    %9 = vector.shape_cast %8 : vector<26xf32> to vector<26x1xf32>
    %cst_3 = arith.constant 3.200000e+01 : f32
    %10 = vector.broadcast %cst_3 : f32 to vector<26x1xf32>
    %11 = arith.divf %9, %10 : vector<26x1xf32>
    %cst_4 = arith.constant 9.99999974E-6 : f32
    %12 = vector.broadcast %cst_4 : f32 to vector<26x1xf32>
    %13 = arith.addf %11, %12 : vector<26x1xf32>
    %14 = math.rsqrt %13 : vector<26x1xf32>
    %15 = vector.broadcast %14 : vector<26x1xf32> to vector<26x32xf32>
    %16 = arith.mulf %6, %15 : vector<26x32xf32>
    %c0_5 = arith.constant 0 : index
    %c0_6 = arith.constant 0 : index
    %17 = vector.load %arg2[%c0_5, %c0_6] : memref<1x32xf32, #tpu.memory_space<vmem>>, vector<1x32xf32>
    %18 = vector.broadcast %17 : vector<1x32xf32> to vector<26x32xf32>
    %19 = arith.mulf %16, %18 : vector<26x32xf32>
    %c0_7 = arith.constant 0 : index
    %c0_8 = arith.constant 0 : index
    %20 = vector.load %arg3[%c0_7, %c0_8] : memref<1x32xf32, #tpu.memory_space<vmem>>, vector<1x32xf32>
    %21 = vector.broadcast %20 : vector<1x32xf32> to vector<26x32xf32>
    %22 = arith.addf %19, %21 : vector<26x32xf32>
    %23 = arith.truncf %22 : vector<26x32xf32> to vector<26x32xbf16>
    %c0_9 = arith.constant 0 : index
    %c0_10 = arith.constant 0 : index
    %24 = vector.load %arg4[%c0_9, %c0_10] : memref<32x64xbf16, #tpu.memory_space<vmem>>, vector<32x64xbf16>
    %cst_11 = arith.constant dense<0.000000e+00> : vector<26x64xf32>
    %25 = tpu.matmul %23, %24, %cst_11 {dimension_numbers = #tpu.dot_dimension_numbers<[1], [0], [0], [1], [0, 0, 1, 1], [], []>} : vector<26x32xbf16>, vector<32x64xbf16>, vector<26x64xf32> -> vector<26x64xf32>
    %c0_12 = arith.constant 0 : index
    %c0_13 = arith.constant 0 : index
    %26 = vector.load %arg5[%c0_12, %c0_13] : memref<1x64xf32, #tpu.memory_space<vmem>>, vector<1x64xf32>
    %27 = vector.broadcast %26 : vector<1x64xf32> to vector<26x64xf32>
    %28 = arith.addf %25, %27 : vector<26x64xf32>
    %cst_14 = arith.constant 0.000000e+00 : f32
    %29 = vector.broadcast %cst_14 : f32 to vector<26x64xf32>
    %30 = arith.subf %29, %28 : vector<26x64xf32>
    %31 = math.exp %30 : vector<26x64xf32>
    %cst_15 = arith.constant 1.000000e+00 : f32
    %32 = vector.broadcast %cst_15 : f32 to vector<26x64xf32>
    %33 = arith.addf %32, %31 : vector<26x64xf32>
    %cst_16 = arith.constant 1.000000e+00 : f32
    %34 = vector.broadcast %cst_16 : f32 to vector<26x64xf32>
    %35 = arith.divf %34, %33 : vector<26x64xf32>
    %36 = arith.mulf %28, %35 : vector<26x64xf32>
    %37 = arith.truncf %36 : vector<26x64xf32> to vector<26x64xbf16>
    %c0_17 = arith.constant 0 : index
    %c0_18 = arith.constant 0 : index
    %38 = vector.load %arg6[%c0_17, %c0_18] : memref<64x32xbf16, #tpu.memory_space<vmem>>, vector<64x32xbf16>
    %cst_19 = arith.constant dense<0.000000e+00> : vector<26x32xf32>
    %39 = tpu.matmul %37, %38, %cst_19 {dimension_numbers = #tpu.dot_dimension_numbers<[1], [0], [0], [1], [0, 0, 1, 1], [], []>} : vector<26x64xbf16>, vector<64x32xbf16>, vector<26x32xf32> -> vector<26x32xf32>
    %c0_20 = arith.constant 0 : index
    %c0_21 = arith.constant 0 : index
    %40 = vector.load %arg7[%c0_20, %c0_21] : memref<1x32xf32, #tpu.memory_space<vmem>>, vector<1x32xf32>
    %41 = vector.broadcast %40 : vector<1x32xf32> to vector<26x32xf32>
    %42 = arith.addf %39, %41 : vector<26x32xf32>
    %cst_22 = arith.constant 5.000000e-01 : f32
    %43 = vector.broadcast %cst_22 : f32 to vector<26x32xf32>
    %44 = arith.mulf %43, %42 : vector<26x32xf32>
    %45 = arith.addf %0, %44 : vector<26x32xf32>
    %cst_23 = arith.constant dense<0.000000e+00> : vector<26xf32>
    %46 = vector.multi_reduction <add>, %45, %cst_23 [1] : vector<26x32xf32> to vector<26xf32>
    %47 = vector.shape_cast %46 : vector<26xf32> to vector<26x1xf32>
    %cst_24 = arith.constant 3.200000e+01 : f32
    %48 = vector.broadcast %cst_24 : f32 to vector<26x1xf32>
    %49 = arith.divf %47, %48 : vector<26x1xf32>
    %50 = vector.broadcast %49 : vector<26x1xf32> to vector<26x32xf32>
    %51 = arith.subf %45, %50 : vector<26x32xf32>
    %52 = arith.mulf %51, %51 : vector<26x32xf32>
    %cst_25 = arith.constant dense<0.000000e+00> : vector<26xf32>
    %53 = vector.multi_reduction <add>, %52, %cst_25 [1] : vector<26x32xf32> to vector<26xf32>
    %54 = vector.shape_cast %53 : vector<26xf32> to vector<26x1xf32>
    %cst_26 = arith.constant 3.200000e+01 : f32
    %55 = vector.broadcast %cst_26 : f32 to vector<26x1xf32>
    %56 = arith.divf %54, %55 : vector<26x1xf32>
    %cst_27 = arith.constant 9.99999974E-6 : f32
    %57 = vector.broadcast %cst_27 : f32 to vector<26x1xf32>
    %58 = arith.addf %56, %57 : vector<26x1xf32>
    %59 = math.rsqrt %58 : vector<26x1xf32>
    %60 = vector.broadcast %59 : vector<26x1xf32> to vector<26x32xf32>
    %61 = arith.mulf %51, %60 : vector<26x32xf32>
    %c0_28 = arith.constant 0 : index
    %c0_29 = arith.constant 0 : index
    %62 = vector.load %arg8[%c0_28, %c0_29] : memref<1x32xf32, #tpu.memory_space<vmem>>, vector<1x32xf32>
    %63 = vector.broadcast %62 : vector<1x32xf32> to vector<26x32xf32>
    %64 = arith.mulf %61, %63 : vector<26x32xf32>
    %c0_30 = arith.constant 0 : index
    %c0_31 = arith.constant 0 : index
    %65 = vector.load %arg9[%c0_30, %c0_31] : memref<1x32xf32, #tpu.memory_space<vmem>>, vector<1x32xf32>
    %66 = vector.broadcast %65 : vector<1x32xf32> to vector<26x32xf32>
    %67 = arith.addf %64, %66 : vector<26x32xf32>
    %c0_32 = arith.constant 0 : index
    %c0_33 = arith.constant 0 : index
    %68 = vector.load %arg10[%c0_32, %c0_33] : memref<26x32xf32, #tpu.memory_space<vmem>>, vector<26x32xf32>
    tpu.vector_store %arg10[%c0_32, %c0_33], %67 {strides = array<i32>} : memref<26x32xf32, #tpu.memory_space<vmem>>, vector<26x32xf32>,
    return
  }
  func.func @transform_0(%arg0: i32) -> (i32, i32) {
    %c0_i32 = arith.constant 0 : i32
    %c0_i32_0 = arith.constant 0 : i32
    return %arg0, %c0_i32 : i32, i32
  }
  func.func @transform_1(%arg0: i32) -> (i32, i32) {
    %c0_i32 = arith.constant 0 : i32
    %c0_i32_0 = arith.constant 0 : i32
    %c0_i32_1 = arith.constant 0 : i32
    return %c0_i32, %c0_i32_0 : i32, i32
  }
  func.func @transform_2(%arg0: i32) -> (i32, i32) {
    %c0_i32 = arith.constant 0 : i32
    %c0_i32_0 = arith.constant 0 : i32
    %c0_i32_1 = arith.constant 0 : i32
    return %c0_i32, %c0_i32_0 : i32, i32
  }
  func.func @transform_3(%arg0: i32) -> (i32, i32) {
    %c0_i32 = arith.constant 0 : i32
    %c0_i32_0 = arith.constant 0 : i32
    %c0_i32_1 = arith.constant 0 : i32
    return %c0_i32, %c0_i32_0 : i32, i32
  }
  func.func @transform_4(%arg0: i32) -> (i32, i32) {
    %c0_i32 = arith.constant 0 : i32
    %c0_i32_0 = arith.constant 0 : i32
    %c0_i32_1 = arith.constant 0 : i32
    return %c0_i32, %c0_i32_0 : i32, i32
  }
  func.func @transform_5(%arg0: i32) -> (i32, i32) {
    %c0_i32 = arith.constant 0 : i32
    %c0_i32_0 = arith.constant 0 : i32
    %c0_i32_1 = arith.constant 0 : i32
    return %c0_i32, %c0_i32_0 : i32, i32
  }
  func.func @transform_6(%arg0: i32) -> (i32, i32) {
    %c0_i32 = arith.constant 0 : i32
    %c0_i32_0 = arith.constant 0 : i32
    %c0_i32_1 = arith.constant 0 : i32
    return %c0_i32, %c0_i32_0 : i32, i32
  }
  func.func @transform_7(%arg0: i32) -> (i32, i32) {
    %c0_i32 = arith.constant 0 : i32
    %c0_i32_0 = arith.constant 0 : i32
    %c0_i32_1 = arith.constant 0 : i32
    return %c0_i32, %c0_i32_0 : i32, i32
  }
  func.func @transform_8(%arg0: i32) -> (i32, i32) {
    %c0_i32 = arith.constant 0 : i32
    %c0_i32_0 = arith.constant 0 : i32
    %c0_i32_1 = arith.constant 0 : i32
    return %c0_i32, %c0_i32_0 : i32, i32
  }
  func.func @transform_9(%arg0: i32) -> (i32, i32) {
    %c0_i32 = arith.constant 0 : i32
    %c0_i32_0 = arith.constant 0 : i32
    return %arg0, %c0_i32 : i32, i32
  }
}

module attributes {stable_mosaic.version = 11 : i64} {
  func.func @_ln_linear_kernel(%arg0: i32, %arg1: memref<26x32xf32, #tpu.memory_space<vmem>>, %arg2: memref<1x32xf32, #tpu.memory_space<vmem>>, %arg3: memref<1x32xf32, #tpu.memory_space<vmem>>, %arg4: memref<32x64xbf16, #tpu.memory_space<vmem>>, %arg5: memref<1x64xf32, #tpu.memory_space<vmem>>, %arg6: memref<26x32xbf16, #tpu.memory_space<vmem>>) attributes {dimension_semantics = [#tpu.dimension_semantics<parallel>], iteration_bounds = array<i64: 1>, scalar_prefetch = 0 : i64, scratch_operands = 0 : i64, tpu.core_type = #tpu.core_type<tc>, window_params = [{transform_indices = @transform_0, window_bounds = array<i64: 26, 32>}, {pipeline_mode = #tpu.pipeline_mode<synchronous>, transform_indices = @transform_1, window_bounds = array<i64: 1, 32>}, {pipeline_mode = #tpu.pipeline_mode<synchronous>, transform_indices = @transform_2, window_bounds = array<i64: 1, 32>}, {pipeline_mode = #tpu.pipeline_mode<synchronous>, transform_indices = @transform_3, window_bounds = array<i64: 32, 64>}, {pipeline_mode = #tpu.pipeline_mode<synchronous>, transform_indices = @transform_4, window_bounds = array<i64: 1, 64>}, {transform_indices = @transform_5, window_bounds = array<i64: 26, 32>}]} {
    %c0 = arith.constant 0 : index
    %c0_0 = arith.constant 0 : index
    %0 = vector.load %arg1[%c0, %c0_0] : memref<26x32xf32, #tpu.memory_space<vmem>>, vector<26x32xf32>
    %cst = arith.constant dense<0.000000e+00> : vector<26xf32>
    %1 = vector.multi_reduction <add>, %0, %cst [1] : vector<26x32xf32> to vector<26xf32>
    %2 = vector.shape_cast %1 : vector<26xf32> to vector<26x1xf32>
    %cst_1 = arith.constant 3.200000e+01 : f32
    %3 = vector.broadcast %cst_1 : f32 to vector<26x1xf32>
    %4 = arith.divf %2, %3 : vector<26x1xf32>
    %5 = vector.broadcast %4 : vector<26x1xf32> to vector<26x32xf32>
    %6 = arith.subf %0, %5 : vector<26x32xf32>
    %7 = arith.mulf %6, %6 : vector<26x32xf32>
    %cst_2 = arith.constant dense<0.000000e+00> : vector<26xf32>
    %8 = vector.multi_reduction <add>, %7, %cst_2 [1] : vector<26x32xf32> to vector<26xf32>
    %9 = vector.shape_cast %8 : vector<26xf32> to vector<26x1xf32>
    %cst_3 = arith.constant 3.200000e+01 : f32
    %10 = vector.broadcast %cst_3 : f32 to vector<26x1xf32>
    %11 = arith.divf %9, %10 : vector<26x1xf32>
    %cst_4 = arith.constant 9.99999974E-6 : f32
    %12 = vector.broadcast %cst_4 : f32 to vector<26x1xf32>
    %13 = arith.addf %11, %12 : vector<26x1xf32>
    %14 = math.rsqrt %13 : vector<26x1xf32>
    %15 = vector.broadcast %14 : vector<26x1xf32> to vector<26x32xf32>
    %16 = arith.mulf %6, %15 : vector<26x32xf32>
    %c0_5 = arith.constant 0 : index
    %c0_6 = arith.constant 0 : index
    %17 = vector.load %arg2[%c0_5, %c0_6] : memref<1x32xf32, #tpu.memory_space<vmem>>, vector<1x32xf32>
    %18 = vector.broadcast %17 : vector<1x32xf32> to vector<26x32xf32>
    %19 = arith.mulf %16, %18 : vector<26x32xf32>
    %c0_7 = arith.constant 0 : index
    %c0_8 = arith.constant 0 : index
    %20 = vector.load %arg3[%c0_7, %c0_8] : memref<1x32xf32, #tpu.memory_space<vmem>>, vector<1x32xf32>
    %21 = vector.broadcast %20 : vector<1x32xf32> to vector<26x32xf32>
    %22 = arith.addf %19, %21 : vector<26x32xf32>
    %23 = arith.truncf %22 : vector<26x32xf32> to vector<26x32xbf16>
    %c0_9 = arith.constant 0 : index
    %c0_10 = arith.constant 0 : index
    %24 = vector.load %arg4[%c0_9, %c0_10] : memref<32x64xbf16, #tpu.memory_space<vmem>>, vector<32x64xbf16>
    %cst_11 = arith.constant dense<0.000000e+00> : vector<26x64xf32>
    %25 = tpu.matmul %23, %24, %cst_11 {dimension_numbers = #tpu.dot_dimension_numbers<[1], [0], [0], [1], [0, 0, 1, 1], [], []>} : vector<26x32xbf16>, vector<32x64xbf16>, vector<26x64xf32> -> vector<26x64xf32>
    %c0_12 = arith.constant 0 : index
    %c0_13 = arith.constant 0 : index
    %26 = vector.load %arg5[%c0_12, %c0_13] : memref<1x64xf32, #tpu.memory_space<vmem>>, vector<1x64xf32>
    %27 = vector.broadcast %26 : vector<1x64xf32> to vector<26x64xf32>
    %28 = arith.addf %25, %27 : vector<26x64xf32>
    %29 = vector.extract_strided_slice %28 {offsets = [0, 0], sizes = [26, 32], strides = [1, 1]} : vector<26x64xf32> to vector<26x32xf32>
    %30 = vector.extract_strided_slice %28 {offsets = [0, 32], sizes = [26, 32], strides = [1, 1]} : vector<26x64xf32> to vector<26x32xf32>
    %cst_14 = arith.constant 0.000000e+00 : f32
    %31 = vector.broadcast %cst_14 : f32 to vector<26x32xf32>
    %32 = arith.subf %31, %30 : vector<26x32xf32>
    %33 = math.exp %32 : vector<26x32xf32>
    %cst_15 = arith.constant 1.000000e+00 : f32
    %34 = vector.broadcast %cst_15 : f32 to vector<26x32xf32>
    %35 = arith.addf %34, %33 : vector<26x32xf32>
    %cst_16 = arith.constant 1.000000e+00 : f32
    %36 = vector.broadcast %cst_16 : f32 to vector<26x32xf32>
    %37 = arith.divf %36, %35 : vector<26x32xf32>
    %38 = arith.mulf %29, %37 : vector<26x32xf32>
    %39 = arith.truncf %38 : vector<26x32xf32> to vector<26x32xbf16>
    %c0_17 = arith.constant 0 : index
    %c0_18 = arith.constant 0 : index
    %40 = vector.load %arg6[%c0_17, %c0_18] : memref<26x32xbf16, #tpu.memory_space<vmem>>, vector<26x32xbf16>
    tpu.vector_store %arg6[%c0_17, %c0_18], %39 {strides = array<i32>} : memref<26x32xbf16, #tpu.memory_space<vmem>>, vector<26x32xbf16>,
    return
  }
  func.func @transform_0(%arg0: i32) -> (i32, i32) {
    %c0_i32 = arith.constant 0 : i32
    %c0_i32_0 = arith.constant 0 : i32
    return %arg0, %c0_i32 : i32, i32
  }
  func.func @transform_1(%arg0: i32) -> (i32, i32) {
    %c0_i32 = arith.constant 0 : i32
    %c0_i32_0 = arith.constant 0 : i32
    %c0_i32_1 = arith.constant 0 : i32
    return %c0_i32, %c0_i32_0 : i32, i32
  }
  func.func @transform_2(%arg0: i32) -> (i32, i32) {
    %c0_i32 = arith.constant 0 : i32
    %c0_i32_0 = arith.constant 0 : i32
    %c0_i32_1 = arith.constant 0 : i32
    return %c0_i32, %c0_i32_0 : i32, i32
  }
  func.func @transform_3(%arg0: i32) -> (i32, i32) {
    %c0_i32 = arith.constant 0 : i32
    %c0_i32_0 = arith.constant 0 : i32
    %c0_i32_1 = arith.constant 0 : i32
    return %c0_i32, %c0_i32_0 : i32, i32
  }
  func.func @transform_4(%arg0: i32) -> (i32, i32) {
    %c0_i32 = arith.constant 0 : i32
    %c0_i32_0 = arith.constant 0 : i32
    %c0_i32_1 = arith.constant 0 : i32
    return %c0_i32, %c0_i32_0 : i32, i32
  }
  func.func @transform_5(%arg0: i32) -> (i32, i32) {
    %c0_i32 = arith.constant 0 : i32
    %c0_i32_0 = arith.constant 0 : i32
    return %arg0, %c0_i32 : i32, i32
  }
}

module attributes {stable_mosaic.version = 11 : i64} {
  func.func @_layernorm_kernel(%arg0: i32, %arg1: memref<26x32xf32, #tpu.memory_space<vmem>>, %arg2: memref<1x32xf32, #tpu.memory_space<vmem>>, %arg3: memref<1x32xf32, #tpu.memory_space<vmem>>, %arg4: memref<26x32xf32, #tpu.memory_space<vmem>>) attributes {dimension_semantics = [#tpu.dimension_semantics<parallel>], iteration_bounds = array<i64: 1>, scalar_prefetch = 0 : i64, scratch_operands = 0 : i64, tpu.core_type = #tpu.core_type<tc>, window_params = [{transform_indices = @transform_0, window_bounds = array<i64: 26, 32>}, {pipeline_mode = #tpu.pipeline_mode<synchronous>, transform_indices = @transform_1, window_bounds = array<i64: 1, 32>}, {pipeline_mode = #tpu.pipeline_mode<synchronous>, transform_indices = @transform_2, window_bounds = array<i64: 1, 32>}, {transform_indices = @transform_3, window_bounds = array<i64: 26, 32>}]} {
    %c0 = arith.constant 0 : index
    %c0_0 = arith.constant 0 : index
    %0 = vector.load %arg1[%c0, %c0_0] : memref<26x32xf32, #tpu.memory_space<vmem>>, vector<26x32xf32>
    %cst = arith.constant dense<0.000000e+00> : vector<26xf32>
    %1 = vector.multi_reduction <add>, %0, %cst [1] : vector<26x32xf32> to vector<26xf32>
    %2 = vector.shape_cast %1 : vector<26xf32> to vector<26x1xf32>
    %cst_1 = arith.constant 3.200000e+01 : f32
    %3 = vector.broadcast %cst_1 : f32 to vector<26x1xf32>
    %4 = arith.divf %2, %3 : vector<26x1xf32>
    %5 = vector.broadcast %4 : vector<26x1xf32> to vector<26x32xf32>
    %6 = arith.subf %0, %5 : vector<26x32xf32>
    %7 = arith.mulf %6, %6 : vector<26x32xf32>
    %cst_2 = arith.constant dense<0.000000e+00> : vector<26xf32>
    %8 = vector.multi_reduction <add>, %7, %cst_2 [1] : vector<26x32xf32> to vector<26xf32>
    %9 = vector.shape_cast %8 : vector<26xf32> to vector<26x1xf32>
    %cst_3 = arith.constant 3.200000e+01 : f32
    %10 = vector.broadcast %cst_3 : f32 to vector<26x1xf32>
    %11 = arith.divf %9, %10 : vector<26x1xf32>
    %cst_4 = arith.constant 9.99999974E-6 : f32
    %12 = vector.broadcast %cst_4 : f32 to vector<26x1xf32>
    %13 = arith.addf %11, %12 : vector<26x1xf32>
    %14 = math.rsqrt %13 : vector<26x1xf32>
    %15 = vector.broadcast %14 : vector<26x1xf32> to vector<26x32xf32>
    %16 = arith.mulf %6, %15 : vector<26x32xf32>
    %c0_5 = arith.constant 0 : index
    %c0_6 = arith.constant 0 : index
    %17 = vector.load %arg2[%c0_5, %c0_6] : memref<1x32xf32, #tpu.memory_space<vmem>>, vector<1x32xf32>
    %18 = vector.broadcast %17 : vector<1x32xf32> to vector<26x32xf32>
    %19 = arith.mulf %16, %18 : vector<26x32xf32>
    %c0_7 = arith.constant 0 : index
    %c0_8 = arith.constant 0 : index
    %20 = vector.load %arg3[%c0_7, %c0_8] : memref<1x32xf32, #tpu.memory_space<vmem>>, vector<1x32xf32>
    %21 = vector.broadcast %20 : vector<1x32xf32> to vector<26x32xf32>
    %22 = arith.addf %19, %21 : vector<26x32xf32>
    %c0_9 = arith.constant 0 : index
    %c0_10 = arith.constant 0 : index
    %23 = vector.load %arg4[%c0_9, %c0_10] : memref<26x32xf32, #tpu.memory_space<vmem>>, vector<26x32xf32>
    tpu.vector_store %arg4[%c0_9, %c0_10], %22 {strides = array<i32>} : memref<26x32xf32, #tpu.memory_space<vmem>>, vector<26x32xf32>,
    return
  }
  func.func @transform_0(%arg0: i32) -> (i32, i32) {
    %c0_i32 = arith.constant 0 : i32
    %c0_i32_0 = arith.constant 0 : i32
    return %arg0, %c0_i32 : i32, i32
  }
  func.func @transform_1(%arg0: i32) -> (i32, i32) {
    %c0_i32 = arith.constant 0 : i32
    %c0_i32_0 = arith.constant 0 : i32
    %c0_i32_1 = arith.constant 0 : i32
    return %c0_i32, %c0_i32_0 : i32, i32
  }
  func.func @transform_2(%arg0: i32) -> (i32, i32) {
    %c0_i32 = arith.constant 0 : i32
    %c0_i32_0 = arith.constant 0 : i32
    %c0_i32_1 = arith.constant 0 : i32
    return %c0_i32, %c0_i32_0 : i32, i32
  }
  func.func @transform_3(%arg0: i32) -> (i32, i32) {
    %c0_i32 = arith.constant 0 : i32
    %c0_i32_0 = arith.constant 0 : i32
    return %arg0, %c0_i32 : i32, i32
  }
}

module attributes {stable_mosaic.version = 11 : i64} {
  func.func @_asp_kernel(%arg0: i32, %arg1: memref<1x13x32xf32, #tpu.memory_space<vmem>>, %arg2: memref<32x16xbf16, #tpu.memory_space<vmem>>, %arg3: memref<32x16xbf16, #tpu.memory_space<vmem>>, %arg4: memref<32x16xbf16, #tpu.memory_space<vmem>>, %arg5: memref<1x16xf32, #tpu.memory_space<vmem>>, %arg6: memref<1x16xf32, #tpu.memory_space<vmem>>, %arg7: memref<1x16xf32, #tpu.memory_space<vmem>>, %arg8: memref<16x32xbf16, #tpu.memory_space<vmem>>, %arg9: memref<1x32xf32, #tpu.memory_space<vmem>>, %arg10: memref<1x1x32xf32, #tpu.memory_space<vmem>>, %arg11: memref<1x1x32xf32, #tpu.memory_space<vmem>>) attributes {dimension_semantics = [#tpu.dimension_semantics<parallel>], iteration_bounds = array<i64: 2>, scalar_prefetch = 0 : i64, scratch_operands = 0 : i64, tpu.core_type = #tpu.core_type<tc>, window_params = [{transform_indices = @transform_0, window_bounds = array<i64: 1, 13, 32>}, {pipeline_mode = #tpu.pipeline_mode<synchronous>, transform_indices = @transform_1, window_bounds = array<i64: 32, 16>}, {pipeline_mode = #tpu.pipeline_mode<synchronous>, transform_indices = @transform_2, window_bounds = array<i64: 32, 16>}, {pipeline_mode = #tpu.pipeline_mode<synchronous>, transform_indices = @transform_3, window_bounds = array<i64: 32, 16>}, {pipeline_mode = #tpu.pipeline_mode<synchronous>, transform_indices = @transform_4, window_bounds = array<i64: 1, 16>}, {pipeline_mode = #tpu.pipeline_mode<synchronous>, transform_indices = @transform_5, window_bounds = array<i64: 1, 16>}, {pipeline_mode = #tpu.pipeline_mode<synchronous>, transform_indices = @transform_6, window_bounds = array<i64: 1, 16>}, {pipeline_mode = #tpu.pipeline_mode<synchronous>, transform_indices = @transform_7, window_bounds = array<i64: 16, 32>}, {pipeline_mode = #tpu.pipeline_mode<synchronous>, transform_indices = @transform_8, window_bounds = array<i64: 1, 32>}, {transform_indices = @transform_9, window_bounds = array<i64: 1, 1, 32>}, {transform_indices = @transform_10, window_bounds = array<i64: 1, 1, 32>}]} {
    %c0 = arith.constant 0 : index
    %c0_0 = arith.constant 0 : index
    %c0_1 = arith.constant 0 : index
    %0 = vector.load %arg1[%c0, %c0_0, %c0_1] : memref<1x13x32xf32, #tpu.memory_space<vmem>>, vector<1x13x32xf32>
    %1 = vector.shape_cast %0 : vector<1x13x32xf32> to vector<13x32xf32>
    %cst = arith.constant dense<0.000000e+00> : vector<32xf32>
    %2 = vector.multi_reduction <add>, %1, %cst [0] : vector<13x32xf32> to vector<32xf32>
    %3 = vector.shape_cast %2 : vector<32xf32> to vector<1x32xf32>
    %cst_2 = arith.constant 1.300000e+01 : f32
    %4 = vector.broadcast %cst_2 : f32 to vector<1x32xf32>
    %5 = arith.divf %3, %4 : vector<1x32xf32>
    %6 = vector.broadcast %5 : vector<1x32xf32> to vector<13x32xf32>
    %7 = arith.subf %1, %6 : vector<13x32xf32>
    %8 = arith.mulf %7, %7 : vector<13x32xf32>
    %cst_3 = arith.constant dense<0.000000e+00> : vector<32xf32>
    %9 = vector.multi_reduction <add>, %8, %cst_3 [0] : vector<13x32xf32> to vector<32xf32>
    %10 = vector.shape_cast %9 : vector<32xf32> to vector<1x32xf32>
    %cst_4 = arith.constant 1.300000e+01 : f32
    %11 = vector.broadcast %cst_4 : f32 to vector<1x32xf32>
    %12 = arith.divf %10, %11 : vector<1x32xf32>
    %cst_5 = arith.constant 9.99999996E-13 : f32
    %13 = vector.broadcast %cst_5 : f32 to vector<1x32xf32>
    %14 = arith.maximumf %12, %13 : vector<1x32xf32>
    %15 = math.sqrt %14 : vector<1x32xf32>
    %16 = arith.truncf %1 : vector<13x32xf32> to vector<13x32xbf16>
    %c0_6 = arith.constant 0 : index
    %c0_7 = arith.constant 0 : index
    %17 = vector.load %arg2[%c0_6, %c0_7] : memref<32x16xbf16, #tpu.memory_space<vmem>>, vector<32x16xbf16>
    %cst_8 = arith.constant dense<0.000000e+00> : vector<13x16xf32>
    %18 = tpu.matmul %16, %17, %cst_8 {dimension_numbers = #tpu.dot_dimension_numbers<[1], [0], [0], [1], [0, 0, 1, 1], [], []>} : vector<13x32xbf16>, vector<32x16xbf16>, vector<13x16xf32> -> vector<13x16xf32>
    %19 = arith.truncf %5 : vector<1x32xf32> to vector<1x32xbf16>
    %c0_9 = arith.constant 0 : index
    %c0_10 = arith.constant 0 : index
    %20 = vector.load %arg3[%c0_9, %c0_10] : memref<32x16xbf16, #tpu.memory_space<vmem>>, vector<32x16xbf16>
    %cst_11 = arith.constant dense<0.000000e+00> : vector<1x16xf32>
    %21 = tpu.matmul %19, %20, %cst_11 {dimension_numbers = #tpu.dot_dimension_numbers<[1], [0], [0], [1], [0, 0, 1, 1], [], []>} : vector<1x32xbf16>, vector<32x16xbf16>, vector<1x16xf32> -> vector<1x16xf32>
    %22 = vector.broadcast %21 : vector<1x16xf32> to vector<13x16xf32>
    %23 = arith.addf %18, %22 : vector<13x16xf32>
    %24 = arith.truncf %15 : vector<1x32xf32> to vector<1x32xbf16>
    %c0_12 = arith.constant 0 : index
    %c0_13 = arith.constant 0 : index
    %25 = vector.load %arg4[%c0_12, %c0_13] : memref<32x16xbf16, #tpu.memory_space<vmem>>, vector<32x16xbf16>
    %cst_14 = arith.constant dense<0.000000e+00> : vector<1x16xf32>
    %26 = tpu.matmul %24, %25, %cst_14 {dimension_numbers = #tpu.dot_dimension_numbers<[1], [0], [0], [1], [0, 0, 1, 1], [], []>} : vector<1x32xbf16>, vector<32x16xbf16>, vector<1x16xf32> -> vector<1x16xf32>
    %27 = vector.broadcast %26 : vector<1x16xf32> to vector<13x16xf32>
    %28 = arith.addf %23, %27 : vector<13x16xf32>
    %c0_15 = arith.constant 0 : index
    %c0_16 = arith.constant 0 : index
    %29 = vector.load %arg5[%c0_15, %c0_16] : memref<1x16xf32, #tpu.memory_space<vmem>>, vector<1x16xf32>
    %30 = vector.broadcast %29 : vector<1x16xf32> to vector<13x16xf32>
    %31 = arith.addf %28, %30 : vector<13x16xf32>
    %cst_17 = arith.constant 0.000000e+00 : f32
    %32 = vector.broadcast %cst_17 : f32 to vector<13x16xf32>
    %33 = arith.maximumf %31, %32 : vector<13x16xf32>
    %c0_18 = arith.constant 0 : index
    %c0_19 = arith.constant 0 : index
    %34 = vector.load %arg6[%c0_18, %c0_19] : memref<1x16xf32, #tpu.memory_space<vmem>>, vector<1x16xf32>
    %35 = vector.broadcast %34 : vector<1x16xf32> to vector<13x16xf32>
    %36 = arith.mulf %33, %35 : vector<13x16xf32>
    %c0_20 = arith.constant 0 : index
    %c0_21 = arith.constant 0 : index
    %37 = vector.load %arg7[%c0_20, %c0_21] : memref<1x16xf32, #tpu.memory_space<vmem>>, vector<1x16xf32>
    %38 = vector.broadcast %37 : vector<1x16xf32> to vector<13x16xf32>
    %39 = arith.addf %36, %38 : vector<13x16xf32>
    %40 = math.tanh %39 : vector<13x16xf32>
    %41 = arith.truncf %40 : vector<13x16xf32> to vector<13x16xbf16>
    %c0_22 = arith.constant 0 : index
    %c0_23 = arith.constant 0 : index
    %42 = vector.load %arg8[%c0_22, %c0_23] : memref<16x32xbf16, #tpu.memory_space<vmem>>, vector<16x32xbf16>
    %cst_24 = arith.constant dense<0.000000e+00> : vector<13x32xf32>
    %43 = tpu.matmul %41, %42, %cst_24 {dimension_numbers = #tpu.dot_dimension_numbers<[1], [0], [0], [1], [0, 0, 1, 1], [], []>} : vector<13x16xbf16>, vector<16x32xbf16>, vector<13x32xf32> -> vector<13x32xf32>
    %c0_25 = arith.constant 0 : index
    %c0_26 = arith.constant 0 : index
    %44 = vector.load %arg9[%c0_25, %c0_26] : memref<1x32xf32, #tpu.memory_space<vmem>>, vector<1x32xf32>
    %45 = vector.broadcast %44 : vector<1x32xf32> to vector<13x32xf32>
    %46 = arith.addf %43, %45 : vector<13x32xf32>
    %cst_27 = arith.constant dense<0xFF800000> : vector<32xf32>
    %47 = vector.multi_reduction <maximumf>, %46, %cst_27 [0] : vector<13x32xf32> to vector<32xf32>
    %48 = vector.shape_cast %47 : vector<32xf32> to vector<1x32xf32>
    %49 = vector.broadcast %48 : vector<1x32xf32> to vector<13x32xf32>
    %50 = arith.subf %46, %49 : vector<13x32xf32>
    %51 = math.exp %50 : vector<13x32xf32>
    %cst_28 = arith.constant dense<0.000000e+00> : vector<32xf32>
    %52 = vector.multi_reduction <add>, %51, %cst_28 [0] : vector<13x32xf32> to vector<32xf32>
    %53 = vector.shape_cast %52 : vector<32xf32> to vector<1x32xf32>
    %54 = tpu.reciprocal %53 {approx = true} : vector<1x32xf32> -> vector<1x32xf32>
    %55 = vector.broadcast %54 : vector<1x32xf32> to vector<13x32xf32>
    %56 = arith.mulf %51, %55 : vector<13x32xf32>
    %57 = arith.mulf %56, %1 : vector<13x32xf32>
    %cst_29 = arith.constant dense<0.000000e+00> : vector<32xf32>
    %58 = vector.multi_reduction <add>, %57, %cst_29 [0] : vector<13x32xf32> to vector<32xf32>
    %59 = vector.shape_cast %58 : vector<32xf32> to vector<1x32xf32>
    %60 = vector.broadcast %59 : vector<1x32xf32> to vector<13x32xf32>
    %61 = arith.subf %1, %60 : vector<13x32xf32>
    %62 = arith.mulf %61, %61 : vector<13x32xf32>
    %63 = arith.mulf %56, %62 : vector<13x32xf32>
    %cst_30 = arith.constant dense<0.000000e+00> : vector<32xf32>
    %64 = vector.multi_reduction <add>, %63, %cst_30 [0] : vector<13x32xf32> to vector<32xf32>
    %65 = vector.shape_cast %64 : vector<32xf32> to vector<1x32xf32>
    %66 = vector.shape_cast %59 : vector<1x32xf32> to vector<1x1x32xf32>
    %c0_31 = arith.constant 0 : index
    %c0_32 = arith.constant 0 : index
    %c0_33 = arith.constant 0 : index
    %67 = vector.load %arg10[%c0_31, %c0_32, %c0_33] : memref<1x1x32xf32, #tpu.memory_space<vmem>>, vector<1x1x32xf32>
    tpu.vector_store %arg10[%c0_31, %c0_32, %c0_33], %66 {strides = array<i32>} : memref<1x1x32xf32, #tpu.memory_space<vmem>>, vector<1x1x32xf32>,
    %cst_34 = arith.constant 9.99999996E-13 : f32
    %68 = vector.broadcast %cst_34 : f32 to vector<1x32xf32>
    %69 = arith.maximumf %65, %68 : vector<1x32xf32>
    %70 = math.sqrt %69 : vector<1x32xf32>
    %71 = vector.shape_cast %70 : vector<1x32xf32> to vector<1x1x32xf32>
    %c0_35 = arith.constant 0 : index
    %c0_36 = arith.constant 0 : index
    %c0_37 = arith.constant 0 : index
    %72 = vector.load %arg11[%c0_35, %c0_36, %c0_37] : memref<1x1x32xf32, #tpu.memory_space<vmem>>, vector<1x1x32xf32>
    tpu.vector_store %arg11[%c0_35, %c0_36, %c0_37], %71 {strides = array<i32>} : memref<1x1x32xf32, #tpu.memory_space<vmem>>, vector<1x1x32xf32>,
    return
  }
  func.func @transform_0(%arg0: i32) -> (i32, i32, i32) {
    %c0_i32 = arith.constant 0 : i32
    %c0_i32_0 = arith.constant 0 : i32
    %c0_i32_1 = arith.constant 0 : i32
    return %arg0, %c0_i32, %c0_i32_0 : i32, i32, i32
  }
  func.func @transform_1(%arg0: i32) -> (i32, i32) {
    %c0_i32 = arith.constant 0 : i32
    %c0_i32_0 = arith.constant 0 : i32
    %c0_i32_1 = arith.constant 0 : i32
    return %c0_i32, %c0_i32_0 : i32, i32
  }
  func.func @transform_2(%arg0: i32) -> (i32, i32) {
    %c0_i32 = arith.constant 0 : i32
    %c0_i32_0 = arith.constant 0 : i32
    %c0_i32_1 = arith.constant 0 : i32
    return %c0_i32, %c0_i32_0 : i32, i32
  }
  func.func @transform_3(%arg0: i32) -> (i32, i32) {
    %c0_i32 = arith.constant 0 : i32
    %c0_i32_0 = arith.constant 0 : i32
    %c0_i32_1 = arith.constant 0 : i32
    return %c0_i32, %c0_i32_0 : i32, i32
  }
  func.func @transform_4(%arg0: i32) -> (i32, i32) {
    %c0_i32 = arith.constant 0 : i32
    %c0_i32_0 = arith.constant 0 : i32
    %c0_i32_1 = arith.constant 0 : i32
    return %c0_i32, %c0_i32_0 : i32, i32
  }
  func.func @transform_5(%arg0: i32) -> (i32, i32) {
    %c0_i32 = arith.constant 0 : i32
    %c0_i32_0 = arith.constant 0 : i32
    %c0_i32_1 = arith.constant 0 : i32
    return %c0_i32, %c0_i32_0 : i32, i32
  }
  func.func @transform_6(%arg0: i32) -> (i32, i32) {
    %c0_i32 = arith.constant 0 : i32
    %c0_i32_0 = arith.constant 0 : i32
    %c0_i32_1 = arith.constant 0 : i32
    return %c0_i32, %c0_i32_0 : i32, i32
  }
  func.func @transform_7(%arg0: i32) -> (i32, i32) {
    %c0_i32 = arith.constant 0 : i32
    %c0_i32_0 = arith.constant 0 : i32
    %c0_i32_1 = arith.constant 0 : i32
    return %c0_i32, %c0_i32_0 : i32, i32
  }
  func.func @transform_8(%arg0: i32) -> (i32, i32) {
    %c0_i32 = arith.constant 0 : i32
    %c0_i32_0 = arith.constant 0 : i32
    %c0_i32_1 = arith.constant 0 : i32
    return %c0_i32, %c0_i32_0 : i32, i32
  }
  func.func @transform_9(%arg0: i32) -> (i32, i32, i32) {
    %c0_i32 = arith.constant 0 : i32
    %c0_i32_0 = arith.constant 0 : i32
    %c0_i32_1 = arith.constant 0 : i32
    return %arg0, %c0_i32, %c0_i32_0 : i32, i32, i32
  }
  func.func @transform_10(%arg0: i32) -> (i32, i32, i32) {
    %c0_i32 = arith.constant 0 : i32
    %c0_i32_0 = arith.constant 0 : i32
    %c0_i32_1 = arith.constant 0 : i32
    return %arg0, %c0_i32, %c0_i32_0 : i32, i32, i32
  }
}

module attributes {stable_mosaic.version = 11 : i64} {
  func.func @_linear_kernel(%arg0: i32, %arg1: memref<2x64xf32, #tpu.memory_space<vmem>>, %arg2: memref<64x16xbf16, #tpu.memory_space<vmem>>, %arg3: memref<1x16xf32, #tpu.memory_space<vmem>>, %arg4: memref<2x16xf32, #tpu.memory_space<vmem>>) attributes {dimension_semantics = [#tpu.dimension_semantics<parallel>], iteration_bounds = array<i64: 1>, scalar_prefetch = 0 : i64, scratch_operands = 0 : i64, tpu.core_type = #tpu.core_type<tc>, window_params = [{transform_indices = @transform_0, window_bounds = array<i64: 2, 64>}, {pipeline_mode = #tpu.pipeline_mode<synchronous>, transform_indices = @transform_1, window_bounds = array<i64: 64, 16>}, {pipeline_mode = #tpu.pipeline_mode<synchronous>, transform_indices = @transform_2, window_bounds = array<i64: 1, 16>}, {transform_indices = @transform_3, window_bounds = array<i64: 2, 16>}]} {
    %c0 = arith.constant 0 : index
    %c0_0 = arith.constant 0 : index
    %0 = vector.load %arg1[%c0, %c0_0] : memref<2x64xf32, #tpu.memory_space<vmem>>, vector<2x64xf32>
    %1 = arith.truncf %0 : vector<2x64xf32> to vector<2x64xbf16>
    %c0_1 = arith.constant 0 : index
    %c0_2 = arith.constant 0 : index
    %2 = vector.load %arg2[%c0_1, %c0_2] : memref<64x16xbf16, #tpu.memory_space<vmem>>, vector<64x16xbf16>
    %cst = arith.constant dense<0.000000e+00> : vector<2x16xf32>
    %3 = tpu.matmul %1, %2, %cst {dimension_numbers = #tpu.dot_dimension_numbers<[1], [0], [0], [1], [0, 0, 1, 1], [], []>} : vector<2x64xbf16>, vector<64x16xbf16>, vector<2x16xf32> -> vector<2x16xf32>
    %c0_3 = arith.constant 0 : index
    %c0_4 = arith.constant 0 : index
    %4 = vector.load %arg3[%c0_3, %c0_4] : memref<1x16xf32, #tpu.memory_space<vmem>>, vector<1x16xf32>
    %5 = vector.broadcast %4 : vector<1x16xf32> to vector<2x16xf32>
    %6 = arith.addf %3, %5 : vector<2x16xf32>
    %c0_5 = arith.constant 0 : index
    %c0_6 = arith.constant 0 : index
    %7 = vector.load %arg4[%c0_5, %c0_6] : memref<2x16xf32, #tpu.memory_space<vmem>>, vector<2x16xf32>
    tpu.vector_store %arg4[%c0_5, %c0_6], %6 {strides = array<i32>} : memref<2x16xf32, #tpu.memory_space<vmem>>, vector<2x16xf32>,
    return
  }
  func.func @transform_0(%arg0: i32) -> (i32, i32) {
    %c0_i32 = arith.constant 0 : i32
    %c0_i32_0 = arith.constant 0 : i32
    return %arg0, %c0_i32 : i32, i32
  }
  func.func @transform_1(%arg0: i32) -> (i32, i32) {
    %c0_i32 = arith.constant 0 : i32
    %c0_i32_0 = arith.constant 0 : i32
    %c0_i32_1 = arith.constant 0 : i32
    return %c0_i32, %c0_i32_0 : i32, i32
  }
  func.func @transform_2(%arg0: i32) -> (i32, i32) {
    %c0_i32 = arith.constant 0 : i32
    %c0_i32_0 = arith.constant 0 : i32
    %c0_i32_1 = arith.constant 0 : i32
    return %c0_i32, %c0_i32_0 : i32, i32
  }
  func.func @transform_3(%arg0: i32) -> (i32, i32) {
    %c0_i32 = arith.constant 0 : i32
    %c0_i32_0 = arith.constant 0 : i32
    return %arg0, %c0_i32 : i32, i32
  }
}

</mosaic_0001>

<llo_original>
// kernel: _lambda_.20
$region0: #{_lambda_.20}
  #allocation0 [shape = 'u32[]', space=smem, size = 0x4, offset = 0x4, fixed_abs, tag = 'smem constant byte address 0x4 - core index']
  #allocation1 [shape = 'u32[144,128]{1,0:T(1,128)}', space=vmem, size = 0x12000, scoped, tag = 'internal scratch']
  %s0 = inlined_call_operand.vmem [shape: bf16[210,9], index: 0, kind: input, shape index: {}]
  %s1 = inlined_call_operand.hbm [shape: bf16[9,32], index: 1, kind: input, shape index: {}]
  %s2 = inlined_call_operand.hbm [shape: f32[1,32], index: 2, kind: input, shape index: {}]
  %s3 = inlined_call_operand.vmem [shape: bf16[210,32], index: 3, kind: output, shape index: {}]
  %s4 = sld [smem:[#allocation0]]
  $region30: #{_lambda_.20} parent=0
    _
  %s6 = ssub.s32 1, %s4
  %s7 = scalar_select 0, %s6, %s4
  $region1: #{_lambda_.20} parent=0
    #allocation2 [shape = 'u8[4096]{0}', space=vmem, size = 0x1000, scoped, tag = 'input window, operand 1, single buffered']
    #allocation3 [shape = 's32[1]{0}', space=sflag, size = 0x4, scoped, tag = 'scoped memory for _lambda_.20']
    #allocation4 [shape = 'u8[512]{0}', space=vmem, size = 0x400, scoped, tag = 'input window, operand 2, single buffered']
    #allocation5 [shape = 's32[1]{0}', space=sflag, size = 0x4, scoped, tag = 'scoped memory for _lambda_.20']
    %8 = vsyncpa [#allocation3], 0
    %9 = vsyncpa [#allocation5], 0
    // Predicated region
    $region2: #{_lambda_.20} parent=1 // pred_check
      _
    $region3: #{_lambda_.20} parent=1 // pred_check_branch
      %11 = sbr.rel (0) target = $region5
    $region4: #{_lambda_.20} parent=1 // pred_region
      _
    $region5: #{_lambda_.20} parent=1 // pred_fallthru
      _
    // Predicated region
    $region6: #{_lambda_.20} parent=1 // pred_check
      _
    $region7: #{_lambda_.20} parent=1 // pred_check_branch
      %13 = sbr.rel (0) target = $region9
    $region8: #{_lambda_.20} parent=1 // pred_region
      %s15 = ssub.s32 128, 128
      %16 = vsyncadd [#allocation3], %s15
      %s17 = sshll.u32 [#allocation2], 4
      %s18 = int_to_ptr.vmem [resolvable:$true] %s17
      %23 = dma.hbm_to_vmem [thread:$0]  %s1, 128, %s18, [#allocation3], 64, 64, 4
    $region9: #{_lambda_.20} parent=1 // pred_fallthru
      _
    // Predicated region
    $region10: #{_lambda_.20} parent=1 // pred_check
      _
    $region11: #{_lambda_.20} parent=1 // pred_check_branch
      %25 = sbr.rel (0) target = $region13
    $region12: #{_lambda_.20} parent=1 // pred_region
      %s27 = ssub.s32 16, 16
      %28 = vsyncadd [#allocation5], %s27
      %s30 = sshll.u32 [#allocation4], 4
      %s31 = int_to_ptr.vmem [resolvable:$true] %s30
      %33 = dma.hbm_to_vmem [thread:$0]  %s2, 16, %s31, [#allocation5]
    $region13: #{_lambda_.20} parent=1 // pred_fallthru
      _
    // Predicated region
    $region14: #{_lambda_.20} parent=1 // pred_check
      _
    $region15: #{_lambda_.20} parent=1 // pred_check_branch
      %35 = sbr.rel (0) target = $region17
    $region16: #{_lambda_.20} parent=1 // pred_region
      %36 = dma.done [#allocation3], 128
    $region17: #{_lambda_.20} parent=1 // pred_fallthru
      _
    // Predicated region
    $region18: #{_lambda_.20} parent=1 // pred_check
      _
    $region19: #{_lambda_.20} parent=1 // pred_check_branch
      %38 = sbr.rel (0) target = $region21
    $region20: #{_lambda_.20} parent=1 // pred_region
      %39 = dma.done [#allocation5], 16
    $region21: #{_lambda_.20} parent=1 // pred_fallthru
      _
    %v41 = vld [vmem:[%s0] sm:$0xf]
    %v42 = vld [vmem:[%s0 + $0x4] sm:$0xf]
    %v43 = vld [vmem:[%s0 + $0x8] sm:$0xf]
    %v44 = vld [vmem:[%s0 + $0xc] sm:$0xf]
    %v45 = vld [vmem:[%s0 + $0x10] sm:$0xf]
    %v46 = vld [vmem:[%s0 + $0x14] sm:$0xf]
    %v47 = vld [vmem:[%s0 + $0x18] sm:$0xf]
    %v48 = vld [vmem:[%s0 + $0x1c] sm:$0xf]
    %v49 = vld [vmem:[%s0 + $0x20] sm:$0xf]
    %v50 = vld [vmem:[%s0 + $0x24] sm:$0xf]
    %v51 = vld [vmem:[%s0 + $0x28] sm:$0xf]
    %v52 = vld [vmem:[%s0 + $0x2c] sm:$0xf]
    %v53 = vld [vmem:[%s0 + $0x30] sm:$0xf]
    %v54 = vld [vmem:[%s0 + $0x34] sm:$0xf]
    %v55 = vld [vmem:[%s0 + $0x38] sm:$0xf]
    %v56 = vld [vmem:[%s0 + $0x3c] sm:$0xf]
    %v57 = vld [vmem:[%s0 + $0x40] sm:$0xf]
    %v58 = vld [vmem:[%s0 + $0x44] sm:$0xf]
    %v59 = vld [vmem:[%s0 + $0x48] sm:$0xf]
    %v60 = vld [vmem:[%s0 + $0x4c] sm:$0xf]
    %v61 = vld [vmem:[%s0 + $0x50] sm:$0xf]
    %v62 = vld [vmem:[%s0 + $0x54] sm:$0xf]
    %v63 = vld [vmem:[%s0 + $0x58] sm:$0xf]
    %v64 = vld [vmem:[%s0 + $0x5c] sm:$0xf]
    %v65 = vld [vmem:[%s0 + $0x60] sm:$0xf]
    %v66 = vld [vmem:[%s0 + $0x64] sm:$0xf]
    %v67 = vld [vmem:[%s0 + $0x68] sm:$0x1]
    %v68 = vld [vmem:[#allocation2] sm:$0xf]
    %v69 = vld [vmem:[#allocation2 + $0x4] sm:$0x1]
    %v70 = vld [vmem:[#allocation4] sm:$0x1]
    %v72 = vlaneseq
    %v73 = vshrl.u32 %v72, 7
    %v74 = vsub.s32 0, %v73
    %v75 = vrot.slane %v70, %v74
    %v104 = vunpack.c.l.b16 %v41
    %v105 = vunpack.c.l.b16 %v42
    %v106 = vunpack.c.l.b16 %v43
    %v107 = vunpack.c.l.b16 %v44
    %v108 = vunpack.c.l.b16 %v45
    %v109 = vunpack.c.l.b16 %v46
    %v110 = vunpack.c.l.b16 %v47
    %v111 = vunpack.c.l.b16 %v48
    %v112 = vunpack.c.l.b16 %v49
    %v113 = vunpack.c.l.b16 %v50
    %v114 = vunpack.c.l.b16 %v51
    %v115 = vunpack.c.l.b16 %v52
    %v116 = vunpack.c.l.b16 %v53
    %v117 = vunpack.c.l.b16 %v54
    %v118 = vunpack.c.l.b16 %v55
    %v119 = vunpack.c.l.b16 %v56
    %v120 = vunpack.c.l.b16 %v57
    %v121 = vunpack.c.l.b16 %v58
    %v122 = vunpack.c.l.b16 %v59
    %v123 = vunpack.c.l.b16 %v60
    %v124 = vunpack.c.l.b16 %v61
    %v125 = vunpack.c.l.b16 %v62
    %v126 = vunpack.c.l.b16 %v63
    %v127 = vunpack.c.l.b16 %v64
    %v128 = vunpack.c.l.b16 %v65
    %v129 = vunpack.c.l.b16 %v66
    %v130 = vunpack.c.l.b16 %v67
    %v131 = vpack.c.b16 %v105, %v104
    %v132 = vpack.c.b16 %v107, %v106
    %v133 = vpack.c.b16 %v109, %v108
    %v134 = vpack.c.b16 %v111, %v110
    %v135 = vpack.c.b16 %v113, %v112
    %v136 = vpack.c.b16 %v115, %v114
    %v137 = vpack.c.b16 %v117, %v116
    %v138 = vpack.c.b16 %v119, %v118
    %v139 = vpack.c.b16 %v121, %v120
    %v140 = vpack.c.b16 %v123, %v122
    %v141 = vpack.c.b16 %v125, %v124
    %v142 = vpack.c.b16 %v127, %v126
    %v143 = vpack.c.b16 %v129, %v128
    %v144 = vpack.c.b16 %v130, %v130
    %v147 = vunpack.c.l.b16 %v68
    %v148 = vunpack.c.l.b16 %v69
    %v149 = vpack.c.b16 %v148, %v147
    %vm150 = vcmask 72704
    %v152 = vsel %vm150, %v131, 0
    %v155 = vsel %vm150, %v132, 0
    %v158 = vsel %vm150, %v133, 0
    %v161 = vsel %vm150, %v134, 0
    %v164 = vsel %vm150, %v135, 0
    %v167 = vsel %vm150, %v136, 0
    %v170 = vsel %vm150, %v137, 0
    %v173 = vsel %vm150, %v138, 0
    %v176 = vsel %vm150, %v139, 0
    %v179 = vsel %vm150, %v140, 0
    %v182 = vsel %vm150, %v141, 0
    %v185 = vsel %vm150, %v142, 0
    %v188 = vsel %vm150, %v143, 0
    %v191 = vsel %vm150, %v144, 0
    %vm193 = vcmask 1043456
    %vm194 = vcmask 1044480
    %v195 = vsel %vm193, 4294967295, 65535
    %v196 = vsel %vm194, %v195, 0
    %v198 = vand.u32 %v149, %v196
    %200 = vmatprep.subr.bf16.mxu0 0
    %201 = vmatpush1.bf16.msra.mxu0 0
    %202 = vmatprep.subr.bf16.mxu0 0
    %203 = vmatpush1.bf16.msra.mxu0 0
    %204 = vmatprep.subr.bf16.mxu0 0
    %205 = vmatpush1.bf16.msra.mxu0 0
    %206 = vmatprep.subr.bf16.mxu0 0
    %207 = vmatpush1.bf16.msra.mxu0 0
    %208 = vmatprep.subr.bf16.mxu0 0
    %209 = vmatpush1.bf16.msra.mxu0 0
    %210 = vmatprep.subr.bf16.mxu0 0
    %211 = vmatpush1.bf16.msra.mxu0 0
    %212 = vmatprep.subr.bf16.mxu0 0
    %213 = vmatpush1.bf16.msra.mxu0 0
    %214 = vmatprep.subr.bf16.mxu0 0
    %215 = vmatpush1.bf16.msra.mxu0 %v198
    %216 = vmatprep.subr.bf16.mxu0 0
    %217 = vmatpush2.bf16.msra.mxu0 0
    %218 = vmatprep.subr.bf16.mxu0 0
    %219 = vmatpush2.bf16.msra.mxu0 0
    %220 = vmatprep.subr.bf16.mxu0 0
    %221 = vmatpush2.bf16.msra.mxu0 0
    %222 = vmatprep.subr.bf16.mxu0 0
    %223 = vmatpush2.bf16.msra.mxu0 0
    %224 = vmatprep.subr.bf16.mxu0 0
    %225 = vmatpush2.bf16.msra.mxu0 0
    %226 = vmatprep.subr.bf16.mxu0 0
    %227 = vmatpush2.bf16.msra.mxu0 0
    %228 = vmatprep.subr.bf16.mxu0 0
    %229 = vmatpush2.bf16.msra.mxu0 0
    %230 = vmatprep.subr.bf16.mxu0 0
    %231 = vmatpush2.bf16.msra.mxu0 0
    %232 = vmatprep.mubr.bf16.mxu0 0
    %233 = vmatmul.mubr.bf16.gmra.mxu0 %v152
    %v234 = vpop.f32.mrf.mxu0
    %v235 = vadd.f32 %v75, %v234
    %v236 = vpop.f32.mrf.mxu0
    %v237 = vpop.f32.mrf.mxu0
    %v238 = vadd.f32 %v75, %v237
    %v239 = vpop.f32.mrf.mxu0
    %240 = vmatprep.mubr.bf16.mxu0 0
    %241 = vmatmul.mubr.bf16.gmra.mxu0 %v155
    %v242 = vpop.f32.mrf.mxu0
    %v243 = vadd.f32 %v75, %v242
    %v244 = vpop.f32.mrf.mxu0
    %v245 = vpop.f32.mrf.mxu0
    %v246 = vadd.f32 %v75, %v245
    %v247 = vpop.f32.mrf.mxu0
    %248 = vmatprep.mubr.bf16.mxu0 0
    %249 = vmatmul.mubr.bf16.gmra.mxu0 %v158
    %v250 = vpop.f32.mrf.mxu0
    %v251 = vadd.f32 %v75, %v250
    %v252 = vpop.f32.mrf.mxu0
    %v253 = vpop.f32.mrf.mxu0
    %v254 = vadd.f32 %v75, %v253
    %v255 = vpop.f32.mrf.mxu0
    %256 = vmatprep.mubr.bf16.mxu0 0
    %257 = vmatmul.mubr.bf16.gmra.mxu0 %v161
    %v258 = vpop.f32.mrf.mxu0
    %v259 = vadd.f32 %v75, %v258
    %v260 = vpop.f32.mrf.mxu0
    %v261 = vpop.f32.mrf.mxu0
    %v262 = vadd.f32 %v75, %v261
    %v263 = vpop.f32.mrf.mxu0
    %264 = vmatprep.mubr.bf16.mxu0 0
    %265 = vmatmul.mubr.bf16.gmra.mxu0 %v164
    %v266 = vpop.f32.mrf.mxu0
    %v267 = vadd.f32 %v75, %v266
    %v268 = vpop.f32.mrf.mxu0
    %v269 = vpop.f32.mrf.mxu0
    %v270 = vadd.f32 %v75, %v269
    %v271 = vpop.f32.mrf.mxu0
    %272 = vmatprep.mubr.bf16.mxu0 0
    %273 = vmatmul.mubr.bf16.gmra.mxu0 %v167
    %v274 = vpop.f32.mrf.mxu0
    %v275 = vadd.f32 %v75, %v274
    %v276 = vpop.f32.mrf.mxu0
    %v277 = vpop.f32.mrf.mxu0
    %v278 = vadd.f32 %v75, %v277
    %v279 = vpop.f32.mrf.mxu0
    %280 = vmatprep.mubr.bf16.mxu0 0
    %281 = vmatmul.mubr.bf16.gmra.mxu0 %v170
    %v282 = vpop.f32.mrf.mxu0
    %v283 = vadd.f32 %v75, %v282
    %v284 = vpop.f32.mrf.mxu0
    %v285 = vpop.f32.mrf.mxu0
    %v286 = vadd.f32 %v75, %v285
    %v287 = vpop.f32.mrf.mxu0
    %288 = vmatprep.mubr.bf16.mxu0 0
    %289 = vmatmul.mubr.bf16.gmra.mxu0 %v173
    %v290 = vpop.f32.mrf.mxu0
    %v291 = vadd.f32 %v75, %v290
    %v292 = vpop.f32.mrf.mxu0
    %v293 = vpop.f32.mrf.mxu0
    %v294 = vadd.f32 %v75, %v293
    %v295 = vpop.f32.mrf.mxu0
    %296 = vmatprep.mubr.bf16.mxu0 0
    %297 = vmatmul.mubr.bf16.gmra.mxu0 %v176
    %v298 = vpop.f32.mrf.mxu0
    %v299 = vadd.f32 %v75, %v298
    %v300 = vpop.f32.mrf.mxu0
    %v301 = vpop.f32.mrf.mxu0
    %v302 = vadd.f32 %v75, %v301
    %v303 = vpop.f32.mrf.mxu0
    %304 = vmatprep.mubr.bf16.mxu0 0
    %305 = vmatmul.mubr.bf16.gmra.mxu0 %v179
    %v306 = vpop.f32.mrf.mxu0
    %v307 = vadd.f32 %v75, %v306
    %v308 = vpop.f32.mrf.mxu0
    %v309 = vpop.f32.mrf.mxu0
    %v310 = vadd.f32 %v75, %v309
    %v311 = vpop.f32.mrf.mxu0
    %312 = vmatprep.mubr.bf16.mxu0 0
    %313 = vmatmul.mubr.bf16.gmra.mxu0 %v182
    %v314 = vpop.f32.mrf.mxu0
    %v315 = vadd.f32 %v75, %v314
    %v316 = vpop.f32.mrf.mxu0
    %v317 = vpop.f32.mrf.mxu0
    %v318 = vadd.f32 %v75, %v317
    %v319 = vpop.f32.mrf.mxu0
    %320 = vmatprep.mubr.bf16.mxu0 0
    %321 = vmatmul.mubr.bf16.gmra.mxu0 %v185
    %v322 = vpop.f32.mrf.mxu0
    %v323 = vadd.f32 %v75, %v322
    %v324 = vpop.f32.mrf.mxu0
    %v325 = vpop.f32.mrf.mxu0
    %v326 = vadd.f32 %v75, %v325
    %v327 = vpop.f32.mrf.mxu0
    %328 = vmatprep.mubr.bf16.mxu0 0
    %329 = vmatmul.mubr.bf16.gmra.mxu0 %v188
    %v330 = vpop.f32.mrf.mxu0
    %v331 = vadd.f32 %v75, %v330
    %v332 = vpop.f32.mrf.mxu0
    %v333 = vpop.f32.mrf.mxu0
    %v334 = vadd.f32 %v75, %v333
    %v335 = vpop.f32.mrf.mxu0
    %336 = vmatprep.mubr.bf16.mxu0 0
    %337 = vmatmul.mubr.bf16.gmra.mxu0 %v191
    %v338 = vpop.f32.mrf.mxu0
    %v339 = vadd.f32 %v75, %v338
    %v340 = vpop.f32.mrf.mxu0
    %v341 = vpop.f32.mrf.mxu0
    %v342 = vpop.f32.mrf.mxu0
    %343 = vdwg.mxu0
    %v344 = vmax.f32 %v235, 0.0
    %v345 = vmax.f32 %v238, 0.0
    %v346 = vmax.f32 %v243, 0.0
    %v347 = vmax.f32 %v246, 0.0
    %v348 = vmax.f32 %v251, 0.0
    %v349 = vmax.f32 %v254, 0.0
    %v350 = vmax.f32 %v259, 0.0
    %v351 = vmax.f32 %v262, 0.0
    %v352 = vmax.f32 %v267, 0.0
    %v353 = vmax.f32 %v270, 0.0
    %v354 = vmax.f32 %v275, 0.0
    %v355 = vmax.f32 %v278, 0.0
    %v356 = vmax.f32 %v283, 0.0
    %v357 = vmax.f32 %v286, 0.0
    %v358 = vmax.f32 %v291, 0.0
    %v359 = vmax.f32 %v294, 0.0
    %v360 = vmax.f32 %v299, 0.0
    %v361 = vmax.f32 %v302, 0.0
    %v362 = vmax.f32 %v307, 0.0
    %v363 = vmax.f32 %v310, 0.0
    %v364 = vmax.f32 %v315, 0.0
    %v365 = vmax.f32 %v318, 0.0
    %v366 = vmax.f32 %v323, 0.0
    %v367 = vmax.f32 %v326, 0.0
    %v368 = vmax.f32 %v331, 0.0
    %v369 = vmax.f32 %v334, 0.0
    %v370 = vmax.f32 %v339, 0.0
    %v371 = vpack.c.bf16 %v345, %v344
    %v372 = vpack.c.bf16 %v347, %v346
    %v373 = vpack.c.bf16 %v349, %v348
    %v374 = vpack.c.bf16 %v351, %v350
    %v375 = vpack.c.bf16 %v353, %v352
    %v376 = vpack.c.bf16 %v355, %v354
    %v377 = vpack.c.bf16 %v357, %v356
    %v378 = vpack.c.bf16 %v359, %v358
    %v379 = vpack.c.bf16 %v361, %v360
    %v380 = vpack.c.bf16 %v363, %v362
    %v381 = vpack.c.bf16 %v365, %v364
    %v382 = vpack.c.bf16 %v367, %v366
    %v383 = vpack.c.bf16 %v369, %v368
    %v384 = vpack.c.bf16 %v370, %v370
    %v399 = vunpack.c.l.b16 %v371
    %v400 = vunpack.c.h.b16 %v371
    %v401 = vunpack.c.l.b16 %v372
    %v402 = vunpack.c.h.b16 %v372
    %v403 = vunpack.c.l.b16 %v373
    %v404 = vunpack.c.h.b16 %v373
    %v405 = vunpack.c.l.b16 %v374
    %v406 = vunpack.c.h.b16 %v374
    %v407 = vunpack.c.l.b16 %v375
    %v408 = vunpack.c.h.b16 %v375
    %v409 = vunpack.c.l.b16 %v376
    %v410 = vunpack.c.h.b16 %v376
    %v411 = vunpack.c.l.b16 %v377
    %v412 = vunpack.c.h.b16 %v377
    %v413 = vunpack.c.l.b16 %v378
    %v414 = vunpack.c.h.b16 %v378
    %v415 = vunpack.c.l.b16 %v379
    %v416 = vunpack.c.h.b16 %v379
    %v417 = vunpack.c.l.b16 %v380
    %v418 = vunpack.c.h.b16 %v380
    %v419 = vunpack.c.l.b16 %v381
    %v420 = vunpack.c.h.b16 %v381
    %v421 = vunpack.c.l.b16 %v382
    %v422 = vunpack.c.h.b16 %v382
    %v423 = vunpack.c.l.b16 %v383
    %v424 = vunpack.c.h.b16 %v383
    %v425 = vunpack.c.l.b16 %v384
    %v426 = vpack.c.b16 %v399, %v399
    %v427 = vpack.c.b16 %v400, %v400
    %v428 = vpack.c.b16 %v401, %v401
    %v429 = vpack.c.b16 %v402, %v402
    %v430 = vpack.c.b16 %v403, %v403
    %v431 = vpack.c.b16 %v404, %v404
    %v432 = vpack.c.b16 %v405, %v405
    %v433 = vpack.c.b16 %v406, %v406
    %v434 = vpack.c.b16 %v407, %v407
    %v435 = vpack.c.b16 %v408, %v408
    %v436 = vpack.c.b16 %v409, %v409
    %v437 = vpack.c.b16 %v410, %v410
    %v438 = vpack.c.b16 %v411, %v411
    %v439 = vpack.c.b16 %v412, %v412
    %v440 = vpack.c.b16 %v413, %v413
    %v441 = vpack.c.b16 %v414, %v414
    %v442 = vpack.c.b16 %v415, %v415
    %v443 = vpack.c.b16 %v416, %v416
    %v444 = vpack.c.b16 %v417, %v417
    %v445 = vpack.c.b16 %v418, %v418
    %v446 = vpack.c.b16 %v419, %v419
    %v447 = vpack.c.b16 %v420, %v420
    %v448 = vpack.c.b16 %v421, %v421
    %v449 = vpack.c.b16 %v422, %v422
    %v450 = vpack.c.b16 %v423, %v423
    %v451 = vpack.c.b16 %v424, %v424
    %v452 = vpack.c.b16 %v425, %v425
    %vm480 = vcmask 257024
    %481 = vst.msk [vmem:[%s3] sm:$0xf] %vm480, %v426
    %482 = vst.msk [vmem:[%s3 + $0x4] sm:$0xf] %vm480, %v427
    %483 = vst.msk [vmem:[%s3 + $0x8] sm:$0xf] %vm480, %v428
    %484 = vst.msk [vmem:[%s3 + $0xc] sm:$0xf] %vm480, %v429
    %485 = vst.msk [vmem:[%s3 + $0x10] sm:$0xf] %vm480, %v430
    %486 = vst.msk [vmem:[%s3 + $0x14] sm:$0xf] %vm480, %v431
    %487 = vst.msk [vmem:[%s3 + $0x18] sm:$0xf] %vm480, %v432
    %488 = vst.msk [vmem:[%s3 + $0x1c] sm:$0xf] %vm480, %v433
    %489 = vst.msk [vmem:[%s3 + $0x20] sm:$0xf] %vm480, %v434
    %490 = vst.msk [vmem:[%s3 + $0x24] sm:$0xf] %vm480, %v435
    %491 = vst.msk [vmem:[%s3 + $0x28] sm:$0xf] %vm480, %v436
    %492 = vst.msk [vmem:[%s3 + $0x2c] sm:$0xf] %vm480, %v437
    %493 = vst.msk [vmem:[%s3 + $0x30] sm:$0xf] %vm480, %v438
    %494 = vst.msk [vmem:[%s3 + $0x34] sm:$0xf] %vm480, %v439
    %495 = vst.msk [vmem:[%s3 + $0x38] sm:$0xf] %vm480, %v440
    %496 = vst.msk [vmem:[%s3 + $0x3c] sm:$0xf] %vm480, %v441
    %497 = vst.msk [vmem:[%s3 + $0x40] sm:$0xf] %vm480, %v442
    %498 = vst.msk [vmem:[%s3 + $0x44] sm:$0xf] %vm480, %v443
    %499 = vst.msk [vmem:[%s3 + $0x48] sm:$0xf] %vm480, %v444
    %500 = vst.msk [vmem:[%s3 + $0x4c] sm:$0xf] %vm480, %v445
    %501 = vst.msk [vmem:[%s3 + $0x50] sm:$0xf] %vm480, %v446
    %502 = vst.msk [vmem:[%s3 + $0x54] sm:$0xf] %vm480, %v447
    %503 = vst.msk [vmem:[%s3 + $0x58] sm:$0xf] %vm480, %v448
    %504 = vst.msk [vmem:[%s3 + $0x5c] sm:$0xf] %vm480, %v449
    %505 = vst.msk [vmem:[%s3 + $0x60] sm:$0xf] %vm480, %v450
    %506 = vst.msk [vmem:[%s3 + $0x64] sm:$0xf] %vm480, %v451
    %vm507 = vcmask 253952
    %508 = vst.msk [vmem:[%s3 + $0x68] sm:$0x1] %vm507, %v452
    // Predicated region
    $region22: #{_lambda_.20} parent=1 // pred_check
      _
    $region23: #{_lambda_.20} parent=1 // pred_check_branch
      %510 = sbr.rel (0) target = $region25
    $region24: #{_lambda_.20} parent=1 // pred_region
      _
    $region25: #{_lambda_.20} parent=1 // pred_fallthru
      _
    // Predicated region
    $region26: #{_lambda_.20} parent=1 // pred_check
      _
    $region27: #{_lambda_.20} parent=1 // pred_check_branch
      %512 = sbr.rel (0) target = $region29
    $region28: #{_lambda_.20} parent=1 // pred_region
      _
    $region29: #{_lambda_.20} parent=1 // pred_fallthru
      _
    %513 = vsyncpa [#allocation3], 1
    %514 = vsyncpa [#allocation5], 1

// kernel: _lambda_.21
$region0: #{_lambda_.21}
  #allocation0 [shape = 'u32[]', space=smem, size = 0x4, offset = 0x4, fixed_abs, tag = 'smem constant byte address 0x4 - core index']
  #allocation1 [shape = 'u32[144,128]{1,0:T(1,128)}', space=vmem, size = 0x12000, scoped, tag = 'internal scratch']
  %s0 = inlined_call_operand.vmem [shape: bf16[130,288], index: 0, kind: input, shape index: {}]
  %s1 = inlined_call_operand.vmem [shape: bf16[288,32], index: 1, kind: input, shape index: {}]
  %s2 = inlined_call_operand.hbm [shape: f32[1,32], index: 2, kind: input, shape index: {}]
  %s3 = inlined_call_operand.vmem [shape: bf16[130,32], index: 3, kind: output, shape index: {}]
  %s4 = sld [smem:[#allocation0]]
  $region26: #{_lambda_.21} parent=0
    _
  %s6 = ssub.s32 1, %s4
  %s7 = scalar_select 0, %s6, %s4
  $region1: #{_lambda_.21} parent=0
    #allocation2 [shape = 'u8[512]{0}', space=vmem, size = 0x400, scoped, tag = 'input window, operand 2, single buffered']
    #allocation3 [shape = 's32[1]{0}', space=sflag, size = 0x4, scoped, tag = 'scoped memory for _lambda_.21']
    %8 = vsyncpa [#allocation3], 0
    // Predicated region
    $region2: #{_lambda_.21} parent=1 // pred_check
      _
    $region3: #{_lambda_.21} parent=1 // pred_check_branch
      %10 = sbr.rel (0) target = $region5
    $region4: #{_lambda_.21} parent=1 // pred_region
      _
    $region5: #{_lambda_.21} parent=1 // pred_fallthru
      _
    // Predicated region
    $region6: #{_lambda_.21} parent=1 // pred_check
      _
    $region7: #{_lambda_.21} parent=1 // pred_check_branch
      %12 = sbr.rel (0) target = $region9
    $region8: #{_lambda_.21} parent=1 // pred_region
      _
    $region9: #{_lambda_.21} parent=1 // pred_fallthru
      _
    // Predicated region
    $region10: #{_lambda_.21} parent=1 // pred_check
      _
    $region11: #{_lambda_.21} parent=1 // pred_check_branch
      %14 = sbr.rel (0) target = $region13
    $region12: #{_lambda_.21} parent=1 // pred_region
      %s16 = ssub.s32 16, 16
      %17 = vsyncadd [#allocation3], %s16
      %s19 = sshll.u32 [#allocation2], 4
      %s20 = int_to_ptr.vmem [resolvable:$true] %s19
      %22 = dma.hbm_to_vmem [thread:$0]  %s2, 16, %s20, [#allocation3]
    $region13: #{_lambda_.21} parent=1 // pred_fallthru
      _
    // Predicated region
    $region14: #{_lambda_.21} parent=1 // pred_check
      _
    $region15: #{_lambda_.21} parent=1 // pred_check_branch
      %24 = sbr.rel (0) target = $region17
    $region16: #{_lambda_.21} parent=1 // pred_region
      %25 = dma.done [#allocation3], 16
    $region17: #{_lambda_.21} parent=1 // pred_fallthru
      _
    %v27 = vld [vmem:[%s0] sm:$0xff]
    %v28 = vld [vmem:[%s0 + $0x8] sm:$0xf]
    %v29 = vld [vmem:[%s0 + $0xc] sm:$0xff]
    %v30 = vld [vmem:[%s0 + $0x14] sm:$0xf]
    %v31 = vld [vmem:[%s0 + $0x18] sm:$0xff]
    %v32 = vld [vmem:[%s0 + $0x20] sm:$0xf]
    %v33 = vld [vmem:[%s0 + $0x24] sm:$0xff]
    %v34 = vld [vmem:[%s0 + $0x2c] sm:$0xf]
    %v35 = vld [vmem:[%s0 + $0x30] sm:$0xff]
    %v36 = vld [vmem:[%s0 + $0x38] sm:$0xf]
    %v37 = vld [vmem:[%s0 + $0x3c] sm:$0xff]
    %v38 = vld [vmem:[%s0 + $0x44] sm:$0xf]
    %v39 = vld [vmem:[%s0 + $0x48] sm:$0xff]
    %v40 = vld [vmem:[%s0 + $0x50] sm:$0xf]
    %v41 = vld [vmem:[%s0 + $0x54] sm:$0xff]
    %v42 = vld [vmem:[%s0 + $0x5c] sm:$0xf]
    %v43 = vld [vmem:[%s0 + $0x60] sm:$0xff]
    %v44 = vld [vmem:[%s0 + $0x68] sm:$0xf]
    %v45 = vld [vmem:[%s0 + $0x6c] sm:$0xff]
    %v46 = vld [vmem:[%s0 + $0x74] sm:$0xf]
    %v47 = vld [vmem:[%s0 + $0x78] sm:$0xff]
    %v48 = vld [vmem:[%s0 + $0x80] sm:$0xf]
    %v49 = vld [vmem:[%s0 + $0x84] sm:$0xff]
    %v50 = vld [vmem:[%s0 + $0x8c] sm:$0xf]
    %v51 = vld [vmem:[%s0 + $0x90] sm:$0xff]
    %v52 = vld [vmem:[%s0 + $0x98] sm:$0xf]
    %v53 = vld [vmem:[%s0 + $0x9c] sm:$0xff]
    %v54 = vld [vmem:[%s0 + $0xa4] sm:$0xf]
    %v55 = vld [vmem:[%s0 + $0xa8] sm:$0xff]
    %v56 = vld [vmem:[%s0 + $0xb0] sm:$0xf]
    %v57 = vld [vmem:[%s0 + $0xb4] sm:$0xff]
    %v58 = vld [vmem:[%s0 + $0xbc] sm:$0xf]
    %v59 = vld [vmem:[%s0 + $0xc0] sm:$0x11]
    %v60 = vld [vmem:[%s0 + $0xc8] sm:$0x1]
    %v61 = vld [vmem:[%s1] sm:$0xf]
    %v62 = vld [vmem:[%s1 + $0x4] sm:$0xf]
    %v63 = vld [vmem:[%s1 + $0x8] sm:$0xf]
    %v64 = vld [vmem:[%s1 + $0xc] sm:$0xf]
    %v65 = vld [vmem:[%s1 + $0x10] sm:$0xf]
    %v66 = vld [vmem:[%s1 + $0x14] sm:$0xf]
    %v67 = vld [vmem:[%s1 + $0x18] sm:$0xf]
    %v68 = vld [vmem:[%s1 + $0x1c] sm:$0xf]
    %v69 = vld [vmem:[%s1 + $0x20] sm:$0xf]
    %v70 = vld [vmem:[%s1 + $0x24] sm:$0xf]
    %v71 = vld [vmem:[%s1 + $0x28] sm:$0xf]
    %v72 = vld [vmem:[%s1 + $0x2c] sm:$0xf]
    %v73 = vld [vmem:[%s1 + $0x30] sm:$0xf]
    %v74 = vld [vmem:[%s1 + $0x34] sm:$0xf]
    %v75 = vld [vmem:[%s1 + $0x38] sm:$0xf]
    %v76 = vld [vmem:[%s1 + $0x3c] sm:$0xf]
    %v77 = vld [vmem:[%s1 + $0x40] sm:$0xf]
    %v78 = vld [vmem:[%s1 + $0x44] sm:$0xf]
    %v79 = vld [vmem:[%s1 + $0x48] sm:$0xf]
    %v80 = vld [vmem:[%s1 + $0x4c] sm:$0xf]
    %v81 = vld [vmem:[%s1 + $0x50] sm:$0xf]
    %v82 = vld [vmem:[%s1 + $0x54] sm:$0xf]
    %v83 = vld [vmem:[%s1 + $0x58] sm:$0xf]
    %v84 = vld [vmem:[%s1 + $0x5c] sm:$0xf]
    %v85 = vld [vmem:[%s1 + $0x60] sm:$0xf]
    %v86 = vld [vmem:[%s1 + $0x64] sm:$0xf]
    %v87 = vld [vmem:[%s1 + $0x68] sm:$0xf]
    %v88 = vld [vmem:[%s1 + $0x6c] sm:$0xf]
    %v89 = vld [vmem:[%s1 + $0x70] sm:$0xf]
    %v90 = vld [vmem:[%s1 + $0x74] sm:$0xf]
    %v91 = vld [vmem:[%s1 + $0x78] sm:$0xf]
    %v92 = vld [vmem:[%s1 + $0x7c] sm:$0xf]
    %v93 = vld [vmem:[%s1 + $0x80] sm:$0xf]
    %v94 = vld [vmem:[%s1 + $0x84] sm:$0xf]
    %v95 = vld [vmem:[%s1 + $0x88] sm:$0xf]
    %v96 = vld [vmem:[%s1 + $0x8c] sm:$0xf]
    %v97 = vld [vmem:[#allocation2] sm:$0x1]
    %v99 = vlaneseq
    %v100 = vshrl.u32 %v99, 7
    %v101 = vsub.s32 0, %v100
    %v102 = vrot.slane %v97, %v101
    %v138 = vunpack.c.l.b16 %v27
    %v139 = vunpack.c.h.b16 %v27
    %v140 = vunpack.c.l.b16 %v28
    %v141 = vunpack.c.l.b16 %v29
    %v142 = vunpack.c.h.b16 %v29
    %v143 = vunpack.c.l.b16 %v30
    %v144 = vunpack.c.l.b16 %v31
    %v145 = vunpack.c.h.b16 %v31
    %v146 = vunpack.c.l.b16 %v32
    %v147 = vunpack.c.l.b16 %v33
    %v148 = vunpack.c.h.b16 %v33
    %v149 = vunpack.c.l.b16 %v34
    %v150 = vunpack.c.l.b16 %v35
    %v151 = vunpack.c.h.b16 %v35
    %v152 = vunpack.c.l.b16 %v36
    %v153 = vunpack.c.l.b16 %v37
    %v154 = vunpack.c.h.b16 %v37
    %v155 = vunpack.c.l.b16 %v38
    %v156 = vunpack.c.l.b16 %v39
    %v157 = vunpack.c.h.b16 %v39
    %v158 = vunpack.c.l.b16 %v40
    %v159 = vunpack.c.l.b16 %v41
    %v160 = vunpack.c.h.b16 %v41
    %v161 = vunpack.c.l.b16 %v42
    %v162 = vunpack.c.l.b16 %v43
    %v163 = vunpack.c.h.b16 %v43
    %v164 = vunpack.c.l.b16 %v44
    %v165 = vunpack.c.l.b16 %v45
    %v166 = vunpack.c.h.b16 %v45
    %v167 = vunpack.c.l.b16 %v46
    %v168 = vunpack.c.l.b16 %v47
    %v169 = vunpack.c.h.b16 %v47
    %v170 = vunpack.c.l.b16 %v48
    %v171 = vunpack.c.l.b16 %v49
    %v172 = vunpack.c.h.b16 %v49
    %v173 = vunpack.c.l.b16 %v50
    %v174 = vunpack.c.l.b16 %v51
    %v175 = vunpack.c.h.b16 %v51
    %v176 = vunpack.c.l.b16 %v52
    %v177 = vunpack.c.l.b16 %v53
    %v178 = vunpack.c.h.b16 %v53
    %v179 = vunpack.c.l.b16 %v54
    %v180 = vunpack.c.l.b16 %v55
    %v181 = vunpack.c.h.b16 %v55
    %v182 = vunpack.c.l.b16 %v56
    %v183 = vunpack.c.l.b16 %v57
    %v184 = vunpack.c.h.b16 %v57
    %v185 = vunpack.c.l.b16 %v58
    %v186 = vunpack.c.l.b16 %v59
    %v187 = vunpack.c.h.b16 %v59
    %v188 = vunpack.c.l.b16 %v60
    %v189 = vpack.c.b16 %v141, %v138
    %v190 = vpack.c.b16 %v142, %v139
    %v191 = vpack.c.b16 %v143, %v140
    %v192 = vpack.c.b16 %v147, %v144
    %v193 = vpack.c.b16 %v148, %v145
    %v194 = vpack.c.b16 %v149, %v146
    %v195 = vpack.c.b16 %v153, %v150
    %v196 = vpack.c.b16 %v154, %v151
    %v197 = vpack.c.b16 %v155, %v152
    %v198 = vpack.c.b16 %v159, %v156
    %v199 = vpack.c.b16 %v160, %v157
    %v200 = vpack.c.b16 %v161, %v158
    %v201 = vpack.c.b16 %v165, %v162
    %v202 = vpack.c.b16 %v166, %v163
    %v203 = vpack.c.b16 %v167, %v164
    %v204 = vpack.c.b16 %v171, %v168
    %v205 = vpack.c.b16 %v172, %v169
    %v206 = vpack.c.b16 %v173, %v170
    %v207 = vpack.c.b16 %v177, %v174
    %v208 = vpack.c.b16 %v178, %v175
    %v209 = vpack.c.b16 %v179, %v176
    %v210 = vpack.c.b16 %v183, %v180
    %v211 = vpack.c.b16 %v184, %v181
    %v212 = vpack.c.b16 %v185, %v182
    %v213 = vpack.c.b16 %v186, %v186
    %v214 = vpack.c.b16 %v187, %v187
    %v215 = vpack.c.b16 %v188, %v188
    %v270 = vunpack.c.l.b16 %v61
    %v271 = vunpack.c.l.b16 %v62
    %v272 = vunpack.c.l.b16 %v63
    %v273 = vunpack.c.l.b16 %v64
    %v274 = vunpack.c.l.b16 %v65
    %v275 = vunpack.c.l.b16 %v66
    %v276 = vunpack.c.l.b16 %v67
    %v277 = vunpack.c.l.b16 %v68
    %v278 = vunpack.c.l.b16 %v69
    %v279 = vunpack.c.l.b16 %v70
    %v280 = vunpack.c.l.b16 %v71
    %v281 = vunpack.c.l.b16 %v72
    %v282 = vunpack.c.l.b16 %v73
    %v283 = vunpack.c.l.b16 %v74
    %v284 = vunpack.c.l.b16 %v75
    %v285 = vunpack.c.l.b16 %v76
    %v286 = vunpack.c.l.b16 %v77
    %v287 = vunpack.c.l.b16 %v78
    %v288 = vunpack.c.l.b16 %v79
    %v289 = vunpack.c.l.b16 %v80
    %v290 = vunpack.c.l.b16 %v81
    %v291 = vunpack.c.l.b16 %v82
    %v292 = vunpack.c.l.b16 %v83
    %v293 = vunpack.c.l.b16 %v84
    %v294 = vunpack.c.l.b16 %v85
    %v295 = vunpack.c.l.b16 %v86
    %v296 = vunpack.c.l.b16 %v87
    %v297 = vunpack.c.l.b16 %v88
    %v298 = vunpack.c.l.b16 %v89
    %v299 = vunpack.c.l.b16 %v90
    %v300 = vunpack.c.l.b16 %v91
    %v301 = vunpack.c.l.b16 %v92
    %v302 = vunpack.c.l.b16 %v93
    %v303 = vunpack.c.l.b16 %v94
    %v304 = vunpack.c.l.b16 %v95
    %v305 = vunpack.c.l.b16 %v96
    %v306 = vpack.c.b16 %v271, %v270
    %v307 = vpack.c.b16 %v273, %v272
    %v308 = vpack.c.b16 %v275, %v274
    %v309 = vpack.c.b16 %v277, %v276
    %v310 = vpack.c.b16 %v279, %v278
    %v311 = vpack.c.b16 %v281, %v280
    %v312 = vpack.c.b16 %v283, %v282
    %v313 = vpack.c.b16 %v285, %v284
    %v314 = vpack.c.b16 %v287, %v286
    %v315 = vpack.c.b16 %v289, %v288
    %v316 = vpack.c.b16 %v291, %v290
    %v317 = vpack.c.b16 %v293, %v292
    %v318 = vpack.c.b16 %v295, %v294
    %v319 = vpack.c.b16 %v297, %v296
    %v320 = vpack.c.b16 %v299, %v298
    %v321 = vpack.c.b16 %v301, %v300
    %v322 = vpack.c.b16 %v303, %v302
    %v323 = vpack.c.b16 %v305, %v304
    %vm342 = vcmask 261120
    %v344 = vsel %vm342, %v191, 0
    %v347 = vsel %vm342, %v194, 0
    %v350 = vsel %vm342, %v197, 0
    %v353 = vsel %vm342, %v200, 0
    %v356 = vsel %vm342, %v203, 0
    %v359 = vsel %vm342, %v206, 0
    %v362 = vsel %vm342, %v209, 0
    %v365 = vsel %vm342, %v212, 0
    %v368 = vsel %vm342, %v215, 0
    %370 = vmatprep.subr.bf16.mxu0 0
    %371 = vmatpush1.bf16.msra.mxu0 %v313
    %372 = vmatprep.subr.bf16.mxu0 0
    %373 = vmatpush1.bf16.msra.mxu0 %v312
    %374 = vmatprep.subr.bf16.mxu0 0
    %375 = vmatpush1.bf16.msra.mxu0 %v311
    %376 = vmatprep.subr.bf16.mxu0 0
    %377 = vmatpush1.bf16.msra.mxu0 %v310
    %378 = vmatprep.subr.bf16.mxu0 0
    %379 = vmatpush1.bf16.msra.mxu0 %v309
    %380 = vmatprep.subr.bf16.mxu0 0
    %381 = vmatpush1.bf16.msra.mxu0 %v308
    %382 = vmatprep.subr.bf16.mxu0 0
    %383 = vmatpush1.bf16.msra.mxu0 %v307
    %384 = vmatprep.subr.bf16.mxu0 0
    %385 = vmatpush1.bf16.msra.mxu0 %v306
    %386 = vmatprep.subr.bf16.mxu0 0
    %387 = vmatpush2.bf16.msra.mxu0 %v321
    %388 = vmatprep.subr.bf16.mxu0 0
    %389 = vmatpush2.bf16.msra.mxu0 %v320
    %390 = vmatprep.subr.bf16.mxu0 0
    %391 = vmatpush2.bf16.msra.mxu0 %v319
    %392 = vmatprep.subr.bf16.mxu0 0
    %393 = vmatpush2.bf16.msra.mxu0 %v318
    %394 = vmatprep.subr.bf16.mxu0 0
    %395 = vmatpush2.bf16.msra.mxu0 %v317
    %396 = vmatprep.subr.bf16.mxu0 0
    %397 = vmatpush2.bf16.msra.mxu0 %v316
    %398 = vmatprep.subr.bf16.mxu0 0
    %399 = vmatpush2.bf16.msra.mxu0 %v315
    %400 = vmatprep.subr.bf16.mxu0 0
    %401 = vmatpush2.bf16.msra.mxu0 %v314
    %402 = vmatprep.mubr.bf16.mxu0 %v190
    %403 = vmatmul.mubr.bf16.gmra.mxu0 %v189
    %v404 = vpop.f32.mrf.mxu0
    %v405 = vadd.f32 %v102, %v404
    %v406 = vpop.f32.mrf.mxu0
    %v407 = vpop.f32.mrf.mxu0
    %v408 = vadd.f32 %v102, %v407
    %v409 = vpop.f32.mrf.mxu0
    %410 = vmatprep.mubr.bf16.mxu0 %v193
    %411 = vmatmul.mubr.bf16.gmra.mxu0 %v192
    %v412 = vpop.f32.mrf.mxu0
    %v413 = vadd.f32 %v102, %v412
    %v414 = vpop.f32.mrf.mxu0
    %v415 = vpop.f32.mrf.mxu0
    %v416 = vadd.f32 %v102, %v415
    %v417 = vpop.f32.mrf.mxu0
    %418 = vmatprep.mubr.bf16.mxu0 %v196
    %419 = vmatmul.mubr.bf16.gmra.mxu0 %v195
    %v420 = vpop.f32.mrf.mxu0
    %v421 = vadd.f32 %v102, %v420
    %v422 = vpop.f32.mrf.mxu0
    %v423 = vpop.f32.mrf.mxu0
    %v424 = vadd.f32 %v102, %v423
    %v425 = vpop.f32.mrf.mxu0
    %426 = vmatprep.mubr.bf16.mxu0 %v199
    %427 = vmatmul.mubr.bf16.gmra.mxu0 %v198
    %v428 = vpop.f32.mrf.mxu0
    %v429 = vadd.f32 %v102, %v428
    %v430 = vpop.f32.mrf.mxu0
    %v431 = vpop.f32.mrf.mxu0
    %v432 = vadd.f32 %v102, %v431
    %v433 = vpop.f32.mrf.mxu0
    %434 = vmatprep.mubr.bf16.mxu0 %v202
    %435 = vmatmul.mubr.bf16.gmra.mxu0 %v201
    %v436 = vpop.f32.mrf.mxu0
    %v437 = vadd.f32 %v102, %v436
    %v438 = vpop.f32.mrf.mxu0
    %v439 = vpop.f32.mrf.mxu0
    %v440 = vadd.f32 %v102, %v439
    %v441 = vpop.f32.mrf.mxu0
    %442 = vmatprep.mubr.bf16.mxu0 %v205
    %443 = vmatmul.mubr.bf16.gmra.mxu0 %v204
    %v444 = vpop.f32.mrf.mxu0
    %v445 = vadd.f32 %v102, %v444
    %v446 = vpop.f32.mrf.mxu0
    %v447 = vpop.f32.mrf.mxu0
    %v448 = vadd.f32 %v102, %v447
    %v449 = vpop.f32.mrf.mxu0
    %450 = vmatprep.mubr.bf16.mxu0 %v208
    %451 = vmatmul.mubr.bf16.gmra.mxu0 %v207
    %v452 = vpop.f32.mrf.mxu0
    %v453 = vadd.f32 %v102, %v452
    %v454 = vpop.f32.mrf.mxu0
    %v455 = vpop.f32.mrf.mxu0
    %v456 = vadd.f32 %v102, %v455
    %v457 = vpop.f32.mrf.mxu0
    %458 = vmatprep.mubr.bf16.mxu0 %v211
    %459 = vmatmul.mubr.bf16.gmra.mxu0 %v210
    %v460 = vpop.f32.mrf.mxu0
    %v461 = vadd.f32 %v102, %v460
    %v462 = vpop.f32.mrf.mxu0
    %v463 = vpop.f32.mrf.mxu0
    %v464 = vadd.f32 %v102, %v463
    %v465 = vpop.f32.mrf.mxu0
    %466 = vmatprep.mubr.bf16.mxu0 %v214
    %467 = vmatmul.mubr.bf16.gmra.mxu0 %v213
    %v468 = vpop.f32.mrf.mxu0
    %v469 = vadd.f32 %v102, %v468
    %v470 = vpop.f32.mrf.mxu0
    %v471 = vpop.f32.mrf.mxu0
    %v472 = vpop.f32.mrf.mxu0
    %473 = vdwg.mxu0
    %474 = vmatprep.subr.bf16.mxu0 0
    %475 = vmatpush1.bf16.msra.mxu0 0
    %476 = vmatprep.subr.bf16.mxu0 0
    %477 = vmatpush1.bf16.msra.mxu0 0
    %478 = vmatprep.subr.bf16.mxu0 0
    %479 = vmatpush1.bf16.msra.mxu0 0
    %480 = vmatprep.subr.bf16.mxu0 0
    %481 = vmatpush1.bf16.msra.mxu0 0
    %482 = vmatprep.subr.bf16.mxu0 0
    %483 = vmatpush1.bf16.msra.mxu0 0
    %484 = vmatprep.subr.bf16.mxu0 0
    %485 = vmatpush1.bf16.msra.mxu0 0
    %486 = vmatprep.subr.bf16.mxu0 0
    %487 = vmatpush1.bf16.msra.mxu0 %v323
    %488 = vmatprep.subr.bf16.mxu0 0
    %489 = vmatpush1.bf16.msra.mxu0 %v322
    %490 = vmatprep.subr.bf16.mxu0 0
    %491 = vmatpush2.bf16.msra.mxu0 0
    %492 = vmatprep.subr.bf16.mxu0 0
    %493 = vmatpush2.bf16.msra.mxu0 0
    %494 = vmatprep.subr.bf16.mxu0 0
    %495 = vmatpush2.bf16.msra.mxu0 0
    %496 = vmatprep.subr.bf16.mxu0 0
    %497 = vmatpush2.bf16.msra.mxu0 0
    %498 = vmatprep.subr.bf16.mxu0 0
    %499 = vmatpush2.bf16.msra.mxu0 0
    %500 = vmatprep.subr.bf16.mxu0 0
    %501 = vmatpush2.bf16.msra.mxu0 0
    %502 = vmatprep.subr.bf16.mxu0 0
    %503 = vmatpush2.bf16.msra.mxu0 0
    %504 = vmatprep.subr.bf16.mxu0 0
    %505 = vmatpush2.bf16.msra.mxu0 0
    %506 = vmatprep.mubr.bf16.mxu0 0
    %507 = vmatmul.mubr.bf16.gmra.mxu0 %v344
    %v508 = vpop.f32.mrf.mxu0
    %v509 = vadd.f32 %v405, %v508
    %v510 = vpop.f32.mrf.mxu0
    %v511 = vpop.f32.mrf.mxu0
    %v512 = vadd.f32 %v408, %v511
    %v513 = vpop.f32.mrf.mxu0
    %514 = vmatprep.mubr.bf16.mxu0 0
    %515 = vmatmul.mubr.bf16.gmra.mxu0 %v347
    %v516 = vpop.f32.mrf.mxu0
    %v517 = vadd.f32 %v413, %v516
    %v518 = vpop.f32.mrf.mxu0
    %v519 = vpop.f32.mrf.mxu0
    %v520 = vadd.f32 %v416, %v519
    %v521 = vpop.f32.mrf.mxu0
    %522 = vmatprep.mubr.bf16.mxu0 0
    %523 = vmatmul.mubr.bf16.gmra.mxu0 %v350
    %v524 = vpop.f32.mrf.mxu0
    %v525 = vadd.f32 %v421, %v524
    %v526 = vpop.f32.mrf.mxu0
    %v527 = vpop.f32.mrf.mxu0
    %v528 = vadd.f32 %v424, %v527
    %v529 = vpop.f32.mrf.mxu0
    %530 = vmatprep.mubr.bf16.mxu0 0
    %531 = vmatmul.mubr.bf16.gmra.mxu0 %v353
    %v532 = vpop.f32.mrf.mxu0
    %v533 = vadd.f32 %v429, %v532
    %v534 = vpop.f32.mrf.mxu0
    %v535 = vpop.f32.mrf.mxu0
    %v536 = vadd.f32 %v432, %v535
    %v537 = vpop.f32.mrf.mxu0
    %538 = vmatprep.mubr.bf16.mxu0 0
    %539 = vmatmul.mubr.bf16.gmra.mxu0 %v356
    %v540 = vpop.f32.mrf.mxu0
    %v541 = vadd.f32 %v437, %v540
    %v542 = vpop.f32.mrf.mxu0
    %v543 = vpop.f32.mrf.mxu0
    %v544 = vadd.f32 %v440, %v543
    %v545 = vpop.f32.mrf.mxu0
    %546 = vmatprep.mubr.bf16.mxu0 0
    %547 = vmatmul.mubr.bf16.gmra.mxu0 %v359
    %v548 = vpop.f32.mrf.mxu0
    %v549 = vadd.f32 %v445, %v548
    %v550 = vpop.f32.mrf.mxu0
    %v551 = vpop.f32.mrf.mxu0
    %v552 = vadd.f32 %v448, %v551
    %v553 = vpop.f32.mrf.mxu0
    %554 = vmatprep.mubr.bf16.mxu0 0
    %555 = vmatmul.mubr.bf16.gmra.mxu0 %v362
    %v556 = vpop.f32.mrf.mxu0
    %v557 = vadd.f32 %v453, %v556
    %v558 = vpop.f32.mrf.mxu0
    %v559 = vpop.f32.mrf.mxu0
    %v560 = vadd.f32 %v456, %v559
    %v561 = vpop.f32.mrf.mxu0
    %562 = vmatprep.mubr.bf16.mxu0 0
    %563 = vmatmul.mubr.bf16.gmra.mxu0 %v365
    %v564 = vpop.f32.mrf.mxu0
    %v565 = vadd.f32 %v461, %v564
    %v566 = vpop.f32.mrf.mxu0
    %v567 = vpop.f32.mrf.mxu0
    %v568 = vadd.f32 %v464, %v567
    %v569 = vpop.f32.mrf.mxu0
    %570 = vmatprep.mubr.bf16.mxu0 0
    %571 = vmatmul.mubr.bf16.gmra.mxu0 %v368
    %v572 = vpop.f32.mrf.mxu0
    %v573 = vadd.f32 %v469, %v572
    %v574 = vpop.f32.mrf.mxu0
    %v575 = vpop.f32.mrf.mxu0
    %v576 = vpop.f32.mrf.mxu0
    %577 = vdwg.mxu0
    %v578 = vmax.f32 %v509, 0.0
    %v579 = vmax.f32 %v512, 0.0
    %v580 = vmax.f32 %v517, 0.0
    %v581 = vmax.f32 %v520, 0.0
    %v582 = vmax.f32 %v525, 0.0
    %v583 = vmax.f32 %v528, 0.0
    %v584 = vmax.f32 %v533, 0.0
    %v585 = vmax.f32 %v536, 0.0
    %v586 = vmax.f32 %v541, 0.0
    %v587 = vmax.f32 %v544, 0.0
    %v588 = vmax.f32 %v549, 0.0
    %v589 = vmax.f32 %v552, 0.0
    %v590 = vmax.f32 %v557, 0.0
    %v591 = vmax.f32 %v560, 0.0
    %v592 = vmax.f32 %v565, 0.0
    %v593 = vmax.f32 %v568, 0.0
    %v594 = vmax.f32 %v573, 0.0
    %v595 = vpack.c.bf16 %v579, %v578
    %v596 = vpack.c.bf16 %v581, %v580
    %v597 = vpack.c.bf16 %v583, %v582
    %v598 = vpack.c.bf16 %v585, %v584
    %v599 = vpack.c.bf16 %v587, %v586
    %v600 = vpack.c.bf16 %v589, %v588
    %v601 = vpack.c.bf16 %v591, %v590
    %v602 = vpack.c.bf16 %v593, %v592
    %v603 = vpack.c.bf16 %v594, %v594
    %v613 = vunpack.c.l.b16 %v595
    %v614 = vunpack.c.h.b16 %v595
    %v615 = vunpack.c.l.b16 %v596
    %v616 = vunpack.c.h.b16 %v596
    %v617 = vunpack.c.l.b16 %v597
    %v618 = vunpack.c.h.b16 %v597
    %v619 = vunpack.c.l.b16 %v598
    %v620 = vunpack.c.h.b16 %v598
    %v621 = vunpack.c.l.b16 %v599
    %v622 = vunpack.c.h.b16 %v599
    %v623 = vunpack.c.l.b16 %v600
    %v624 = vunpack.c.h.b16 %v600
    %v625 = vunpack.c.l.b16 %v601
    %v626 = vunpack.c.h.b16 %v601
    %v627 = vunpack.c.l.b16 %v602
    %v628 = vunpack.c.h.b16 %v602
    %v629 = vunpack.c.l.b16 %v603
    %v630 = vpack.c.b16 %v613, %v613
    %v631 = vpack.c.b16 %v614, %v614
    %v632 = vpack.c.b16 %v615, %v615
    %v633 = vpack.c.b16 %v616, %v616
    %v634 = vpack.c.b16 %v617, %v617
    %v635 = vpack.c.b16 %v618, %v618
    %v636 = vpack.c.b16 %v619, %v619
    %v637 = vpack.c.b16 %v620, %v620
    %v638 = vpack.c.b16 %v621, %v621
    %v639 = vpack.c.b16 %v622, %v622
    %v640 = vpack.c.b16 %v623, %v623
    %v641 = vpack.c.b16 %v624, %v624
    %v642 = vpack.c.b16 %v625, %v625
    %v643 = vpack.c.b16 %v626, %v626
    %v644 = vpack.c.b16 %v627, %v627
    %v645 = vpack.c.b16 %v628, %v628
    %v646 = vpack.c.b16 %v629, %v629
    %vm664 = vcmask 257024
    %665 = vst.msk [vmem:[%s3] sm:$0xf] %vm664, %v630
    %666 = vst.msk [vmem:[%s3 + $0x4] sm:$0xf] %vm664, %v631
    %667 = vst.msk [vmem:[%s3 + $0x8] sm:$0xf] %vm664, %v632
    %668 = vst.msk [vmem:[%s3 + $0xc] sm:$0xf] %vm664, %v633
    %669 = vst.msk [vmem:[%s3 + $0x10] sm:$0xf] %vm664, %v634
    %670 = vst.msk [vmem:[%s3 + $0x14] sm:$0xf] %vm664, %v635
    %671 = vst.msk [vmem:[%s3 + $0x18] sm:$0xf] %vm664, %v636
    %672 = vst.msk [vmem:[%s3 + $0x1c] sm:$0xf] %vm664, %v637
    %673 = vst.msk [vmem:[%s3 + $0x20] sm:$0xf] %vm664, %v638
    %674 = vst.msk [vmem:[%s3 + $0x24] sm:$0xf] %vm664, %v639
    %675 = vst.msk [vmem:[%s3 + $0x28] sm:$0xf] %vm664, %v640
    %676 = vst.msk [vmem:[%s3 + $0x2c] sm:$0xf] %vm664, %v641
    %677 = vst.msk [vmem:[%s3 + $0x30] sm:$0xf] %vm664, %v642
    %678 = vst.msk [vmem:[%s3 + $0x34] sm:$0xf] %vm664, %v643
    %679 = vst.msk [vmem:[%s3 + $0x38] sm:$0xf] %vm664, %v644
    %680 = vst.msk [vmem:[%s3 + $0x3c] sm:$0xf] %vm664, %v645
    %vm681 = vcmask 253952
    %682 = vst.msk [vmem:[%s3 + $0x40] sm:$0x1] %vm681, %v646
    // Predicated region
    $region18: #{_lambda_.21} parent=1 // pred_check
      _
    $region19: #{_lambda_.21} parent=1 // pred_check_branch
      %684 = sbr.rel (0) target = $region21
    $region20: #{_lambda_.21} parent=1 // pred_region
      _
    $region21: #{_lambda_.21} parent=1 // pred_fallthru
      _
    // Predicated region
    $region22: #{_lambda_.21} parent=1 // pred_check
      _
    $region23: #{_lambda_.21} parent=1 // pred_check_branch
      %686 = sbr.rel (0) target = $region25
    $region24: #{_lambda_.21} parent=1 // pred_region
      _
    $region25: #{_lambda_.21} parent=1 // pred_fallthru
      _
    %687 = vsyncpa [#allocation3], 1

// kernel: _lambda_.22
$region0: #{_lambda_.22}
  #allocation0 [shape = 'u32[]', space=smem, size = 0x4, offset = 0x4, fixed_abs, tag = 'smem constant byte address 0x4 - core index']
  #allocation1 [shape = 'u32[144,128]{1,0:T(1,128)}', space=vmem, size = 0x12000, scoped, tag = 'internal scratch']
  %s0 = inlined_call_operand.vmem [shape: bf16[26,160], index: 0, kind: input, shape index: {}]
  %s1 = inlined_call_operand.vmem [shape: bf16[160,32], index: 1, kind: input, shape index: {}]
  %s2 = inlined_call_operand.hbm [shape: f32[1,32], index: 2, kind: input, shape index: {}]
  %s3 = inlined_call_operand.vmem [shape: f32[26,32], index: 3, kind: output, shape index: {}]
  %s4 = sld [smem:[#allocation0]]
  $region26: #{_lambda_.22} parent=0
    _
  %s6 = ssub.s32 1, %s4
  %s7 = scalar_select 0, %s6, %s4
  $region1: #{_lambda_.22} parent=0
    #allocation2 [shape = 'u8[512]{0}', space=vmem, size = 0x400, scoped, tag = 'input window, operand 2, single buffered']
    #allocation3 [shape = 's32[1]{0}', space=sflag, size = 0x4, scoped, tag = 'scoped memory for _lambda_.22']
    %8 = vsyncpa [#allocation3], 0
    // Predicated region
    $region2: #{_lambda_.22} parent=1 // pred_check
      _
    $region3: #{_lambda_.22} parent=1 // pred_check_branch
      %10 = sbr.rel (0) target = $region5
    $region4: #{_lambda_.22} parent=1 // pred_region
      _
    $region5: #{_lambda_.22} parent=1 // pred_fallthru
      _
    // Predicated region
    $region6: #{_lambda_.22} parent=1 // pred_check
      _
    $region7: #{_lambda_.22} parent=1 // pred_check_branch
      %12 = sbr.rel (0) target = $region9
    $region8: #{_lambda_.22} parent=1 // pred_region
      _
    $region9: #{_lambda_.22} parent=1 // pred_fallthru
      _
    // Predicated region
    $region10: #{_lambda_.22} parent=1 // pred_check
      _
    $region11: #{_lambda_.22} parent=1 // pred_check_branch
      %14 = sbr.rel (0) target = $region13
    $region12: #{_lambda_.22} parent=1 // pred_region
      %s16 = ssub.s32 16, 16
      %17 = vsyncadd [#allocation3], %s16
      %s19 = sshll.u32 [#allocation2], 4
      %s20 = int_to_ptr.vmem [resolvable:$true] %s19
      %22 = dma.hbm_to_vmem [thread:$0]  %s2, 16, %s20, [#allocation3]
    $region13: #{_lambda_.22} parent=1 // pred_fallthru
      _
    // Predicated region
    $region14: #{_lambda_.22} parent=1 // pred_check
      _
    $region15: #{_lambda_.22} parent=1 // pred_check_branch
      %24 = sbr.rel (0) target = $region17
    $region16: #{_lambda_.22} parent=1 // pred_region
      %25 = dma.done [#allocation3], 16
    $region17: #{_lambda_.22} parent=1 // pred_fallthru
      _
    %v27 = vld [vmem:[%s0] sm:$0xff]
    %v28 = vld [vmem:[%s0 + $0x8] sm:$0xff]
    %v29 = vld [vmem:[%s0 + $0x10] sm:$0xff]
    %v30 = vld [vmem:[%s0 + $0x18] sm:$0x11]
    %v31 = vld [vmem:[%s1] sm:$0xf]
    %v32 = vld [vmem:[%s1 + $0x4] sm:$0xf]
    %v33 = vld [vmem:[%s1 + $0x8] sm:$0xf]
    %v34 = vld [vmem:[%s1 + $0xc] sm:$0xf]
    %v35 = vld [vmem:[%s1 + $0x10] sm:$0xf]
    %v36 = vld [vmem:[%s1 + $0x14] sm:$0xf]
    %v37 = vld [vmem:[%s1 + $0x18] sm:$0xf]
    %v38 = vld [vmem:[%s1 + $0x1c] sm:$0xf]
    %v39 = vld [vmem:[%s1 + $0x20] sm:$0xf]
    %v40 = vld [vmem:[%s1 + $0x24] sm:$0xf]
    %v41 = vld [vmem:[%s1 + $0x28] sm:$0xf]
    %v42 = vld [vmem:[%s1 + $0x2c] sm:$0xf]
    %v43 = vld [vmem:[%s1 + $0x30] sm:$0xf]
    %v44 = vld [vmem:[%s1 + $0x34] sm:$0xf]
    %v45 = vld [vmem:[%s1 + $0x38] sm:$0xf]
    %v46 = vld [vmem:[%s1 + $0x3c] sm:$0xf]
    %v47 = vld [vmem:[%s1 + $0x40] sm:$0xf]
    %v48 = vld [vmem:[%s1 + $0x44] sm:$0xf]
    %v49 = vld [vmem:[%s1 + $0x48] sm:$0xf]
    %v50 = vld [vmem:[%s1 + $0x4c] sm:$0xf]
    %v51 = vld [vmem:[#allocation2] sm:$0x1]
    %v53 = vlaneseq
    %v54 = vshrl.u32 %v53, 7
    %v55 = vsub.s32 0, %v54
    %v56 = vrot.slane %v51, %v55
    %v62 = vunpack.c.l.b16 %v27
    %v63 = vunpack.c.h.b16 %v27
    %v64 = vunpack.c.l.b16 %v28
    %v65 = vunpack.c.h.b16 %v28
    %v66 = vunpack.c.l.b16 %v29
    %v67 = vunpack.c.h.b16 %v29
    %v68 = vunpack.c.l.b16 %v30
    %v69 = vunpack.c.h.b16 %v30
    %v70 = vpack.c.b16 %v64, %v62
    %v71 = vpack.c.b16 %v65, %v63
    %v72 = vpack.c.b16 %v68, %v66
    %v73 = vpack.c.b16 %v69, %v67
    %v96 = vunpack.c.l.b16 %v31
    %v97 = vunpack.c.l.b16 %v32
    %v98 = vunpack.c.l.b16 %v33
    %v99 = vunpack.c.l.b16 %v34
    %v100 = vunpack.c.l.b16 %v35
    %v101 = vunpack.c.l.b16 %v36
    %v102 = vunpack.c.l.b16 %v37
    %v103 = vunpack.c.l.b16 %v38
    %v104 = vunpack.c.l.b16 %v39
    %v105 = vunpack.c.l.b16 %v40
    %v106 = vunpack.c.l.b16 %v41
    %v107 = vunpack.c.l.b16 %v42
    %v108 = vunpack.c.l.b16 %v43
    %v109 = vunpack.c.l.b16 %v44
    %v110 = vunpack.c.l.b16 %v45
    %v111 = vunpack.c.l.b16 %v46
    %v112 = vunpack.c.l.b16 %v47
    %v113 = vunpack.c.l.b16 %v48
    %v114 = vunpack.c.l.b16 %v49
    %v115 = vunpack.c.l.b16 %v50
    %v116 = vpack.c.b16 %v97, %v96
    %v117 = vpack.c.b16 %v99, %v98
    %v118 = vpack.c.b16 %v101, %v100
    %v119 = vpack.c.b16 %v103, %v102
    %v120 = vpack.c.b16 %v105, %v104
    %v121 = vpack.c.b16 %v107, %v106
    %v122 = vpack.c.b16 %v109, %v108
    %v123 = vpack.c.b16 %v111, %v110
    %v124 = vpack.c.b16 %v113, %v112
    %v125 = vpack.c.b16 %v115, %v114
    %vm136 = vcmask 261120
    %v138 = vsel %vm136, %v71, 0
    %v141 = vsel %vm136, %v73, 0
    %143 = vmatprep.subr.bf16.mxu0 0
    %144 = vmatpush1.bf16.msra.mxu0 %v123
    %145 = vmatprep.subr.bf16.mxu0 0
    %146 = vmatpush1.bf16.msra.mxu0 %v122
    %147 = vmatprep.subr.bf16.mxu0 0
    %148 = vmatpush1.bf16.msra.mxu0 %v121
    %149 = vmatprep.subr.bf16.mxu0 0
    %150 = vmatpush1.bf16.msra.mxu0 %v120
    %151 = vmatprep.subr.bf16.mxu0 0
    %152 = vmatpush1.bf16.msra.mxu0 %v119
    %153 = vmatprep.subr.bf16.mxu0 0
    %154 = vmatpush1.bf16.msra.mxu0 %v118
    %155 = vmatprep.subr.bf16.mxu0 0
    %156 = vmatpush1.bf16.msra.mxu0 %v117
    %157 = vmatprep.subr.bf16.mxu0 0
    %158 = vmatpush1.bf16.msra.mxu0 %v116
    %159 = vmatprep.subr.bf16.mxu0 0
    %160 = vmatpush2.bf16.msra.mxu0 0
    %161 = vmatprep.subr.bf16.mxu0 0
    %162 = vmatpush2.bf16.msra.mxu0 0
    %163 = vmatprep.subr.bf16.mxu0 0
    %164 = vmatpush2.bf16.msra.mxu0 0
    %165 = vmatprep.subr.bf16.mxu0 0
    %166 = vmatpush2.bf16.msra.mxu0 0
    %167 = vmatprep.subr.bf16.mxu0 0
    %168 = vmatpush2.bf16.msra.mxu0 0
    %169 = vmatprep.subr.bf16.mxu0 0
    %170 = vmatpush2.bf16.msra.mxu0 0
    %171 = vmatprep.subr.bf16.mxu0 0
    %172 = vmatpush2.bf16.msra.mxu0 %v125
    %173 = vmatprep.subr.bf16.mxu0 0
    %174 = vmatpush2.bf16.msra.mxu0 %v124
    %175 = vmatprep.mubr.bf16.mxu0 %v138
    %176 = vmatmul.mubr.bf16.gmra.mxu0 %v70
    %v177 = vpop.f32.mrf.mxu0
    %v178 = vadd.f32 %v56, %v177
    %v179 = vpop.f32.mrf.mxu0
    %v180 = vpop.f32.mrf.mxu0
    %v181 = vadd.f32 %v56, %v180
    %v182 = vpop.f32.mrf.mxu0
    %183 = vmatprep.mubr.bf16.mxu0 %v141
    %184 = vmatmul.mubr.bf16.gmra.mxu0 %v72
    %v185 = vpop.f32.mrf.mxu0
    %v186 = vadd.f32 %v56, %v185
    %v187 = vpop.f32.mrf.mxu0
    %v188 = vpop.f32.mrf.mxu0
    %v189 = vadd.f32 %v56, %v188
    %v190 = vpop.f32.mrf.mxu0
    %191 = vdwg.mxu0
    %192 = vst.msk [vmem:[%s3] sm:$0xff] %vm136, %v178
    %193 = vst.msk [vmem:[%s3 + $0x8] sm:$0xff] %vm136, %v181
    %194 = vst.msk [vmem:[%s3 + $0x10] sm:$0xff] %vm136, %v186
    %vm195 = vcmask 254976
    %196 = vst.msk [vmem:[%s3 + $0x18] sm:$0x3] %vm195, %v189
    // Predicated region
    $region18: #{_lambda_.22} parent=1 // pred_check
      _
    $region19: #{_lambda_.22} parent=1 // pred_check_branch
      %198 = sbr.rel (0) target = $region21
    $region20: #{_lambda_.22} parent=1 // pred_region
      _
    $region21: #{_lambda_.22} parent=1 // pred_fallthru
      _
    // Predicated region
    $region22: #{_lambda_.22} parent=1 // pred_check
      _
    $region23: #{_lambda_.22} parent=1 // pred_check_branch
      %200 = sbr.rel (0) target = $region25
    $region24: #{_lambda_.22} parent=1 // pred_region
      _
    $region25: #{_lambda_.22} parent=1 // pred_fallthru
      _
    %201 = vsyncpa [#allocation3], 1

// kernel: _lambda_.23
$region0: #{_lambda_.23}
  #allocation0 [shape = 'u32[]', space=smem, size = 0x4, offset = 0x4, fixed_abs, tag = 'smem constant byte address 0x4 - core index']
  #allocation1 [shape = 'u32[144,128]{1,0:T(1,128)}', space=vmem, size = 0x12000, scoped, tag = 'internal scratch']
  %s0 = inlined_call_operand.vmem [shape: f32[26,32], index: 0, kind: input, shape index: {}]
  %s1 = inlined_call_operand.vmem [shape: f32[1,32], index: 1, kind: input, shape index: {}]
  %s2 = inlined_call_operand.vmem [shape: f32[1,32], index: 2, kind: input, shape index: {}]
  %s3 = inlined_call_operand.vmem [shape: bf16[32,64], index: 3, kind: input, shape index: {}]
  %s4 = inlined_call_operand.vmem [shape: f32[1,64], index: 4, kind: input, shape index: {}]
  %s5 = inlined_call_operand.vmem [shape: bf16[64,32], index: 5, kind: input, shape index: {}]
  %s6 = inlined_call_operand.vmem [shape: f32[1,32], index: 6, kind: input, shape index: {}]
  %s7 = inlined_call_operand.vmem [shape: f32[26,32], index: 7, kind: output, shape index: {}]
  %s8 = sld [smem:[#allocation0]]
  $region38: #{_lambda_.23} parent=0
    _
  %s10 = ssub.s32 1, %s8
  %s11 = scalar_select 0, %s10, %s8
  // Predicated region
  $region2: #{_lambda_.23} parent=0 // pred_check
    _
  $region3: #{_lambda_.23} parent=0 // pred_check_branch
    %13 = sbr.rel (0) target = $region5
  $region4: #{_lambda_.23} parent=0 // pred_region
    _
  $region5: #{_lambda_.23} parent=0 // pred_fallthru
    _
  // Predicated region
  $region6: #{_lambda_.23} parent=0 // pred_check
    _
  $region7: #{_lambda_.23} parent=0 // pred_check_branch
    %15 = sbr.rel (0) target = $region9
  $region8: #{_lambda_.23} parent=0 // pred_region
    _
  $region9: #{_lambda_.23} parent=0 // pred_fallthru
    _
  // Predicated region
  $region10: #{_lambda_.23} parent=0 // pred_check
    _
  $region11: #{_lambda_.23} parent=0 // pred_check_branch
    %17 = sbr.rel (0) target = $region13
  $region12: #{_lambda_.23} parent=0 // pred_region
    _
  $region13: #{_lambda_.23} parent=0 // pred_fallthru
    _
  // Predicated region
  $region14: #{_lambda_.23} parent=0 // pred_check
    _
  $region15: #{_lambda_.23} parent=0 // pred_check_branch
    %19 = sbr.rel (0) target = $region17
  $region16: #{_lambda_.23} parent=0 // pred_region
    _
  $region17: #{_lambda_.23} parent=0 // pred_fallthru
    _
  // Predicated region
  $region18: #{_lambda_.23} parent=0 // pred_check
    _
  $region19: #{_lambda_.23} parent=0 // pred_check_branch
    %21 = sbr.rel (0) target = $region21
  $region20: #{_lambda_.23} parent=0 // pred_region
    _
  $region21: #{_lambda_.23} parent=0 // pred_fallthru
    _
  // Predicated region
  $region22: #{_lambda_.23} parent=0 // pred_check
    _
  $region23: #{_lambda_.23} parent=0 // pred_check_branch
    %23 = sbr.rel (0) target = $region25
  $region24: #{_lambda_.23} parent=0 // pred_region
    _
  $region25: #{_lambda_.23} parent=0 // pred_fallthru
    _
  // Predicated region
  $region26: #{_lambda_.23} parent=0 // pred_check
    _
  $region27: #{_lambda_.23} parent=0 // pred_check_branch
    %25 = sbr.rel (0) target = $region29
  $region28: #{_lambda_.23} parent=0 // pred_region
    _
  $region29: #{_lambda_.23} parent=0 // pred_fallthru
    _
  %v27 = vld [vmem:[%s0] sm:$0xff]
  %v28 = vld [vmem:[%s0 + $0x8] sm:$0xff]
  %v29 = vld [vmem:[%s0 + $0x10] sm:$0xff]
  %v30 = vld [vmem:[%s0 + $0x18] sm:$0x3]
  %vm31 = vcmask 261120
  %v32 = vsel %vm31, %v27, 0.0
  %33 = vadd.xlane.f32.xlu0 %v32
  %v34 = vpop.xlane.xlu0 %33
  %v35 = vsel %vm31, %v28, 0.0
  %36 = vadd.xlane.f32.xlu0 %v35
  %v37 = vpop.xlane.xlu0 %36
  %v38 = vsel %vm31, %v29, 0.0
  %39 = vadd.xlane.f32.xlu0 %v38
  %v40 = vpop.xlane.xlu0 %39
  %vm41 = vcmask 254976
  %v42 = vsel %vm41, %v30, 0.0
  %43 = vadd.xlane.f32.xlu0 %v42
  %v44 = vpop.xlane.xlu0 %43
  %v45 = vrcp.pop 32.0
  %v46 = vmul.f32 %v34, %v45
  %v47 = vmul.f32 %v37, %v45
  %v48 = vmul.f32 %v40, %v45
  %v49 = vmul.f32 %v44, %v45
  %v50 = vsub.f32 %v27, %v46
  %v51 = vsub.f32 %v28, %v47
  %v52 = vsub.f32 %v29, %v48
  %v53 = vsub.f32 %v30, %v49
  %v54 = vmul.f32 %v50, %v50
  %v55 = vmul.f32 %v51, %v51
  %v56 = vmul.f32 %v52, %v52
  %v57 = vmul.f32 %v53, %v53
  %v58 = vsel %vm31, %v54, 0.0
  %59 = vadd.xlane.f32.xlu0 %v58
  %v60 = vpop.xlane.xlu0 %59
  %v61 = vsel %vm31, %v55, 0.0
  %62 = vadd.xlane.f32.xlu0 %v61
  %v63 = vpop.xlane.xlu0 %62
  %v64 = vsel %vm31, %v56, 0.0
  %65 = vadd.xlane.f32.xlu0 %v64
  %v66 = vpop.xlane.xlu0 %65
  %v67 = vsel %vm41, %v57, 0.0
  %68 = vadd.xlane.f32.xlu0 %v67
  %v69 = vpop.xlane.xlu0 %68
  %v70 = vmul.f32 %v60, %v45
  %v71 = vmul.f32 %v63, %v45
  %v72 = vmul.f32 %v66, %v45
  %v73 = vmul.f32 %v69, %v45
  %v74 = vadd.f32 %v70, 1e-05
  %v75 = vadd.f32 %v71, 1e-05
  %v76 = vadd.f32 %v72, 1e-05
  %v77 = vadd.f32 %v73, 1e-05
  %v78 = vrsqrt.pop %v74
  %v79 = vrsqrt.pop %v75
  %v80 = vrsqrt.pop %v76
  %v81 = vrsqrt.pop %v77
  %v82 = vmul.f32 %v50, %v78
  %v83 = vmul.f32 %v51, %v79
  %v84 = vmul.f32 %v52, %v80
  %v85 = vmul.f32 %v53, %v81
  %v86 = vld [vmem:[%s1] sm:$0x1]
  %v88 = vlaneseq
  %v89 = vshrl.u32 %v88, 7
  %v90 = vsub.s32 0, %v89
  %v91 = vrot.slane %v86, %v90
  %v93 = vmul.f32 %v82, %v91
  %v94 = vmul.f32 %v83, %v91
  %v95 = vmul.f32 %v84, %v91
  %v96 = vmul.f32 %v85, %v91
  %v97 = vld [vmem:[%s2] sm:$0x1]
  %v99 = vlaneseq
  %v100 = vshrl.u32 %v99, 7
  %v101 = vsub.s32 0, %v100
  %v102 = vrot.slane %v97, %v101
  %v104 = vadd.f32 %v93, %v102
  %v105 = vadd.f32 %v94, %v102
  %v106 = vadd.f32 %v95, %v102
  %v107 = vadd.f32 %v96, %v102
  %v108 = vpack.c.bf16 %v105, %v104
  %v109 = vpack.c.bf16 %v107, %v106
  %v110 = vld [vmem:[%s3] sm:$0xf]
  %v111 = vld [vmem:[%s3 + $0x4] sm:$0xf]
  %v112 = vld [vmem:[%s3 + $0x8] sm:$0xf]
  %v113 = vld [vmem:[%s3 + $0xc] sm:$0xf]
  %v114 = vld [vmem:[%s4] sm:$0x1]
  %v116 = vlaneseq
  %v117 = vshrl.u32 %v116, 7
  %v118 = vsub.s32 0, %v117
  %v119 = vrot.slane %v114, %v118
  %v125 = vunpack.c.l.b16 %v110
  %v126 = vunpack.c.l.b16 %v111
  %v127 = vunpack.c.l.b16 %v112
  %v128 = vunpack.c.l.b16 %v113
  %v129 = vpack.c.b16 %v126, %v125
  %v130 = vpack.c.b16 %v128, %v127
  %v134 = vsel %vm31, %v108, 0
  %v137 = vsel %vm31, %v109, 0
  %139 = vmatprep.subr.bf16.mxu0 0
  %140 = vmatpush1.bf16.msra.mxu0 0
  %141 = vmatprep.subr.bf16.mxu0 0
  %142 = vmatpush1.bf16.msra.mxu0 0
  %143 = vmatprep.subr.bf16.mxu0 0
  %144 = vmatpush1.bf16.msra.mxu0 0
  %145 = vmatprep.subr.bf16.mxu0 0
  %146 = vmatpush1.bf16.msra.mxu0 0
  %147 = vmatprep.subr.bf16.mxu0 0
  %148 = vmatpush1.bf16.msra.mxu0 0
  %149 = vmatprep.subr.bf16.mxu0 0
  %150 = vmatpush1.bf16.msra.mxu0 0
  %151 = vmatprep.subr.bf16.mxu0 0
  %152 = vmatpush1.bf16.msra.mxu0 %v130
  %153 = vmatprep.subr.bf16.mxu0 0
  %154 = vmatpush1.bf16.msra.mxu0 %v129
  %155 = vmatprep.subr.bf16.mxu0 0
  %156 = vmatpush2.bf16.msra.mxu0 0
  %157 = vmatprep.subr.bf16.mxu0 0
  %158 = vmatpush2.bf16.msra.mxu0 0
  %159 = vmatprep.subr.bf16.mxu0 0
  %160 = vmatpush2.bf16.msra.mxu0 0
  %161 = vmatprep.subr.bf16.mxu0 0
  %162 = vmatpush2.bf16.msra.mxu0 0
  %163 = vmatprep.subr.bf16.mxu0 0
  %164 = vmatpush2.bf16.msra.mxu0 0
  %165 = vmatprep.subr.bf16.mxu0 0
  %166 = vmatpush2.bf16.msra.mxu0 0
  %167 = vmatprep.subr.bf16.mxu0 0
  %168 = vmatpush2.bf16.msra.mxu0 0
  %169 = vmatprep.subr.bf16.mxu0 0
  %170 = vmatpush2.bf16.msra.mxu0 0
  %171 = vmatprep.mubr.bf16.mxu0 0
  %172 = vmatmul.mubr.bf16.gmra.mxu0 %v134
  %v173 = vpop.f32.mrf.mxu0
  %v174 = vadd.f32 %v119, %v173
  %v175 = vpop.f32.mrf.mxu0
  %v176 = vpop.f32.mrf.mxu0
  %v177 = vadd.f32 %v119, %v176
  %v178 = vpop.f32.mrf.mxu0
  %179 = vmatprep.mubr.bf16.mxu0 0
  %180 = vmatmul.mubr.bf16.gmra.mxu0 %v137
  %v181 = vpop.f32.mrf.mxu0
  %v182 = vadd.f32 %v119, %v181
  %v183 = vpop.f32.mrf.mxu0
  %v184 = vpop.f32.mrf.mxu0
  %v185 = vadd.f32 %v119, %v184
  %v186 = vpop.f32.mrf.mxu0
  %187 = vdwg.mxu0
  %v188 = vsub.f32 0.0, %v174
  %v189 = vsub.f32 0.0, %v177
  %v190 = vsub.f32 0.0, %v182
  %v191 = vsub.f32 0.0, %v185
  %v192 = vmul.f32 %v188, 1.442695
  %v193 = vpow.pop %v192
  %v194 = vmul.f32 %v189, 1.442695
  %v195 = vpow.pop %v194
  %v196 = vmul.f32 %v190, 1.442695
  %v197 = vpow.pop %v196
  %v198 = vmul.f32 %v191, 1.442695
  %v199 = vpow.pop %v198
  %v200 = vadd.f32 %v193, 1.0
  %v201 = vadd.f32 %v195, 1.0
  %v202 = vadd.f32 %v197, 1.0
  %v203 = vadd.f32 %v199, 1.0
  %v204 = vrcp.pop %v200
  %v205 = vmul.f32 1.0, %v204
  %v206 = vrcp.pop %v201
  %v207 = vmul.f32 1.0, %v206
  %v208 = vrcp.pop %v202
  %v209 = vmul.f32 1.0, %v208
  %v210 = vrcp.pop %v203
  %v211 = vmul.f32 1.0, %v210
  %v212 = vmul.f32 %v174, %v205
  %v213 = vmul.f32 %v177, %v207
  %v214 = vmul.f32 %v182, %v209
  %v215 = vmul.f32 %v185, %v211
  %v216 = vpack.c.bf16 %v213, %v212
  %v217 = vpack.c.bf16 %v215, %v214
  %v218 = vld [vmem:[%s5] sm:$0xf]
  %v219 = vld [vmem:[%s5 + $0x4] sm:$0xf]
  %v220 = vld [vmem:[%s5 + $0x8] sm:$0xf]
  %v221 = vld [vmem:[%s5 + $0xc] sm:$0xf]
  %v222 = vld [vmem:[%s5 + $0x10] sm:$0xf]
  %v223 = vld [vmem:[%s5 + $0x14] sm:$0xf]
  %v224 = vld [vmem:[%s5 + $0x18] sm:$0xf]
  %v225 = vld [vmem:[%s5 + $0x1c] sm:$0xf]
  %v226 = vld [vmem:[%s6] sm:$0x1]
  %v228 = vlaneseq
  %v229 = vshrl.u32 %v228, 7
  %v230 = vsub.s32 0, %v229
  %v231 = vrot.slane %v226, %v230
  %v241 = vunpack.c.l.b16 %v218
  %v242 = vunpack.c.l.b16 %v219
  %v243 = vunpack.c.l.b16 %v220
  %v244 = vunpack.c.l.b16 %v221
  %v245 = vunpack.c.l.b16 %v222
  %v246 = vunpack.c.l.b16 %v223
  %v247 = vunpack.c.l.b16 %v224
  %v248 = vunpack.c.l.b16 %v225
  %v249 = vpack.c.b16 %v242, %v241
  %v250 = vpack.c.b16 %v244, %v243
  %v251 = vpack.c.b16 %v246, %v245
  %v252 = vpack.c.b16 %v248, %v247
  %vm257 = vcmask 523264
  %v259 = vsel %vm257, %v216, 0
  %v262 = vsel %vm257, %v217, 0
  %264 = vmatprep.subr.bf16.mxu0 0
  %265 = vmatpush1.bf16.msra.mxu0 0
  %266 = vmatprep.subr.bf16.mxu0 0
  %267 = vmatpush1.bf16.msra.mxu0 0
  %268 = vmatprep.subr.bf16.mxu0 0
  %269 = vmatpush1.bf16.msra.mxu0 0
  %270 = vmatprep.subr.bf16.mxu0 0
  %271 = vmatpush1.bf16.msra.mxu0 0
  %272 = vmatprep.subr.bf16.mxu0 0
  %273 = vmatpush1.bf16.msra.mxu0 %v252
  %274 = vmatprep.subr.bf16.mxu0 0
  %275 = vmatpush1.bf16.msra.mxu0 %v251
  %276 = vmatprep.subr.bf16.mxu0 0
  %277 = vmatpush1.bf16.msra.mxu0 %v250
  %278 = vmatprep.subr.bf16.mxu0 0
  %279 = vmatpush1.bf16.msra.mxu0 %v249
  %280 = vmatprep.subr.bf16.mxu0 0
  %281 = vmatpush2.bf16.msra.mxu0 0
  %282 = vmatprep.subr.bf16.mxu0 0
  %283 = vmatpush2.bf16.msra.mxu0 0
  %284 = vmatprep.subr.bf16.mxu0 0
  %285 = vmatpush2.bf16.msra.mxu0 0
  %286 = vmatprep.subr.bf16.mxu0 0
  %287 = vmatpush2.bf16.msra.mxu0 0
  %288 = vmatprep.subr.bf16.mxu0 0
  %289 = vmatpush2.bf16.msra.mxu0 0
  %290 = vmatprep.subr.bf16.mxu0 0
  %291 = vmatpush2.bf16.msra.mxu0 0
  %292 = vmatprep.subr.bf16.mxu0 0
  %293 = vmatpush2.bf16.msra.mxu0 0
  %294 = vmatprep.subr.bf16.mxu0 0
  %295 = vmatpush2.bf16.msra.mxu0 0
  %296 = vmatprep.mubr.bf16.mxu0 0
  %297 = vmatmul.mubr.bf16.gmra.mxu0 %v259
  %v298 = vpop.f32.mrf.mxu0
  %v299 = vadd.f32 %v231, %v298
  %v300 = vpop.f32.mrf.mxu0
  %v301 = vpop.f32.mrf.mxu0
  %v302 = vadd.f32 %v231, %v301
  %v303 = vpop.f32.mrf.mxu0
  %304 = vmatprep.mubr.bf16.mxu0 0
  %305 = vmatmul.mubr.bf16.gmra.mxu0 %v262
  %v306 = vpop.f32.mrf.mxu0
  %v307 = vadd.f32 %v231, %v306
  %v308 = vpop.f32.mrf.mxu0
  %v309 = vpop.f32.mrf.mxu0
  %v310 = vadd.f32 %v231, %v309
  %v311 = vpop.f32.mrf.mxu0
  %312 = vdwg.mxu0
  %v313 = vmul.f32 %v299, 0.5
  %v314 = vmul.f32 %v302, 0.5
  %v315 = vmul.f32 %v307, 0.5
  %v316 = vmul.f32 %v310, 0.5
  %v317 = vadd.f32 %v27, %v313
  %v318 = vadd.f32 %v28, %v314
  %v319 = vadd.f32 %v29, %v315
  %v320 = vadd.f32 %v30, %v316
  %321 = vst.msk [vmem:[%s7] sm:$0xff] %vm31, %v317
  %322 = vst.msk [vmem:[%s7 + $0x8] sm:$0xff] %vm31, %v318
  %323 = vst.msk [vmem:[%s7 + $0x10] sm:$0xff] %vm31, %v319
  %324 = vst.msk [vmem:[%s7 + $0x18] sm:$0x3] %vm41, %v320
  // Predicated region
  $region30: #{_lambda_.23} parent=0 // pred_check
    _
  $region31: #{_lambda_.23} parent=0 // pred_check_branch
    %326 = sbr.rel (0) target = $region33
  $region32: #{_lambda_.23} parent=0 // pred_region
    _
  $region33: #{_lambda_.23} parent=0 // pred_fallthru
    _
  // Predicated region
  $region34: #{_lambda_.23} parent=0 // pred_check
    _
  $region35: #{_lambda_.23} parent=0 // pred_check_branch
    %328 = sbr.rel (0) target = $region37
  $region36: #{_lambda_.23} parent=0 // pred_region
    _
  $region37: #{_lambda_.23} parent=0 // pred_fallthru
    _

// kernel: _lambda_.24
$region0: #{_lambda_.24}
  #allocation0 [shape = 'u32[]', space=smem, size = 0x4, offset = 0x4, fixed_abs, tag = 'smem constant byte address 0x4 - core index']
  #allocation1 [shape = 'u32[144,128]{1,0:T(1,128)}', space=vmem, size = 0x12000, scoped, tag = 'internal scratch']
  %s0 = inlined_call_operand.vmem [shape: f32[26,32], index: 0, kind: input, shape index: {}]
  %s1 = inlined_call_operand.hbm [shape: f32[1,32], index: 1, kind: input, shape index: {}]
  %s2 = inlined_call_operand.hbm [shape: f32[1,32], index: 2, kind: input, shape index: {}]
  %s3 = inlined_call_operand.vmem [shape: bf16[32,96], index: 3, kind: input, shape index: {}]
  %s4 = inlined_call_operand.hbm [shape: f32[1,96], index: 4, kind: input, shape index: {}]
  %s5 = inlined_call_operand.vmem [shape: bf16[26,32], index: 5, kind: output, shape index: {0}]
  %s6 = inlined_call_operand.vmem [shape: bf16[26,32], index: 6, kind: output, shape index: {1}]
  %s7 = inlined_call_operand.vmem [shape: bf16[26,32], index: 7, kind: output, shape index: {2}]
  %8 = xla_tuple %s5, %s6, %s7
  %s9 = sld [smem:[#allocation0]]
  $region58: #{_lambda_.24} parent=0
    _
  %s11 = ssub.s32 1, %s9
  %s12 = scalar_select 0, %s11, %s9
  $region1: #{_lambda_.24} parent=0
    #allocation2 [shape = 'u8[512]{0}', space=vmem, size = 0x400, scoped, tag = 'input window, operand 1, single buffered']
    #allocation3 [shape = 's32[1]{0}', space=sflag, size = 0x4, scoped, tag = 'scoped memory for _lambda_.24']
    #allocation4 [shape = 'u8[512]{0}', space=vmem, size = 0x400, scoped, tag = 'input window, operand 2, single buffered']
    #allocation5 [shape = 's32[1]{0}', space=sflag, size = 0x4, scoped, tag = 'scoped memory for _lambda_.24']
    #allocation6 [shape = 'u8[512]{0}', space=vmem, size = 0x400, scoped, tag = 'input window, operand 4, single buffered']
    %13 = vsyncpa [#allocation3], 0
    %14 = vsyncpa [#allocation5], 0
    // Predicated region
    $region2: #{_lambda_.24} parent=1 // pred_check
      _
    $region3: #{_lambda_.24} parent=1 // pred_check_branch
      %16 = sbr.rel (0) target = $region5
    $region4: #{_lambda_.24} parent=1 // pred_region
      _
    $region5: #{_lambda_.24} parent=1 // pred_fallthru
      _
    // Predicated region
    $region6: #{_lambda_.24} parent=1 // pred_check
      _
    $region7: #{_lambda_.24} parent=1 // pred_check_branch
      %18 = sbr.rel (0) target = $region9
    $region8: #{_lambda_.24} parent=1 // pred_region
      %s20 = ssub.s32 16, 16
      %21 = vsyncadd [#allocation3], %s20
      %s23 = sshll.u32 [#allocation2], 4
      %s24 = int_to_ptr.vmem [resolvable:$true] %s23
      %26 = dma.hbm_to_vmem [thread:$0]  %s1, 16, %s24, [#allocation3]
    $region9: #{_lambda_.24} parent=1 // pred_fallthru
      _
    // Predicated region
    $region10: #{_lambda_.24} parent=1 // pred_check
      _
    $region11: #{_lambda_.24} parent=1 // pred_check_branch
      %28 = sbr.rel (0) target = $region13
    $region12: #{_lambda_.24} parent=1 // pred_region
      %s30 = ssub.s32 16, 16
      %31 = vsyncadd [#allocation5], %s30
      %s33 = sshll.u32 [#allocation4], 4
      %s34 = int_to_ptr.vmem [resolvable:$true] %s33
      %36 = dma.hbm_to_vmem [thread:$0]  %s2, 16, %s34, [#allocation5]
    $region13: #{_lambda_.24} parent=1 // pred_fallthru
      _
    // Predicated region
    $region14: #{_lambda_.24} parent=1 // pred_check
      _
    $region15: #{_lambda_.24} parent=1 // pred_check_branch
      %38 = sbr.rel (0) target = $region17
    $region16: #{_lambda_.24} parent=1 // pred_region
      _
    $region17: #{_lambda_.24} parent=1 // pred_fallthru
      _
    // Predicated region
    $region18: #{_lambda_.24} parent=1 // pred_check
      _
    $region19: #{_lambda_.24} parent=1 // pred_check_branch
      %40 = sbr.rel (0) target = $region21
    $region20: #{_lambda_.24} parent=1 // pred_region
      %s42 = ssub.s32 16, 16
      %43 = vsyncadd [#allocation5], %s42
      %s45 = sshll.u32 [#allocation6], 4
      %s46 = int_to_ptr.vmem [resolvable:$true] %s45
      %48 = dma.hbm_to_vmem [thread:$0]  %s4, 16, %s46, [#allocation5]
    $region21: #{_lambda_.24} parent=1 // pred_fallthru
      _
    // Predicated region
    $region22: #{_lambda_.24} parent=1 // pred_check
      _
    $region23: #{_lambda_.24} parent=1 // pred_check_branch
      %50 = sbr.rel (0) target = $region25
    $region24: #{_lambda_.24} parent=1 // pred_region
      %51 = dma.done [#allocation3], 16
    $region25: #{_lambda_.24} parent=1 // pred_fallthru
      _
    // Predicated region
    $region26: #{_lambda_.24} parent=1 // pred_check
      _
    $region27: #{_lambda_.24} parent=1 // pred_check_branch
      %53 = sbr.rel (0) target = $region29
    $region28: #{_lambda_.24} parent=1 // pred_region
      %54 = dma.done [#allocation5], 16
    $region29: #{_lambda_.24} parent=1 // pred_fallthru
      _
    // Predicated region
    $region30: #{_lambda_.24} parent=1 // pred_check
      _
    $region31: #{_lambda_.24} parent=1 // pred_check_branch
      %56 = sbr.rel (0) target = $region33
    $region32: #{_lambda_.24} parent=1 // pred_region
      %57 = dma.done [#allocation5], 16
    $region33: #{_lambda_.24} parent=1 // pred_fallthru
      _
    %v59 = vld [vmem:[%s0] sm:$0xff]
    %v60 = vld [vmem:[%s0 + $0x8] sm:$0xff]
    %v61 = vld [vmem:[%s0 + $0x10] sm:$0xff]
    %v62 = vld [vmem:[%s0 + $0x18] sm:$0x3]
    %vm63 = vcmask 261120
    %v64 = vsel %vm63, %v59, 0.0
    %65 = vadd.xlane.f32.xlu0 %v64
    %v66 = vpop.xlane.xlu0 %65
    %v67 = vsel %vm63, %v60, 0.0
    %68 = vadd.xlane.f32.xlu0 %v67
    %v69 = vpop.xlane.xlu0 %68
    %v70 = vsel %vm63, %v61, 0.0
    %71 = vadd.xlane.f32.xlu0 %v70
    %v72 = vpop.xlane.xlu0 %71
    %vm73 = vcmask 254976
    %v74 = vsel %vm73, %v62, 0.0
    %75 = vadd.xlane.f32.xlu0 %v74
    %v76 = vpop.xlane.xlu0 %75
    %v77 = vrcp.pop 32.0
    %v78 = vmul.f32 %v66, %v77
    %v79 = vmul.f32 %v69, %v77
    %v80 = vmul.f32 %v72, %v77
    %v81 = vmul.f32 %v76, %v77
    %v82 = vsub.f32 %v59, %v78
    %v83 = vsub.f32 %v60, %v79
    %v84 = vsub.f32 %v61, %v80
    %v85 = vsub.f32 %v62, %v81
    %v86 = vmul.f32 %v82, %v82
    %v87 = vmul.f32 %v83, %v83
    %v88 = vmul.f32 %v84, %v84
    %v89 = vmul.f32 %v85, %v85
    %v90 = vsel %vm63, %v86, 0.0
    %91 = vadd.xlane.f32.xlu0 %v90
    %v92 = vpop.xlane.xlu0 %91
    %v93 = vsel %vm63, %v87, 0.0
    %94 = vadd.xlane.f32.xlu0 %v93
    %v95 = vpop.xlane.xlu0 %94
    %v96 = vsel %vm63, %v88, 0.0
    %97 = vadd.xlane.f32.xlu0 %v96
    %v98 = vpop.xlane.xlu0 %97
    %v99 = vsel %vm73, %v89, 0.0
    %100 = vadd.xlane.f32.xlu0 %v99
    %v101 = vpop.xlane.xlu0 %100
    %v102 = vmul.f32 %v92, %v77
    %v103 = vmul.f32 %v95, %v77
    %v104 = vmul.f32 %v98, %v77
    %v105 = vmul.f32 %v101, %v77
    %v106 = vadd.f32 %v102, 1e-05
    %v107 = vadd.f32 %v103, 1e-05
    %v108 = vadd.f32 %v104, 1e-05
    %v109 = vadd.f32 %v105, 1e-05
    %v110 = vrsqrt.pop %v106
    %v111 = vrsqrt.pop %v107
    %v112 = vrsqrt.pop %v108
    %v113 = vrsqrt.pop %v109
    %v114 = vmul.f32 %v82, %v110
    %v115 = vmul.f32 %v83, %v111
    %v116 = vmul.f32 %v84, %v112
    %v117 = vmul.f32 %v85, %v113
    %v118 = vld [vmem:[#allocation2] sm:$0x1]
    %v120 = vlaneseq
    %v121 = vshrl.u32 %v120, 7
    %v122 = vsub.s32 0, %v121
    %v123 = vrot.slane %v118, %v122
    %v125 = vmul.f32 %v114, %v123
    %v126 = vmul.f32 %v115, %v123
    %v127 = vmul.f32 %v116, %v123
    %v128 = vmul.f32 %v117, %v123
    %v129 = vld [vmem:[#allocation4] sm:$0x1]
    %v131 = vlaneseq
    %v132 = vshrl.u32 %v131, 7
    %v133 = vsub.s32 0, %v132
    %v134 = vrot.slane %v129, %v133
    %v136 = vadd.f32 %v125, %v134
    %v137 = vadd.f32 %v126, %v134
    %v138 = vadd.f32 %v127, %v134
    %v139 = vadd.f32 %v128, %v134
    %v140 = vpack.c.bf16 %v137, %v136
    %v141 = vpack.c.bf16 %v139, %v138
    %v142 = vld [vmem:[%s3] sm:$0xf]
    %v143 = vld [vmem:[%s3 + $0x4] sm:$0xf]
    %v144 = vld [vmem:[%s3 + $0x8] sm:$0xf]
    %v145 = vld [vmem:[%s3 + $0xc] sm:$0xf]
    %v146 = vld [vmem:[#allocation6] sm:$0x1]
    %v148 = vlaneseq
    %v149 = vshrl.u32 %v148, 7
    %v150 = vsub.s32 0, %v149
    %v151 = vrot.slane %v146, %v150
    %v157 = vunpack.c.l.b16 %v142
    %v158 = vunpack.c.l.b16 %v143
    %v159 = vunpack.c.l.b16 %v144
    %v160 = vunpack.c.l.b16 %v145
    %v161 = vpack.c.b16 %v158, %v157
    %v162 = vpack.c.b16 %v160, %v159
    %v166 = vsel %vm63, %v140, 0
    %v169 = vsel %vm63, %v141, 0
    %171 = vmatprep.subr.bf16.mxu0 0
    %172 = vmatpush1.bf16.msra.mxu0 0
    %173 = vmatprep.subr.bf16.mxu0 0
    %174 = vmatpush1.bf16.msra.mxu0 0
    %175 = vmatprep.subr.bf16.mxu0 0
    %176 = vmatpush1.bf16.msra.mxu0 0
    %177 = vmatprep.subr.bf16.mxu0 0
    %178 = vmatpush1.bf16.msra.mxu0 0
    %179 = vmatprep.subr.bf16.mxu0 0
    %180 = vmatpush1.bf16.msra.mxu0 0
    %181 = vmatprep.subr.bf16.mxu0 0
    %182 = vmatpush1.bf16.msra.mxu0 0
    %183 = vmatprep.subr.bf16.mxu0 0
    %184 = vmatpush1.bf16.msra.mxu0 %v162
    %185 = vmatprep.subr.bf16.mxu0 0
    %186 = vmatpush1.bf16.msra.mxu0 %v161
    %187 = vmatprep.subr.bf16.mxu0 0
    %188 = vmatpush2.bf16.msra.mxu0 0
    %189 = vmatprep.subr.bf16.mxu0 0
    %190 = vmatpush2.bf16.msra.mxu0 0
    %191 = vmatprep.subr.bf16.mxu0 0
    %192 = vmatpush2.bf16.msra.mxu0 0
    %193 = vmatprep.subr.bf16.mxu0 0
    %194 = vmatpush2.bf16.msra.mxu0 0
    %195 = vmatprep.subr.bf16.mxu0 0
    %196 = vmatpush2.bf16.msra.mxu0 0
    %197 = vmatprep.subr.bf16.mxu0 0
    %198 = vmatpush2.bf16.msra.mxu0 0
    %199 = vmatprep.subr.bf16.mxu0 0
    %200 = vmatpush2.bf16.msra.mxu0 0
    %201 = vmatprep.subr.bf16.mxu0 0
    %202 = vmatpush2.bf16.msra.mxu0 0
    %203 = vmatprep.mubr.bf16.mxu0 0
    %204 = vmatmul.mubr.bf16.gmra.mxu0 %v166
    %v205 = vpop.f32.mrf.mxu0
    %v206 = vadd.f32 %v151, %v205
    %v207 = vpop.f32.mrf.mxu0
    %v208 = vpop.f32.mrf.mxu0
    %v209 = vadd.f32 %v151, %v208
    %v210 = vpop.f32.mrf.mxu0
    %211 = vmatprep.mubr.bf16.mxu0 0
    %212 = vmatmul.mubr.bf16.gmra.mxu0 %v169
    %v213 = vpop.f32.mrf.mxu0
    %v214 = vadd.f32 %v151, %v213
    %v215 = vpop.f32.mrf.mxu0
    %v216 = vpop.f32.mrf.mxu0
    %v217 = vadd.f32 %v151, %v216
    %v218 = vpop.f32.mrf.mxu0
    %219 = vdwg.mxu0
    %v220 = vpack.c.bf16 %v209, %v206
    %v221 = vpack.c.bf16 %v217, %v214
    %v224 = vunpack.c.l.b16 %v220
    %v225 = vunpack.c.h.b16 %v220
    %v226 = vunpack.c.l.b16 %v221
    %v227 = vunpack.c.h.b16 %v221
    %v228 = vpack.c.b16 %v224, %v224
    %v229 = vpack.c.b16 %v225, %v225
    %v230 = vpack.c.b16 %v226, %v226
    %v231 = vpack.c.b16 %v227, %v227
    %vm236 = vcmask 257024
    %237 = vst.msk [vmem:[%s5] sm:$0xf] %vm236, %v228
    %238 = vst.msk [vmem:[%s5 + $0x4] sm:$0xf] %vm236, %v229
    %239 = vst.msk [vmem:[%s5 + $0x8] sm:$0xf] %vm236, %v230
    %vm240 = vcmask 253952
    %241 = vst.msk [vmem:[%s5 + $0xc] sm:$0x1] %vm240, %v231
    %242 = vrot.lane.b32.xlu0 %v228, 96
    %v243 = vpop.permute.xlu0 %242
    %244 = vrot.lane.b32.xlu0 %v229, 96
    %v245 = vpop.permute.xlu0 %244
    %246 = vrot.lane.b32.xlu0 %v230, 96
    %v247 = vpop.permute.xlu0 %246
    %248 = vrot.lane.b32.xlu0 %v231, 96
    %v249 = vpop.permute.xlu0 %248
    %254 = vst.msk [vmem:[%s6] sm:$0xf] %vm236, %v243
    %255 = vst.msk [vmem:[%s6 + $0x4] sm:$0xf] %vm236, %v245
    %256 = vst.msk [vmem:[%s6 + $0x8] sm:$0xf] %vm236, %v247
    %257 = vst.msk [vmem:[%s6 + $0xc] sm:$0x1] %vm240, %v249
    %258 = vrot.lane.b32.xlu0 %v228, 64
    %v259 = vpop.permute.xlu0 %258
    %260 = vrot.lane.b32.xlu0 %v229, 64
    %v261 = vpop.permute.xlu0 %260
    %262 = vrot.lane.b32.xlu0 %v230, 64
    %v263 = vpop.permute.xlu0 %262
    %264 = vrot.lane.b32.xlu0 %v231, 64
    %v265 = vpop.permute.xlu0 %264
    %270 = vst.msk [vmem:[%s7] sm:$0xf] %vm236, %v259
    %271 = vst.msk [vmem:[%s7 + $0x4] sm:$0xf] %vm236, %v261
    %272 = vst.msk [vmem:[%s7 + $0x8] sm:$0xf] %vm236, %v263
    %273 = vst.msk [vmem:[%s7 + $0xc] sm:$0x1] %vm240, %v265
    // Predicated region
    $region34: #{_lambda_.24} parent=1 // pred_check
      _
    $region35: #{_lambda_.24} parent=1 // pred_check_branch
      %275 = sbr.rel (0) target = $region37
    $region36: #{_lambda_.24} parent=1 // pred_region
      _
    $region37: #{_lambda_.24} parent=1 // pred_fallthru
      _
    // Predicated region
    $region38: #{_lambda_.24} parent=1 // pred_check
      _
    $region39: #{_lambda_.24} parent=1 // pred_check_branch
      %277 = sbr.rel (0) target = $region41
    $region40: #{_lambda_.24} parent=1 // pred_region
      _
    $region41: #{_lambda_.24} parent=1 // pred_fallthru
      _
    // Predicated region
    $region42: #{_lambda_.24} parent=1 // pred_check
      _
    $region43: #{_lambda_.24} parent=1 // pred_check_branch
      %279 = sbr.rel (0) target = $region45
    $region44: #{_lambda_.24} parent=1 // pred_region
      _
    $region45: #{_lambda_.24} parent=1 // pred_fallthru
      _
    // Predicated region
    $region46: #{_lambda_.24} parent=1 // pred_check
      _
    $region47: #{_lambda_.24} parent=1 // pred_check_branch
      %281 = sbr.rel (0) target = $region49
    $region48: #{_lambda_.24} parent=1 // pred_region
      _
    $region49: #{_lambda_.24} parent=1 // pred_fallthru
      _
    // Predicated region
    $region50: #{_lambda_.24} parent=1 // pred_check
      _
    $region51: #{_lambda_.24} parent=1 // pred_check_branch
      %283 = sbr.rel (0) target = $region53
    $region52: #{_lambda_.24} parent=1 // pred_region
      _
    $region53: #{_lambda_.24} parent=1 // pred_fallthru
      _
    // Predicated region
    $region54: #{_lambda_.24} parent=1 // pred_check
      _
    $region55: #{_lambda_.24} parent=1 // pred_check_branch
      %285 = sbr.rel (0) target = $region57
    $region56: #{_lambda_.24} parent=1 // pred_region
      _
    $region57: #{_lambda_.24} parent=1 // pred_fallthru
      _
    %286 = vsyncpa [#allocation3], 1
    %287 = vsyncpa [#allocation5], 1

// kernel: _lambda_.25
$region0: #{_lambda_.25}
  #allocation0 [shape = 'u32[]', space=smem, size = 0x4, offset = 0x4, fixed_abs, tag = 'smem constant byte address 0x4 - core index']
  #allocation1 [shape = 'u32[144,128]{1,0:T(1,128)}', space=vmem, size = 0x12000, scoped, tag = 'internal scratch']
  %s0 = inlined_call_operand.vmem [shape: f32[13,32], index: 0, kind: input, shape index: {}]
  %s1 = inlined_call_operand.vmem [shape: bf16[32,32], index: 1, kind: input, shape index: {}]
  %s2 = inlined_call_operand.vmem [shape: f32[1,32], index: 2, kind: input, shape index: {}]
  %s3 = inlined_call_operand.vmem [shape: bf16[13,32], index: 3, kind: output, shape index: {}]
  %s4 = sld [smem:[#allocation0]]
  $region22: #{_lambda_.25} parent=0
    _
  %s6 = ssub.s32 1, %s4
  %s7 = scalar_select 0, %s6, %s4
  // Predicated region
  $region2: #{_lambda_.25} parent=0 // pred_check
    _
  $region3: #{_lambda_.25} parent=0 // pred_check_branch
    %9 = sbr.rel (0) target = $region5
  $region4: #{_lambda_.25} parent=0 // pred_region
    _
  $region5: #{_lambda_.25} parent=0 // pred_fallthru
    _
  // Predicated region
  $region6: #{_lambda_.25} parent=0 // pred_check
    _
  $region7: #{_lambda_.25} parent=0 // pred_check_branch
    %11 = sbr.rel (0) target = $region9
  $region8: #{_lambda_.25} parent=0 // pred_region
    _
  $region9: #{_lambda_.25} parent=0 // pred_fallthru
    _
  // Predicated region
  $region10: #{_lambda_.25} parent=0 // pred_check
    _
  $region11: #{_lambda_.25} parent=0 // pred_check_branch
    %13 = sbr.rel (0) target = $region13
  $region12: #{_lambda_.25} parent=0 // pred_region
    _
  $region13: #{_lambda_.25} parent=0 // pred_fallthru
    _
  %v15 = vld [vmem:[%s0] sm:$0xff]
  %v16 = vld [vmem:[%s0 + $0x8] sm:$0x1f]
  %v17 = vpack.c.bf16 %v16, %v15
  %v18 = vld [vmem:[%s1] sm:$0xf]
  %v19 = vld [vmem:[%s1 + $0x4] sm:$0xf]
  %v20 = vld [vmem:[%s1 + $0x8] sm:$0xf]
  %v21 = vld [vmem:[%s1 + $0xc] sm:$0xf]
  %v22 = vld [vmem:[%s2] sm:$0x1]
  %v24 = vlaneseq
  %v25 = vshrl.u32 %v24, 7
  %v26 = vsub.s32 0, %v25
  %v27 = vrot.slane %v22, %v26
  %v33 = vunpack.c.l.b16 %v18
  %v34 = vunpack.c.l.b16 %v19
  %v35 = vunpack.c.l.b16 %v20
  %v36 = vunpack.c.l.b16 %v21
  %v37 = vpack.c.b16 %v34, %v33
  %v38 = vpack.c.b16 %v36, %v35
  %vm41 = vcmask 261120
  %v43 = vsel %vm41, %v17, 0
  %45 = vmatprep.subr.bf16.mxu0 0
  %46 = vmatpush1.bf16.msra.mxu0 0
  %47 = vmatprep.subr.bf16.mxu0 0
  %48 = vmatpush1.bf16.msra.mxu0 0
  %49 = vmatprep.subr.bf16.mxu0 0
  %50 = vmatpush1.bf16.msra.mxu0 0
  %51 = vmatprep.subr.bf16.mxu0 0
  %52 = vmatpush1.bf16.msra.mxu0 0
  %53 = vmatprep.subr.bf16.mxu0 0
  %54 = vmatpush1.bf16.msra.mxu0 0
  %55 = vmatprep.subr.bf16.mxu0 0
  %56 = vmatpush1.bf16.msra.mxu0 0
  %57 = vmatprep.subr.bf16.mxu0 0
  %58 = vmatpush1.bf16.msra.mxu0 %v38
  %59 = vmatprep.subr.bf16.mxu0 0
  %60 = vmatpush1.bf16.msra.mxu0 %v37
  %61 = vmatprep.subr.bf16.mxu0 0
  %62 = vmatpush2.bf16.msra.mxu0 0
  %63 = vmatprep.subr.bf16.mxu0 0
  %64 = vmatpush2.bf16.msra.mxu0 0
  %65 = vmatprep.subr.bf16.mxu0 0
  %66 = vmatpush2.bf16.msra.mxu0 0
  %67 = vmatprep.subr.bf16.mxu0 0
  %68 = vmatpush2.bf16.msra.mxu0 0
  %69 = vmatprep.subr.bf16.mxu0 0
  %70 = vmatpush2.bf16.msra.mxu0 0
  %71 = vmatprep.subr.bf16.mxu0 0
  %72 = vmatpush2.bf16.msra.mxu0 0
  %73 = vmatprep.subr.bf16.mxu0 0
  %74 = vmatpush2.bf16.msra.mxu0 0
  %75 = vmatprep.subr.bf16.mxu0 0
  %76 = vmatpush2.bf16.msra.mxu0 0
  %77 = vmatprep.mubr.bf16.mxu0 0
  %78 = vmatmul.mubr.bf16.gmra.mxu0 %v43
  %v79 = vpop.f32.mrf.mxu0
  %v80 = vadd.f32 %v27, %v79
  %v81 = vpop.f32.mrf.mxu0
  %v82 = vpop.f32.mrf.mxu0
  %v83 = vadd.f32 %v27, %v82
  %v84 = vpop.f32.mrf.mxu0
  %85 = vdwg.mxu0
  %v86 = vpack.c.bf16 %v83, %v80
  %v88 = vunpack.c.l.b16 %v86
  %v89 = vunpack.c.h.b16 %v86
  %v90 = vpack.c.b16 %v88, %v88
  %v91 = vpack.c.b16 %v89, %v89
  %vm94 = vcmask 257024
  %95 = vst.msk [vmem:[%s3] sm:$0xf] %vm94, %v90
  %vm96 = vcmask 256000
  %vm97 = vsmask.f32 2304
  %vm98 = vmand %vm96, %vm97
  %v99 = vld [vmem:[%s3 + $0x4] sm:$0x7]
  %v100 = vsel %vm98, %v91, %v99
  %101 = vst [vmem:[%s3 + $0x4] sm:$0x7] %v100
  // Predicated region
  $region14: #{_lambda_.25} parent=0 // pred_check
    _
  $region15: #{_lambda_.25} parent=0 // pred_check_branch
    %103 = sbr.rel (0) target = $region17
  $region16: #{_lambda_.25} parent=0 // pred_region
    _
  $region17: #{_lambda_.25} parent=0 // pred_fallthru
    _
  // Predicated region
  $region18: #{_lambda_.25} parent=0 // pred_check
    _
  $region19: #{_lambda_.25} parent=0 // pred_check_branch
    %105 = sbr.rel (0) target = $region21
  $region20: #{_lambda_.25} parent=0 // pred_region
    _
  $region21: #{_lambda_.25} parent=0 // pred_fallthru
    _

// kernel: _lambda_.27
$region0: #{_lambda_.27}
  #allocation0 [shape = 'u32[]', space=smem, size = 0x4, offset = 0x4, fixed_abs, tag = 'smem constant byte address 0x4 - core index']
  #allocation1 [shape = 'u32[144,128]{1,0:T(1,128)}', space=vmem, size = 0x12000, scoped, tag = 'internal scratch']
  %s0 = inlined_call_operand.vmem [shape: f32[26,32], index: 0, kind: input, shape index: {}]
  %s1 = inlined_call_operand.hbm [shape: f32[1,32], index: 1, kind: input, shape index: {}]
  %s2 = inlined_call_operand.hbm [shape: f32[1,32], index: 2, kind: input, shape index: {}]
  %s3 = inlined_call_operand.vmem [shape: bf16[32,64], index: 3, kind: input, shape index: {}]
  %s4 = inlined_call_operand.hbm [shape: f32[1,64], index: 4, kind: input, shape index: {}]
  %s5 = inlined_call_operand.vmem [shape: bf16[26,32], index: 5, kind: output, shape index: {}]
  %s6 = sld [smem:[#allocation0]]
  $region42: #{_lambda_.27} parent=0
    _
  %s8 = ssub.s32 1, %s6
  %s9 = scalar_select 0, %s8, %s6
  $region1: #{_lambda_.27} parent=0
    #allocation2 [shape = 'u8[512]{0}', space=vmem, size = 0x400, scoped, tag = 'input window, operand 1, single buffered']
    #allocation3 [shape = 's32[1]{0}', space=sflag, size = 0x4, scoped, tag = 'scoped memory for _lambda_.27']
    #allocation4 [shape = 'u8[512]{0}', space=vmem, size = 0x400, scoped, tag = 'input window, operand 2, single buffered']
    #allocation5 [shape = 's32[1]{0}', space=sflag, size = 0x4, scoped, tag = 'scoped memory for _lambda_.27']
    #allocation6 [shape = 'u8[512]{0}', space=vmem, size = 0x400, scoped, tag = 'input window, operand 4, single buffered']
    %10 = vsyncpa [#allocation3], 0
    %11 = vsyncpa [#allocation5], 0
    // Predicated region
    $region2: #{_lambda_.27} parent=1 // pred_check
      _
    $region3: #{_lambda_.27} parent=1 // pred_check_branch
      %13 = sbr.rel (0) target = $region5
    $region4: #{_lambda_.27} parent=1 // pred_region
      _
    $region5: #{_lambda_.27} parent=1 // pred_fallthru
      _
    // Predicated region
    $region6: #{_lambda_.27} parent=1 // pred_check
      _
    $region7: #{_lambda_.27} parent=1 // pred_check_branch
      %15 = sbr.rel (0) target = $region9
    $region8: #{_lambda_.27} parent=1 // pred_region
      %s17 = ssub.s32 16, 16
      %18 = vsyncadd [#allocation3], %s17
      %s20 = sshll.u32 [#allocation2], 4
      %s21 = int_to_ptr.vmem [resolvable:$true] %s20
      %23 = dma.hbm_to_vmem [thread:$0]  %s1, 16, %s21, [#allocation3]
    $region9: #{_lambda_.27} parent=1 // pred_fallthru
      _
    // Predicated region
    $region10: #{_lambda_.27} parent=1 // pred_check
      _
    $region11: #{_lambda_.27} parent=1 // pred_check_branch
      %25 = sbr.rel (0) target = $region13
    $region12: #{_lambda_.27} parent=1 // pred_region
      %s27 = ssub.s32 16, 16
      %28 = vsyncadd [#allocation5], %s27
      %s30 = sshll.u32 [#allocation4], 4
      %s31 = int_to_ptr.vmem [resolvable:$true] %s30
      %33 = dma.hbm_to_vmem [thread:$0]  %s2, 16, %s31, [#allocation5]
    $region13: #{_lambda_.27} parent=1 // pred_fallthru
      _
    // Predicated region
    $region14: #{_lambda_.27} parent=1 // pred_check
      _
    $region15: #{_lambda_.27} parent=1 // pred_check_branch
      %35 = sbr.rel (0) target = $region17
    $region16: #{_lambda_.27} parent=1 // pred_region
      _
    $region17: #{_lambda_.27} parent=1 // pred_fallthru
      _
    // Predicated region
    $region18: #{_lambda_.27} parent=1 // pred_check
      _
    $region19: #{_lambda_.27} parent=1 // pred_check_branch
      %37 = sbr.rel (0) target = $region21
    $region20: #{_lambda_.27} parent=1 // pred_region
      %s39 = ssub.s32 16, 16
      %40 = vsyncadd [#allocation5], %s39
      %s42 = sshll.u32 [#allocation6], 4
      %s43 = int_to_ptr.vmem [resolvable:$true] %s42
      %45 = dma.hbm_to_vmem [thread:$0]  %s4, 16, %s43, [#allocation5]
    $region21: #{_lambda_.27} parent=1 // pred_fallthru
      _
    // Predicated region
    $region22: #{_lambda_.27} parent=1 // pred_check
      _
    $region23: #{_lambda_.27} parent=1 // pred_check_branch
      %47 = sbr.rel (0) target = $region25
    $region24: #{_lambda_.27} parent=1 // pred_region
      %48 = dma.done [#allocation3], 16
    $region25: #{_lambda_.27} parent=1 // pred_fallthru
      _
    // Predicated region
    $region26: #{_lambda_.27} parent=1 // pred_check
      _
    $region27: #{_lambda_.27} parent=1 // pred_check_branch
      %50 = sbr.rel (0) target = $region29
    $region28: #{_lambda_.27} parent=1 // pred_region
      %51 = dma.done [#allocation5], 16
    $region29: #{_lambda_.27} parent=1 // pred_fallthru
      _
    // Predicated region
    $region30: #{_lambda_.27} parent=1 // pred_check
      _
    $region31: #{_lambda_.27} parent=1 // pred_check_branch
      %53 = sbr.rel (0) target = $region33
    $region32: #{_lambda_.27} parent=1 // pred_region
      %54 = dma.done [#allocation5], 16
    $region33: #{_lambda_.27} parent=1 // pred_fallthru
      _
    %v56 = vld [vmem:[%s0] sm:$0xff]
    %v57 = vld [vmem:[%s0 + $0x8] sm:$0xff]
    %v58 = vld [vmem:[%s0 + $0x10] sm:$0xff]
    %v59 = vld [vmem:[%s0 + $0x18] sm:$0x3]
    %vm60 = vcmask 261120
    %v61 = vsel %vm60, %v56, 0.0
    %62 = vadd.xlane.f32.xlu0 %v61
    %v63 = vpop.xlane.xlu0 %62
    %v64 = vsel %vm60, %v57, 0.0
    %65 = vadd.xlane.f32.xlu0 %v64
    %v66 = vpop.xlane.xlu0 %65
    %v67 = vsel %vm60, %v58, 0.0
    %68 = vadd.xlane.f32.xlu0 %v67
    %v69 = vpop.xlane.xlu0 %68
    %vm70 = vcmask 254976
    %v71 = vsel %vm70, %v59, 0.0
    %72 = vadd.xlane.f32.xlu0 %v71
    %v73 = vpop.xlane.xlu0 %72
    %v74 = vrcp.pop 32.0
    %v75 = vmul.f32 %v63, %v74
    %v76 = vmul.f32 %v66, %v74
    %v77 = vmul.f32 %v69, %v74
    %v78 = vmul.f32 %v73, %v74
    %v79 = vsub.f32 %v56, %v75
    %v80 = vsub.f32 %v57, %v76
    %v81 = vsub.f32 %v58, %v77
    %v82 = vsub.f32 %v59, %v78
    %v83 = vmul.f32 %v79, %v79
    %v84 = vmul.f32 %v80, %v80
    %v85 = vmul.f32 %v81, %v81
    %v86 = vmul.f32 %v82, %v82
    %v87 = vsel %vm60, %v83, 0.0
    %88 = vadd.xlane.f32.xlu0 %v87
    %v89 = vpop.xlane.xlu0 %88
    %v90 = vsel %vm60, %v84, 0.0
    %91 = vadd.xlane.f32.xlu0 %v90
    %v92 = vpop.xlane.xlu0 %91
    %v93 = vsel %vm60, %v85, 0.0
    %94 = vadd.xlane.f32.xlu0 %v93
    %v95 = vpop.xlane.xlu0 %94
    %v96 = vsel %vm70, %v86, 0.0
    %97 = vadd.xlane.f32.xlu0 %v96
    %v98 = vpop.xlane.xlu0 %97
    %v99 = vmul.f32 %v89, %v74
    %v100 = vmul.f32 %v92, %v74
    %v101 = vmul.f32 %v95, %v74
    %v102 = vmul.f32 %v98, %v74
    %v103 = vadd.f32 %v99, 1e-05
    %v104 = vadd.f32 %v100, 1e-05
    %v105 = vadd.f32 %v101, 1e-05
    %v106 = vadd.f32 %v102, 1e-05
    %v107 = vrsqrt.pop %v103
    %v108 = vrsqrt.pop %v104
    %v109 = vrsqrt.pop %v105
    %v110 = vrsqrt.pop %v106
    %v111 = vmul.f32 %v79, %v107
    %v112 = vmul.f32 %v80, %v108
    %v113 = vmul.f32 %v81, %v109
    %v114 = vmul.f32 %v82, %v110
    %v115 = vld [vmem:[#allocation2] sm:$0x1]
    %v117 = vlaneseq
    %v118 = vshrl.u32 %v117, 7
    %v119 = vsub.s32 0, %v118
    %v120 = vrot.slane %v115, %v119
    %v122 = vmul.f32 %v111, %v120
    %v123 = vmul.f32 %v112, %v120
    %v124 = vmul.f32 %v113, %v120
    %v125 = vmul.f32 %v114, %v120
    %v126 = vld [vmem:[#allocation4] sm:$0x1]
    %v128 = vlaneseq
    %v129 = vshrl.u32 %v128, 7
    %v130 = vsub.s32 0, %v129
    %v131 = vrot.slane %v126, %v130
    %v133 = vadd.f32 %v122, %v131
    %v134 = vadd.f32 %v123, %v131
    %v135 = vadd.f32 %v124, %v131
    %v136 = vadd.f32 %v125, %v131
    %v137 = vpack.c.bf16 %v134, %v133
    %v138 = vpack.c.bf16 %v136, %v135
    %v139 = vld [vmem:[%s3] sm:$0xf]
    %v140 = vld [vmem:[%s3 + $0x4] sm:$0xf]
    %v141 = vld [vmem:[%s3 + $0x8] sm:$0xf]
    %v142 = vld [vmem:[%s3 + $0xc] sm:$0xf]
    %v143 = vld [vmem:[#allocation6] sm:$0x1]
    %v145 = vlaneseq
    %v146 = vshrl.u32 %v145, 7
    %v147 = vsub.s32 0, %v146
    %v148 = vrot.slane %v143, %v147
    %v154 = vunpack.c.l.b16 %v139
    %v155 = vunpack.c.l.b16 %v140
    %v156 = vunpack.c.l.b16 %v141
    %v157 = vunpack.c.l.b16 %v142
    %v158 = vpack.c.b16 %v155, %v154
    %v159 = vpack.c.b16 %v157, %v156
    %v163 = vsel %vm60, %v137, 0
    %v166 = vsel %vm60, %v138, 0
    %168 = vmatprep.subr.bf16.mxu0 0
    %169 = vmatpush1.bf16.msra.mxu0 0
    %170 = vmatprep.subr.bf16.mxu0 0
    %171 = vmatpush1.bf16.msra.mxu0 0
    %172 = vmatprep.subr.bf16.mxu0 0
    %173 = vmatpush1.bf16.msra.mxu0 0
    %174 = vmatprep.subr.bf16.mxu0 0
    %175 = vmatpush1.bf16.msra.mxu0 0
    %176 = vmatprep.subr.bf16.mxu0 0
    %177 = vmatpush1.bf16.msra.mxu0 0
    %178 = vmatprep.subr.bf16.mxu0 0
    %179 = vmatpush1.bf16.msra.mxu0 0
    %180 = vmatprep.subr.bf16.mxu0 0
    %181 = vmatpush1.bf16.msra.mxu0 %v159
    %182 = vmatprep.subr.bf16.mxu0 0
    %183 = vmatpush1.bf16.msra.mxu0 %v158
    %184 = vmatprep.subr.bf16.mxu0 0
    %185 = vmatpush2.bf16.msra.mxu0 0
    %186 = vmatprep.subr.bf16.mxu0 0
    %187 = vmatpush2.bf16.msra.mxu0 0
    %188 = vmatprep.subr.bf16.mxu0 0
    %189 = vmatpush2.bf16.msra.mxu0 0
    %190 = vmatprep.subr.bf16.mxu0 0
    %191 = vmatpush2.bf16.msra.mxu0 0
    %192 = vmatprep.subr.bf16.mxu0 0
    %193 = vmatpush2.bf16.msra.mxu0 0
    %194 = vmatprep.subr.bf16.mxu0 0
    %195 = vmatpush2.bf16.msra.mxu0 0
    %196 = vmatprep.subr.bf16.mxu0 0
    %197 = vmatpush2.bf16.msra.mxu0 0
    %198 = vmatprep.subr.bf16.mxu0 0
    %199 = vmatpush2.bf16.msra.mxu0 0
    %200 = vmatprep.mubr.bf16.mxu0 0
    %201 = vmatmul.mubr.bf16.gmra.mxu0 %v163
    %v202 = vpop.f32.mrf.mxu0
    %v203 = vadd.f32 %v148, %v202
    %v204 = vpop.f32.mrf.mxu0
    %v205 = vpop.f32.mrf.mxu0
    %v206 = vadd.f32 %v148, %v205
    %v207 = vpop.f32.mrf.mxu0
    %208 = vmatprep.mubr.bf16.mxu0 0
    %209 = vmatmul.mubr.bf16.gmra.mxu0 %v166
    %v210 = vpop.f32.mrf.mxu0
    %v211 = vadd.f32 %v148, %v210
    %v212 = vpop.f32.mrf.mxu0
    %v213 = vpop.f32.mrf.mxu0
    %v214 = vadd.f32 %v148, %v213
    %v215 = vpop.f32.mrf.mxu0
    %216 = vdwg.mxu0
    %v217 = vsub.f32 0.0, %v203
    %v218 = vsub.f32 0.0, %v206
    %v219 = vsub.f32 0.0, %v211
    %v220 = vsub.f32 0.0, %v214
    %v221 = vmul.f32 %v217, 1.442695
    %v222 = vpow.pop %v221
    %v223 = vmul.f32 %v218, 1.442695
    %v224 = vpow.pop %v223
    %v225 = vmul.f32 %v219, 1.442695
    %v226 = vpow.pop %v225
    %v227 = vmul.f32 %v220, 1.442695
    %v228 = vpow.pop %v227
    %v229 = vadd.f32 %v222, 1.0
    %v230 = vadd.f32 %v224, 1.0
    %v231 = vadd.f32 %v226, 1.0
    %v232 = vadd.f32 %v228, 1.0
    %v233 = vrcp.pop %v229
    %v234 = vmul.f32 1.0, %v233
    %v235 = vrcp.pop %v230
    %v236 = vmul.f32 1.0, %v235
    %v237 = vrcp.pop %v231
    %v238 = vmul.f32 1.0, %v237
    %v239 = vrcp.pop %v232
    %v240 = vmul.f32 1.0, %v239
    %245 = vrot.lane.b32.xlu0 %v234, 96
    %v246 = vpop.permute.xlu0 %245
    %247 = vrot.lane.b32.xlu0 %v236, 96
    %v248 = vpop.permute.xlu0 %247
    %249 = vrot.lane.b32.xlu0 %v238, 96
    %v250 = vpop.permute.xlu0 %249
    %251 = vrot.lane.b32.xlu0 %v240, 96
    %v252 = vpop.permute.xlu0 %251
    %v257 = vmul.f32 %v203, %v246
    %v258 = vmul.f32 %v206, %v248
    %v259 = vmul.f32 %v211, %v250
    %v260 = vmul.f32 %v214, %v252
    %v261 = vpack.c.bf16 %v258, %v257
    %v262 = vpack.c.bf16 %v260, %v259
    %v265 = vunpack.c.l.b16 %v261
    %v266 = vunpack.c.h.b16 %v261
    %v267 = vunpack.c.l.b16 %v262
    %v268 = vunpack.c.h.b16 %v262
    %v269 = vpack.c.b16 %v265, %v265
    %v270 = vpack.c.b16 %v266, %v266
    %v271 = vpack.c.b16 %v267, %v267
    %v272 = vpack.c.b16 %v268, %v268
    %vm277 = vcmask 257024
    %278 = vst.msk [vmem:[%s5] sm:$0xf] %vm277, %v269
    %279 = vst.msk [vmem:[%s5 + $0x4] sm:$0xf] %vm277, %v270
    %280 = vst.msk [vmem:[%s5 + $0x8] sm:$0xf] %vm277, %v271
    %vm281 = vcmask 253952
    %282 = vst.msk [vmem:[%s5 + $0xc] sm:$0x1] %vm281, %v272
    // Predicated region
    $region34: #{_lambda_.27} parent=1 // pred_check
      _
    $region35: #{_lambda_.27} parent=1 // pred_check_branch
      %284 = sbr.rel (0) target = $region37
    $region36: #{_lambda_.27} parent=1 // pred_region
      _
    $region37: #{_lambda_.27} parent=1 // pred_fallthru
      _
    // Predicated region
    $region38: #{_lambda_.27} parent=1 // pred_check
      _
    $region39: #{_lambda_.27} parent=1 // pred_check_branch
      %286 = sbr.rel (0) target = $region41
    $region40: #{_lambda_.27} parent=1 // pred_region
      _
    $region41: #{_lambda_.27} parent=1 // pred_fallthru
      _
    %287 = vsyncpa [#allocation3], 1
    %288 = vsyncpa [#allocation5], 1

// kernel: _lambda_.26
$region0: #{_lambda_.26}
  #allocation0 [shape = 'u32[]', space=smem, size = 0x4, offset = 0x4, fixed_abs, tag = 'smem constant byte address 0x4 - core index']
  #allocation1 [shape = 'u32[144,128]{1,0:T(1,128)}', space=vmem, size = 0x12000, scoped, tag = 'internal scratch']
  %s0 = inlined_call_operand.vmem [shape: bf16[2,13,32], index: 0, kind: input, shape index: {}]
  %s1 = inlined_call_operand.vmem [shape: bf16[2,13,32], index: 1, kind: input, shape index: {}]
  %s2 = inlined_call_operand.vmem [shape: bf16[2,13,32], index: 2, kind: input, shape index: {}]
  %s3 = inlined_call_operand.vmem [shape: bf16[13,32], index: 3, kind: input, shape index: {}]
  %s4 = inlined_call_operand.hbm [shape: f32[1,32], index: 4, kind: input, shape index: {}]
  %s5 = inlined_call_operand.hbm [shape: f32[1,32], index: 5, kind: input, shape index: {}]
  %s6 = inlined_call_operand.vmem [shape: bf16[32,32], index: 6, kind: input, shape index: {}]
  %s7 = inlined_call_operand.hbm [shape: f32[1,32], index: 7, kind: input, shape index: {}]
  %s8 = inlined_call_operand.vmem [shape: f32[2,13,32], index: 8, kind: input, shape index: {}]
  %s9 = inlined_call_operand.vmem [shape: f32[2,13,32], index: 9, kind: output, shape index: {}]
  %s10 = sld [smem:[#allocation0]]
  $region81: #{_lambda_.26} parent=0
    _
  %s12 = ssub.s32 1, %s10
  %s13 = scalar_select 0, %s12, %s10
  $region1: #{_lambda_.26} parent=0
    #allocation2 [shape = 'u8[512]{0}', space=vmem, size = 0x400, scoped, tag = 'input window, operand 4, single buffered']
    #allocation3 [shape = 's32[2]{0}', space=sflag, size = 0x8, scoped, tag = 'scoped memory for _lambda_.26']
    #allocation4 [shape = 'u8[512]{0}', space=vmem, size = 0x400, scoped, tag = 'input window, operand 5, single buffered']
    #allocation5 [shape = 's32[1]{0}', space=sflag, size = 0x4, scoped, tag = 'scoped memory for _lambda_.26']
    #allocation6 [shape = 'u8[512]{0}', space=vmem, size = 0x400, scoped, tag = 'input window, operand 7, single buffered']
    %14 = vsyncpa [#allocation3], 0
    %15 = vsyncpa [#allocation5], 0
    loop: start=0, step=1, limit=4
    $region2: #{_lambda_.26} parent=1 // loop_pre_header
      _
    $region3: #{_lambda_.26} parent=1 // loop_header
      %s17 = sphi 0, %s21
      %p18 = scmp.ge.s32.totalorder %s17, 4
      %s27 = sphi 0, %s29
      %s30 = sphi 0, %s27
      %s31 = sphi 0, %s30
      %s47 = sphi 0, %s31
      %s53 = sphi 0, %s55
      %s56 = sphi 0, %s53
      %s57 = sphi 0, %s56
      %s73 = sphi 0, %s57
      %s79 = sphi 0, %s81
      %s82 = sphi 0, %s79
      %s83 = sphi 0, %s82
      %s99 = sphi 0, %s83
      %s103 = sphi 0, %s103
      %s105 = sphi 0, %s103
      %s106 = sphi 0, %s105
      %s120 = sphi 0, %s106
      %s124 = sphi 0, %s124
      %s126 = sphi 0, %s124
      %s127 = sphi 0, %s126
      %s141 = sphi 0, %s127
      %s145 = sphi 0, %s145
      %s147 = sphi 0, %s145
      %s148 = sphi 0, %s147
      %s162 = sphi 0, %s148
      %s166 = sphi 0, %s166
      %s168 = sphi 0, %s166
      %s169 = sphi 0, %s168
      %s183 = sphi 0, %s169
      %s187 = sphi 0, %s187
      %s189 = sphi 0, %s187
      %s190 = sphi 0, %s189
      %s204 = sphi 0, %s190
      %s210 = sphi 0, %s212
      %s213 = sphi 0, %s210
      %s214 = sphi 0, %s213
      %s230 = sphi 0, %s214
      %s236 = sphi 0, %s238
      %s239 = sphi 0, %s236
      %s240 = sphi 0, %s239
      %s256 = sphi 0, %s240
    $region4: #{_lambda_.26} parent=1 // loop_header_branch
      %20 = sbr.rel (%p18) target = $region8
    $region5: #{_lambda_.26} parent=1 // loop_body
      %s22 = ssub.s32 %s17, 1
      %s23 = ssub.s32 %s17, 2
      %s24 = sadd.s32 %s17, 1
      %s25 = ssub.s32 %s17, %s24
      %p26 = scmp.eq.s32.totalorder %s25, 0
      %s28 = sadd.s32 %s27, 1
      %s29 = scalar_select %p26, %s27, %s28
      %p32 = pneg %p26
      %p33 = scmp.eq.s32.totalorder %s17, 1
      %p34 = por %p32, %p33
      %p35 = scmp.ne.s32.totalorder %s27, %s30
      %p36 = scmp.eq.s32.totalorder %s17, 0
      %p37 = por %p35, %p36
      %p38 = scmp.ne.s32.totalorder %s27, %s30
      %p39 = scmp.eq.s32.totalorder %s22, 1
      %p40 = por %p38, %p39
      %p41 = scmp.ne.s32.totalorder %s30, %s31
      %p42 = scmp.eq.s32.totalorder %s22, 0
      %p43 = por %p41, %p42
      %p44 = scmp.ne.s32.totalorder %s30, %s31
      %p45 = scmp.eq.s32.totalorder %s23, 1
      %p46 = por %p44, %p45
      %p48 = scmp.ne.s32.totalorder %s31, %s47
      %p49 = scmp.eq.s32.totalorder %s23, 0
      %p50 = por %p48, %p49
      %s51 = ssub.s32 %s17, %s24
      %p52 = scmp.eq.s32.totalorder %s51, 0
      %s54 = sadd.s32 %s53, 1
      %s55 = scalar_select %p52, %s53, %s54
      %p58 = pneg %p52
      %p59 = scmp.eq.s32.totalorder %s17, 1
      %p60 = por %p58, %p59
      %p61 = scmp.ne.s32.totalorder %s53, %s56
      %p62 = scmp.eq.s32.totalorder %s17, 0
      %p63 = por %p61, %p62
      %p64 = scmp.ne.s32.totalorder %s53, %s56
      %p65 = scmp.eq.s32.totalorder %s22, 1
      %p66 = por %p64, %p65
      %p67 = scmp.ne.s32.totalorder %s56, %s57
      %p68 = scmp.eq.s32.totalorder %s22, 0
      %p69 = por %p67, %p68
      %p70 = scmp.ne.s32.totalorder %s56, %s57
      %p71 = scmp.eq.s32.totalorder %s23, 1
      %p72 = por %p70, %p71
      %p74 = scmp.ne.s32.totalorder %s57, %s73
      %p75 = scmp.eq.s32.totalorder %s23, 0
      %p76 = por %p74, %p75
      %s77 = ssub.s32 %s17, %s24
      %p78 = scmp.eq.s32.totalorder %s77, 0
      %s80 = sadd.s32 %s79, 1
      %s81 = scalar_select %p78, %s79, %s80
      %p84 = pneg %p78
      %p85 = scmp.eq.s32.totalorder %s17, 1
      %p86 = por %p84, %p85
      %p87 = scmp.ne.s32.totalorder %s79, %s82
      %p88 = scmp.eq.s32.totalorder %s17, 0
      %p89 = por %p87, %p88
      %p90 = scmp.ne.s32.totalorder %s79, %s82
      %p91 = scmp.eq.s32.totalorder %s22, 1
      %p92 = por %p90, %p91
      %p93 = scmp.ne.s32.totalorder %s82, %s83
      %p94 = scmp.eq.s32.totalorder %s22, 0
      %p95 = por %p93, %p94
      %p96 = scmp.ne.s32.totalorder %s82, %s83
      %p97 = scmp.eq.s32.totalorder %s23, 1
      %p98 = por %p96, %p97
      %p100 = scmp.ne.s32.totalorder %s83, %s99
      %p101 = scmp.eq.s32.totalorder %s23, 0
      %p102 = por %p100, %p101
      %s104 = sadd.s32 %s103, 1
      %p107 = scmp.eq.s32.totalorder %s17, 1
      %p108 = scmp.ne.s32.totalorder %s103, %s105
      %p109 = scmp.eq.s32.totalorder %s17, 0
      %p110 = por %p108, %p109
      %p111 = scmp.ne.s32.totalorder %s103, %s105
      %p112 = scmp.eq.s32.totalorder %s22, 1
      %p113 = por %p111, %p112
      %p114 = scmp.ne.s32.totalorder %s105, %s106
      %p115 = scmp.eq.s32.totalorder %s22, 0
      %p116 = por %p114, %p115
      %p117 = scmp.ne.s32.totalorder %s105, %s106
      %p118 = scmp.eq.s32.totalorder %s23, 1
      %p119 = por %p117, %p118
      %p121 = scmp.ne.s32.totalorder %s106, %s120
      %p122 = scmp.eq.s32.totalorder %s23, 0
      %p123 = por %p121, %p122
      %s125 = sadd.s32 %s124, 1
      %p128 = scmp.eq.s32.totalorder %s17, 1
      %p129 = scmp.ne.s32.totalorder %s124, %s126
      %p130 = scmp.eq.s32.totalorder %s17, 0
      %p131 = por %p129, %p130
      %p132 = scmp.ne.s32.totalorder %s124, %s126
      %p133 = scmp.eq.s32.totalorder %s22, 1
      %p134 = por %p132, %p133
      %p135 = scmp.ne.s32.totalorder %s126, %s127
      %p136 = scmp.eq.s32.totalorder %s22, 0
      %p137 = por %p135, %p136
      %p138 = scmp.ne.s32.totalorder %s126, %s127
      %p139 = scmp.eq.s32.totalorder %s23, 1
      %p140 = por %p138, %p139
      %p142 = scmp.ne.s32.totalorder %s127, %s141
      %p143 = scmp.eq.s32.totalorder %s23, 0
      %p144 = por %p142, %p143
      %s146 = sadd.s32 %s145, 1
      %p149 = scmp.eq.s32.totalorder %s17, 1
      %p150 = scmp.ne.s32.totalorder %s145, %s147
      %p151 = scmp.eq.s32.totalorder %s17, 0
      %p152 = por %p150, %p151
      %p153 = scmp.ne.s32.totalorder %s145, %s147
      %p154 = scmp.eq.s32.totalorder %s22, 1
      %p155 = por %p153, %p154
      %p156 = scmp.ne.s32.totalorder %s147, %s148
      %p157 = scmp.eq.s32.totalorder %s22, 0
      %p158 = por %p156, %p157
      %p159 = scmp.ne.s32.totalorder %s147, %s148
      %p160 = scmp.eq.s32.totalorder %s23, 1
      %p161 = por %p159, %p160
      %p163 = scmp.ne.s32.totalorder %s148, %s162
      %p164 = scmp.eq.s32.totalorder %s23, 0
      %p165 = por %p163, %p164
      %s167 = sadd.s32 %s166, 1
      %p170 = scmp.eq.s32.totalorder %s17, 1
      %p171 = scmp.ne.s32.totalorder %s166, %s168
      %p172 = scmp.eq.s32.totalorder %s17, 0
      %p173 = por %p171, %p172
      %p174 = scmp.ne.s32.totalorder %s166, %s168
      %p175 = scmp.eq.s32.totalorder %s22, 1
      %p176 = por %p174, %p175
      %p177 = scmp.ne.s32.totalorder %s168, %s169
      %p178 = scmp.eq.s32.totalorder %s22, 0
      %p179 = por %p177, %p178
      %p180 = scmp.ne.s32.totalorder %s168, %s169
      %p181 = scmp.eq.s32.totalorder %s23, 1
      %p182 = por %p180, %p181
      %p184 = scmp.ne.s32.totalorder %s169, %s183
      %p185 = scmp.eq.s32.totalorder %s23, 0
      %p186 = por %p184, %p185
      %s188 = sadd.s32 %s187, 1
      %p191 = scmp.eq.s32.totalorder %s17, 1
      %p192 = scmp.ne.s32.totalorder %s187, %s189
      %p193 = scmp.eq.s32.totalorder %s17, 0
      %p194 = por %p192, %p193
      %p195 = scmp.ne.s32.totalorder %s187, %s189
      %p196 = scmp.eq.s32.totalorder %s22, 1
      %p197 = por %p195, %p196
      %p198 = scmp.ne.s32.totalorder %s189, %s190
      %p199 = scmp.eq.s32.totalorder %s22, 0
      %p200 = por %p198, %p199
      %p201 = scmp.ne.s32.totalorder %s189, %s190
      %p202 = scmp.eq.s32.totalorder %s23, 1
      %p203 = por %p201, %p202
      %p205 = scmp.ne.s32.totalorder %s190, %s204
      %p206 = scmp.eq.s32.totalorder %s23, 0
      %p207 = por %p205, %p206
      %s208 = ssub.s32 %s17, %s24
      %p209 = scmp.eq.s32.totalorder %s208, 0
      %s211 = sadd.s32 %s210, 1
      %s212 = scalar_select %p209, %s210, %s211
      %p215 = pneg %p209
      %p216 = scmp.eq.s32.totalorder %s17, 1
      %p217 = por %p215, %p216
      %p218 = scmp.ne.s32.totalorder %s210, %s213
      %p219 = scmp.eq.s32.totalorder %s17, 0
      %p220 = por %p218, %p219
      %p221 = scmp.ne.s32.totalorder %s210, %s213
      %p222 = scmp.eq.s32.totalorder %s22, 1
      %p223 = por %p221, %p222
      %p224 = scmp.ne.s32.totalorder %s213, %s214
      %p225 = scmp.eq.s32.totalorder %s22, 0
      %p226 = por %p224, %p225
      %p227 = scmp.ne.s32.totalorder %s213, %s214
      %p228 = scmp.eq.s32.totalorder %s23, 1
      %p229 = por %p227, %p228
      %p231 = scmp.ne.s32.totalorder %s214, %s230
      %p232 = scmp.eq.s32.totalorder %s23, 0
      %p233 = por %p231, %p232
      %s234 = ssub.s32 %s17, %s24
      %p235 = scmp.eq.s32.totalorder %s234, 0
      %s237 = sadd.s32 %s236, 1
      %s238 = scalar_select %p235, %s236, %s237
      %p241 = pneg %p235
      %p242 = scmp.eq.s32.totalorder %s17, 1
      %p243 = por %p241, %p242
      %p244 = scmp.ne.s32.totalorder %s236, %s239
      %p245 = scmp.eq.s32.totalorder %s17, 0
      %p246 = por %p244, %p245
      %p247 = scmp.ne.s32.totalorder %s236, %s239
      %p248 = scmp.eq.s32.totalorder %s22, 1
      %p249 = por %p247, %p248
      %p250 = scmp.ne.s32.totalorder %s239, %s240
      %p251 = scmp.eq.s32.totalorder %s22, 0
      %p252 = por %p250, %p251
      %p253 = scmp.ne.s32.totalorder %s239, %s240
      %p254 = scmp.eq.s32.totalorder %s23, 1
      %p255 = por %p253, %p254
      %p257 = scmp.ne.s32.totalorder %s240, %s256
      %p258 = scmp.eq.s32.totalorder %s23, 0
      %p259 = por %p257, %p258
      %p260 = scmp.le.s32.totalorder 1, %s17
      %p261 = scmp.lt.s32.totalorder %s17, 3
      %p262 = pnand %p260, %p261
      %p263 = pneg %p262
      // Predicated region
      $region9: #{_lambda_.26} parent=5 // pred_check
        _
      $region10: #{_lambda_.26} parent=5 // pred_check_branch
        %265 = sbr.rel (%p262) target = $region12
      $region11: #{_lambda_.26} parent=5 // pred_region
        %s266 = ssub.s32 %s17, 1
        // Predicated region
        $region13: #{_lambda_.26} parent=11 // pred_check
          %p267 = pneg %p116
        $region14: #{_lambda_.26} parent=11 // pred_check_branch
          %269 = sbr.rel (%p267) target = $region16
        $region15: #{_lambda_.26} parent=11 // pred_region
          _
        $region16: #{_lambda_.26} parent=11 // pred_fallthru
          _
        // Predicated region
        $region17: #{_lambda_.26} parent=11 // pred_check
          %p270 = pneg %p137
        $region18: #{_lambda_.26} parent=11 // pred_check_branch
          %272 = sbr.rel (%p270) target = $region20
        $region19: #{_lambda_.26} parent=11 // pred_region
          %s274 = ssub.s32 16, 16
          %275 = vsyncadd [#allocation3], %s274
          %s277 = sshll.u32 [#allocation2], 4
          %s278 = int_to_ptr.vmem [resolvable:$true] %s277
          %280 = dma.hbm_to_vmem [thread:$0]  %s4, 16, %s278, [#allocation3]
        $region20: #{_lambda_.26} parent=11 // pred_fallthru
          _
        // Predicated region
        $region21: #{_lambda_.26} parent=11 // pred_check
          %p281 = pneg %p158
        $region22: #{_lambda_.26} parent=11 // pred_check_branch
          %283 = sbr.rel (%p281) target = $region24
        $region23: #{_lambda_.26} parent=11 // pred_region
          %s285 = ssub.s32 16, 16
          %286 = vsyncadd [#allocation5], %s285
          %s288 = sshll.u32 [#allocation4], 4
          %s289 = int_to_ptr.vmem [resolvable:$true] %s288
          %291 = dma.hbm_to_vmem [thread:$0]  %s5, 16, %s289, [#allocation5]
        $region24: #{_lambda_.26} parent=11 // pred_fallthru
          _
        // Predicated region
        $region25: #{_lambda_.26} parent=11 // pred_check
          %p292 = pneg %p179
        $region26: #{_lambda_.26} parent=11 // pred_check_branch
          %294 = sbr.rel (%p292) target = $region28
        $region27: #{_lambda_.26} parent=11 // pred_region
          _
        $region28: #{_lambda_.26} parent=11 // pred_fallthru
          _
        // Predicated region
        $region29: #{_lambda_.26} parent=11 // pred_check
          %p295 = pneg %p200
        $region30: #{_lambda_.26} parent=11 // pred_check_branch
          %297 = sbr.rel (%p295) target = $region32
        $region31: #{_lambda_.26} parent=11 // pred_region
          %s299 = ssub.s32 16, 16
          %300 = vsyncadd [#allocation5], %s299
          %s302 = sshll.u32 [#allocation6], 4
          %s303 = int_to_ptr.vmem [resolvable:$true] %s302
          %305 = dma.hbm_to_vmem [thread:$0]  %s7, 16, %s303, [#allocation5]
        $region32: #{_lambda_.26} parent=11 // pred_fallthru
          _
      $region12: #{_lambda_.26} parent=5 // pred_fallthru
        _
      %p306 = scmp.lt.s32.totalorder %s17, 2
      // Predicated region
      $region33: #{_lambda_.26} parent=5 // pred_check
        %p307 = pneg %p306
      $region34: #{_lambda_.26} parent=5 // pred_check_branch
        %309 = sbr.rel (%p307) target = $region36
      $region35: #{_lambda_.26} parent=5 // pred_region
        // Predicated region
        $region37: #{_lambda_.26} parent=35 // pred_check
          %p310 = pneg %p37
        $region38: #{_lambda_.26} parent=35 // pred_check_branch
          %312 = sbr.rel (%p310) target = $region40
        $region39: #{_lambda_.26} parent=35 // pred_region
          %p313 = scmp.lt.s32.totalorder %s17, 1
          %s314 = scalar_select %p313, %s17, 1
          %s315 = smul.addr %s314, 2
          %s316 = smul.addr %s315, 4
          %s317 = scalar_lea.vmem %s0, %s316
        $region40: #{_lambda_.26} parent=35 // pred_fallthru
          _
        // Predicated region
        $region41: #{_lambda_.26} parent=35 // pred_check
          %p318 = pneg %p63
        $region42: #{_lambda_.26} parent=35 // pred_check_branch
          %320 = sbr.rel (%p318) target = $region44
        $region43: #{_lambda_.26} parent=35 // pred_region
          %p321 = scmp.lt.s32.totalorder %s17, 1
          %s322 = scalar_select %p321, %s17, 1
          %s323 = smul.addr %s322, 2
          %s324 = smul.addr %s323, 4
          %s325 = scalar_lea.vmem %s1, %s324
        $region44: #{_lambda_.26} parent=35 // pred_fallthru
          _
        // Predicated region
        $region45: #{_lambda_.26} parent=35 // pred_check
          %p326 = pneg %p89
        $region46: #{_lambda_.26} parent=35 // pred_check_branch
          %328 = sbr.rel (%p326) target = $region48
        $region47: #{_lambda_.26} parent=35 // pred_region
          %p329 = scmp.lt.s32.totalorder %s17, 1
          %s330 = scalar_select %p329, %s17, 1
          %s331 = smul.addr %s330, 2
          %s332 = smul.addr %s331, 4
          %s333 = scalar_lea.vmem %s2, %s332
        $region48: #{_lambda_.26} parent=35 // pred_fallthru
          _
        // Predicated region
        $region49: #{_lambda_.26} parent=35 // pred_check
          %p334 = pneg %p220
        $region50: #{_lambda_.26} parent=35 // pred_check_branch
          %336 = sbr.rel (%p334) target = $region52
        $region51: #{_lambda_.26} parent=35 // pred_region
          %p337 = scmp.lt.s32.totalorder %s17, 1
          %s338 = scalar_select %p337, %s17, 1
          %s339 = smul.addr %s338, 2
          %s340 = smul.addr %s339, 8
          %s341 = scalar_lea.vmem %s8, %s340
        $region52: #{_lambda_.26} parent=35 // pred_fallthru
          _
      $region36: #{_lambda_.26} parent=5 // pred_fallthru
        _
      %p342 = scmp.le.s32.totalorder 1, %s17
      %p343 = scmp.lt.s32.totalorder %s17, 3
      %p344 = pnand %p342, %p343
      %p345 = pneg %p344
      // Predicated region
      $region53: #{_lambda_.26} parent=5 // pred_check
        _
      $region54: #{_lambda_.26} parent=5 // pred_check_branch
        %347 = sbr.rel (%p344) target = $region56
      $region55: #{_lambda_.26} parent=5 // pred_region
        %s348 = ssub.s32 %s17, 1
        // Predicated region
        $region57: #{_lambda_.26} parent=55 // pred_check
          %p349 = pneg %p137
        $region58: #{_lambda_.26} parent=55 // pred_check_branch
          %351 = sbr.rel (%p349) target = $region60
        $region59: #{_lambda_.26} parent=55 // pred_region
          %352 = dma.done [#allocation3], 16
        $region60: #{_lambda_.26} parent=55 // pred_fallthru
          _
        // Predicated region
        $region61: #{_lambda_.26} parent=55 // pred_check
          %p353 = pneg %p158
        $region62: #{_lambda_.26} parent=55 // pred_check_branch
          %355 = sbr.rel (%p353) target = $region64
        $region63: #{_lambda_.26} parent=55 // pred_region
          %356 = dma.done [#allocation5], 16
        $region64: #{_lambda_.26} parent=55 // pred_fallthru
          _
        // Predicated region
        $region65: #{_lambda_.26} parent=55 // pred_check
          %p357 = pneg %p200
        $region66: #{_lambda_.26} parent=55 // pred_check_branch
          %359 = sbr.rel (%p357) target = $region68
        $region67: #{_lambda_.26} parent=55 // pred_region
          %360 = dma.done [#allocation5], 16
        $region68: #{_lambda_.26} parent=55 // pred_fallthru
          _
        %p361 = scmp.lt.s32.totalorder %s22, 1
        %s362 = scalar_select %p361, %s22, 1
        %s363 = smul.addr %s362, 2
        %s364 = smul.addr %s363, 4
        %s365 = scalar_lea.vmem %s0, %s364
        %p366 = pneg %p43
        %p367 = pneg %p40
        %p368 = scmp.lt.s32.totalorder %s22, 1
        %s369 = scalar_select %p368, %s22, 1
        %s370 = smul.addr %s369, 2
        %s371 = smul.addr %s370, 4
        %s372 = scalar_lea.vmem %s1, %s371
        %p373 = pneg %p69
        %p374 = pneg %p66
        %p375 = scmp.lt.s32.totalorder %s22, 1
        %s376 = scalar_select %p375, %s22, 1
        %s377 = smul.addr %s376, 2
        %s378 = smul.addr %s377, 4
        %s379 = scalar_lea.vmem %s2, %s378
        %p380 = pneg %p95
        %p381 = pneg %p92
        %p382 = pneg %p116
        %p383 = pneg %p113
        %p384 = pneg %p137
        %p385 = pneg %p134
        %p386 = pneg %p158
        %p387 = pneg %p155
        %p388 = pneg %p179
        %p389 = pneg %p176
        %p390 = pneg %p200
        %p391 = pneg %p197
        %p392 = scmp.lt.s32.totalorder %s22, 1
        %s393 = scalar_select %p392, %s22, 1
        %s394 = smul.addr %s393, 2
        %s395 = smul.addr %s394, 8
        %s396 = scalar_lea.vmem %s8, %s395
        %p397 = pneg %p226
        %p398 = pneg %p223
        %p399 = pneg %p252
        %p400 = pneg %p249
        %p401 = scmp.lt.s32.totalorder %s22, 1
        %s402 = scalar_select %p401, %s22, 1
        %s403 = smul.addr %s402, 2
        %s404 = smul.addr %s403, 8
        %s405 = scalar_lea.vmem %s9, %s404
        %p406 = scmp.lt.s32.totalorder %s22, 1
        %s407 = scalar_select %p406, %s22, 1
        %s408 = smul.addr %s407, 2
        %s409 = smul.addr %s408, 4
        %s410 = scalar_lea.vmem %s0, %s409
        %p411 = scmp.lt.s32.totalorder %s22, 1
        %s412 = scalar_select %p411, %s22, 1
        %s413 = smul.addr %s412, 2
        %s414 = smul.addr %s413, 4
        %s415 = scalar_lea.vmem %s1, %s414
        %p416 = scmp.lt.s32.totalorder %s22, 1
        %s417 = scalar_select %p416, %s22, 1
        %s418 = smul.addr %s417, 2
        %s419 = smul.addr %s418, 4
        %s420 = scalar_lea.vmem %s2, %s419
        %p421 = scmp.lt.s32.totalorder %s22, 1
        %s422 = scalar_select %p421, %s22, 1
        %s423 = smul.addr %s422, 2
        %s424 = smul.addr %s423, 8
        %s425 = scalar_lea.vmem %s8, %s424
        %p426 = scmp.lt.s32.totalorder %s22, 1
        %s427 = scalar_select %p426, %s22, 1
        %s428 = smul.addr %s427, 2
        %s429 = smul.addr %s428, 8
        %s430 = scalar_lea.vmem %s9, %s429
        %v432 = vld [vmem:[%s410] sm:$0xf]
        %v433 = vld [vmem:[%s410 + $0x4] sm:$0x7]
        %v434 = vunpack.c.l.bf16 %v432
        %v435 = vunpack.c.l.bf16 %v433
        %v436 = vld [vmem:[#allocation2] sm:$0x1]
        %v438 = vlaneseq
        %v439 = vshrl.u32 %v438, 7
        %v440 = vsub.s32 0, %v439
        %v441 = vrot.slane %v436, %v440
        %v443 = vadd.f32 %v434, %v441
        %v444 = vadd.f32 %v435, %v441
        %v445 = vpack.c.bf16 %v444, %v443
        %v446 = vld [vmem:[#allocation4] sm:$0x1]
        %v448 = vlaneseq
        %v449 = vshrl.u32 %v448, 7
        %v450 = vsub.s32 0, %v449
        %v451 = vrot.slane %v446, %v450
        %v453 = vadd.f32 %v434, %v451
        %v454 = vadd.f32 %v435, %v451
        %v455 = vpack.c.bf16 %v454, %v453
        %v456 = vld [vmem:[%s415] sm:$0xf]
        %v457 = vld [vmem:[%s415 + $0x4] sm:$0x7]
        %v458 = vld [vmem:[%s420] sm:$0xf]
        %v459 = vld [vmem:[%s420 + $0x4] sm:$0x7]
        %v460 = vld [vmem:[%s3] sm:$0xf]
        %v461 = vld [vmem:[%s3 + $0x4] sm:$0x7]
        %v462 = vld [vmem:[%s6] sm:$0xf]
        %v463 = vld [vmem:[%s6 + $0x4] sm:$0xf]
        %v464 = vld [vmem:[%s6 + $0x8] sm:$0xf]
        %v465 = vld [vmem:[%s6 + $0xc] sm:$0xf]
        %v466 = vld [vmem:[%s425] sm:$0xff]
        %v467 = vld [vmem:[%s425 + $0x8] sm:$0x1f]
        %v468 = vld [vmem:[#allocation6] sm:$0x1]
        %v470 = vlaneseq
        %v471 = vshrl.u32 %v470, 7
        %v472 = vsub.s32 0, %v471
        %v473 = vrot.slane %v468, %v472
        %v475 = vadd.f32 %v466, %v473
        %v476 = vadd.f32 %v467, %v473
        %v479 = vunpack.c.l.b16 %v460
        %v480 = vunpack.c.l.b16 %v461
        %v481 = vpack.c.b16 %v480, %v479
        %vm482 = vcmask 64512
        %v484 = vsel %vm482, %v455, 0
        %v487 = vsel %vm482, %v481, 0
        %489 = vmatprep.subr.bf16.mxu0 0
        %490 = vmatpush1.bf16.xpose.msra.mxu0 0
        %491 = vmatprep.subr.bf16.mxu0 0
        %492 = vmatpush1.bf16.xpose.msra.mxu0 0
        %493 = vmatprep.subr.bf16.mxu0 0
        %494 = vmatpush1.bf16.xpose.msra.mxu0 0
        %495 = vmatprep.subr.bf16.mxu0 0
        %496 = vmatpush1.bf16.xpose.msra.mxu0 0
        %497 = vmatprep.subr.bf16.mxu0 0
        %498 = vmatpush1.bf16.xpose.msra.mxu0 0
        %499 = vmatprep.subr.bf16.mxu0 0
        %500 = vmatpush1.bf16.xpose.msra.mxu0 0
        %501 = vmatprep.subr.bf16.mxu0 0
        %502 = vmatpush1.bf16.xpose.msra.mxu0 0
        %503 = vmatprep.subr.bf16.mxu0 0
        %504 = vmatpush1.bf16.xpose.msra.mxu0 %v487
        %505 = vmatprep.subr.bf16.mxu0 0
        %506 = vmatpush2.bf16.xpose.msra.mxu0 0
        %507 = vmatprep.subr.bf16.mxu0 0
        %508 = vmatpush2.bf16.xpose.msra.mxu0 0
        %509 = vmatprep.subr.bf16.mxu0 0
        %510 = vmatpush2.bf16.xpose.msra.mxu0 0
        %511 = vmatprep.subr.bf16.mxu0 0
        %512 = vmatpush2.bf16.xpose.msra.mxu0 0
        %513 = vmatprep.subr.bf16.mxu0 0
        %514 = vmatpush2.bf16.xpose.msra.mxu0 0
        %515 = vmatprep.subr.bf16.mxu0 0
        %516 = vmatpush2.bf16.xpose.msra.mxu0 0
        %517 = vmatprep.subr.bf16.mxu0 0
        %518 = vmatpush2.bf16.xpose.msra.mxu0 0
        %519 = vmatprep.subr.bf16.mxu0 0
        %520 = vmatpush2.bf16.xpose.msra.mxu0 0
        %521 = vmatprep.mubr.bf16.mxu0 0
        %522 = vmatmul.mubr.bf16.gmra.mxu0 %v484
        %v523 = vpop.f32.mrf.mxu0
        %v524 = vadd.f32 0.0, %v523
        %v525 = vpop.f32.mrf.mxu0
        %v526 = vpop.f32.mrf.mxu0
        %v527 = vadd.f32 0.0, %v526
        %v528 = vpop.f32.mrf.mxu0
        %529 = vdwg.mxu0
        %v532 = vunpack.c.l.b16 %v456
        %v533 = vunpack.c.l.b16 %v457
        %v534 = vpack.c.b16 %v533, %v532
        %v536 = vsel %vm482, %v445, 0
        %v539 = vsel %vm482, %v534, 0
        %541 = vmatprep.subr.bf16.mxu0 0
        %542 = vmatpush1.bf16.xpose.msra.mxu0 0
        %543 = vmatprep.subr.bf16.mxu0 0
        %544 = vmatpush1.bf16.xpose.msra.mxu0 0
        %545 = vmatprep.subr.bf16.mxu0 0
        %546 = vmatpush1.bf16.xpose.msra.mxu0 0
        %547 = vmatprep.subr.bf16.mxu0 0
        %548 = vmatpush1.bf16.xpose.msra.mxu0 0
        %549 = vmatprep.subr.bf16.mxu0 0
        %550 = vmatpush1.bf16.xpose.msra.mxu0 0
        %551 = vmatprep.subr.bf16.mxu0 0
        %552 = vmatpush1.bf16.xpose.msra.mxu0 0
        %553 = vmatprep.subr.bf16.mxu0 0
        %554 = vmatpush1.bf16.xpose.msra.mxu0 0
        %555 = vmatprep.subr.bf16.mxu0 0
        %556 = vmatpush1.bf16.xpose.msra.mxu0 %v539
        %557 = vmatprep.subr.bf16.mxu0 0
        %558 = vmatpush2.bf16.xpose.msra.mxu0 0
        %559 = vmatprep.subr.bf16.mxu0 0
        %560 = vmatpush2.bf16.xpose.msra.mxu0 0
        %561 = vmatprep.subr.bf16.mxu0 0
        %562 = vmatpush2.bf16.xpose.msra.mxu0 0
        %563 = vmatprep.subr.bf16.mxu0 0
        %564 = vmatpush2.bf16.xpose.msra.mxu0 0
        %565 = vmatprep.subr.bf16.mxu0 0
        %566 = vmatpush2.bf16.xpose.msra.mxu0 0
        %567 = vmatprep.subr.bf16.mxu0 0
        %568 = vmatpush2.bf16.xpose.msra.mxu0 0
        %569 = vmatprep.subr.bf16.mxu0 0
        %570 = vmatpush2.bf16.xpose.msra.mxu0 0
        %571 = vmatprep.subr.bf16.mxu0 0
        %572 = vmatpush2.bf16.xpose.msra.mxu0 0
        %573 = vmatprep.mubr.bf16.mxu0 0
        %574 = vmatmul.mubr.bf16.gmra.mxu0 %v536
        %v575 = vpop.f32.mrf.mxu0
        %v576 = vadd.f32 %v524, %v575
        %v577 = vpop.f32.mrf.mxu0
        %v578 = vpop.f32.mrf.mxu0
        %v579 = vadd.f32 %v527, %v578
        %v580 = vpop.f32.mrf.mxu0
        %581 = vdwg.mxu0
        %v582 = vmul.f32 %v576, 0.35355338
        %v583 = vmul.f32 %v579, 0.35355338
        %vm584 = vcmask 105472
        %v585 = vsel %vm584, %v582, -inf
        %586 = vmax.xlane.f32.xlu0 %v585
        %v587 = vpop.xlane.xlu0 %586
        %vm588 = vcmask 102400
        %v589 = vsel %vm588, %v583, -inf
        %590 = vmax.xlane.f32.xlu0 %v589
        %v591 = vpop.xlane.xlu0 %590
        %v592 = vsub.f32 %v582, %v587
        %v593 = vsub.f32 %v583, %v591
        %v594 = vmul.f32 %v592, 1.442695
        %v595 = vpow.pop %v594
        %v596 = vmul.f32 %v593, 1.442695
        %v597 = vpow.pop %v596
        %v598 = vsel %vm584, %v595, 0.0
        %599 = vadd.xlane.f32.xlu0 %v598
        %v600 = vpop.xlane.xlu0 %599
        %v601 = vsel %vm588, %v597, 0.0
        %602 = vadd.xlane.f32.xlu0 %v601
        %v603 = vpop.xlane.xlu0 %602
        %v604 = vrcp.pop %v600
        %v605 = vrcp.pop %v603
        %v606 = vmul.f32 %v595, %v604
        %v607 = vmul.f32 %v597, %v605
        %v608 = vpack.c.bf16 %v607, %v606
        %v611 = vunpack.c.l.b16 %v458
        %v612 = vunpack.c.l.b16 %v459
        %v613 = vpack.c.b16 %v612, %v611
        %v615 = vsel %vm584, %v608, 0
        %vm617 = vcmask 1045504
        %vm618 = vcmask 1046528
        %v619 = vsel %vm617, 4294967295, 65535
        %v620 = vsel %vm618, %v619, 0
        %v622 = vand.u32 %v613, %v620
        %624 = vmatprep.subr.bf16.mxu0 0
        %625 = vmatpush1.bf16.msra.mxu0 0
        %626 = vmatprep.subr.bf16.mxu0 0
        %627 = vmatpush1.bf16.msra.mxu0 0
        %628 = vmatprep.subr.bf16.mxu0 0
        %629 = vmatpush1.bf16.msra.mxu0 0
        %630 = vmatprep.subr.bf16.mxu0 0
        %631 = vmatpush1.bf16.msra.mxu0 0
        %632 = vmatprep.subr.bf16.mxu0 0
        %633 = vmatpush1.bf16.msra.mxu0 0
        %634 = vmatprep.subr.bf16.mxu0 0
        %635 = vmatpush1.bf16.msra.mxu0 0
        %636 = vmatprep.subr.bf16.mxu0 0
        %637 = vmatpush1.bf16.msra.mxu0 0
        %638 = vmatprep.subr.bf16.mxu0 0
        %639 = vmatpush1.bf16.msra.mxu0 %v622
        %640 = vmatprep.subr.bf16.mxu0 0
        %641 = vmatpush2.bf16.msra.mxu0 0
        %642 = vmatprep.subr.bf16.mxu0 0
        %643 = vmatpush2.bf16.msra.mxu0 0
        %644 = vmatprep.subr.bf16.mxu0 0
        %645 = vmatpush2.bf16.msra.mxu0 0
        %646 = vmatprep.subr.bf16.mxu0 0
        %647 = vmatpush2.bf16.msra.mxu0 0
        %648 = vmatprep.subr.bf16.mxu0 0
        %649 = vmatpush2.bf16.msra.mxu0 0
        %650 = vmatprep.subr.bf16.mxu0 0
        %651 = vmatpush2.bf16.msra.mxu0 0
        %652 = vmatprep.subr.bf16.mxu0 0
        %653 = vmatpush2.bf16.msra.mxu0 0
        %654 = vmatprep.subr.bf16.mxu0 0
        %655 = vmatpush2.bf16.msra.mxu0 0
        %656 = vmatprep.mubr.bf16.mxu0 0
        %657 = vmatmul.mubr.bf16.gmra.mxu0 %v615
        %v658 = vpop.f32.mrf.mxu0
        %v659 = vadd.f32 0.0, %v658
        %v660 = vpop.f32.mrf.mxu0
        %v661 = vpop.f32.mrf.mxu0
        %v662 = vadd.f32 0.0, %v661
        %v663 = vpop.f32.mrf.mxu0
        %664 = vdwg.mxu0
        %v665 = vpack.c.bf16 %v662, %v659
        %v667 = vsel %vm482, %v665, 0
        %vm669 = vcmask 1043456
        %v671 = vsel %vm669, %v462, 0
        %673 = vmatprep.subr.bf16.mxu0 0
        %674 = vmatpush1.bf16.msra.mxu0 0
        %675 = vmatprep.subr.bf16.mxu0 0
        %676 = vmatpush1.bf16.msra.mxu0 0
        %677 = vmatprep.subr.bf16.mxu0 0
        %678 = vmatpush1.bf16.msra.mxu0 0
        %679 = vmatprep.subr.bf16.mxu0 0
        %680 = vmatpush1.bf16.msra.mxu0 0
        %681 = vmatprep.subr.bf16.mxu0 0
        %682 = vmatpush1.bf16.msra.mxu0 0
        %683 = vmatprep.subr.bf16.mxu0 0
        %684 = vmatpush1.bf16.msra.mxu0 0
        %685 = vmatprep.subr.bf16.mxu0 0
        %686 = vmatpush1.bf16.msra.mxu0 0
        %687 = vmatprep.subr.bf16.mxu0 0
        %688 = vmatpush1.bf16.msra.mxu0 %v671
        %689 = vmatprep.subr.bf16.mxu0 0
        %690 = vmatpush2.bf16.msra.mxu0 0
        %691 = vmatprep.subr.bf16.mxu0 0
        %692 = vmatpush2.bf16.msra.mxu0 0
        %693 = vmatprep.subr.bf16.mxu0 0
        %694 = vmatpush2.bf16.msra.mxu0 0
        %695 = vmatprep.subr.bf16.mxu0 0
        %696 = vmatpush2.bf16.msra.mxu0 0
        %697 = vmatprep.subr.bf16.mxu0 0
        %698 = vmatpush2.bf16.msra.mxu0 0
        %699 = vmatprep.subr.bf16.mxu0 0
        %700 = vmatpush2.bf16.msra.mxu0 0
        %701 = vmatprep.subr.bf16.mxu0 0
        %702 = vmatpush2.bf16.msra.mxu0 0
        %703 = vmatprep.subr.bf16.mxu0 0
        %704 = vmatpush2.bf16.msra.mxu0 0
        %705 = vmatprep.mubr.bf16.mxu0 0
        %706 = vmatmul.mubr.bf16.gmra.mxu0 %v667
        %v707 = vpop.f32.mrf.mxu0
        %v708 = vadd.f32 0.0, %v707
        %v709 = vpop.f32.mrf.mxu0
        %v710 = vpop.f32.mrf.mxu0
        %v711 = vadd.f32 0.0, %v710
        %v712 = vpop.f32.mrf.mxu0
        %713 = vdwg.mxu0
        %v714 = vadd.f32 %v475, %v708
        %v715 = vadd.f32 %v476, %v711
        %717 = vrot.lane.b32.xlu0 %v455, 120
        %v718 = vpop.permute.xlu0 %717
        %719 = vrot.lane.b32.xlu0 %v481, 120
        %v720 = vpop.permute.xlu0 %719
        %v722 = vsel %vm482, %v718, 0
        %v725 = vsel %vm482, %v720, 0
        %727 = vmatprep.subr.bf16.mxu0 0
        %728 = vmatpush1.bf16.xpose.msra.mxu0 0
        %729 = vmatprep.subr.bf16.mxu0 0
        %730 = vmatpush1.bf16.xpose.msra.mxu0 0
        %731 = vmatprep.subr.bf16.mxu0 0
        %732 = vmatpush1.bf16.xpose.msra.mxu0 0
        %733 = vmatprep.subr.bf16.mxu0 0
        %734 = vmatpush1.bf16.xpose.msra.mxu0 0
        %735 = vmatprep.subr.bf16.mxu0 0
        %736 = vmatpush1.bf16.xpose.msra.mxu0 0
        %737 = vmatprep.subr.bf16.mxu0 0
        %738 = vmatpush1.bf16.xpose.msra.mxu0 0
        %739 = vmatprep.subr.bf16.mxu0 0
        %740 = vmatpush1.bf16.xpose.msra.mxu0 0
        %741 = vmatprep.subr.bf16.mxu0 0
        %742 = vmatpush1.bf16.xpose.msra.mxu0 %v725
        %743 = vmatprep.subr.bf16.mxu0 0
        %744 = vmatpush2.bf16.xpose.msra.mxu0 0
        %745 = vmatprep.subr.bf16.mxu0 0
        %746 = vmatpush2.bf16.xpose.msra.mxu0 0
        %747 = vmatprep.subr.bf16.mxu0 0
        %748 = vmatpush2.bf16.xpose.msra.mxu0 0
        %749 = vmatprep.subr.bf16.mxu0 0
        %750 = vmatpush2.bf16.xpose.msra.mxu0 0
        %751 = vmatprep.subr.bf16.mxu0 0
        %752 = vmatpush2.bf16.xpose.msra.mxu0 0
        %753 = vmatprep.subr.bf16.mxu0 0
        %754 = vmatpush2.bf16.xpose.msra.mxu0 0
        %755 = vmatprep.subr.bf16.mxu0 0
        %756 = vmatpush2.bf16.xpose.msra.mxu0 0
        %757 = vmatprep.subr.bf16.mxu0 0
        %758 = vmatpush2.bf16.xpose.msra.mxu0 0
        %759 = vmatprep.mubr.bf16.mxu0 0
        %760 = vmatmul.mubr.bf16.gmra.mxu0 %v722
        %v761 = vpop.f32.mrf.mxu0
        %v762 = vadd.f32 0.0, %v761
        %v763 = vpop.f32.mrf.mxu0
        %v764 = vpop.f32.mrf.mxu0
        %v765 = vadd.f32 0.0, %v764
        %v766 = vpop.f32.mrf.mxu0
        %767 = vdwg.mxu0
        %769 = vrot.lane.b32.xlu0 %v445, 120
        %v770 = vpop.permute.xlu0 %769
        %771 = vrot.lane.b32.xlu0 %v534, 120
        %v772 = vpop.permute.xlu0 %771
        %v774 = vsel %vm482, %v770, 0
        %v777 = vsel %vm482, %v772, 0
        %779 = vmatprep.subr.bf16.mxu0 0
        %780 = vmatpush1.bf16.xpose.msra.mxu0 0
        %781 = vmatprep.subr.bf16.mxu0 0
        %782 = vmatpush1.bf16.xpose.msra.mxu0 0
        %783 = vmatprep.subr.bf16.mxu0 0
        %784 = vmatpush1.bf16.xpose.msra.mxu0 0
        %785 = vmatprep.subr.bf16.mxu0 0
        %786 = vmatpush1.bf16.xpose.msra.mxu0 0
        %787 = vmatprep.subr.bf16.mxu0 0
        %788 = vmatpush1.bf16.xpose.msra.mxu0 0
        %789 = vmatprep.subr.bf16.mxu0 0
        %790 = vmatpush1.bf16.xpose.msra.mxu0 0
        %791 = vmatprep.subr.bf16.mxu0 0
        %792 = vmatpush1.bf16.xpose.msra.mxu0 0
        %793 = vmatprep.subr.bf16.mxu0 0
        %794 = vmatpush1.bf16.xpose.msra.mxu0 %v777
        %795 = vmatprep.subr.bf16.mxu0 0
        %796 = vmatpush2.bf16.xpose.msra.mxu0 0
        %797 = vmatprep.subr.bf16.mxu0 0
        %798 = vmatpush2.bf16.xpose.msra.mxu0 0
        %799 = vmatprep.subr.bf16.mxu0 0
        %800 = vmatpush2.bf16.xpose.msra.mxu0 0
        %801 = vmatprep.subr.bf16.mxu0 0
        %802 = vmatpush2.bf16.xpose.msra.mxu0 0
        %803 = vmatprep.subr.bf16.mxu0 0
        %804 = vmatpush2.bf16.xpose.msra.mxu0 0
        %805 = vmatprep.subr.bf16.mxu0 0
        %806 = vmatpush2.bf16.xpose.msra.mxu0 0
        %807 = vmatprep.subr.bf16.mxu0 0
        %808 = vmatpush2.bf16.xpose.msra.mxu0 0
        %809 = vmatprep.subr.bf16.mxu0 0
        %810 = vmatpush2.bf16.xpose.msra.mxu0 0
        %811 = vmatprep.mubr.bf16.mxu0 0
        %812 = vmatmul.mubr.bf16.gmra.mxu0 %v774
        %v813 = vpop.f32.mrf.mxu0
        %v814 = vadd.f32 %v762, %v813
        %v815 = vpop.f32.mrf.mxu0
        %v816 = vpop.f32.mrf.mxu0
        %v817 = vadd.f32 %v765, %v816
        %v818 = vpop.f32.mrf.mxu0
        %819 = vdwg.mxu0
        %v820 = vmul.f32 %v814, 0.35355338
        %v821 = vmul.f32 %v817, 0.35355338
        %v822 = vsel %vm584, %v820, -inf
        %823 = vmax.xlane.f32.xlu0 %v822
        %v824 = vpop.xlane.xlu0 %823
        %v825 = vsel %vm588, %v821, -inf
        %826 = vmax.xlane.f32.xlu0 %v825
        %v827 = vpop.xlane.xlu0 %826
        %v828 = vsub.f32 %v820, %v824
        %v829 = vsub.f32 %v821, %v827
        %v830 = vmul.f32 %v828, 1.442695
        %v831 = vpow.pop %v830
        %v832 = vmul.f32 %v829, 1.442695
        %v833 = vpow.pop %v832
        %v834 = vsel %vm584, %v831, 0.0
        %835 = vadd.xlane.f32.xlu0 %v834
        %v836 = vpop.xlane.xlu0 %835
        %v837 = vsel %vm588, %v833, 0.0
        %838 = vadd.xlane.f32.xlu0 %v837
        %v839 = vpop.xlane.xlu0 %838
        %v840 = vrcp.pop %v836
        %v841 = vrcp.pop %v839
        %v842 = vmul.f32 %v831, %v840
        %v843 = vmul.f32 %v833, %v841
        %v844 = vpack.c.bf16 %v843, %v842
        %845 = vrot.lane.b32.xlu0 %v613, 120
        %v846 = vpop.permute.xlu0 %845
        %v848 = vsel %vm584, %v844, 0
        %v851 = vand.u32 %v846, %v620
        %853 = vmatprep.subr.bf16.mxu0 0
        %854 = vmatpush1.bf16.msra.mxu0 0
        %855 = vmatprep.subr.bf16.mxu0 0
        %856 = vmatpush1.bf16.msra.mxu0 0
        %857 = vmatprep.subr.bf16.mxu0 0
        %858 = vmatpush1.bf16.msra.mxu0 0
        %859 = vmatprep.subr.bf16.mxu0 0
        %860 = vmatpush1.bf16.msra.mxu0 0
        %861 = vmatprep.subr.bf16.mxu0 0
        %862 = vmatpush1.bf16.msra.mxu0 0
        %863 = vmatprep.subr.bf16.mxu0 0
        %864 = vmatpush1.bf16.msra.mxu0 0
        %865 = vmatprep.subr.bf16.mxu0 0
        %866 = vmatpush1.bf16.msra.mxu0 0
        %867 = vmatprep.subr.bf16.mxu0 0
        %868 = vmatpush1.bf16.msra.mxu0 %v851
        %869 = vmatprep.subr.bf16.mxu0 0
        %870 = vmatpush2.bf16.msra.mxu0 0
        %871 = vmatprep.subr.bf16.mxu0 0
        %872 = vmatpush2.bf16.msra.mxu0 0
        %873 = vmatprep.subr.bf16.mxu0 0
        %874 = vmatpush2.bf16.msra.mxu0 0
        %875 = vmatprep.subr.bf16.mxu0 0
        %876 = vmatpush2.bf16.msra.mxu0 0
        %877 = vmatprep.subr.bf16.mxu0 0
        %878 = vmatpush2.bf16.msra.mxu0 0
        %879 = vmatprep.subr.bf16.mxu0 0
        %880 = vmatpush2.bf16.msra.mxu0 0
        %881 = vmatprep.subr.bf16.mxu0 0
        %882 = vmatpush2.bf16.msra.mxu0 0
        %883 = vmatprep.subr.bf16.mxu0 0
        %884 = vmatpush2.bf16.msra.mxu0 0
        %885 = vmatprep.mubr.bf16.mxu0 0
        %886 = vmatmul.mubr.bf16.gmra.mxu0 %v848
        %v887 = vpop.f32.mrf.mxu0
        %v888 = vadd.f32 0.0, %v887
        %v889 = vpop.f32.mrf.mxu0
        %v890 = vpop.f32.mrf.mxu0
        %v891 = vadd.f32 0.0, %v890
        %v892 = vpop.f32.mrf.mxu0
        %893 = vdwg.mxu0
        %v894 = vpack.c.bf16 %v891, %v888
        %v896 = vsel %vm482, %v894, 0
        %v899 = vsel %vm669, %v463, 0
        %901 = vmatprep.subr.bf16.mxu0 0
        %902 = vmatpush1.bf16.msra.mxu0 0
        %903 = vmatprep.subr.bf16.mxu0 0
        %904 = vmatpush1.bf16.msra.mxu0 0
        %905 = vmatprep.subr.bf16.mxu0 0
        %906 = vmatpush1.bf16.msra.mxu0 0
        %907 = vmatprep.subr.bf16.mxu0 0
        %908 = vmatpush1.bf16.msra.mxu0 0
        %909 = vmatprep.subr.bf16.mxu0 0
        %910 = vmatpush1.bf16.msra.mxu0 0
        %911 = vmatprep.subr.bf16.mxu0 0
        %912 = vmatpush1.bf16.msra.mxu0 0
        %913 = vmatprep.subr.bf16.mxu0 0
        %914 = vmatpush1.bf16.msra.mxu0 0
        %915 = vmatprep.subr.bf16.mxu0 0
        %916 = vmatpush1.bf16.msra.mxu0 %v899
        %917 = vmatprep.subr.bf16.mxu0 0
        %918 = vmatpush2.bf16.msra.mxu0 0
        %919 = vmatprep.subr.bf16.mxu0 0
        %920 = vmatpush2.bf16.msra.mxu0 0
        %921 = vmatprep.subr.bf16.mxu0 0
        %922 = vmatpush2.bf16.msra.mxu0 0
        %923 = vmatprep.subr.bf16.mxu0 0
        %924 = vmatpush2.bf16.msra.mxu0 0
        %925 = vmatprep.subr.bf16.mxu0 0
        %926 = vmatpush2.bf16.msra.mxu0 0
        %927 = vmatprep.subr.bf16.mxu0 0
        %928 = vmatpush2.bf16.msra.mxu0 0
        %929 = vmatprep.subr.bf16.mxu0 0
        %930 = vmatpush2.bf16.msra.mxu0 0
        %931 = vmatprep.subr.bf16.mxu0 0
        %932 = vmatpush2.bf16.msra.mxu0 0
        %933 = vmatprep.mubr.bf16.mxu0 0
        %934 = vmatmul.mubr.bf16.gmra.mxu0 %v896
        %v935 = vpop.f32.mrf.mxu0
        %v936 = vadd.f32 0.0, %v935
        %v937 = vpop.f32.mrf.mxu0
        %v938 = vpop.f32.mrf.mxu0
        %v939 = vadd.f32 0.0, %v938
        %v940 = vpop.f32.mrf.mxu0
        %941 = vdwg.mxu0
        %v942 = vadd.f32 %v714, %v936
        %v943 = vadd.f32 %v715, %v939
        %944 = vrot.lane.b32.xlu0 %v455, 112
        %v945 = vpop.permute.xlu0 %944
        %946 = vrot.lane.b32.xlu0 %v481, 112
        %v947 = vpop.permute.xlu0 %946
        %v949 = vsel %vm482, %v945, 0
        %v952 = vsel %vm482, %v947, 0
        %954 = vmatprep.subr.bf16.mxu0 0
        %955 = vmatpush1.bf16.xpose.msra.mxu0 0
        %956 = vmatprep.subr.bf16.mxu0 0
        %957 = vmatpush1.bf16.xpose.msra.mxu0 0
        %958 = vmatprep.subr.bf16.mxu0 0
        %959 = vmatpush1.bf16.xpose.msra.mxu0 0
        %960 = vmatprep.subr.bf16.mxu0 0
        %961 = vmatpush1.bf16.xpose.msra.mxu0 0
        %962 = vmatprep.subr.bf16.mxu0 0
        %963 = vmatpush1.bf16.xpose.msra.mxu0 0
        %964 = vmatprep.subr.bf16.mxu0 0
        %965 = vmatpush1.bf16.xpose.msra.mxu0 0
        %966 = vmatprep.subr.bf16.mxu0 0
        %967 = vmatpush1.bf16.xpose.msra.mxu0 0
        %968 = vmatprep.subr.bf16.mxu0 0
        %969 = vmatpush1.bf16.xpose.msra.mxu0 %v952
        %970 = vmatprep.subr.bf16.mxu0 0
        %971 = vmatpush2.bf16.xpose.msra.mxu0 0
        %972 = vmatprep.subr.bf16.mxu0 0
        %973 = vmatpush2.bf16.xpose.msra.mxu0 0
        %974 = vmatprep.subr.bf16.mxu0 0
        %975 = vmatpush2.bf16.xpose.msra.mxu0 0
        %976 = vmatprep.subr.bf16.mxu0 0
        %977 = vmatpush2.bf16.xpose.msra.mxu0 0
        %978 = vmatprep.subr.bf16.mxu0 0
        %979 = vmatpush2.bf16.xpose.msra.mxu0 0
        %980 = vmatprep.subr.bf16.mxu0 0
        %981 = vmatpush2.bf16.xpose.msra.mxu0 0
        %982 = vmatprep.subr.bf16.mxu0 0
        %983 = vmatpush2.bf16.xpose.msra.mxu0 0
        %984 = vmatprep.subr.bf16.mxu0 0
        %985 = vmatpush2.bf16.xpose.msra.mxu0 0
        %986 = vmatprep.mubr.bf16.mxu0 0
        %987 = vmatmul.mubr.bf16.gmra.mxu0 %v949
        %v988 = vpop.f32.mrf.mxu0
        %v989 = vadd.f32 0.0, %v988
        %v990 = vpop.f32.mrf.mxu0
        %v991 = vpop.f32.mrf.mxu0
        %v992 = vadd.f32 0.0, %v991
        %v993 = vpop.f32.mrf.mxu0
        %994 = vdwg.mxu0
        %995 = vrot.lane.b32.xlu0 %v445, 112
        %v996 = vpop.permute.xlu0 %995
        %997 = vrot.lane.b32.xlu0 %v534, 112
        %v998 = vpop.permute.xlu0 %997
        %v1000 = vsel %vm482, %v996, 0
        %v1003 = vsel %vm482, %v998, 0
        %1005 = vmatprep.subr.bf16.mxu0 0
        %1006 = vmatpush1.bf16.xpose.msra.mxu0 0
        %1007 = vmatprep.subr.bf16.mxu0 0
        %1008 = vmatpush1.bf16.xpose.msra.mxu0 0
        %1009 = vmatprep.subr.bf16.mxu0 0
        %1010 = vmatpush1.bf16.xpose.msra.mxu0 0
        %1011 = vmatprep.subr.bf16.mxu0 0
        %1012 = vmatpush1.bf16.xpose.msra.mxu0 0
        %1013 = vmatprep.subr.bf16.mxu0 0
        %1014 = vmatpush1.bf16.xpose.msra.mxu0 0
        %1015 = vmatprep.subr.bf16.mxu0 0
        %1016 = vmatpush1.bf16.xpose.msra.mxu0 0
        %1017 = vmatprep.subr.bf16.mxu0 0
        %1018 = vmatpush1.bf16.xpose.msra.mxu0 0
        %1019 = vmatprep.subr.bf16.mxu0 0
        %1020 = vmatpush1.bf16.xpose.msra.mxu0 %v1003
        %1021 = vmatprep.subr.bf16.mxu0 0
        %1022 = vmatpush2.bf16.xpose.msra.mxu0 0
        %1023 = vmatprep.subr.bf16.mxu0 0
        %1024 = vmatpush2.bf16.xpose.msra.mxu0 0
        %1025 = vmatprep.subr.bf16.mxu0 0
        %1026 = vmatpush2.bf16.xpose.msra.mxu0 0
        %1027 = vmatprep.subr.bf16.mxu0 0
        %1028 = vmatpush2.bf16.xpose.msra.mxu0 0
        %1029 = vmatprep.subr.bf16.mxu0 0
        %1030 = vmatpush2.bf16.xpose.msra.mxu0 0
        %1031 = vmatprep.subr.bf16.mxu0 0
        %1032 = vmatpush2.bf16.xpose.msra.mxu0 0
        %1033 = vmatprep.subr.bf16.mxu0 0
        %1034 = vmatpush2.bf16.xpose.msra.mxu0 0
        %1035 = vmatprep.subr.bf16.mxu0 0
        %1036 = vmatpush2.bf16.xpose.msra.mxu0 0
        %1037 = vmatprep.mubr.bf16.mxu0 0
        %1038 = vmatmul.mubr.bf16.gmra.mxu0 %v1000
        %v1039 = vpop.f32.mrf.mxu0
        %v1040 = vadd.f32 %v989, %v1039
        %v1041 = vpop.f32.mrf.mxu0
        %v1042 = vpop.f32.mrf.mxu0
        %v1043 = vadd.f32 %v992, %v1042
        %v1044 = vpop.f32.mrf.mxu0
        %1045 = vdwg.mxu0
        %v1046 = vmul.f32 %v1040, 0.35355338
        %v1047 = vmul.f32 %v1043, 0.35355338
        %v1048 = vsel %vm584, %v1046, -inf
        %1049 = vmax.xlane.f32.xlu0 %v1048
        %v1050 = vpop.xlane.xlu0 %1049
        %v1051 = vsel %vm588, %v1047, -inf
        %1052 = vmax.xlane.f32.xlu0 %v1051
        %v1053 = vpop.xlane.xlu0 %1052
        %v1054 = vsub.f32 %v1046, %v1050
        %v1055 = vsub.f32 %v1047, %v1053
        %v1056 = vmul.f32 %v1054, 1.442695
        %v1057 = vpow.pop %v1056
        %v1058 = vmul.f32 %v1055, 1.442695
        %v1059 = vpow.pop %v1058
        %v1060 = vsel %vm584, %v1057, 0.0
        %1061 = vadd.xlane.f32.xlu0 %v1060
        %v1062 = vpop.xlane.xlu0 %1061
        %v1063 = vsel %vm588, %v1059, 0.0
        %1064 = vadd.xlane.f32.xlu0 %v1063
        %v1065 = vpop.xlane.xlu0 %1064
        %v1066 = vrcp.pop %v1062
        %v1067 = vrcp.pop %v1065
        %v1068 = vmul.f32 %v1057, %v1066
        %v1069 = vmul.f32 %v1059, %v1067
        %v1070 = vpack.c.bf16 %v1069, %v1068
        %1071 = vrot.lane.b32.xlu0 %v613, 112
        %v1072 = vpop.permute.xlu0 %1071
        %v1074 = vsel %vm584, %v1070, 0
        %v1077 = vand.u32 %v1072, %v620
        %1079 = vmatprep.subr.bf16.mxu0 0
        %1080 = vmatpush1.bf16.msra.mxu0 0
        %1081 = vmatprep.subr.bf16.mxu0 0
        %1082 = vmatpush1.bf16.msra.mxu0 0
        %1083 = vmatprep.subr.bf16.mxu0 0
        %1084 = vmatpush1.bf16.msra.mxu0 0
        %1085 = vmatprep.subr.bf16.mxu0 0
        %1086 = vmatpush1.bf16.msra.mxu0 0
        %1087 = vmatprep.subr.bf16.mxu0 0
        %1088 = vmatpush1.bf16.msra.mxu0 0
        %1089 = vmatprep.subr.bf16.mxu0 0
        %1090 = vmatpush1.bf16.msra.mxu0 0
        %1091 = vmatprep.subr.bf16.mxu0 0
        %1092 = vmatpush1.bf16.msra.mxu0 0
        %1093 = vmatprep.subr.bf16.mxu0 0
        %1094 = vmatpush1.bf16.msra.mxu0 %v1077
        %1095 = vmatprep.subr.bf16.mxu0 0
        %1096 = vmatpush2.bf16.msra.mxu0 0
        %1097 = vmatprep.subr.bf16.mxu0 0
        %1098 = vmatpush2.bf16.msra.mxu0 0
        %1099 = vmatprep.subr.bf16.mxu0 0
        %1100 = vmatpush2.bf16.msra.mxu0 0
        %1101 = vmatprep.subr.bf16.mxu0 0
        %1102 = vmatpush2.bf16.msra.mxu0 0
        %1103 = vmatprep.subr.bf16.mxu0 0
        %1104 = vmatpush2.bf16.msra.mxu0 0
        %1105 = vmatprep.subr.bf16.mxu0 0
        %1106 = vmatpush2.bf16.msra.mxu0 0
        %1107 = vmatprep.subr.bf16.mxu0 0
        %1108 = vmatpush2.bf16.msra.mxu0 0
        %1109 = vmatprep.subr.bf16.mxu0 0
        %1110 = vmatpush2.bf16.msra.mxu0 0
        %1111 = vmatprep.mubr.bf16.mxu0 0
        %1112 = vmatmul.mubr.bf16.gmra.mxu0 %v1074
        %v1113 = vpop.f32.mrf.mxu0
        %v1114 = vadd.f32 0.0, %v1113
        %v1115 = vpop.f32.mrf.mxu0
        %v1116 = vpop.f32.mrf.mxu0
        %v1117 = vadd.f32 0.0, %v1116
        %v1118 = vpop.f32.mrf.mxu0
        %1119 = vdwg.mxu0
        %v1120 = vpack.c.bf16 %v1117, %v1114
        %v1122 = vsel %vm482, %v1120, 0
        %v1125 = vsel %vm669, %v464, 0
        %1127 = vmatprep.subr.bf16.mxu0 0
        %1128 = vmatpush1.bf16.msra.mxu0 0
        %1129 = vmatprep.subr.bf16.mxu0 0
        %1130 = vmatpush1.bf16.msra.mxu0 0
        %1131 = vmatprep.subr.bf16.mxu0 0
        %1132 = vmatpush1.bf16.msra.mxu0 0
        %1133 = vmatprep.subr.bf16.mxu0 0
        %1134 = vmatpush1.bf16.msra.mxu0 0
        %1135 = vmatprep.subr.bf16.mxu0 0
        %1136 = vmatpush1.bf16.msra.mxu0 0
        %1137 = vmatprep.subr.bf16.mxu0 0
        %1138 = vmatpush1.bf16.msra.mxu0 0
        %1139 = vmatprep.subr.bf16.mxu0 0
        %1140 = vmatpush1.bf16.msra.mxu0 0
        %1141 = vmatprep.subr.bf16.mxu0 0
        %1142 = vmatpush1.bf16.msra.mxu0 %v1125
        %1143 = vmatprep.subr.bf16.mxu0 0
        %1144 = vmatpush2.bf16.msra.mxu0 0
        %1145 = vmatprep.subr.bf16.mxu0 0
        %1146 = vmatpush2.bf16.msra.mxu0 0
        %1147 = vmatprep.subr.bf16.mxu0 0
        %1148 = vmatpush2.bf16.msra.mxu0 0
        %1149 = vmatprep.subr.bf16.mxu0 0
        %1150 = vmatpush2.bf16.msra.mxu0 0
        %1151 = vmatprep.subr.bf16.mxu0 0
        %1152 = vmatpush2.bf16.msra.mxu0 0
        %1153 = vmatprep.subr.bf16.mxu0 0
        %1154 = vmatpush2.bf16.msra.mxu0 0
        %1155 = vmatprep.subr.bf16.mxu0 0
        %1156 = vmatpush2.bf16.msra.mxu0 0
        %1157 = vmatprep.subr.bf16.mxu0 0
        %1158 = vmatpush2.bf16.msra.mxu0 0
        %1159 = vmatprep.mubr.bf16.mxu0 0
        %1160 = vmatmul.mubr.bf16.gmra.mxu0 %v1122
        %v1161 = vpop.f32.mrf.mxu0
        %v1162 = vadd.f32 0.0, %v1161
        %v1163 = vpop.f32.mrf.mxu0
        %v1164 = vpop.f32.mrf.mxu0
        %v1165 = vadd.f32 0.0, %v1164
        %v1166 = vpop.f32.mrf.mxu0
        %1167 = vdwg.mxu0
        %v1168 = vadd.f32 %v942, %v1162
        %v1169 = vadd.f32 %v943, %v1165
        %1170 = vrot.lane.b32.xlu0 %v455, 104
        %v1171 = vpop.permute.xlu0 %1170
        %1172 = vrot.lane.b32.xlu0 %v481, 104
        %v1173 = vpop.permute.xlu0 %1172
        %v1175 = vsel %vm482, %v1171, 0
        %v1178 = vsel %vm482, %v1173, 0
        %1180 = vmatprep.subr.bf16.mxu0 0
        %1181 = vmatpush1.bf16.xpose.msra.mxu0 0
        %1182 = vmatprep.subr.bf16.mxu0 0
        %1183 = vmatpush1.bf16.xpose.msra.mxu0 0
        %1184 = vmatprep.subr.bf16.mxu0 0
        %1185 = vmatpush1.bf16.xpose.msra.mxu0 0
        %1186 = vmatprep.subr.bf16.mxu0 0
        %1187 = vmatpush1.bf16.xpose.msra.mxu0 0
        %1188 = vmatprep.subr.bf16.mxu0 0
        %1189 = vmatpush1.bf16.xpose.msra.mxu0 0
        %1190 = vmatprep.subr.bf16.mxu0 0
        %1191 = vmatpush1.bf16.xpose.msra.mxu0 0
        %1192 = vmatprep.subr.bf16.mxu0 0
        %1193 = vmatpush1.bf16.xpose.msra.mxu0 0
        %1194 = vmatprep.subr.bf16.mxu0 0
        %1195 = vmatpush1.bf16.xpose.msra.mxu0 %v1178
        %1196 = vmatprep.subr.bf16.mxu0 0
        %1197 = vmatpush2.bf16.xpose.msra.mxu0 0
        %1198 = vmatprep.subr.bf16.mxu0 0
        %1199 = vmatpush2.bf16.xpose.msra.mxu0 0
        %1200 = vmatprep.subr.bf16.mxu0 0
        %1201 = vmatpush2.bf16.xpose.msra.mxu0 0
        %1202 = vmatprep.subr.bf16.mxu0 0
        %1203 = vmatpush2.bf16.xpose.msra.mxu0 0
        %1204 = vmatprep.subr.bf16.mxu0 0
        %1205 = vmatpush2.bf16.xpose.msra.mxu0 0
        %1206 = vmatprep.subr.bf16.mxu0 0
        %1207 = vmatpush2.bf16.xpose.msra.mxu0 0
        %1208 = vmatprep.subr.bf16.mxu0 0
        %1209 = vmatpush2.bf16.xpose.msra.mxu0 0
        %1210 = vmatprep.subr.bf16.mxu0 0
        %1211 = vmatpush2.bf16.xpose.msra.mxu0 0
        %1212 = vmatprep.mubr.bf16.mxu0 0
        %1213 = vmatmul.mubr.bf16.gmra.mxu0 %v1175
        %v1214 = vpop.f32.mrf.mxu0
        %v1215 = vadd.f32 0.0, %v1214
        %v1216 = vpop.f32.mrf.mxu0
        %v1217 = vpop.f32.mrf.mxu0
        %v1218 = vadd.f32 0.0, %v1217
        %v1219 = vpop.f32.mrf.mxu0
        %1220 = vdwg.mxu0
        %1221 = vrot.lane.b32.xlu0 %v445, 104
        %v1222 = vpop.permute.xlu0 %1221
        %1223 = vrot.lane.b32.xlu0 %v534, 104
        %v1224 = vpop.permute.xlu0 %1223
        %v1226 = vsel %vm482, %v1222, 0
        %v1229 = vsel %vm482, %v1224, 0
        %1231 = vmatprep.subr.bf16.mxu0 0
        %1232 = vmatpush1.bf16.xpose.msra.mxu0 0
        %1233 = vmatprep.subr.bf16.mxu0 0
        %1234 = vmatpush1.bf16.xpose.msra.mxu0 0
        %1235 = vmatprep.subr.bf16.mxu0 0
        %1236 = vmatpush1.bf16.xpose.msra.mxu0 0
        %1237 = vmatprep.subr.bf16.mxu0 0
        %1238 = vmatpush1.bf16.xpose.msra.mxu0 0
        %1239 = vmatprep.subr.bf16.mxu0 0
        %1240 = vmatpush1.bf16.xpose.msra.mxu0 0
        %1241 = vmatprep.subr.bf16.mxu0 0
        %1242 = vmatpush1.bf16.xpose.msra.mxu0 0
        %1243 = vmatprep.subr.bf16.mxu0 0
        %1244 = vmatpush1.bf16.xpose.msra.mxu0 0
        %1245 = vmatprep.subr.bf16.mxu0 0
        %1246 = vmatpush1.bf16.xpose.msra.mxu0 %v1229
        %1247 = vmatprep.subr.bf16.mxu0 0
        %1248 = vmatpush2.bf16.xpose.msra.mxu0 0
        %1249 = vmatprep.subr.bf16.mxu0 0
        %1250 = vmatpush2.bf16.xpose.msra.mxu0 0
        %1251 = vmatprep.subr.bf16.mxu0 0
        %1252 = vmatpush2.bf16.xpose.msra.mxu0 0
        %1253 = vmatprep.subr.bf16.mxu0 0
        %1254 = vmatpush2.bf16.xpose.msra.mxu0 0
        %1255 = vmatprep.subr.bf16.mxu0 0
        %1256 = vmatpush2.bf16.xpose.msra.mxu0 0
        %1257 = vmatprep.subr.bf16.mxu0 0
        %1258 = vmatpush2.bf16.xpose.msra.mxu0 0
        %1259 = vmatprep.subr.bf16.mxu0 0
        %1260 = vmatpush2.bf16.xpose.msra.mxu0 0
        %1261 = vmatprep.subr.bf16.mxu0 0
        %1262 = vmatpush2.bf16.xpose.msra.mxu0 0
        %1263 = vmatprep.mubr.bf16.mxu0 0
        %1264 = vmatmul.mubr.bf16.gmra.mxu0 %v1226
        %v1265 = vpop.f32.mrf.mxu0
        %v1266 = vadd.f32 %v1215, %v1265
        %v1267 = vpop.f32.mrf.mxu0
        %v1268 = vpop.f32.mrf.mxu0
        %v1269 = vadd.f32 %v1218, %v1268
        %v1270 = vpop.f32.mrf.mxu0
        %1271 = vdwg.mxu0
        %v1272 = vmul.f32 %v1266, 0.35355338
        %v1273 = vmul.f32 %v1269, 0.35355338
        %v1274 = vsel %vm584, %v1272, -inf
        %1275 = vmax.xlane.f32.xlu0 %v1274
        %v1276 = vpop.xlane.xlu0 %1275
        %v1277 = vsel %vm588, %v1273, -inf
        %1278 = vmax.xlane.f32.xlu0 %v1277
        %v1279 = vpop.xlane.xlu0 %1278
        %v1280 = vsub.f32 %v1272, %v1276
        %v1281 = vsub.f32 %v1273, %v1279
        %v1282 = vmul.f32 %v1280, 1.442695
        %v1283 = vpow.pop %v1282
        %v1284 = vmul.f32 %v1281, 1.442695
        %v1285 = vpow.pop %v1284
        %v1286 = vsel %vm584, %v1283, 0.0
        %1287 = vadd.xlane.f32.xlu0 %v1286
        %v1288 = vpop.xlane.xlu0 %1287
        %v1289 = vsel %vm588, %v1285, 0.0
        %1290 = vadd.xlane.f32.xlu0 %v1289
        %v1291 = vpop.xlane.xlu0 %1290
        %v1292 = vrcp.pop %v1288
        %v1293 = vrcp.pop %v1291
        %v1294 = vmul.f32 %v1283, %v1292
        %v1295 = vmul.f32 %v1285, %v1293
        %v1296 = vpack.c.bf16 %v1295, %v1294
        %1297 = vrot.lane.b32.xlu0 %v613, 104
        %v1298 = vpop.permute.xlu0 %1297
        %v1300 = vsel %vm584, %v1296, 0
        %v1303 = vand.u32 %v1298, %v620
        %1305 = vmatprep.subr.bf16.mxu0 0
        %1306 = vmatpush1.bf16.msra.mxu0 0
        %1307 = vmatprep.subr.bf16.mxu0 0
        %1308 = vmatpush1.bf16.msra.mxu0 0
        %1309 = vmatprep.subr.bf16.mxu0 0
        %1310 = vmatpush1.bf16.msra.mxu0 0
        %1311 = vmatprep.subr.bf16.mxu0 0
        %1312 = vmatpush1.bf16.msra.mxu0 0
        %1313 = vmatprep.subr.bf16.mxu0 0
        %1314 = vmatpush1.bf16.msra.mxu0 0
        %1315 = vmatprep.subr.bf16.mxu0 0
        %1316 = vmatpush1.bf16.msra.mxu0 0
        %1317 = vmatprep.subr.bf16.mxu0 0
        %1318 = vmatpush1.bf16.msra.mxu0 0
        %1319 = vmatprep.subr.bf16.mxu0 0
        %1320 = vmatpush1.bf16.msra.mxu0 %v1303
        %1321 = vmatprep.subr.bf16.mxu0 0
        %1322 = vmatpush2.bf16.msra.mxu0 0
        %1323 = vmatprep.subr.bf16.mxu0 0
        %1324 = vmatpush2.bf16.msra.mxu0 0
        %1325 = vmatprep.subr.bf16.mxu0 0
        %1326 = vmatpush2.bf16.msra.mxu0 0
        %1327 = vmatprep.subr.bf16.mxu0 0
        %1328 = vmatpush2.bf16.msra.mxu0 0
        %1329 = vmatprep.subr.bf16.mxu0 0
        %1330 = vmatpush2.bf16.msra.mxu0 0
        %1331 = vmatprep.subr.bf16.mxu0 0
        %1332 = vmatpush2.bf16.msra.mxu0 0
        %1333 = vmatprep.subr.bf16.mxu0 0
        %1334 = vmatpush2.bf16.msra.mxu0 0
        %1335 = vmatprep.subr.bf16.mxu0 0
        %1336 = vmatpush2.bf16.msra.mxu0 0
        %1337 = vmatprep.mubr.bf16.mxu0 0
        %1338 = vmatmul.mubr.bf16.gmra.mxu0 %v1300
        %v1339 = vpop.f32.mrf.mxu0
        %v1340 = vadd.f32 0.0, %v1339
        %v1341 = vpop.f32.mrf.mxu0
        %v1342 = vpop.f32.mrf.mxu0
        %v1343 = vadd.f32 0.0, %v1342
        %v1344 = vpop.f32.mrf.mxu0
        %1345 = vdwg.mxu0
        %v1346 = vpack.c.bf16 %v1343, %v1340
        %v1348 = vsel %vm482, %v1346, 0
        %v1351 = vsel %vm669, %v465, 0
        %1353 = vmatprep.subr.bf16.mxu0 0
        %1354 = vmatpush1.bf16.msra.mxu0 0
        %1355 = vmatprep.subr.bf16.mxu0 0
        %1356 = vmatpush1.bf16.msra.mxu0 0
        %1357 = vmatprep.subr.bf16.mxu0 0
        %1358 = vmatpush1.bf16.msra.mxu0 0
        %1359 = vmatprep.subr.bf16.mxu0 0
        %1360 = vmatpush1.bf16.msra.mxu0 0
        %1361 = vmatprep.subr.bf16.mxu0 0
        %1362 = vmatpush1.bf16.msra.mxu0 0
        %1363 = vmatprep.subr.bf16.mxu0 0
        %1364 = vmatpush1.bf16.msra.mxu0 0
        %1365 = vmatprep.subr.bf16.mxu0 0
        %1366 = vmatpush1.bf16.msra.mxu0 0
        %1367 = vmatprep.subr.bf16.mxu0 0
        %1368 = vmatpush1.bf16.msra.mxu0 %v1351
        %1369 = vmatprep.subr.bf16.mxu0 0
        %1370 = vmatpush2.bf16.msra.mxu0 0
        %1371 = vmatprep.subr.bf16.mxu0 0
        %1372 = vmatpush2.bf16.msra.mxu0 0
        %1373 = vmatprep.subr.bf16.mxu0 0
        %1374 = vmatpush2.bf16.msra.mxu0 0
        %1375 = vmatprep.subr.bf16.mxu0 0
        %1376 = vmatpush2.bf16.msra.mxu0 0
        %1377 = vmatprep.subr.bf16.mxu0 0
        %1378 = vmatpush2.bf16.msra.mxu0 0
        %1379 = vmatprep.subr.bf16.mxu0 0
        %1380 = vmatpush2.bf16.msra.mxu0 0
        %1381 = vmatprep.subr.bf16.mxu0 0
        %1382 = vmatpush2.bf16.msra.mxu0 0
        %1383 = vmatprep.subr.bf16.mxu0 0
        %1384 = vmatpush2.bf16.msra.mxu0 0
        %1385 = vmatprep.mubr.bf16.mxu0 0
        %1386 = vmatmul.mubr.bf16.gmra.mxu0 %v1348
        %v1387 = vpop.f32.mrf.mxu0
        %v1388 = vadd.f32 0.0, %v1387
        %v1389 = vpop.f32.mrf.mxu0
        %v1390 = vpop.f32.mrf.mxu0
        %v1391 = vadd.f32 0.0, %v1390
        %v1392 = vpop.f32.mrf.mxu0
        %1393 = vdwg.mxu0
        %v1394 = vadd.f32 %v1168, %v1388
        %v1395 = vadd.f32 %v1169, %v1391
        %vm1396 = vcmask 261120
        %1397 = vst.msk [vmem:[%s430] sm:$0xff] %vm1396, %v1394
        %vm1398 = vcmask 258048
        %1399 = vst.msk [vmem:[%s430 + $0x8] sm:$0x1f] %vm1398, %v1395
        %p1400 = scmp.lt.s32.totalorder %s22, 1
        %s1401 = scalar_select %p1400, %s22, 1
        %s1402 = smul.addr %s1401, 2
        %s1403 = smul.addr %s1402, 8
        %s1404 = scalar_lea.vmem %s9, %s1403
        // Predicated region
        $region69: #{_lambda_.26} parent=55 // pred_check
          %p1405 = pneg %p249
        $region70: #{_lambda_.26} parent=55 // pred_check_branch
          %1407 = sbr.rel (%p1405) target = $region72
        $region71: #{_lambda_.26} parent=55 // pred_region
          _
        $region72: #{_lambda_.26} parent=55 // pred_fallthru
          _
      $region56: #{_lambda_.26} parent=5 // pred_fallthru
        _
      %p1408 = scmp.le.s32.totalorder 2, %s17
      // Predicated region
      $region73: #{_lambda_.26} parent=5 // pred_check
        %p1409 = pneg %p1408
      $region74: #{_lambda_.26} parent=5 // pred_check_branch
        %1411 = sbr.rel (%p1409) target = $region76
      $region75: #{_lambda_.26} parent=5 // pred_region
        %s1412 = ssub.s32 %s17, 2
        // Predicated region
        $region77: #{_lambda_.26} parent=75 // pred_check
          %p1413 = pneg %p255
        $region78: #{_lambda_.26} parent=75 // pred_check_branch
          %1415 = sbr.rel (%p1413) target = $region80
        $region79: #{_lambda_.26} parent=75 // pred_region
          %p1416 = scmp.lt.s32.totalorder %s23, 1
          %s1417 = scalar_select %p1416, %s23, 1
          %s1418 = smul.addr %s1417, 2
          %s1419 = smul.addr %s1418, 8
          %s1420 = scalar_lea.vmem %s9, %s1419
        $region80: #{_lambda_.26} parent=75 // pred_fallthru
          _
      $region76: #{_lambda_.26} parent=5 // pred_fallthru
        _
    $region6: #{_lambda_.26} parent=1 // loop_footer
      %s21 = sadd.s32 1, %s17
    $region7: #{_lambda_.26} parent=1 // loop_footer_branch
      %16 = sbr.rel target = $region3
    $region8: #{_lambda_.26} parent=1 // loop_exit
      _
    %1421 = vsyncpa [#allocation3], 1
    %s1422 = scalar_lea.sflag [#allocation3], 1
    %1423 = vsyncpa %s1422, 1
    %1424 = vsyncpa [#allocation5], 1

// kernel: _lambda_.28
$region0: #{_lambda_.28}
  #allocation0 [shape = 'u32[]', space=smem, size = 0x4, offset = 0x4, fixed_abs, tag = 'smem constant byte address 0x4 - core index']
  #allocation1 [shape = 'u32[144,128]{1,0:T(1,128)}', space=vmem, size = 0x12000, scoped, tag = 'internal scratch']
  %s0 = inlined_call_operand.vmem [shape: bf16[2,27,32], index: 0, kind: input, shape index: {}]
  %s1 = inlined_call_operand.vmem [shape: f32[15,32], index: 1, kind: input, shape index: {}]
  %s2 = inlined_call_operand.hbm [shape: f32[1,32], index: 2, kind: input, shape index: {}]
  %s3 = inlined_call_operand.hbm [shape: f32[1,32], index: 3, kind: input, shape index: {}]
  %s4 = inlined_call_operand.hbm [shape: f32[1,32], index: 4, kind: input, shape index: {}]
  %s5 = inlined_call_operand.vmem [shape: bf16[32,32], index: 5, kind: input, shape index: {}]
  %s6 = inlined_call_operand.hbm [shape: f32[1,32], index: 6, kind: input, shape index: {}]
  %s7 = inlined_call_operand.vmem [shape: f32[2,13,32], index: 7, kind: input, shape index: {}]
  %s8 = inlined_call_operand.vmem [shape: f32[2,13,32], index: 8, kind: output, shape index: {}]
  %s9 = sld [smem:[#allocation0]]
  $region81: #{_lambda_.28} parent=0
    _
  %s11 = ssub.s32 1, %s9
  %s12 = scalar_select 0, %s11, %s9
  $region1: #{_lambda_.28} parent=0
    #allocation2 [shape = 'u8[512]{0}', space=vmem, size = 0x400, scoped, tag = 'input window, operand 2, single buffered']
    #allocation3 [shape = 's32[2]{0}', space=sflag, size = 0x8, scoped, tag = 'scoped memory for _lambda_.28']
    #allocation4 [shape = 'u8[512]{0}', space=vmem, size = 0x400, scoped, tag = 'input window, operand 3, single buffered']
    #allocation5 [shape = 's32[1]{0}', space=sflag, size = 0x4, scoped, tag = 'scoped memory for _lambda_.28']
    #allocation6 [shape = 'u8[512]{0}', space=vmem, size = 0x400, scoped, tag = 'input window, operand 4, single buffered']
    #allocation7 [shape = 'u8[512]{0}', space=vmem, size = 0x400, scoped, tag = 'input window, operand 6, single buffered']
    #allocation8 [shape = 's32[1]{0}', space=sflag, size = 0x4, scoped, tag = 'scoped memory for _lambda_.28']
    %13 = vsyncpa [#allocation3], 0
    %14 = vsyncpa [#allocation5], 0
    %15 = vsyncpa [#allocation8], 0
    loop: start=0, step=1, limit=4
    $region2: #{_lambda_.28} parent=1 // loop_pre_header
      _
    $region3: #{_lambda_.28} parent=1 // loop_header
      %s17 = sphi 0, %s21
      %p18 = scmp.ge.s32.totalorder %s17, 4
      %s27 = sphi 0, %s29
      %s30 = sphi 0, %s27
      %s31 = sphi 0, %s30
      %s47 = sphi 0, %s31
      %s51 = sphi 0, %s51
      %s53 = sphi 0, %s51
      %s54 = sphi 0, %s53
      %s68 = sphi 0, %s54
      %s72 = sphi 0, %s72
      %s74 = sphi 0, %s72
      %s75 = sphi 0, %s74
      %s89 = sphi 0, %s75
      %s93 = sphi 0, %s93
      %s95 = sphi 0, %s93
      %s96 = sphi 0, %s95
      %s110 = sphi 0, %s96
      %s114 = sphi 0, %s114
      %s116 = sphi 0, %s114
      %s117 = sphi 0, %s116
      %s131 = sphi 0, %s117
      %s135 = sphi 0, %s135
      %s137 = sphi 0, %s135
      %s138 = sphi 0, %s137
      %s152 = sphi 0, %s138
      %s156 = sphi 0, %s156
      %s158 = sphi 0, %s156
      %s159 = sphi 0, %s158
      %s173 = sphi 0, %s159
      %s179 = sphi 0, %s181
      %s182 = sphi 0, %s179
      %s183 = sphi 0, %s182
      %s199 = sphi 0, %s183
      %s205 = sphi 0, %s207
      %s208 = sphi 0, %s205
      %s209 = sphi 0, %s208
      %s225 = sphi 0, %s209
    $region4: #{_lambda_.28} parent=1 // loop_header_branch
      %20 = sbr.rel (%p18) target = $region8
    $region5: #{_lambda_.28} parent=1 // loop_body
      %s22 = ssub.s32 %s17, 1
      %s23 = ssub.s32 %s17, 2
      %s24 = sadd.s32 %s17, 1
      %s25 = ssub.s32 %s17, %s24
      %p26 = scmp.eq.s32.totalorder %s25, 0
      %s28 = sadd.s32 %s27, 1
      %s29 = scalar_select %p26, %s27, %s28
      %p32 = pneg %p26
      %p33 = scmp.eq.s32.totalorder %s17, 1
      %p34 = por %p32, %p33
      %p35 = scmp.ne.s32.totalorder %s27, %s30
      %p36 = scmp.eq.s32.totalorder %s17, 0
      %p37 = por %p35, %p36
      %p38 = scmp.ne.s32.totalorder %s27, %s30
      %p39 = scmp.eq.s32.totalorder %s22, 1
      %p40 = por %p38, %p39
      %p41 = scmp.ne.s32.totalorder %s30, %s31
      %p42 = scmp.eq.s32.totalorder %s22, 0
      %p43 = por %p41, %p42
      %p44 = scmp.ne.s32.totalorder %s30, %s31
      %p45 = scmp.eq.s32.totalorder %s23, 1
      %p46 = por %p44, %p45
      %p48 = scmp.ne.s32.totalorder %s31, %s47
      %p49 = scmp.eq.s32.totalorder %s23, 0
      %p50 = por %p48, %p49
      %s52 = sadd.s32 %s51, 1
      %p55 = scmp.eq.s32.totalorder %s17, 1
      %p56 = scmp.ne.s32.totalorder %s51, %s53
      %p57 = scmp.eq.s32.totalorder %s17, 0
      %p58 = por %p56, %p57
      %p59 = scmp.ne.s32.totalorder %s51, %s53
      %p60 = scmp.eq.s32.totalorder %s22, 1
      %p61 = por %p59, %p60
      %p62 = scmp.ne.s32.totalorder %s53, %s54
      %p63 = scmp.eq.s32.totalorder %s22, 0
      %p64 = por %p62, %p63
      %p65 = scmp.ne.s32.totalorder %s53, %s54
      %p66 = scmp.eq.s32.totalorder %s23, 1
      %p67 = por %p65, %p66
      %p69 = scmp.ne.s32.totalorder %s54, %s68
      %p70 = scmp.eq.s32.totalorder %s23, 0
      %p71 = por %p69, %p70
      %s73 = sadd.s32 %s72, 1
      %p76 = scmp.eq.s32.totalorder %s17, 1
      %p77 = scmp.ne.s32.totalorder %s72, %s74
      %p78 = scmp.eq.s32.totalorder %s17, 0
      %p79 = por %p77, %p78
      %p80 = scmp.ne.s32.totalorder %s72, %s74
      %p81 = scmp.eq.s32.totalorder %s22, 1
      %p82 = por %p80, %p81
      %p83 = scmp.ne.s32.totalorder %s74, %s75
      %p84 = scmp.eq.s32.totalorder %s22, 0
      %p85 = por %p83, %p84
      %p86 = scmp.ne.s32.totalorder %s74, %s75
      %p87 = scmp.eq.s32.totalorder %s23, 1
      %p88 = por %p86, %p87
      %p90 = scmp.ne.s32.totalorder %s75, %s89
      %p91 = scmp.eq.s32.totalorder %s23, 0
      %p92 = por %p90, %p91
      %s94 = sadd.s32 %s93, 1
      %p97 = scmp.eq.s32.totalorder %s17, 1
      %p98 = scmp.ne.s32.totalorder %s93, %s95
      %p99 = scmp.eq.s32.totalorder %s17, 0
      %p100 = por %p98, %p99
      %p101 = scmp.ne.s32.totalorder %s93, %s95
      %p102 = scmp.eq.s32.totalorder %s22, 1
      %p103 = por %p101, %p102
      %p104 = scmp.ne.s32.totalorder %s95, %s96
      %p105 = scmp.eq.s32.totalorder %s22, 0
      %p106 = por %p104, %p105
      %p107 = scmp.ne.s32.totalorder %s95, %s96
      %p108 = scmp.eq.s32.totalorder %s23, 1
      %p109 = por %p107, %p108
      %p111 = scmp.ne.s32.totalorder %s96, %s110
      %p112 = scmp.eq.s32.totalorder %s23, 0
      %p113 = por %p111, %p112
      %s115 = sadd.s32 %s114, 1
      %p118 = scmp.eq.s32.totalorder %s17, 1
      %p119 = scmp.ne.s32.totalorder %s114, %s116
      %p120 = scmp.eq.s32.totalorder %s17, 0
      %p121 = por %p119, %p120
      %p122 = scmp.ne.s32.totalorder %s114, %s116
      %p123 = scmp.eq.s32.totalorder %s22, 1
      %p124 = por %p122, %p123
      %p125 = scmp.ne.s32.totalorder %s116, %s117
      %p126 = scmp.eq.s32.totalorder %s22, 0
      %p127 = por %p125, %p126
      %p128 = scmp.ne.s32.totalorder %s116, %s117
      %p129 = scmp.eq.s32.totalorder %s23, 1
      %p130 = por %p128, %p129
      %p132 = scmp.ne.s32.totalorder %s117, %s131
      %p133 = scmp.eq.s32.totalorder %s23, 0
      %p134 = por %p132, %p133
      %s136 = sadd.s32 %s135, 1
      %p139 = scmp.eq.s32.totalorder %s17, 1
      %p140 = scmp.ne.s32.totalorder %s135, %s137
      %p141 = scmp.eq.s32.totalorder %s17, 0
      %p142 = por %p140, %p141
      %p143 = scmp.ne.s32.totalorder %s135, %s137
      %p144 = scmp.eq.s32.totalorder %s22, 1
      %p145 = por %p143, %p144
      %p146 = scmp.ne.s32.totalorder %s137, %s138
      %p147 = scmp.eq.s32.totalorder %s22, 0
      %p148 = por %p146, %p147
      %p149 = scmp.ne.s32.totalorder %s137, %s138
      %p150 = scmp.eq.s32.totalorder %s23, 1
      %p151 = por %p149, %p150
      %p153 = scmp.ne.s32.totalorder %s138, %s152
      %p154 = scmp.eq.s32.totalorder %s23, 0
      %p155 = por %p153, %p154
      %s157 = sadd.s32 %s156, 1
      %p160 = scmp.eq.s32.totalorder %s17, 1
      %p161 = scmp.ne.s32.totalorder %s156, %s158
      %p162 = scmp.eq.s32.totalorder %s17, 0
      %p163 = por %p161, %p162
      %p164 = scmp.ne.s32.totalorder %s156, %s158
      %p165 = scmp.eq.s32.totalorder %s22, 1
      %p166 = por %p164, %p165
      %p167 = scmp.ne.s32.totalorder %s158, %s159
      %p168 = scmp.eq.s32.totalorder %s22, 0
      %p169 = por %p167, %p168
      %p170 = scmp.ne.s32.totalorder %s158, %s159
      %p171 = scmp.eq.s32.totalorder %s23, 1
      %p172 = por %p170, %p171
      %p174 = scmp.ne.s32.totalorder %s159, %s173
      %p175 = scmp.eq.s32.totalorder %s23, 0
      %p176 = por %p174, %p175
      %s177 = ssub.s32 %s17, %s24
      %p178 = scmp.eq.s32.totalorder %s177, 0
      %s180 = sadd.s32 %s179, 1
      %s181 = scalar_select %p178, %s179, %s180
      %p184 = pneg %p178
      %p185 = scmp.eq.s32.totalorder %s17, 1
      %p186 = por %p184, %p185
      %p187 = scmp.ne.s32.totalorder %s179, %s182
      %p188 = scmp.eq.s32.totalorder %s17, 0
      %p189 = por %p187, %p188
      %p190 = scmp.ne.s32.totalorder %s179, %s182
      %p191 = scmp.eq.s32.totalorder %s22, 1
      %p192 = por %p190, %p191
      %p193 = scmp.ne.s32.totalorder %s182, %s183
      %p194 = scmp.eq.s32.totalorder %s22, 0
      %p195 = por %p193, %p194
      %p196 = scmp.ne.s32.totalorder %s182, %s183
      %p197 = scmp.eq.s32.totalorder %s23, 1
      %p198 = por %p196, %p197
      %p200 = scmp.ne.s32.totalorder %s183, %s199
      %p201 = scmp.eq.s32.totalorder %s23, 0
      %p202 = por %p200, %p201
      %s203 = ssub.s32 %s17, %s24
      %p204 = scmp.eq.s32.totalorder %s203, 0
      %s206 = sadd.s32 %s205, 1
      %s207 = scalar_select %p204, %s205, %s206
      %p210 = pneg %p204
      %p211 = scmp.eq.s32.totalorder %s17, 1
      %p212 = por %p210, %p211
      %p213 = scmp.ne.s32.totalorder %s205, %s208
      %p214 = scmp.eq.s32.totalorder %s17, 0
      %p215 = por %p213, %p214
      %p216 = scmp.ne.s32.totalorder %s205, %s208
      %p217 = scmp.eq.s32.totalorder %s22, 1
      %p218 = por %p216, %p217
      %p219 = scmp.ne.s32.totalorder %s208, %s209
      %p220 = scmp.eq.s32.totalorder %s22, 0
      %p221 = por %p219, %p220
      %p222 = scmp.ne.s32.totalorder %s208, %s209
      %p223 = scmp.eq.s32.totalorder %s23, 1
      %p224 = por %p222, %p223
      %p226 = scmp.ne.s32.totalorder %s209, %s225
      %p227 = scmp.eq.s32.totalorder %s23, 0
      %p228 = por %p226, %p227
      %p229 = scmp.le.s32.totalorder 1, %s17
      %p230 = scmp.lt.s32.totalorder %s17, 3
      %p231 = pnand %p229, %p230
      %p232 = pneg %p231
      // Predicated region
      $region9: #{_lambda_.28} parent=5 // pred_check
        _
      $region10: #{_lambda_.28} parent=5 // pred_check_branch
        %234 = sbr.rel (%p231) target = $region12
      $region11: #{_lambda_.28} parent=5 // pred_region
        %s235 = ssub.s32 %s17, 1
        // Predicated region
        $region13: #{_lambda_.28} parent=11 // pred_check
          %p236 = pneg %p64
        $region14: #{_lambda_.28} parent=11 // pred_check_branch
          %238 = sbr.rel (%p236) target = $region16
        $region15: #{_lambda_.28} parent=11 // pred_region
          _
        $region16: #{_lambda_.28} parent=11 // pred_fallthru
          _
        // Predicated region
        $region17: #{_lambda_.28} parent=11 // pred_check
          %p239 = pneg %p85
        $region18: #{_lambda_.28} parent=11 // pred_check_branch
          %241 = sbr.rel (%p239) target = $region20
        $region19: #{_lambda_.28} parent=11 // pred_region
          %s243 = ssub.s32 16, 16
          %244 = vsyncadd [#allocation3], %s243
          %s246 = sshll.u32 [#allocation2], 4
          %s247 = int_to_ptr.vmem [resolvable:$true] %s246
          %249 = dma.hbm_to_vmem [thread:$0]  %s2, 16, %s247, [#allocation3]
        $region20: #{_lambda_.28} parent=11 // pred_fallthru
          _
        // Predicated region
        $region21: #{_lambda_.28} parent=11 // pred_check
          %p250 = pneg %p106
        $region22: #{_lambda_.28} parent=11 // pred_check_branch
          %252 = sbr.rel (%p250) target = $region24
        $region23: #{_lambda_.28} parent=11 // pred_region
          %s254 = ssub.s32 16, 16
          %255 = vsyncadd [#allocation5], %s254
          %s257 = sshll.u32 [#allocation4], 4
          %s258 = int_to_ptr.vmem [resolvable:$true] %s257
          %260 = dma.hbm_to_vmem [thread:$0]  %s3, 16, %s258, [#allocation5]
        $region24: #{_lambda_.28} parent=11 // pred_fallthru
          _
        // Predicated region
        $region25: #{_lambda_.28} parent=11 // pred_check
          %p261 = pneg %p127
        $region26: #{_lambda_.28} parent=11 // pred_check_branch
          %263 = sbr.rel (%p261) target = $region28
        $region27: #{_lambda_.28} parent=11 // pred_region
          %s265 = ssub.s32 16, 16
          %266 = vsyncadd [#allocation5], %s265
          %s268 = sshll.u32 [#allocation6], 4
          %s269 = int_to_ptr.vmem [resolvable:$true] %s268
          %271 = dma.hbm_to_vmem [thread:$0]  %s4, 16, %s269, [#allocation5]
        $region28: #{_lambda_.28} parent=11 // pred_fallthru
          _
        // Predicated region
        $region29: #{_lambda_.28} parent=11 // pred_check
          %p272 = pneg %p148
        $region30: #{_lambda_.28} parent=11 // pred_check_branch
          %274 = sbr.rel (%p272) target = $region32
        $region31: #{_lambda_.28} parent=11 // pred_region
          _
        $region32: #{_lambda_.28} parent=11 // pred_fallthru
          _
        // Predicated region
        $region33: #{_lambda_.28} parent=11 // pred_check
          %p275 = pneg %p169
        $region34: #{_lambda_.28} parent=11 // pred_check_branch
          %277 = sbr.rel (%p275) target = $region36
        $region35: #{_lambda_.28} parent=11 // pred_region
          %s279 = ssub.s32 16, 16
          %280 = vsyncadd [#allocation8], %s279
          %s282 = sshll.u32 [#allocation7], 4
          %s283 = int_to_ptr.vmem [resolvable:$true] %s282
          %285 = dma.hbm_to_vmem [thread:$0]  %s6, 16, %s283, [#allocation8]
        $region36: #{_lambda_.28} parent=11 // pred_fallthru
          _
      $region12: #{_lambda_.28} parent=5 // pred_fallthru
        _
      %p286 = scmp.lt.s32.totalorder %s17, 2
      // Predicated region
      $region37: #{_lambda_.28} parent=5 // pred_check
        %p287 = pneg %p286
      $region38: #{_lambda_.28} parent=5 // pred_check_branch
        %289 = sbr.rel (%p287) target = $region40
      $region39: #{_lambda_.28} parent=5 // pred_region
        // Predicated region
        $region41: #{_lambda_.28} parent=39 // pred_check
          %p290 = pneg %p37
        $region42: #{_lambda_.28} parent=39 // pred_check_branch
          %292 = sbr.rel (%p290) target = $region44
        $region43: #{_lambda_.28} parent=39 // pred_region
          %p293 = scmp.lt.s32.totalorder %s17, 1
          %s294 = scalar_select %p293, %s17, 1
          %s295 = smul.addr %s294, 4
          %s296 = smul.addr %s295, 4
          %s297 = scalar_lea.vmem %s0, %s296
        $region44: #{_lambda_.28} parent=39 // pred_fallthru
          _
        // Predicated region
        $region45: #{_lambda_.28} parent=39 // pred_check
          %p298 = pneg %p189
        $region46: #{_lambda_.28} parent=39 // pred_check_branch
          %300 = sbr.rel (%p298) target = $region48
        $region47: #{_lambda_.28} parent=39 // pred_region
          %p301 = scmp.lt.s32.totalorder %s17, 1
          %s302 = scalar_select %p301, %s17, 1
          %s303 = smul.addr %s302, 2
          %s304 = smul.addr %s303, 8
          %s305 = scalar_lea.vmem %s7, %s304
        $region48: #{_lambda_.28} parent=39 // pred_fallthru
          _
      $region40: #{_lambda_.28} parent=5 // pred_fallthru
        _
      %p306 = scmp.le.s32.totalorder 1, %s17
      %p307 = scmp.lt.s32.totalorder %s17, 3
      %p308 = pnand %p306, %p307
      %p309 = pneg %p308
      // Predicated region
      $region49: #{_lambda_.28} parent=5 // pred_check
        _
      $region50: #{_lambda_.28} parent=5 // pred_check_branch
        %311 = sbr.rel (%p308) target = $region52
      $region51: #{_lambda_.28} parent=5 // pred_region
        %s312 = ssub.s32 %s17, 1
        // Predicated region
        $region53: #{_lambda_.28} parent=51 // pred_check
          %p313 = pneg %p85
        $region54: #{_lambda_.28} parent=51 // pred_check_branch
          %315 = sbr.rel (%p313) target = $region56
        $region55: #{_lambda_.28} parent=51 // pred_region
          %316 = dma.done [#allocation3], 16
        $region56: #{_lambda_.28} parent=51 // pred_fallthru
          _
        // Predicated region
        $region57: #{_lambda_.28} parent=51 // pred_check
          %p317 = pneg %p106
        $region58: #{_lambda_.28} parent=51 // pred_check_branch
          %319 = sbr.rel (%p317) target = $region60
        $region59: #{_lambda_.28} parent=51 // pred_region
          %320 = dma.done [#allocation5], 16
        $region60: #{_lambda_.28} parent=51 // pred_fallthru
          _
        // Predicated region
        $region61: #{_lambda_.28} parent=51 // pred_check
          %p321 = pneg %p127
        $region62: #{_lambda_.28} parent=51 // pred_check_branch
          %323 = sbr.rel (%p321) target = $region64
        $region63: #{_lambda_.28} parent=51 // pred_region
          %324 = dma.done [#allocation5], 16
        $region64: #{_lambda_.28} parent=51 // pred_fallthru
          _
        // Predicated region
        $region65: #{_lambda_.28} parent=51 // pred_check
          %p325 = pneg %p169
        $region66: #{_lambda_.28} parent=51 // pred_check_branch
          %327 = sbr.rel (%p325) target = $region68
        $region67: #{_lambda_.28} parent=51 // pred_region
          %328 = dma.done [#allocation8], 16
        $region68: #{_lambda_.28} parent=51 // pred_fallthru
          _
        %p329 = scmp.lt.s32.totalorder %s22, 1
        %s330 = scalar_select %p329, %s22, 1
        %s331 = smul.addr %s330, 4
        %s332 = smul.addr %s331, 4
        %s333 = scalar_lea.vmem %s0, %s332
        %p334 = pneg %p43
        %p335 = pneg %p40
        %p336 = pneg %p64
        %p337 = pneg %p61
        %p338 = pneg %p85
        %p339 = pneg %p82
        %p340 = pneg %p106
        %p341 = pneg %p103
        %p342 = pneg %p127
        %p343 = pneg %p124
        %p344 = pneg %p148
        %p345 = pneg %p145
        %p346 = pneg %p169
        %p347 = pneg %p166
        %p348 = scmp.lt.s32.totalorder %s22, 1
        %s349 = scalar_select %p348, %s22, 1
        %s350 = smul.addr %s349, 2
        %s351 = smul.addr %s350, 8
        %s352 = scalar_lea.vmem %s7, %s351
        %p353 = pneg %p195
        %p354 = pneg %p192
        %p355 = pneg %p221
        %p356 = pneg %p218
        %p357 = scmp.lt.s32.totalorder %s22, 1
        %s358 = scalar_select %p357, %s22, 1
        %s359 = smul.addr %s358, 2
        %s360 = smul.addr %s359, 8
        %s361 = scalar_lea.vmem %s8, %s360
        %p362 = scmp.lt.s32.totalorder %s22, 1
        %s363 = scalar_select %p362, %s22, 1
        %s364 = smul.addr %s363, 4
        %s365 = smul.addr %s364, 4
        %s366 = scalar_lea.vmem %s0, %s365
        %p367 = scmp.lt.s32.totalorder %s22, 1
        %s368 = scalar_select %p367, %s22, 1
        %s369 = smul.addr %s368, 2
        %s370 = smul.addr %s369, 8
        %s371 = scalar_lea.vmem %s7, %s370
        %p372 = scmp.lt.s32.totalorder %s22, 1
        %s373 = scalar_select %p372, %s22, 1
        %s374 = smul.addr %s373, 2
        %s375 = smul.addr %s374, 8
        %s376 = scalar_lea.vmem %s8, %s375
        %v378 = vld [vmem:[%s1] sm:$0xff]
        %v379 = vld [vmem:[%s1 + $0x8] sm:$0x7f]
        %v380 = vld [vmem:[%s366] sm:$0xf]
        %v381 = vld [vmem:[%s366 + $0x4] sm:$0x7]
        %v382 = vunpack.c.l.bf16 %v380
        %v383 = vunpack.c.l.bf16 %v381
        %v384 = vlaneseq
        %v385 = vshrl.u32 %v384, 7
        %v386 = vsub.s32 0, %v385
        %v387 = vrot.slane %v378, %v386
        %v388 = vmul.f32 %v382, %v387
        %v389 = vmul.f32 %v383, %v387
        %v390 = vadd.f32 %v388, 0.0
        %v391 = vadd.f32 %v389, 0.0
        %v392 = vlaneseq
        %v393 = vshrl.u32 %v392, 7
        %v394 = vsub.s32 1, %v393
        %v395 = vrot.slane %v378, %v394
        %v396 = vmul.f32 %v382, %v395
        %v397 = vmul.f32 %v383, %v395
        %vm400 = vcmask 1046528
        %v401 = vrot.slane %v396, 1
        %v402 = vrot.slane %v397, 1
        %v403 = vsel %vm400, %v401, %v402
        %v406 = vadd.f32 %v390, %v403
        %v407 = vadd.f32 %v391, %v402
        %v408 = vld [vmem:[%s366] sm:$0xe]
        %v409 = vld [vmem:[%s366 + $0x4] sm:$0xf]
        %v410 = vunpack.c.l.bf16 %v408
        %v411 = vunpack.c.l.bf16 %v409
        %v412 = vlaneseq
        %v413 = vshrl.u32 %v412, 7
        %v414 = vsub.s32 2, %v413
        %v415 = vrot.slane %v378, %v414
        %v416 = vmul.f32 %v410, %v415
        %v417 = vmul.f32 %v411, %v415
        %vm420 = vcmask 1045504
        %v421 = vrot.slane %v416, 2
        %v422 = vrot.slane %v417, 2
        %v423 = vsel %vm420, %v421, %v422
        %v426 = vadd.f32 %v406, %v423
        %v427 = vadd.f32 %v407, %v422
        %v428 = vlaneseq
        %v429 = vshrl.u32 %v428, 7
        %v430 = vsub.s32 3, %v429
        %v431 = vrot.slane %v378, %v430
        %v432 = vmul.f32 %v410, %v431
        %v433 = vmul.f32 %v411, %v431
        %vm436 = vcmask 1044480
        %v437 = vrot.slane %v432, 3
        %v438 = vrot.slane %v433, 3
        %v439 = vsel %vm436, %v437, %v438
        %v442 = vadd.f32 %v426, %v439
        %v443 = vadd.f32 %v427, %v438
        %v444 = vld [vmem:[%s366] sm:$0xc]
        %v445 = vld [vmem:[%s366 + $0x8] sm:$0x1]
        %v446 = vunpack.c.l.bf16 %v444
        %v447 = vunpack.c.l.bf16 %v445
        %v448 = vlaneseq
        %v449 = vshrl.u32 %v448, 7
        %v450 = vsub.s32 4, %v449
        %v451 = vrot.slane %v378, %v450
        %v452 = vmul.f32 %v446, %v451
        %v453 = vmul.f32 %v411, %v451
        %v454 = vmul.f32 %v447, %v451
        %vm458 = vcmask 1043456
        %v459 = vrot.slane %v452, 4
        %v460 = vrot.slane %v453, 4
        %v461 = vsel %vm458, %v459, %v460
        %v462 = vrot.slane %v454, 4
        %v463 = vsel %vm458, %v460, %v462
        %v466 = vadd.f32 %v442, %v461
        %v467 = vadd.f32 %v443, %v463
        %v468 = vlaneseq
        %v469 = vshrl.u32 %v468, 7
        %v470 = vsub.s32 5, %v469
        %v471 = vrot.slane %v378, %v470
        %v472 = vmul.f32 %v446, %v471
        %v473 = vmul.f32 %v411, %v471
        %v474 = vmul.f32 %v447, %v471
        %vm478 = vcmask 1042432
        %v479 = vrot.slane %v472, 5
        %v480 = vrot.slane %v473, 5
        %v481 = vsel %vm478, %v479, %v480
        %v482 = vrot.slane %v474, 5
        %v483 = vsel %vm478, %v480, %v482
        %v486 = vadd.f32 %v466, %v481
        %v487 = vadd.f32 %v467, %v483
        %v488 = vld [vmem:[%s366] sm:$0x8]
        %v489 = vld [vmem:[%s366 + $0x8] sm:$0x3]
        %v490 = vunpack.c.l.bf16 %v488
        %v491 = vunpack.c.l.bf16 %v489
        %v492 = vlaneseq
        %v493 = vshrl.u32 %v492, 7
        %v494 = vsub.s32 6, %v493
        %v495 = vrot.slane %v378, %v494
        %v496 = vmul.f32 %v490, %v495
        %v497 = vmul.f32 %v411, %v495
        %v498 = vmul.f32 %v491, %v495
        %vm502 = vcmask 1041408
        %v503 = vrot.slane %v496, 6
        %v504 = vrot.slane %v497, 6
        %v505 = vsel %vm502, %v503, %v504
        %v506 = vrot.slane %v498, 6
        %v507 = vsel %vm502, %v504, %v506
        %v510 = vadd.f32 %v486, %v505
        %v511 = vadd.f32 %v487, %v507
        %v512 = vlaneseq
        %v513 = vshrl.u32 %v512, 7
        %v514 = vsub.s32 7, %v513
        %v515 = vrot.slane %v378, %v514
        %v516 = vmul.f32 %v490, %v515
        %v517 = vmul.f32 %v411, %v515
        %v518 = vmul.f32 %v491, %v515
        %vm522 = vcmask 1040384
        %v523 = vrot.slane %v516, 7
        %v524 = vrot.slane %v517, 7
        %v525 = vsel %vm522, %v523, %v524
        %v526 = vrot.slane %v518, 7
        %v527 = vsel %vm522, %v524, %v526
        %v530 = vadd.f32 %v510, %v525
        %v531 = vadd.f32 %v511, %v527
        %v532 = vld [vmem:[%s366 + $0x8] sm:$0x7]
        %v533 = vunpack.c.l.bf16 %v532
        %v534 = vlaneseq
        %v535 = vshrl.u32 %v534, 7
        %v536 = vsub.s32 0, %v535
        %v537 = vrot.slane %v379, %v536
        %v538 = vmul.f32 %v411, %v537
        %v539 = vmul.f32 %v533, %v537
        %v540 = vadd.f32 %v530, %v538
        %v541 = vadd.f32 %v531, %v539
        %v542 = vlaneseq
        %v543 = vshrl.u32 %v542, 7
        %v544 = vsub.s32 1, %v543
        %v545 = vrot.slane %v379, %v544
        %v546 = vmul.f32 %v411, %v545
        %v547 = vmul.f32 %v533, %v545
        %v550 = vrot.slane %v546, 1
        %v551 = vrot.slane %v547, 1
        %v552 = vsel %vm400, %v550, %v551
        %v555 = vadd.f32 %v540, %v552
        %v556 = vadd.f32 %v541, %v551
        %v557 = vld [vmem:[%s366 + $0x4] sm:$0xe]
        %v558 = vld [vmem:[%s366 + $0x8] sm:$0xf]
        %v559 = vunpack.c.l.bf16 %v557
        %v560 = vunpack.c.l.bf16 %v558
        %v561 = vlaneseq
        %v562 = vshrl.u32 %v561, 7
        %v563 = vsub.s32 2, %v562
        %v564 = vrot.slane %v379, %v563
        %v565 = vmul.f32 %v559, %v564
        %v566 = vmul.f32 %v560, %v564
        %v569 = vrot.slane %v565, 2
        %v570 = vrot.slane %v566, 2
        %v571 = vsel %vm420, %v569, %v570
        %v574 = vadd.f32 %v555, %v571
        %v575 = vadd.f32 %v556, %v570
        %v576 = vlaneseq
        %v577 = vshrl.u32 %v576, 7
        %v578 = vsub.s32 3, %v577
        %v579 = vrot.slane %v379, %v578
        %v580 = vmul.f32 %v559, %v579
        %v581 = vmul.f32 %v560, %v579
        %v584 = vrot.slane %v580, 3
        %v585 = vrot.slane %v581, 3
        %v586 = vsel %vm436, %v584, %v585
        %v589 = vadd.f32 %v574, %v586
        %v590 = vadd.f32 %v575, %v585
        %v591 = vld [vmem:[%s366 + $0x4] sm:$0xc]
        %v592 = vld [vmem:[%s366 + $0xc] sm:$0x1]
        %v593 = vunpack.c.l.bf16 %v591
        %v594 = vunpack.c.l.bf16 %v592
        %v595 = vlaneseq
        %v596 = vshrl.u32 %v595, 7
        %v597 = vsub.s32 4, %v596
        %v598 = vrot.slane %v379, %v597
        %v599 = vmul.f32 %v593, %v598
        %v600 = vmul.f32 %v560, %v598
        %v601 = vmul.f32 %v594, %v598
        %v605 = vrot.slane %v599, 4
        %v606 = vrot.slane %v600, 4
        %v607 = vsel %vm458, %v605, %v606
        %v608 = vrot.slane %v601, 4
        %v609 = vsel %vm458, %v606, %v608
        %v612 = vadd.f32 %v589, %v607
        %v613 = vadd.f32 %v590, %v609
        %v614 = vlaneseq
        %v615 = vshrl.u32 %v614, 7
        %v616 = vsub.s32 5, %v615
        %v617 = vrot.slane %v379, %v616
        %v618 = vmul.f32 %v593, %v617
        %v619 = vmul.f32 %v560, %v617
        %v620 = vmul.f32 %v594, %v617
        %v624 = vrot.slane %v618, 5
        %v625 = vrot.slane %v619, 5
        %v626 = vsel %vm478, %v624, %v625
        %v627 = vrot.slane %v620, 5
        %v628 = vsel %vm478, %v625, %v627
        %v631 = vadd.f32 %v612, %v626
        %v632 = vadd.f32 %v613, %v628
        %v633 = vld [vmem:[%s366 + $0x4] sm:$0x8]
        %v634 = vld [vmem:[%s366 + $0xc] sm:$0x3]
        %v635 = vunpack.c.l.bf16 %v633
        %v636 = vunpack.c.l.bf16 %v634
        %v637 = vlaneseq
        %v638 = vshrl.u32 %v637, 7
        %v639 = vsub.s32 6, %v638
        %v640 = vrot.slane %v379, %v639
        %v641 = vmul.f32 %v635, %v640
        %v642 = vmul.f32 %v560, %v640
        %v643 = vmul.f32 %v636, %v640
        %v647 = vrot.slane %v641, 6
        %v648 = vrot.slane %v642, 6
        %v649 = vsel %vm502, %v647, %v648
        %v650 = vrot.slane %v643, 6
        %v651 = vsel %vm502, %v648, %v650
        %v654 = vadd.f32 %v631, %v649
        %v655 = vadd.f32 %v632, %v651
        %v656 = vld [vmem:[#allocation2] sm:$0x1]
        %v658 = vlaneseq
        %v659 = vshrl.u32 %v658, 7
        %v660 = vsub.s32 0, %v659
        %v661 = vrot.slane %v656, %v660
        %v663 = vadd.f32 %v654, %v661
        %v664 = vadd.f32 %v655, %v661
        %v665 = vld [vmem:[#allocation4] sm:$0x1]
        %v667 = vlaneseq
        %v668 = vshrl.u32 %v667, 7
        %v669 = vsub.s32 0, %v668
        %v670 = vrot.slane %v665, %v669
        %v672 = vmul.f32 %v663, %v670
        %v673 = vmul.f32 %v664, %v670
        %v674 = vld [vmem:[#allocation6] sm:$0x1]
        %v676 = vlaneseq
        %v677 = vshrl.u32 %v676, 7
        %v678 = vsub.s32 0, %v677
        %v679 = vrot.slane %v674, %v678
        %v681 = vadd.f32 %v672, %v679
        %v682 = vadd.f32 %v673, %v679
        %v683 = vsub.f32 0.0, %v681
        %v684 = vsub.f32 0.0, %v682
        %v685 = vmul.f32 %v683, 1.442695
        %v686 = vpow.pop %v685
        %v687 = vmul.f32 %v684, 1.442695
        %v688 = vpow.pop %v687
        %v689 = vadd.f32 %v686, 1.0
        %v690 = vadd.f32 %v688, 1.0
        %v691 = vrcp.pop %v689
        %v692 = vmul.f32 1.0, %v691
        %v693 = vrcp.pop %v690
        %v694 = vmul.f32 1.0, %v693
        %v695 = vmul.f32 %v681, %v692
        %v696 = vmul.f32 %v682, %v694
        %v697 = vpack.c.bf16 %v696, %v695
        %v698 = vld [vmem:[%s5] sm:$0xf]
        %v699 = vld [vmem:[%s5 + $0x4] sm:$0xf]
        %v700 = vld [vmem:[%s5 + $0x8] sm:$0xf]
        %v701 = vld [vmem:[%s5 + $0xc] sm:$0xf]
        %v702 = vld [vmem:[#allocation7] sm:$0x1]
        %v704 = vlaneseq
        %v705 = vshrl.u32 %v704, 7
        %v706 = vsub.s32 0, %v705
        %v707 = vrot.slane %v702, %v706
        %v713 = vunpack.c.l.b16 %v698
        %v714 = vunpack.c.l.b16 %v699
        %v715 = vunpack.c.l.b16 %v700
        %v716 = vunpack.c.l.b16 %v701
        %v717 = vpack.c.b16 %v714, %v713
        %v718 = vpack.c.b16 %v716, %v715
        %vm721 = vcmask 261120
        %v723 = vsel %vm721, %v697, 0
        %725 = vmatprep.subr.bf16.mxu0 0
        %726 = vmatpush1.bf16.msra.mxu0 0
        %727 = vmatprep.subr.bf16.mxu0 0
        %728 = vmatpush1.bf16.msra.mxu0 0
        %729 = vmatprep.subr.bf16.mxu0 0
        %730 = vmatpush1.bf16.msra.mxu0 0
        %731 = vmatprep.subr.bf16.mxu0 0
        %732 = vmatpush1.bf16.msra.mxu0 0
        %733 = vmatprep.subr.bf16.mxu0 0
        %734 = vmatpush1.bf16.msra.mxu0 0
        %735 = vmatprep.subr.bf16.mxu0 0
        %736 = vmatpush1.bf16.msra.mxu0 0
        %737 = vmatprep.subr.bf16.mxu0 0
        %738 = vmatpush1.bf16.msra.mxu0 %v718
        %739 = vmatprep.subr.bf16.mxu0 0
        %740 = vmatpush1.bf16.msra.mxu0 %v717
        %741 = vmatprep.subr.bf16.mxu0 0
        %742 = vmatpush2.bf16.msra.mxu0 0
        %743 = vmatprep.subr.bf16.mxu0 0
        %744 = vmatpush2.bf16.msra.mxu0 0
        %745 = vmatprep.subr.bf16.mxu0 0
        %746 = vmatpush2.bf16.msra.mxu0 0
        %747 = vmatprep.subr.bf16.mxu0 0
        %748 = vmatpush2.bf16.msra.mxu0 0
        %749 = vmatprep.subr.bf16.mxu0 0
        %750 = vmatpush2.bf16.msra.mxu0 0
        %751 = vmatprep.subr.bf16.mxu0 0
        %752 = vmatpush2.bf16.msra.mxu0 0
        %753 = vmatprep.subr.bf16.mxu0 0
        %754 = vmatpush2.bf16.msra.mxu0 0
        %755 = vmatprep.subr.bf16.mxu0 0
        %756 = vmatpush2.bf16.msra.mxu0 0
        %757 = vmatprep.mubr.bf16.mxu0 0
        %758 = vmatmul.mubr.bf16.gmra.mxu0 %v723
        %v759 = vpop.f32.mrf.mxu0
        %v760 = vadd.f32 %v707, %v759
        %v761 = vpop.f32.mrf.mxu0
        %v762 = vpop.f32.mrf.mxu0
        %v763 = vadd.f32 %v707, %v762
        %v764 = vpop.f32.mrf.mxu0
        %765 = vdwg.mxu0
        %v766 = vld [vmem:[%s371] sm:$0xff]
        %v767 = vld [vmem:[%s371 + $0x8] sm:$0x1f]
        %v768 = vadd.f32 %v760, %v766
        %v769 = vadd.f32 %v763, %v767
        %770 = vst.msk [vmem:[%s376] sm:$0xff] %vm721, %v768
        %vm771 = vcmask 258048
        %772 = vst.msk [vmem:[%s376 + $0x8] sm:$0x1f] %vm771, %v769
        %p773 = scmp.lt.s32.totalorder %s22, 1
        %s774 = scalar_select %p773, %s22, 1
        %s775 = smul.addr %s774, 2
        %s776 = smul.addr %s775, 8
        %s777 = scalar_lea.vmem %s8, %s776
        // Predicated region
        $region69: #{_lambda_.28} parent=51 // pred_check
          %p778 = pneg %p218
        $region70: #{_lambda_.28} parent=51 // pred_check_branch
          %780 = sbr.rel (%p778) target = $region72
        $region71: #{_lambda_.28} parent=51 // pred_region
          _
        $region72: #{_lambda_.28} parent=51 // pred_fallthru
          _
      $region52: #{_lambda_.28} parent=5 // pred_fallthru
        _
      %p781 = scmp.le.s32.totalorder 2, %s17
      // Predicated region
      $region73: #{_lambda_.28} parent=5 // pred_check
        %p782 = pneg %p781
      $region74: #{_lambda_.28} parent=5 // pred_check_branch
        %784 = sbr.rel (%p782) target = $region76
      $region75: #{_lambda_.28} parent=5 // pred_region
        %s785 = ssub.s32 %s17, 2
        // Predicated region
        $region77: #{_lambda_.28} parent=75 // pred_check
          %p786 = pneg %p224
        $region78: #{_lambda_.28} parent=75 // pred_check_branch
          %788 = sbr.rel (%p786) target = $region80
        $region79: #{_lambda_.28} parent=75 // pred_region
          %p789 = scmp.lt.s32.totalorder %s23, 1
          %s790 = scalar_select %p789, %s23, 1
          %s791 = smul.addr %s790, 2
          %s792 = smul.addr %s791, 8
          %s793 = scalar_lea.vmem %s8, %s792
        $region80: #{_lambda_.28} parent=75 // pred_fallthru
          _
      $region76: #{_lambda_.28} parent=5 // pred_fallthru
        _
    $region6: #{_lambda_.28} parent=1 // loop_footer
      %s21 = sadd.s32 1, %s17
    $region7: #{_lambda_.28} parent=1 // loop_footer_branch
      %16 = sbr.rel target = $region3
    $region8: #{_lambda_.28} parent=1 // loop_exit
      _
    %794 = vsyncpa [#allocation3], 1
    %s795 = scalar_lea.sflag [#allocation3], 1
    %796 = vsyncpa %s795, 1
    %797 = vsyncpa [#allocation5], 1
    %798 = vsyncpa [#allocation8], 1

// kernel: _lambda_.29
$region0: #{_lambda_.29}
  #allocation0 [shape = 'u32[]', space=smem, size = 0x4, offset = 0x4, fixed_abs, tag = 'smem constant byte address 0x4 - core index']
  #allocation1 [shape = 'u32[144,128]{1,0:T(1,128)}', space=vmem, size = 0x12000, scoped, tag = 'internal scratch']
  %s0 = inlined_call_operand.vmem [shape: f32[26,32], index: 0, kind: input, shape index: {}]
  %s1 = inlined_call_operand.hbm [shape: f32[1,32], index: 1, kind: input, shape index: {}]
  %s2 = inlined_call_operand.hbm [shape: f32[1,32], index: 2, kind: input, shape index: {}]
  %s3 = inlined_call_operand.vmem [shape: bf16[32,64], index: 3, kind: input, shape index: {}]
  %s4 = inlined_call_operand.hbm [shape: f32[1,64], index: 4, kind: input, shape index: {}]
  %s5 = inlined_call_operand.vmem [shape: bf16[64,32], index: 5, kind: input, shape index: {}]
  %s6 = inlined_call_operand.hbm [shape: f32[1,32], index: 6, kind: input, shape index: {}]
  %s7 = inlined_call_operand.hbm [shape: f32[1,32], index: 7, kind: input, shape index: {}]
  %s8 = inlined_call_operand.hbm [shape: f32[1,32], index: 8, kind: input, shape index: {}]
  %s9 = inlined_call_operand.vmem [shape: f32[26,32], index: 9, kind: output, shape index: {}]
  %s10 = sld [smem:[#allocation0]]
  $region70: #{_lambda_.29} parent=0
    _
  %s12 = ssub.s32 1, %s10
  %s13 = scalar_select 0, %s12, %s10
  $region1: #{_lambda_.29} parent=0
    #allocation2 [shape = 'u8[512]{0}', space=vmem, size = 0x400, scoped, tag = 'input window, operand 1, single buffered']
    #allocation3 [shape = 's32[1]{0}', space=sflag, size = 0x4, scoped, tag = 'scoped memory for _lambda_.29']
    #allocation4 [shape = 'u8[512]{0}', space=vmem, size = 0x400, scoped, tag = 'input window, operand 2, single buffered']
    #allocation5 [shape = 's32[1]{0}', space=sflag, size = 0x4, scoped, tag = 'scoped memory for _lambda_.29']
    #allocation6 [shape = 'u8[512]{0}', space=vmem, size = 0x400, scoped, tag = 'input window, operand 4, single buffered']
    #allocation7 [shape = 'u8[512]{0}', space=vmem, size = 0x400, scoped, tag = 'input window, operand 6, single buffered']
    #allocation8 [shape = 's32[1]{0}', space=sflag, size = 0x4, scoped, tag = 'scoped memory for _lambda_.29']
    #allocation9 [shape = 'u8[512]{0}', space=vmem, size = 0x400, scoped, tag = 'input window, operand 7, single buffered']
    #allocation10 [shape = 'u8[512]{0}', space=vmem, size = 0x400, scoped, tag = 'input window, operand 8, single buffered']
    #allocation11 [shape = 's32[1]{0}', space=sflag, size = 0x4, scoped, tag = 'scoped memory for _lambda_.29']
    %14 = vsyncpa [#allocation3], 0
    %15 = vsyncpa [#allocation5], 0
    %16 = vsyncpa [#allocation8], 0
    %17 = vsyncpa [#allocation11], 0
    // Predicated region
    $region2: #{_lambda_.29} parent=1 // pred_check
      _
    $region3: #{_lambda_.29} parent=1 // pred_check_branch
      %19 = sbr.rel (0) target = $region5
    $region4: #{_lambda_.29} parent=1 // pred_region
      _
    $region5: #{_lambda_.29} parent=1 // pred_fallthru
      _
    // Predicated region
    $region6: #{_lambda_.29} parent=1 // pred_check
      _
    $region7: #{_lambda_.29} parent=1 // pred_check_branch
      %21 = sbr.rel (0) target = $region9
    $region8: #{_lambda_.29} parent=1 // pred_region
      %s23 = ssub.s32 16, 16
      %24 = vsyncadd [#allocation3], %s23
      %s26 = sshll.u32 [#allocation2], 4
      %s27 = int_to_ptr.vmem [resolvable:$true] %s26
      %29 = dma.hbm_to_vmem [thread:$0]  %s1, 16, %s27, [#allocation3]
    $region9: #{_lambda_.29} parent=1 // pred_fallthru
      _
    // Predicated region
    $region10: #{_lambda_.29} parent=1 // pred_check
      _
    $region11: #{_lambda_.29} parent=1 // pred_check_branch
      %31 = sbr.rel (0) target = $region13
    $region12: #{_lambda_.29} parent=1 // pred_region
      %s33 = ssub.s32 16, 16
      %34 = vsyncadd [#allocation5], %s33
      %s36 = sshll.u32 [#allocation4], 4
      %s37 = int_to_ptr.vmem [resolvable:$true] %s36
      %39 = dma.hbm_to_vmem [thread:$0]  %s2, 16, %s37, [#allocation5]
    $region13: #{_lambda_.29} parent=1 // pred_fallthru
      _
    // Predicated region
    $region14: #{_lambda_.29} parent=1 // pred_check
      _
    $region15: #{_lambda_.29} parent=1 // pred_check_branch
      %41 = sbr.rel (0) target = $region17
    $region16: #{_lambda_.29} parent=1 // pred_region
      _
    $region17: #{_lambda_.29} parent=1 // pred_fallthru
      _
    // Predicated region
    $region18: #{_lambda_.29} parent=1 // pred_check
      _
    $region19: #{_lambda_.29} parent=1 // pred_check_branch
      %43 = sbr.rel (0) target = $region21
    $region20: #{_lambda_.29} parent=1 // pred_region
      %s45 = ssub.s32 16, 16
      %46 = vsyncadd [#allocation5], %s45
      %s48 = sshll.u32 [#allocation6], 4
      %s49 = int_to_ptr.vmem [resolvable:$true] %s48
      %51 = dma.hbm_to_vmem [thread:$0]  %s4, 16, %s49, [#allocation5]
    $region21: #{_lambda_.29} parent=1 // pred_fallthru
      _
    // Predicated region
    $region22: #{_lambda_.29} parent=1 // pred_check
      _
    $region23: #{_lambda_.29} parent=1 // pred_check_branch
      %53 = sbr.rel (0) target = $region25
    $region24: #{_lambda_.29} parent=1 // pred_region
      _
    $region25: #{_lambda_.29} parent=1 // pred_fallthru
      _
    // Predicated region
    $region26: #{_lambda_.29} parent=1 // pred_check
      _
    $region27: #{_lambda_.29} parent=1 // pred_check_branch
      %55 = sbr.rel (0) target = $region29
    $region28: #{_lambda_.29} parent=1 // pred_region
      %s57 = ssub.s32 16, 16
      %58 = vsyncadd [#allocation8], %s57
      %s60 = sshll.u32 [#allocation7], 4
      %s61 = int_to_ptr.vmem [resolvable:$true] %s60
      %63 = dma.hbm_to_vmem [thread:$0]  %s6, 16, %s61, [#allocation8]
    $region29: #{_lambda_.29} parent=1 // pred_fallthru
      _
    // Predicated region
    $region30: #{_lambda_.29} parent=1 // pred_check
      _
    $region31: #{_lambda_.29} parent=1 // pred_check_branch
      %65 = sbr.rel (0) target = $region33
    $region32: #{_lambda_.29} parent=1 // pred_region
      %s67 = ssub.s32 16, 16
      %68 = vsyncadd [#allocation8], %s67
      %s70 = sshll.u32 [#allocation9], 4
      %s71 = int_to_ptr.vmem [resolvable:$true] %s70
      %73 = dma.hbm_to_vmem [thread:$0]  %s7, 16, %s71, [#allocation8]
    $region33: #{_lambda_.29} parent=1 // pred_fallthru
      _
    // Predicated region
    $region34: #{_lambda_.29} parent=1 // pred_check
      _
    $region35: #{_lambda_.29} parent=1 // pred_check_branch
      %75 = sbr.rel (0) target = $region37
    $region36: #{_lambda_.29} parent=1 // pred_region
      %s77 = ssub.s32 16, 16
      %78 = vsyncadd [#allocation11], %s77
      %s80 = sshll.u32 [#allocation10], 4
      %s81 = int_to_ptr.vmem [resolvable:$true] %s80
      %83 = dma.hbm_to_vmem [thread:$0]  %s8, 16, %s81, [#allocation11]
    $region37: #{_lambda_.29} parent=1 // pred_fallthru
      _
    // Predicated region
    $region38: #{_lambda_.29} parent=1 // pred_check
      _
    $region39: #{_lambda_.29} parent=1 // pred_check_branch
      %85 = sbr.rel (0) target = $region41
    $region40: #{_lambda_.29} parent=1 // pred_region
      %86 = dma.done [#allocation3], 16
    $region41: #{_lambda_.29} parent=1 // pred_fallthru
      _
    // Predicated region
    $region42: #{_lambda_.29} parent=1 // pred_check
      _
    $region43: #{_lambda_.29} parent=1 // pred_check_branch
      %88 = sbr.rel (0) target = $region45
    $region44: #{_lambda_.29} parent=1 // pred_region
      %89 = dma.done [#allocation5], 16
    $region45: #{_lambda_.29} parent=1 // pred_fallthru
      _
    // Predicated region
    $region46: #{_lambda_.29} parent=1 // pred_check
      _
    $region47: #{_lambda_.29} parent=1 // pred_check_branch
      %91 = sbr.rel (0) target = $region49
    $region48: #{_lambda_.29} parent=1 // pred_region
      %92 = dma.done [#allocation5], 16
    $region49: #{_lambda_.29} parent=1 // pred_fallthru
      _
    // Predicated region
    $region50: #{_lambda_.29} parent=1 // pred_check
      _
    $region51: #{_lambda_.29} parent=1 // pred_check_branch
      %94 = sbr.rel (0) target = $region53
    $region52: #{_lambda_.29} parent=1 // pred_region
      %95 = dma.done [#allocation8], 16
    $region53: #{_lambda_.29} parent=1 // pred_fallthru
      _
    // Predicated region
    $region54: #{_lambda_.29} parent=1 // pred_check
      _
    $region55: #{_lambda_.29} parent=1 // pred_check_branch
      %97 = sbr.rel (0) target = $region57
    $region56: #{_lambda_.29} parent=1 // pred_region
      %98 = dma.done [#allocation8], 16
    $region57: #{_lambda_.29} parent=1 // pred_fallthru
      _
    // Predicated region
    $region58: #{_lambda_.29} parent=1 // pred_check
      _
    $region59: #{_lambda_.29} parent=1 // pred_check_branch
      %100 = sbr.rel (0) target = $region61
    $region60: #{_lambda_.29} parent=1 // pred_region
      %101 = dma.done [#allocation11], 16
    $region61: #{_lambda_.29} parent=1 // pred_fallthru
      _
    %v103 = vld [vmem:[%s0] sm:$0xff]
    %v104 = vld [vmem:[%s0 + $0x8] sm:$0xff]
    %v105 = vld [vmem:[%s0 + $0x10] sm:$0xff]
    %v106 = vld [vmem:[%s0 + $0x18] sm:$0x3]
    %vm107 = vcmask 261120
    %v108 = vsel %vm107, %v103, 0.0
    %109 = vadd.xlane.f32.xlu0 %v108
    %v110 = vpop.xlane.xlu0 %109
    %v111 = vsel %vm107, %v104, 0.0
    %112 = vadd.xlane.f32.xlu0 %v111
    %v113 = vpop.xlane.xlu0 %112
    %v114 = vsel %vm107, %v105, 0.0
    %115 = vadd.xlane.f32.xlu0 %v114
    %v116 = vpop.xlane.xlu0 %115
    %vm117 = vcmask 254976
    %v118 = vsel %vm117, %v106, 0.0
    %119 = vadd.xlane.f32.xlu0 %v118
    %v120 = vpop.xlane.xlu0 %119
    %v121 = vrcp.pop 32.0
    %v122 = vmul.f32 %v110, %v121
    %v123 = vmul.f32 %v113, %v121
    %v124 = vmul.f32 %v116, %v121
    %v125 = vmul.f32 %v120, %v121
    %v126 = vsub.f32 %v103, %v122
    %v127 = vsub.f32 %v104, %v123
    %v128 = vsub.f32 %v105, %v124
    %v129 = vsub.f32 %v106, %v125
    %v130 = vmul.f32 %v126, %v126
    %v131 = vmul.f32 %v127, %v127
    %v132 = vmul.f32 %v128, %v128
    %v133 = vmul.f32 %v129, %v129
    %v134 = vsel %vm107, %v130, 0.0
    %135 = vadd.xlane.f32.xlu0 %v134
    %v136 = vpop.xlane.xlu0 %135
    %v137 = vsel %vm107, %v131, 0.0
    %138 = vadd.xlane.f32.xlu0 %v137
    %v139 = vpop.xlane.xlu0 %138
    %v140 = vsel %vm107, %v132, 0.0
    %141 = vadd.xlane.f32.xlu0 %v140
    %v142 = vpop.xlane.xlu0 %141
    %v143 = vsel %vm117, %v133, 0.0
    %144 = vadd.xlane.f32.xlu0 %v143
    %v145 = vpop.xlane.xlu0 %144
    %v146 = vmul.f32 %v136, %v121
    %v147 = vmul.f32 %v139, %v121
    %v148 = vmul.f32 %v142, %v121
    %v149 = vmul.f32 %v145, %v121
    %v150 = vadd.f32 %v146, 1e-05
    %v151 = vadd.f32 %v147, 1e-05
    %v152 = vadd.f32 %v148, 1e-05
    %v153 = vadd.f32 %v149, 1e-05
    %v154 = vrsqrt.pop %v150
    %v155 = vrsqrt.pop %v151
    %v156 = vrsqrt.pop %v152
    %v157 = vrsqrt.pop %v153
    %v158 = vmul.f32 %v126, %v154
    %v159 = vmul.f32 %v127, %v155
    %v160 = vmul.f32 %v128, %v156
    %v161 = vmul.f32 %v129, %v157
    %v162 = vld [vmem:[#allocation2] sm:$0x1]
    %v164 = vlaneseq
    %v165 = vshrl.u32 %v164, 7
    %v166 = vsub.s32 0, %v165
    %v167 = vrot.slane %v162, %v166
    %v169 = vmul.f32 %v158, %v167
    %v170 = vmul.f32 %v159, %v167
    %v171 = vmul.f32 %v160, %v167
    %v172 = vmul.f32 %v161, %v167
    %v173 = vld [vmem:[#allocation4] sm:$0x1]
    %v175 = vlaneseq
    %v176 = vshrl.u32 %v175, 7
    %v177 = vsub.s32 0, %v176
    %v178 = vrot.slane %v173, %v177
    %v180 = vadd.f32 %v169, %v178
    %v181 = vadd.f32 %v170, %v178
    %v182 = vadd.f32 %v171, %v178
    %v183 = vadd.f32 %v172, %v178
    %v184 = vpack.c.bf16 %v181, %v180
    %v185 = vpack.c.bf16 %v183, %v182
    %v186 = vld [vmem:[%s3] sm:$0xf]
    %v187 = vld [vmem:[%s3 + $0x4] sm:$0xf]
    %v188 = vld [vmem:[%s3 + $0x8] sm:$0xf]
    %v189 = vld [vmem:[%s3 + $0xc] sm:$0xf]
    %v190 = vld [vmem:[#allocation6] sm:$0x1]
    %v192 = vlaneseq
    %v193 = vshrl.u32 %v192, 7
    %v194 = vsub.s32 0, %v193
    %v195 = vrot.slane %v190, %v194
    %v201 = vunpack.c.l.b16 %v186
    %v202 = vunpack.c.l.b16 %v187
    %v203 = vunpack.c.l.b16 %v188
    %v204 = vunpack.c.l.b16 %v189
    %v205 = vpack.c.b16 %v202, %v201
    %v206 = vpack.c.b16 %v204, %v203
    %v210 = vsel %vm107, %v184, 0
    %v213 = vsel %vm107, %v185, 0
    %215 = vmatprep.subr.bf16.mxu0 0
    %216 = vmatpush1.bf16.msra.mxu0 0
    %217 = vmatprep.subr.bf16.mxu0 0
    %218 = vmatpush1.bf16.msra.mxu0 0
    %219 = vmatprep.subr.bf16.mxu0 0
    %220 = vmatpush1.bf16.msra.mxu0 0
    %221 = vmatprep.subr.bf16.mxu0 0
    %222 = vmatpush1.bf16.msra.mxu0 0
    %223 = vmatprep.subr.bf16.mxu0 0
    %224 = vmatpush1.bf16.msra.mxu0 0
    %225 = vmatprep.subr.bf16.mxu0 0
    %226 = vmatpush1.bf16.msra.mxu0 0
    %227 = vmatprep.subr.bf16.mxu0 0
    %228 = vmatpush1.bf16.msra.mxu0 %v206
    %229 = vmatprep.subr.bf16.mxu0 0
    %230 = vmatpush1.bf16.msra.mxu0 %v205
    %231 = vmatprep.subr.bf16.mxu0 0
    %232 = vmatpush2.bf16.msra.mxu0 0
    %233 = vmatprep.subr.bf16.mxu0 0
    %234 = vmatpush2.bf16.msra.mxu0 0
    %235 = vmatprep.subr.bf16.mxu0 0
    %236 = vmatpush2.bf16.msra.mxu0 0
    %237 = vmatprep.subr.bf16.mxu0 0
    %238 = vmatpush2.bf16.msra.mxu0 0
    %239 = vmatprep.subr.bf16.mxu0 0
    %240 = vmatpush2.bf16.msra.mxu0 0
    %241 = vmatprep.subr.bf16.mxu0 0
    %242 = vmatpush2.bf16.msra.mxu0 0
    %243 = vmatprep.subr.bf16.mxu0 0
    %244 = vmatpush2.bf16.msra.mxu0 0
    %245 = vmatprep.subr.bf16.mxu0 0
    %246 = vmatpush2.bf16.msra.mxu0 0
    %247 = vmatprep.mubr.bf16.mxu0 0
    %248 = vmatmul.mubr.bf16.gmra.mxu0 %v210
    %v249 = vpop.f32.mrf.mxu0
    %v250 = vadd.f32 %v195, %v249
    %v251 = vpop.f32.mrf.mxu0
    %v252 = vpop.f32.mrf.mxu0
    %v253 = vadd.f32 %v195, %v252
    %v254 = vpop.f32.mrf.mxu0
    %255 = vmatprep.mubr.bf16.mxu0 0
    %256 = vmatmul.mubr.bf16.gmra.mxu0 %v213
    %v257 = vpop.f32.mrf.mxu0
    %v258 = vadd.f32 %v195, %v257
    %v259 = vpop.f32.mrf.mxu0
    %v260 = vpop.f32.mrf.mxu0
    %v261 = vadd.f32 %v195, %v260
    %v262 = vpop.f32.mrf.mxu0
    %263 = vdwg.mxu0
    %v264 = vsub.f32 0.0, %v250
    %v265 = vsub.f32 0.0, %v253
    %v266 = vsub.f32 0.0, %v258
    %v267 = vsub.f32 0.0, %v261
    %v268 = vmul.f32 %v264, 1.442695
    %v269 = vpow.pop %v268
    %v270 = vmul.f32 %v265, 1.442695
    %v271 = vpow.pop %v270
    %v272 = vmul.f32 %v266, 1.442695
    %v273 = vpow.pop %v272
    %v274 = vmul.f32 %v267, 1.442695
    %v275 = vpow.pop %v274
    %v276 = vadd.f32 %v269, 1.0
    %v277 = vadd.f32 %v271, 1.0
    %v278 = vadd.f32 %v273, 1.0
    %v279 = vadd.f32 %v275, 1.0
    %v280 = vrcp.pop %v276
    %v281 = vmul.f32 1.0, %v280
    %v282 = vrcp.pop %v277
    %v283 = vmul.f32 1.0, %v282
    %v284 = vrcp.pop %v278
    %v285 = vmul.f32 1.0, %v284
    %v286 = vrcp.pop %v279
    %v287 = vmul.f32 1.0, %v286
    %v288 = vmul.f32 %v250, %v281
    %v289 = vmul.f32 %v253, %v283
    %v290 = vmul.f32 %v258, %v285
    %v291 = vmul.f32 %v261, %v287
    %v292 = vpack.c.bf16 %v289, %v288
    %v293 = vpack.c.bf16 %v291, %v290
    %v294 = vld [vmem:[%s5] sm:$0xf]
    %v295 = vld [vmem:[%s5 + $0x4] sm:$0xf]
    %v296 = vld [vmem:[%s5 + $0x8] sm:$0xf]
    %v297 = vld [vmem:[%s5 + $0xc] sm:$0xf]
    %v298 = vld [vmem:[%s5 + $0x10] sm:$0xf]
    %v299 = vld [vmem:[%s5 + $0x14] sm:$0xf]
    %v300 = vld [vmem:[%s5 + $0x18] sm:$0xf]
    %v301 = vld [vmem:[%s5 + $0x1c] sm:$0xf]
    %v302 = vld [vmem:[#allocation7] sm:$0x1]
    %v304 = vlaneseq
    %v305 = vshrl.u32 %v304, 7
    %v306 = vsub.s32 0, %v305
    %v307 = vrot.slane %v302, %v306
    %v317 = vunpack.c.l.b16 %v294
    %v318 = vunpack.c.l.b16 %v295
    %v319 = vunpack.c.l.b16 %v296
    %v320 = vunpack.c.l.b16 %v297
    %v321 = vunpack.c.l.b16 %v298
    %v322 = vunpack.c.l.b16 %v299
    %v323 = vunpack.c.l.b16 %v300
    %v324 = vunpack.c.l.b16 %v301
    %v325 = vpack.c.b16 %v318, %v317
    %v326 = vpack.c.b16 %v320, %v319
    %v327 = vpack.c.b16 %v322, %v321
    %v328 = vpack.c.b16 %v324, %v323
    %vm333 = vcmask 523264
    %v335 = vsel %vm333, %v292, 0
    %v338 = vsel %vm333, %v293, 0
    %340 = vmatprep.subr.bf16.mxu0 0
    %341 = vmatpush1.bf16.msra.mxu0 0
    %342 = vmatprep.subr.bf16.mxu0 0
    %343 = vmatpush1.bf16.msra.mxu0 0
    %344 = vmatprep.subr.bf16.mxu0 0
    %345 = vmatpush1.bf16.msra.mxu0 0
    %346 = vmatprep.subr.bf16.mxu0 0
    %347 = vmatpush1.bf16.msra.mxu0 0
    %348 = vmatprep.subr.bf16.mxu0 0
    %349 = vmatpush1.bf16.msra.mxu0 %v328
    %350 = vmatprep.subr.bf16.mxu0 0
    %351 = vmatpush1.bf16.msra.mxu0 %v327
    %352 = vmatprep.subr.bf16.mxu0 0
    %353 = vmatpush1.bf16.msra.mxu0 %v326
    %354 = vmatprep.subr.bf16.mxu0 0
    %355 = vmatpush1.bf16.msra.mxu0 %v325
    %356 = vmatprep.subr.bf16.mxu0 0
    %357 = vmatpush2.bf16.msra.mxu0 0
    %358 = vmatprep.subr.bf16.mxu0 0
    %359 = vmatpush2.bf16.msra.mxu0 0
    %360 = vmatprep.subr.bf16.mxu0 0
    %361 = vmatpush2.bf16.msra.mxu0 0
    %362 = vmatprep.subr.bf16.mxu0 0
    %363 = vmatpush2.bf16.msra.mxu0 0
    %364 = vmatprep.subr.bf16.mxu0 0
    %365 = vmatpush2.bf16.msra.mxu0 0
    %366 = vmatprep.subr.bf16.mxu0 0
    %367 = vmatpush2.bf16.msra.mxu0 0
    %368 = vmatprep.subr.bf16.mxu0 0
    %369 = vmatpush2.bf16.msra.mxu0 0
    %370 = vmatprep.subr.bf16.mxu0 0
    %371 = vmatpush2.bf16.msra.mxu0 0
    %372 = vmatprep.mubr.bf16.mxu0 0
    %373 = vmatmul.mubr.bf16.gmra.mxu0 %v335
    %v374 = vpop.f32.mrf.mxu0
    %v375 = vadd.f32 %v307, %v374
    %v376 = vpop.f32.mrf.mxu0
    %v377 = vpop.f32.mrf.mxu0
    %v378 = vadd.f32 %v307, %v377
    %v379 = vpop.f32.mrf.mxu0
    %380 = vmatprep.mubr.bf16.mxu0 0
    %381 = vmatmul.mubr.bf16.gmra.mxu0 %v338
    %v382 = vpop.f32.mrf.mxu0
    %v383 = vadd.f32 %v307, %v382
    %v384 = vpop.f32.mrf.mxu0
    %v385 = vpop.f32.mrf.mxu0
    %v386 = vadd.f32 %v307, %v385
    %v387 = vpop.f32.mrf.mxu0
    %388 = vdwg.mxu0
    %v389 = vmul.f32 %v375, 0.5
    %v390 = vmul.f32 %v378, 0.5
    %v391 = vmul.f32 %v383, 0.5
    %v392 = vmul.f32 %v386, 0.5
    %v393 = vadd.f32 %v103, %v389
    %v394 = vadd.f32 %v104, %v390
    %v395 = vadd.f32 %v105, %v391
    %v396 = vadd.f32 %v106, %v392
    %v397 = vsel %vm107, %v393, 0.0
    %398 = vadd.xlane.f32.xlu0 %v397
    %v399 = vpop.xlane.xlu0 %398
    %v400 = vsel %vm107, %v394, 0.0
    %401 = vadd.xlane.f32.xlu0 %v400
    %v402 = vpop.xlane.xlu0 %401
    %v403 = vsel %vm107, %v395, 0.0
    %404 = vadd.xlane.f32.xlu0 %v403
    %v405 = vpop.xlane.xlu0 %404
    %v406 = vsel %vm117, %v396, 0.0
    %407 = vadd.xlane.f32.xlu0 %v406
    %v408 = vpop.xlane.xlu0 %407
    %v409 = vmul.f32 %v399, %v121
    %v410 = vmul.f32 %v402, %v121
    %v411 = vmul.f32 %v405, %v121
    %v412 = vmul.f32 %v408, %v121
    %v413 = vsub.f32 %v393, %v409
    %v414 = vsub.f32 %v394, %v410
    %v415 = vsub.f32 %v395, %v411
    %v416 = vsub.f32 %v396, %v412
    %v417 = vmul.f32 %v413, %v413
    %v418 = vmul.f32 %v414, %v414
    %v419 = vmul.f32 %v415, %v415
    %v420 = vmul.f32 %v416, %v416
    %v421 = vsel %vm107, %v417, 0.0
    %422 = vadd.xlane.f32.xlu0 %v421
    %v423 = vpop.xlane.xlu0 %422
    %v424 = vsel %vm107, %v418, 0.0
    %425 = vadd.xlane.f32.xlu0 %v424
    %v426 = vpop.xlane.xlu0 %425
    %v427 = vsel %vm107, %v419, 0.0
    %428 = vadd.xlane.f32.xlu0 %v427
    %v429 = vpop.xlane.xlu0 %428
    %v430 = vsel %vm117, %v420, 0.0
    %431 = vadd.xlane.f32.xlu0 %v430
    %v432 = vpop.xlane.xlu0 %431
    %v433 = vmul.f32 %v423, %v121
    %v434 = vmul.f32 %v426, %v121
    %v435 = vmul.f32 %v429, %v121
    %v436 = vmul.f32 %v432, %v121
    %v437 = vadd.f32 %v433, 1e-05
    %v438 = vadd.f32 %v434, 1e-05
    %v439 = vadd.f32 %v435, 1e-05
    %v440 = vadd.f32 %v436, 1e-05
    %v441 = vrsqrt.pop %v437
    %v442 = vrsqrt.pop %v438
    %v443 = vrsqrt.pop %v439
    %v444 = vrsqrt.pop %v440
    %v445 = vmul.f32 %v413, %v441
    %v446 = vmul.f32 %v414, %v442
    %v447 = vmul.f32 %v415, %v443
    %v448 = vmul.f32 %v416, %v444
    %v449 = vld [vmem:[#allocation9] sm:$0x1]
    %v451 = vlaneseq
    %v452 = vshrl.u32 %v451, 7
    %v453 = vsub.s32 0, %v452
    %v454 = vrot.slane %v449, %v453
    %v456 = vmul.f32 %v445, %v454
    %v457 = vmul.f32 %v446, %v454
    %v458 = vmul.f32 %v447, %v454
    %v459 = vmul.f32 %v448, %v454
    %v460 = vld [vmem:[#allocation10] sm:$0x1]
    %v462 = vlaneseq
    %v463 = vshrl.u32 %v462, 7
    %v464 = vsub.s32 0, %v463
    %v465 = vrot.slane %v460, %v464
    %v467 = vadd.f32 %v456, %v465
    %v468 = vadd.f32 %v457, %v465
    %v469 = vadd.f32 %v458, %v465
    %v470 = vadd.f32 %v459, %v465
    %471 = vst.msk [vmem:[%s9] sm:$0xff] %vm107, %v467
    %472 = vst.msk [vmem:[%s9 + $0x8] sm:$0xff] %vm107, %v468
    %473 = vst.msk [vmem:[%s9 + $0x10] sm:$0xff] %vm107, %v469
    %474 = vst.msk [vmem:[%s9 + $0x18] sm:$0x3] %vm117, %v470
    // Predicated region
    $region62: #{_lambda_.29} parent=1 // pred_check
      _
    $region63: #{_lambda_.29} parent=1 // pred_check_branch
      %476 = sbr.rel (0) target = $region65
    $region64: #{_lambda_.29} parent=1 // pred_region
      _
    $region65: #{_lambda_.29} parent=1 // pred_fallthru
      _
    // Predicated region
    $region66: #{_lambda_.29} parent=1 // pred_check
      _
    $region67: #{_lambda_.29} parent=1 // pred_check_branch
      %478 = sbr.rel (0) target = $region69
    $region68: #{_lambda_.29} parent=1 // pred_region
      _
    $region69: #{_lambda_.29} parent=1 // pred_fallthru
      _
    %479 = vsyncpa [#allocation3], 1
    %480 = vsyncpa [#allocation5], 1
    %481 = vsyncpa [#allocation8], 1
    %482 = vsyncpa [#allocation11], 1

// kernel: _lambda_.37
$region0: #{_lambda_.37}
  #allocation0 [shape = 'u32[]', space=smem, size = 0x4, offset = 0x4, fixed_abs, tag = 'smem constant byte address 0x4 - core index']
  #allocation1 [shape = 'u32[144,128]{1,0:T(1,128)}', space=vmem, size = 0x12000, scoped, tag = 'internal scratch']
  %s0 = inlined_call_operand.vmem [shape: f32[26,32], index: 0, kind: input, shape index: {}]
  %s1 = inlined_call_operand.vmem [shape: f32[1,32], index: 1, kind: input, shape index: {}]
  %s2 = inlined_call_operand.vmem [shape: f32[1,32], index: 2, kind: input, shape index: {}]
  %s3 = inlined_call_operand.vmem [shape: f32[26,32], index: 3, kind: output, shape index: {}]
  %s4 = sld [smem:[#allocation0]]
  $region22: #{_lambda_.37} parent=0
    _
  %s6 = ssub.s32 1, %s4
  %s7 = scalar_select 0, %s6, %s4
  // Predicated region
  $region2: #{_lambda_.37} parent=0 // pred_check
    _
  $region3: #{_lambda_.37} parent=0 // pred_check_branch
    %9 = sbr.rel (0) target = $region5
  $region4: #{_lambda_.37} parent=0 // pred_region
    _
  $region5: #{_lambda_.37} parent=0 // pred_fallthru
    _
  // Predicated region
  $region6: #{_lambda_.37} parent=0 // pred_check
    _
  $region7: #{_lambda_.37} parent=0 // pred_check_branch
    %11 = sbr.rel (0) target = $region9
  $region8: #{_lambda_.37} parent=0 // pred_region
    _
  $region9: #{_lambda_.37} parent=0 // pred_fallthru
    _
  // Predicated region
  $region10: #{_lambda_.37} parent=0 // pred_check
    _
  $region11: #{_lambda_.37} parent=0 // pred_check_branch
    %13 = sbr.rel (0) target = $region13
  $region12: #{_lambda_.37} parent=0 // pred_region
    _
  $region13: #{_lambda_.37} parent=0 // pred_fallthru
    _
  %v14 = vld [vmem:[%s0] sm:$0xff]
  %v15 = vld [vmem:[%s0 + $0x8] sm:$0xff]
  %v16 = vld [vmem:[%s0 + $0x10] sm:$0xff]
  %v17 = vld [vmem:[%s0 + $0x18] sm:$0x3]
  %vm18 = vcmask 261120
  %v19 = vsel %vm18, %v14, 0.0
  %20 = vadd.xlane.f32.xlu0 %v19
  %v21 = vpop.xlane.xlu0 %20
  %v22 = vsel %vm18, %v15, 0.0
  %23 = vadd.xlane.f32.xlu0 %v22
  %v24 = vpop.xlane.xlu0 %23
  %v25 = vsel %vm18, %v16, 0.0
  %26 = vadd.xlane.f32.xlu0 %v25
  %v27 = vpop.xlane.xlu0 %26
  %vm28 = vcmask 254976
  %v29 = vsel %vm28, %v17, 0.0
  %30 = vadd.xlane.f32.xlu0 %v29
  %v31 = vpop.xlane.xlu0 %30
  %v32 = vrcp.pop 32.0
  %v33 = vmul.f32 %v21, %v32
  %v34 = vmul.f32 %v24, %v32
  %v35 = vmul.f32 %v27, %v32
  %v36 = vmul.f32 %v31, %v32
  %v37 = vsub.f32 %v14, %v33
  %v38 = vsub.f32 %v15, %v34
  %v39 = vsub.f32 %v16, %v35
  %v40 = vsub.f32 %v17, %v36
  %v41 = vmul.f32 %v37, %v37
  %v42 = vmul.f32 %v38, %v38
  %v43 = vmul.f32 %v39, %v39
  %v44 = vmul.f32 %v40, %v40
  %v45 = vsel %vm18, %v41, 0.0
  %46 = vadd.xlane.f32.xlu0 %v45
  %v47 = vpop.xlane.xlu0 %46
  %v48 = vsel %vm18, %v42, 0.0
  %49 = vadd.xlane.f32.xlu0 %v48
  %v50 = vpop.xlane.xlu0 %49
  %v51 = vsel %vm18, %v43, 0.0
  %52 = vadd.xlane.f32.xlu0 %v51
  %v53 = vpop.xlane.xlu0 %52
  %v54 = vsel %vm28, %v44, 0.0
  %55 = vadd.xlane.f32.xlu0 %v54
  %v56 = vpop.xlane.xlu0 %55
  %v57 = vmul.f32 %v47, %v32
  %v58 = vmul.f32 %v50, %v32
  %v59 = vmul.f32 %v53, %v32
  %v60 = vmul.f32 %v56, %v32
  %v61 = vadd.f32 %v57, 1e-05
  %v62 = vadd.f32 %v58, 1e-05
  %v63 = vadd.f32 %v59, 1e-05
  %v64 = vadd.f32 %v60, 1e-05
  %v65 = vrsqrt.pop %v61
  %v66 = vrsqrt.pop %v62
  %v67 = vrsqrt.pop %v63
  %v68 = vrsqrt.pop %v64
  %v69 = vmul.f32 %v37, %v65
  %v70 = vmul.f32 %v38, %v66
  %v71 = vmul.f32 %v39, %v67
  %v72 = vmul.f32 %v40, %v68
  %v73 = vld [vmem:[%s1] sm:$0x1]
  %v75 = vlaneseq
  %v76 = vshrl.u32 %v75, 7
  %v77 = vsub.s32 0, %v76
  %v78 = vrot.slane %v73, %v77
  %v80 = vmul.f32 %v69, %v78
  %v81 = vmul.f32 %v70, %v78
  %v82 = vmul.f32 %v71, %v78
  %v83 = vmul.f32 %v72, %v78
  %v84 = vld [vmem:[%s2] sm:$0x1]
  %v86 = vlaneseq
  %v87 = vshrl.u32 %v86, 7
  %v88 = vsub.s32 0, %v87
  %v89 = vrot.slane %v84, %v88
  %v91 = vadd.f32 %v80, %v89
  %v92 = vadd.f32 %v81, %v89
  %v93 = vadd.f32 %v82, %v89
  %v94 = vadd.f32 %v83, %v89
  %95 = vst.msk [vmem:[%s3] sm:$0xff] %vm18, %v91
  %96 = vst.msk [vmem:[%s3 + $0x8] sm:$0xff] %vm18, %v92
  %97 = vst.msk [vmem:[%s3 + $0x10] sm:$0xff] %vm18, %v93
  %98 = vst.msk [vmem:[%s3 + $0x18] sm:$0x3] %vm28, %v94
  // Predicated region
  $region14: #{_lambda_.37} parent=0 // pred_check
    _
  $region15: #{_lambda_.37} parent=0 // pred_check_branch
    %100 = sbr.rel (0) target = $region17
  $region16: #{_lambda_.37} parent=0 // pred_region
    _
  $region17: #{_lambda_.37} parent=0 // pred_fallthru
    _
  // Predicated region
  $region18: #{_lambda_.37} parent=0 // pred_check
    _
  $region19: #{_lambda_.37} parent=0 // pred_check_branch
    %102 = sbr.rel (0) target = $region21
  $region20: #{_lambda_.37} parent=0 // pred_region
    _
  $region21: #{_lambda_.37} parent=0 // pred_fallthru
    _

// kernel: _lambda_.34
$region0: #{_lambda_.34}
  #allocation0 [shape = 'u32[]', space=smem, size = 0x4, offset = 0x4, fixed_abs, tag = 'smem constant byte address 0x4 - core index']
  #allocation1 [shape = 'u32[144,128]{1,0:T(1,128)}', space=vmem, size = 0x12000, scoped, tag = 'internal scratch']
  %s0 = inlined_call_operand.vmem [shape: f32[26,32], index: 0, kind: input, shape index: {}]
  %s1 = inlined_call_operand.vmem [shape: f32[1,32], index: 1, kind: input, shape index: {}]
  %s2 = inlined_call_operand.vmem [shape: f32[1,32], index: 2, kind: input, shape index: {}]
  %s3 = inlined_call_operand.vmem [shape: bf16[32,64], index: 3, kind: input, shape index: {}]
  %s4 = inlined_call_operand.vmem [shape: f32[1,64], index: 4, kind: input, shape index: {}]
  %s5 = inlined_call_operand.vmem [shape: bf16[26,32], index: 5, kind: output, shape index: {}]
  %s6 = sld [smem:[#allocation0]]
  $region30: #{_lambda_.34} parent=0
    _
  %s8 = ssub.s32 1, %s6
  %s9 = scalar_select 0, %s8, %s6
  // Predicated region
  $region2: #{_lambda_.34} parent=0 // pred_check
    _
  $region3: #{_lambda_.34} parent=0 // pred_check_branch
    %11 = sbr.rel (0) target = $region5
  $region4: #{_lambda_.34} parent=0 // pred_region
    _
  $region5: #{_lambda_.34} parent=0 // pred_fallthru
    _
  // Predicated region
  $region6: #{_lambda_.34} parent=0 // pred_check
    _
  $region7: #{_lambda_.34} parent=0 // pred_check_branch
    %13 = sbr.rel (0) target = $region9
  $region8: #{_lambda_.34} parent=0 // pred_region
    _
  $region9: #{_lambda_.34} parent=0 // pred_fallthru
    _
  // Predicated region
  $region10: #{_lambda_.34} parent=0 // pred_check
    _
  $region11: #{_lambda_.34} parent=0 // pred_check_branch
    %15 = sbr.rel (0) target = $region13
  $region12: #{_lambda_.34} parent=0 // pred_region
    _
  $region13: #{_lambda_.34} parent=0 // pred_fallthru
    _
  // Predicated region
  $region14: #{_lambda_.34} parent=0 // pred_check
    _
  $region15: #{_lambda_.34} parent=0 // pred_check_branch
    %17 = sbr.rel (0) target = $region17
  $region16: #{_lambda_.34} parent=0 // pred_region
    _
  $region17: #{_lambda_.34} parent=0 // pred_fallthru
    _
  // Predicated region
  $region18: #{_lambda_.34} parent=0 // pred_check
    _
  $region19: #{_lambda_.34} parent=0 // pred_check_branch
    %19 = sbr.rel (0) target = $region21
  $region20: #{_lambda_.34} parent=0 // pred_region
    _
  $region21: #{_lambda_.34} parent=0 // pred_fallthru
    _
  %v21 = vld [vmem:[%s0] sm:$0xff]
  %v22 = vld [vmem:[%s0 + $0x8] sm:$0xff]
  %v23 = vld [vmem:[%s0 + $0x10] sm:$0xff]
  %v24 = vld [vmem:[%s0 + $0x18] sm:$0x3]
  %vm25 = vcmask 261120
  %v26 = vsel %vm25, %v21, 0.0
  %27 = vadd.xlane.f32.xlu0 %v26
  %v28 = vpop.xlane.xlu0 %27
  %v29 = vsel %vm25, %v22, 0.0
  %30 = vadd.xlane.f32.xlu0 %v29
  %v31 = vpop.xlane.xlu0 %30
  %v32 = vsel %vm25, %v23, 0.0
  %33 = vadd.xlane.f32.xlu0 %v32
  %v34 = vpop.xlane.xlu0 %33
  %vm35 = vcmask 254976
  %v36 = vsel %vm35, %v24, 0.0
  %37 = vadd.xlane.f32.xlu0 %v36
  %v38 = vpop.xlane.xlu0 %37
  %v39 = vrcp.pop 32.0
  %v40 = vmul.f32 %v28, %v39
  %v41 = vmul.f32 %v31, %v39
  %v42 = vmul.f32 %v34, %v39
  %v43 = vmul.f32 %v38, %v39
  %v44 = vsub.f32 %v21, %v40
  %v45 = vsub.f32 %v22, %v41
  %v46 = vsub.f32 %v23, %v42
  %v47 = vsub.f32 %v24, %v43
  %v48 = vmul.f32 %v44, %v44
  %v49 = vmul.f32 %v45, %v45
  %v50 = vmul.f32 %v46, %v46
  %v51 = vmul.f32 %v47, %v47
  %v52 = vsel %vm25, %v48, 0.0
  %53 = vadd.xlane.f32.xlu0 %v52
  %v54 = vpop.xlane.xlu0 %53
  %v55 = vsel %vm25, %v49, 0.0
  %56 = vadd.xlane.f32.xlu0 %v55
  %v57 = vpop.xlane.xlu0 %56
  %v58 = vsel %vm25, %v50, 0.0
  %59 = vadd.xlane.f32.xlu0 %v58
  %v60 = vpop.xlane.xlu0 %59
  %v61 = vsel %vm35, %v51, 0.0
  %62 = vadd.xlane.f32.xlu0 %v61
  %v63 = vpop.xlane.xlu0 %62
  %v64 = vmul.f32 %v54, %v39
  %v65 = vmul.f32 %v57, %v39
  %v66 = vmul.f32 %v60, %v39
  %v67 = vmul.f32 %v63, %v39
  %v68 = vadd.f32 %v64, 1e-05
  %v69 = vadd.f32 %v65, 1e-05
  %v70 = vadd.f32 %v66, 1e-05
  %v71 = vadd.f32 %v67, 1e-05
  %v72 = vrsqrt.pop %v68
  %v73 = vrsqrt.pop %v69
  %v74 = vrsqrt.pop %v70
  %v75 = vrsqrt.pop %v71
  %v76 = vmul.f32 %v44, %v72
  %v77 = vmul.f32 %v45, %v73
  %v78 = vmul.f32 %v46, %v74
  %v79 = vmul.f32 %v47, %v75
  %v80 = vld [vmem:[%s1] sm:$0x1]
  %v82 = vlaneseq
  %v83 = vshrl.u32 %v82, 7
  %v84 = vsub.s32 0, %v83
  %v85 = vrot.slane %v80, %v84
  %v87 = vmul.f32 %v76, %v85
  %v88 = vmul.f32 %v77, %v85
  %v89 = vmul.f32 %v78, %v85
  %v90 = vmul.f32 %v79, %v85
  %v91 = vld [vmem:[%s2] sm:$0x1]
  %v93 = vlaneseq
  %v94 = vshrl.u32 %v93, 7
  %v95 = vsub.s32 0, %v94
  %v96 = vrot.slane %v91, %v95
  %v98 = vadd.f32 %v87, %v96
  %v99 = vadd.f32 %v88, %v96
  %v100 = vadd.f32 %v89, %v96
  %v101 = vadd.f32 %v90, %v96
  %v102 = vpack.c.bf16 %v99, %v98
  %v103 = vpack.c.bf16 %v101, %v100
  %v104 = vld [vmem:[%s3] sm:$0xf]
  %v105 = vld [vmem:[%s3 + $0x4] sm:$0xf]
  %v106 = vld [vmem:[%s3 + $0x8] sm:$0xf]
  %v107 = vld [vmem:[%s3 + $0xc] sm:$0xf]
  %v108 = vld [vmem:[%s4] sm:$0x1]
  %v110 = vlaneseq
  %v111 = vshrl.u32 %v110, 7
  %v112 = vsub.s32 0, %v111
  %v113 = vrot.slane %v108, %v112
  %v119 = vunpack.c.l.b16 %v104
  %v120 = vunpack.c.l.b16 %v105
  %v121 = vunpack.c.l.b16 %v106
  %v122 = vunpack.c.l.b16 %v107
  %v123 = vpack.c.b16 %v120, %v119
  %v124 = vpack.c.b16 %v122, %v121
  %v128 = vsel %vm25, %v102, 0
  %v131 = vsel %vm25, %v103, 0
  %133 = vmatprep.subr.bf16.mxu0 0
  %134 = vmatpush1.bf16.msra.mxu0 0
  %135 = vmatprep.subr.bf16.mxu0 0
  %136 = vmatpush1.bf16.msra.mxu0 0
  %137 = vmatprep.subr.bf16.mxu0 0
  %138 = vmatpush1.bf16.msra.mxu0 0
  %139 = vmatprep.subr.bf16.mxu0 0
  %140 = vmatpush1.bf16.msra.mxu0 0
  %141 = vmatprep.subr.bf16.mxu0 0
  %142 = vmatpush1.bf16.msra.mxu0 0
  %143 = vmatprep.subr.bf16.mxu0 0
  %144 = vmatpush1.bf16.msra.mxu0 0
  %145 = vmatprep.subr.bf16.mxu0 0
  %146 = vmatpush1.bf16.msra.mxu0 %v124
  %147 = vmatprep.subr.bf16.mxu0 0
  %148 = vmatpush1.bf16.msra.mxu0 %v123
  %149 = vmatprep.subr.bf16.mxu0 0
  %150 = vmatpush2.bf16.msra.mxu0 0
  %151 = vmatprep.subr.bf16.mxu0 0
  %152 = vmatpush2.bf16.msra.mxu0 0
  %153 = vmatprep.subr.bf16.mxu0 0
  %154 = vmatpush2.bf16.msra.mxu0 0
  %155 = vmatprep.subr.bf16.mxu0 0
  %156 = vmatpush2.bf16.msra.mxu0 0
  %157 = vmatprep.subr.bf16.mxu0 0
  %158 = vmatpush2.bf16.msra.mxu0 0
  %159 = vmatprep.subr.bf16.mxu0 0
  %160 = vmatpush2.bf16.msra.mxu0 0
  %161 = vmatprep.subr.bf16.mxu0 0
  %162 = vmatpush2.bf16.msra.mxu0 0
  %163 = vmatprep.subr.bf16.mxu0 0
  %164 = vmatpush2.bf16.msra.mxu0 0
  %165 = vmatprep.mubr.bf16.mxu0 0
  %166 = vmatmul.mubr.bf16.gmra.mxu0 %v128
  %v167 = vpop.f32.mrf.mxu0
  %v168 = vadd.f32 %v113, %v167
  %v169 = vpop.f32.mrf.mxu0
  %v170 = vpop.f32.mrf.mxu0
  %v171 = vadd.f32 %v113, %v170
  %v172 = vpop.f32.mrf.mxu0
  %173 = vmatprep.mubr.bf16.mxu0 0
  %174 = vmatmul.mubr.bf16.gmra.mxu0 %v131
  %v175 = vpop.f32.mrf.mxu0
  %v176 = vadd.f32 %v113, %v175
  %v177 = vpop.f32.mrf.mxu0
  %v178 = vpop.f32.mrf.mxu0
  %v179 = vadd.f32 %v113, %v178
  %v180 = vpop.f32.mrf.mxu0
  %181 = vdwg.mxu0
  %v182 = vsub.f32 0.0, %v168
  %v183 = vsub.f32 0.0, %v171
  %v184 = vsub.f32 0.0, %v176
  %v185 = vsub.f32 0.0, %v179
  %v186 = vmul.f32 %v182, 1.442695
  %v187 = vpow.pop %v186
  %v188 = vmul.f32 %v183, 1.442695
  %v189 = vpow.pop %v188
  %v190 = vmul.f32 %v184, 1.442695
  %v191 = vpow.pop %v190
  %v192 = vmul.f32 %v185, 1.442695
  %v193 = vpow.pop %v192
  %v194 = vadd.f32 %v187, 1.0
  %v195 = vadd.f32 %v189, 1.0
  %v196 = vadd.f32 %v191, 1.0
  %v197 = vadd.f32 %v193, 1.0
  %v198 = vrcp.pop %v194
  %v199 = vmul.f32 1.0, %v198
  %v200 = vrcp.pop %v195
  %v201 = vmul.f32 1.0, %v200
  %v202 = vrcp.pop %v196
  %v203 = vmul.f32 1.0, %v202
  %v204 = vrcp.pop %v197
  %v205 = vmul.f32 1.0, %v204
  %210 = vrot.lane.b32.xlu0 %v199, 96
  %v211 = vpop.permute.xlu0 %210
  %212 = vrot.lane.b32.xlu0 %v201, 96
  %v213 = vpop.permute.xlu0 %212
  %214 = vrot.lane.b32.xlu0 %v203, 96
  %v215 = vpop.permute.xlu0 %214
  %216 = vrot.lane.b32.xlu0 %v205, 96
  %v217 = vpop.permute.xlu0 %216
  %v222 = vmul.f32 %v168, %v211
  %v223 = vmul.f32 %v171, %v213
  %v224 = vmul.f32 %v176, %v215
  %v225 = vmul.f32 %v179, %v217
  %v226 = vpack.c.bf16 %v223, %v222
  %v227 = vpack.c.bf16 %v225, %v224
  %v230 = vunpack.c.l.b16 %v226
  %v231 = vunpack.c.h.b16 %v226
  %v232 = vunpack.c.l.b16 %v227
  %v233 = vunpack.c.h.b16 %v227
  %v234 = vpack.c.b16 %v230, %v230
  %v235 = vpack.c.b16 %v231, %v231
  %v236 = vpack.c.b16 %v232, %v232
  %v237 = vpack.c.b16 %v233, %v233
  %vm242 = vcmask 257024
  %243 = vst.msk [vmem:[%s5] sm:$0xf] %vm242, %v234
  %244 = vst.msk [vmem:[%s5 + $0x4] sm:$0xf] %vm242, %v235
  %245 = vst.msk [vmem:[%s5 + $0x8] sm:$0xf] %vm242, %v236
  %vm246 = vcmask 253952
  %247 = vst.msk [vmem:[%s5 + $0xc] sm:$0x1] %vm246, %v237
  // Predicated region
  $region22: #{_lambda_.34} parent=0 // pred_check
    _
  $region23: #{_lambda_.34} parent=0 // pred_check_branch
    %249 = sbr.rel (0) target = $region25
  $region24: #{_lambda_.34} parent=0 // pred_region
    _
  $region25: #{_lambda_.34} parent=0 // pred_fallthru
    _
  // Predicated region
  $region26: #{_lambda_.34} parent=0 // pred_check
    _
  $region27: #{_lambda_.34} parent=0 // pred_check_branch
    %251 = sbr.rel (0) target = $region29
  $region28: #{_lambda_.34} parent=0 // pred_region
    _
  $region29: #{_lambda_.34} parent=0 // pred_fallthru
    _

// kernel: _lambda_.38
$region0: #{_lambda_.38}
  #allocation0 [shape = 'u32[]', space=smem, size = 0x4, offset = 0x4, fixed_abs, tag = 'smem constant byte address 0x4 - core index']
  #allocation1 [shape = 'u32[144,128]{1,0:T(1,128)}', space=vmem, size = 0x12000, scoped, tag = 'internal scratch']
  %s0 = inlined_call_operand.vmem [shape: f32[2,13,32], index: 0, kind: input, shape index: {}]
  %s1 = inlined_call_operand.vmem [shape: bf16[32,16], index: 1, kind: input, shape index: {}]
  %s2 = inlined_call_operand.vmem [shape: bf16[32,16], index: 2, kind: input, shape index: {}]
  %s3 = inlined_call_operand.vmem [shape: bf16[32,16], index: 3, kind: input, shape index: {}]
  %s4 = inlined_call_operand.vmem [shape: f32[1,16], index: 4, kind: input, shape index: {}]
  %s5 = inlined_call_operand.vmem [shape: f32[1,16], index: 5, kind: input, shape index: {}]
  %s6 = inlined_call_operand.vmem [shape: f32[1,16], index: 6, kind: input, shape index: {}]
  %s7 = inlined_call_operand.vmem [shape: bf16[16,32], index: 7, kind: input, shape index: {}]
  %s8 = inlined_call_operand.vmem [shape: f32[1,32], index: 8, kind: input, shape index: {}]
  %s9 = inlined_call_operand.vmem [shape: f32[2,1,32], index: 9, kind: output, shape index: {0}]
  %s10 = inlined_call_operand.vmem [shape: f32[2,1,32], index: 10, kind: output, shape index: {1}]
  %11 = xla_tuple %s9, %s10
  %s12 = sld [smem:[#allocation0]]
  $region77: #{_lambda_.38} parent=0
    _
  %s14 = ssub.s32 1, %s12
  %s15 = scalar_select 0, %s14, %s12
  loop: start=0, step=1, limit=4
  $region2: #{_lambda_.38} parent=0 // loop_pre_header
    _
  $region3: #{_lambda_.38} parent=0 // loop_header
    %s17 = sphi 0, %s21
    %p18 = scmp.ge.s32.totalorder %s17, 4
    %s27 = sphi 0, %s29
    %s30 = sphi 0, %s27
    %s31 = sphi 0, %s30
    %s47 = sphi 0, %s31
    %s51 = sphi 0, %s51
    %s53 = sphi 0, %s51
    %s54 = sphi 0, %s53
    %s68 = sphi 0, %s54
    %s72 = sphi 0, %s72
    %s74 = sphi 0, %s72
    %s75 = sphi 0, %s74
    %s89 = sphi 0, %s75
    %s93 = sphi 0, %s93
    %s95 = sphi 0, %s93
    %s96 = sphi 0, %s95
    %s110 = sphi 0, %s96
    %s114 = sphi 0, %s114
    %s116 = sphi 0, %s114
    %s117 = sphi 0, %s116
    %s131 = sphi 0, %s117
    %s135 = sphi 0, %s135
    %s137 = sphi 0, %s135
    %s138 = sphi 0, %s137
    %s152 = sphi 0, %s138
    %s156 = sphi 0, %s156
    %s158 = sphi 0, %s156
    %s159 = sphi 0, %s158
    %s173 = sphi 0, %s159
    %s177 = sphi 0, %s177
    %s179 = sphi 0, %s177
    %s180 = sphi 0, %s179
    %s194 = sphi 0, %s180
    %s198 = sphi 0, %s198
    %s200 = sphi 0, %s198
    %s201 = sphi 0, %s200
    %s215 = sphi 0, %s201
    %s221 = sphi 0, %s223
    %s224 = sphi 0, %s221
    %s225 = sphi 0, %s224
    %s241 = sphi 0, %s225
    %s247 = sphi 0, %s249
    %s250 = sphi 0, %s247
    %s251 = sphi 0, %s250
    %s267 = sphi 0, %s251
  $region4: #{_lambda_.38} parent=0 // loop_header_branch
    %20 = sbr.rel (%p18) target = $region8
  $region5: #{_lambda_.38} parent=0 // loop_body
    %s22 = ssub.s32 %s17, 1
    %s23 = ssub.s32 %s17, 2
    %s24 = sadd.s32 %s17, 1
    %s25 = ssub.s32 %s17, %s24
    %p26 = scmp.eq.s32.totalorder %s25, 0
    %s28 = sadd.s32 %s27, 1
    %s29 = scalar_select %p26, %s27, %s28
    %p32 = pneg %p26
    %p33 = scmp.eq.s32.totalorder %s17, 1
    %p34 = por %p32, %p33
    %p35 = scmp.ne.s32.totalorder %s27, %s30
    %p36 = scmp.eq.s32.totalorder %s17, 0
    %p37 = por %p35, %p36
    %p38 = scmp.ne.s32.totalorder %s27, %s30
    %p39 = scmp.eq.s32.totalorder %s22, 1
    %p40 = por %p38, %p39
    %p41 = scmp.ne.s32.totalorder %s30, %s31
    %p42 = scmp.eq.s32.totalorder %s22, 0
    %p43 = por %p41, %p42
    %p44 = scmp.ne.s32.totalorder %s30, %s31
    %p45 = scmp.eq.s32.totalorder %s23, 1
    %p46 = por %p44, %p45
    %p48 = scmp.ne.s32.totalorder %s31, %s47
    %p49 = scmp.eq.s32.totalorder %s23, 0
    %p50 = por %p48, %p49
    %s52 = sadd.s32 %s51, 1
    %p55 = scmp.eq.s32.totalorder %s17, 1
    %p56 = scmp.ne.s32.totalorder %s51, %s53
    %p57 = scmp.eq.s32.totalorder %s17, 0
    %p58 = por %p56, %p57
    %p59 = scmp.ne.s32.totalorder %s51, %s53
    %p60 = scmp.eq.s32.totalorder %s22, 1
    %p61 = por %p59, %p60
    %p62 = scmp.ne.s32.totalorder %s53, %s54
    %p63 = scmp.eq.s32.totalorder %s22, 0
    %p64 = por %p62, %p63
    %p65 = scmp.ne.s32.totalorder %s53, %s54
    %p66 = scmp.eq.s32.totalorder %s23, 1
    %p67 = por %p65, %p66
    %p69 = scmp.ne.s32.totalorder %s54, %s68
    %p70 = scmp.eq.s32.totalorder %s23, 0
    %p71 = por %p69, %p70
    %s73 = sadd.s32 %s72, 1
    %p76 = scmp.eq.s32.totalorder %s17, 1
    %p77 = scmp.ne.s32.totalorder %s72, %s74
    %p78 = scmp.eq.s32.totalorder %s17, 0
    %p79 = por %p77, %p78
    %p80 = scmp.ne.s32.totalorder %s72, %s74
    %p81 = scmp.eq.s32.totalorder %s22, 1
    %p82 = por %p80, %p81
    %p83 = scmp.ne.s32.totalorder %s74, %s75
    %p84 = scmp.eq.s32.totalorder %s22, 0
    %p85 = por %p83, %p84
    %p86 = scmp.ne.s32.totalorder %s74, %s75
    %p87 = scmp.eq.s32.totalorder %s23, 1
    %p88 = por %p86, %p87
    %p90 = scmp.ne.s32.totalorder %s75, %s89
    %p91 = scmp.eq.s32.totalorder %s23, 0
    %p92 = por %p90, %p91
    %s94 = sadd.s32 %s93, 1
    %p97 = scmp.eq.s32.totalorder %s17, 1
    %p98 = scmp.ne.s32.totalorder %s93, %s95
    %p99 = scmp.eq.s32.totalorder %s17, 0
    %p100 = por %p98, %p99
    %p101 = scmp.ne.s32.totalorder %s93, %s95
    %p102 = scmp.eq.s32.totalorder %s22, 1
    %p103 = por %p101, %p102
    %p104 = scmp.ne.s32.totalorder %s95, %s96
    %p105 = scmp.eq.s32.totalorder %s22, 0
    %p106 = por %p104, %p105
    %p107 = scmp.ne.s32.totalorder %s95, %s96
    %p108 = scmp.eq.s32.totalorder %s23, 1
    %p109 = por %p107, %p108
    %p111 = scmp.ne.s32.totalorder %s96, %s110
    %p112 = scmp.eq.s32.totalorder %s23, 0
    %p113 = por %p111, %p112
    %s115 = sadd.s32 %s114, 1
    %p118 = scmp.eq.s32.totalorder %s17, 1
    %p119 = scmp.ne.s32.totalorder %s114, %s116
    %p120 = scmp.eq.s32.totalorder %s17, 0
    %p121 = por %p119, %p120
    %p122 = scmp.ne.s32.totalorder %s114, %s116
    %p123 = scmp.eq.s32.totalorder %s22, 1
    %p124 = por %p122, %p123
    %p125 = scmp.ne.s32.totalorder %s116, %s117
    %p126 = scmp.eq.s32.totalorder %s22, 0
    %p127 = por %p125, %p126
    %p128 = scmp.ne.s32.totalorder %s116, %s117
    %p129 = scmp.eq.s32.totalorder %s23, 1
    %p130 = por %p128, %p129
    %p132 = scmp.ne.s32.totalorder %s117, %s131
    %p133 = scmp.eq.s32.totalorder %s23, 0
    %p134 = por %p132, %p133
    %s136 = sadd.s32 %s135, 1
    %p139 = scmp.eq.s32.totalorder %s17, 1
    %p140 = scmp.ne.s32.totalorder %s135, %s137
    %p141 = scmp.eq.s32.totalorder %s17, 0
    %p142 = por %p140, %p141
    %p143 = scmp.ne.s32.totalorder %s135, %s137
    %p144 = scmp.eq.s32.totalorder %s22, 1
    %p145 = por %p143, %p144
    %p146 = scmp.ne.s32.totalorder %s137, %s138
    %p147 = scmp.eq.s32.totalorder %s22, 0
    %p148 = por %p146, %p147
    %p149 = scmp.ne.s32.totalorder %s137, %s138
    %p150 = scmp.eq.s32.totalorder %s23, 1
    %p151 = por %p149, %p150
    %p153 = scmp.ne.s32.totalorder %s138, %s152
    %p154 = scmp.eq.s32.totalorder %s23, 0
    %p155 = por %p153, %p154
    %s157 = sadd.s32 %s156, 1
    %p160 = scmp.eq.s32.totalorder %s17, 1
    %p161 = scmp.ne.s32.totalorder %s156, %s158
    %p162 = scmp.eq.s32.totalorder %s17, 0
    %p163 = por %p161, %p162
    %p164 = scmp.ne.s32.totalorder %s156, %s158
    %p165 = scmp.eq.s32.totalorder %s22, 1
    %p166 = por %p164, %p165
    %p167 = scmp.ne.s32.totalorder %s158, %s159
    %p168 = scmp.eq.s32.totalorder %s22, 0
    %p169 = por %p167, %p168
    %p170 = scmp.ne.s32.totalorder %s158, %s159
    %p171 = scmp.eq.s32.totalorder %s23, 1
    %p172 = por %p170, %p171
    %p174 = scmp.ne.s32.totalorder %s159, %s173
    %p175 = scmp.eq.s32.totalorder %s23, 0
    %p176 = por %p174, %p175
    %s178 = sadd.s32 %s177, 1
    %p181 = scmp.eq.s32.totalorder %s17, 1
    %p182 = scmp.ne.s32.totalorder %s177, %s179
    %p183 = scmp.eq.s32.totalorder %s17, 0
    %p184 = por %p182, %p183
    %p185 = scmp.ne.s32.totalorder %s177, %s179
    %p186 = scmp.eq.s32.totalorder %s22, 1
    %p187 = por %p185, %p186
    %p188 = scmp.ne.s32.totalorder %s179, %s180
    %p189 = scmp.eq.s32.totalorder %s22, 0
    %p190 = por %p188, %p189
    %p191 = scmp.ne.s32.totalorder %s179, %s180
    %p192 = scmp.eq.s32.totalorder %s23, 1
    %p193 = por %p191, %p192
    %p195 = scmp.ne.s32.totalorder %s180, %s194
    %p196 = scmp.eq.s32.totalorder %s23, 0
    %p197 = por %p195, %p196
    %s199 = sadd.s32 %s198, 1
    %p202 = scmp.eq.s32.totalorder %s17, 1
    %p203 = scmp.ne.s32.totalorder %s198, %s200
    %p204 = scmp.eq.s32.totalorder %s17, 0
    %p205 = por %p203, %p204
    %p206 = scmp.ne.s32.totalorder %s198, %s200
    %p207 = scmp.eq.s32.totalorder %s22, 1
    %p208 = por %p206, %p207
    %p209 = scmp.ne.s32.totalorder %s200, %s201
    %p210 = scmp.eq.s32.totalorder %s22, 0
    %p211 = por %p209, %p210
    %p212 = scmp.ne.s32.totalorder %s200, %s201
    %p213 = scmp.eq.s32.totalorder %s23, 1
    %p214 = por %p212, %p213
    %p216 = scmp.ne.s32.totalorder %s201, %s215
    %p217 = scmp.eq.s32.totalorder %s23, 0
    %p218 = por %p216, %p217
    %s219 = ssub.s32 %s17, %s24
    %p220 = scmp.eq.s32.totalorder %s219, 0
    %s222 = sadd.s32 %s221, 1
    %s223 = scalar_select %p220, %s221, %s222
    %p226 = pneg %p220
    %p227 = scmp.eq.s32.totalorder %s17, 1
    %p228 = por %p226, %p227
    %p229 = scmp.ne.s32.totalorder %s221, %s224
    %p230 = scmp.eq.s32.totalorder %s17, 0
    %p231 = por %p229, %p230
    %p232 = scmp.ne.s32.totalorder %s221, %s224
    %p233 = scmp.eq.s32.totalorder %s22, 1
    %p234 = por %p232, %p233
    %p235 = scmp.ne.s32.totalorder %s224, %s225
    %p236 = scmp.eq.s32.totalorder %s22, 0
    %p237 = por %p235, %p236
    %p238 = scmp.ne.s32.totalorder %s224, %s225
    %p239 = scmp.eq.s32.totalorder %s23, 1
    %p240 = por %p238, %p239
    %p242 = scmp.ne.s32.totalorder %s225, %s241
    %p243 = scmp.eq.s32.totalorder %s23, 0
    %p244 = por %p242, %p243
    %s245 = ssub.s32 %s17, %s24
    %p246 = scmp.eq.s32.totalorder %s245, 0
    %s248 = sadd.s32 %s247, 1
    %s249 = scalar_select %p246, %s247, %s248
    %p252 = pneg %p246
    %p253 = scmp.eq.s32.totalorder %s17, 1
    %p254 = por %p252, %p253
    %p255 = scmp.ne.s32.totalorder %s247, %s250
    %p256 = scmp.eq.s32.totalorder %s17, 0
    %p257 = por %p255, %p256
    %p258 = scmp.ne.s32.totalorder %s247, %s250
    %p259 = scmp.eq.s32.totalorder %s22, 1
    %p260 = por %p258, %p259
    %p261 = scmp.ne.s32.totalorder %s250, %s251
    %p262 = scmp.eq.s32.totalorder %s22, 0
    %p263 = por %p261, %p262
    %p264 = scmp.ne.s32.totalorder %s250, %s251
    %p265 = scmp.eq.s32.totalorder %s23, 1
    %p266 = por %p264, %p265
    %p268 = scmp.ne.s32.totalorder %s251, %s267
    %p269 = scmp.eq.s32.totalorder %s23, 0
    %p270 = por %p268, %p269
    %p271 = scmp.le.s32.totalorder 1, %s17
    %p272 = scmp.lt.s32.totalorder %s17, 3
    %p273 = pnand %p271, %p272
    %p274 = pneg %p273
    // Predicated region
    $region9: #{_lambda_.38} parent=5 // pred_check
      _
    $region10: #{_lambda_.38} parent=5 // pred_check_branch
      %276 = sbr.rel (%p273) target = $region12
    $region11: #{_lambda_.38} parent=5 // pred_region
      %s277 = ssub.s32 %s17, 1
      // Predicated region
      $region13: #{_lambda_.38} parent=11 // pred_check
        %p278 = pneg %p64
      $region14: #{_lambda_.38} parent=11 // pred_check_branch
        %280 = sbr.rel (%p278) target = $region16
      $region15: #{_lambda_.38} parent=11 // pred_region
        _
      $region16: #{_lambda_.38} parent=11 // pred_fallthru
        _
      // Predicated region
      $region17: #{_lambda_.38} parent=11 // pred_check
        %p281 = pneg %p85
      $region18: #{_lambda_.38} parent=11 // pred_check_branch
        %283 = sbr.rel (%p281) target = $region20
      $region19: #{_lambda_.38} parent=11 // pred_region
        _
      $region20: #{_lambda_.38} parent=11 // pred_fallthru
        _
      // Predicated region
      $region21: #{_lambda_.38} parent=11 // pred_check
        %p284 = pneg %p106
      $region22: #{_lambda_.38} parent=11 // pred_check_branch
        %286 = sbr.rel (%p284) target = $region24
      $region23: #{_lambda_.38} parent=11 // pred_region
        _
      $region24: #{_lambda_.38} parent=11 // pred_fallthru
        _
      // Predicated region
      $region25: #{_lambda_.38} parent=11 // pred_check
        %p287 = pneg %p127
      $region26: #{_lambda_.38} parent=11 // pred_check_branch
        %289 = sbr.rel (%p287) target = $region28
      $region27: #{_lambda_.38} parent=11 // pred_region
        _
      $region28: #{_lambda_.38} parent=11 // pred_fallthru
        _
      // Predicated region
      $region29: #{_lambda_.38} parent=11 // pred_check
        %p290 = pneg %p148
      $region30: #{_lambda_.38} parent=11 // pred_check_branch
        %292 = sbr.rel (%p290) target = $region32
      $region31: #{_lambda_.38} parent=11 // pred_region
        _
      $region32: #{_lambda_.38} parent=11 // pred_fallthru
        _
      // Predicated region
      $region33: #{_lambda_.38} parent=11 // pred_check
        %p293 = pneg %p169
      $region34: #{_lambda_.38} parent=11 // pred_check_branch
        %295 = sbr.rel (%p293) target = $region36
      $region35: #{_lambda_.38} parent=11 // pred_region
        _
      $region36: #{_lambda_.38} parent=11 // pred_fallthru
        _
      // Predicated region
      $region37: #{_lambda_.38} parent=11 // pred_check
        %p296 = pneg %p190
      $region38: #{_lambda_.38} parent=11 // pred_check_branch
        %298 = sbr.rel (%p296) target = $region40
      $region39: #{_lambda_.38} parent=11 // pred_region
        _
      $region40: #{_lambda_.38} parent=11 // pred_fallthru
        _
      // Predicated region
      $region41: #{_lambda_.38} parent=11 // pred_check
        %p299 = pneg %p211
      $region42: #{_lambda_.38} parent=11 // pred_check_branch
        %301 = sbr.rel (%p299) target = $region44
      $region43: #{_lambda_.38} parent=11 // pred_region
        _
      $region44: #{_lambda_.38} parent=11 // pred_fallthru
        _
    $region12: #{_lambda_.38} parent=5 // pred_fallthru
      _
    %p302 = scmp.lt.s32.totalorder %s17, 2
    // Predicated region
    $region45: #{_lambda_.38} parent=5 // pred_check
      %p303 = pneg %p302
    $region46: #{_lambda_.38} parent=5 // pred_check_branch
      %305 = sbr.rel (%p303) target = $region48
    $region47: #{_lambda_.38} parent=5 // pred_region
      // Predicated region
      $region49: #{_lambda_.38} parent=47 // pred_check
        %p306 = pneg %p37
      $region50: #{_lambda_.38} parent=47 // pred_check_branch
        %308 = sbr.rel (%p306) target = $region52
      $region51: #{_lambda_.38} parent=47 // pred_region
        %p309 = scmp.lt.s32.totalorder %s17, 1
        %s310 = scalar_select %p309, %s17, 1
        %s311 = smul.addr %s310, 2
        %s312 = smul.addr %s311, 8
        %s313 = scalar_lea.vmem %s0, %s312
      $region52: #{_lambda_.38} parent=47 // pred_fallthru
        _
    $region48: #{_lambda_.38} parent=5 // pred_fallthru
      _
    %p314 = scmp.le.s32.totalorder 1, %s17
    %p315 = scmp.lt.s32.totalorder %s17, 3
    %p316 = pnand %p314, %p315
    %p317 = pneg %p316
    // Predicated region
    $region53: #{_lambda_.38} parent=5 // pred_check
      _
    $region54: #{_lambda_.38} parent=5 // pred_check_branch
      %319 = sbr.rel (%p316) target = $region56
    $region55: #{_lambda_.38} parent=5 // pred_region
      %s320 = ssub.s32 %s17, 1
      %p321 = scmp.lt.s32.totalorder %s22, 1
      %s322 = scalar_select %p321, %s22, 1
      %s323 = smul.addr %s322, 2
      %s324 = smul.addr %s323, 8
      %s325 = scalar_lea.vmem %s0, %s324
      %p326 = pneg %p43
      %p327 = pneg %p40
      %p328 = pneg %p64
      %p329 = pneg %p61
      %p330 = pneg %p85
      %p331 = pneg %p82
      %p332 = pneg %p106
      %p333 = pneg %p103
      %p334 = pneg %p127
      %p335 = pneg %p124
      %p336 = pneg %p148
      %p337 = pneg %p145
      %p338 = pneg %p169
      %p339 = pneg %p166
      %p340 = pneg %p190
      %p341 = pneg %p187
      %p342 = pneg %p211
      %p343 = pneg %p208
      %p344 = pneg %p237
      %p345 = pneg %p234
      %p346 = scmp.lt.s32.totalorder %s22, 1
      %s347 = scalar_select %p346, %s22, 1
      %s348 = scalar_lea.vmem %s9, %s347
      %p349 = pneg %p263
      %p350 = pneg %p260
      %p351 = scmp.lt.s32.totalorder %s22, 1
      %s352 = scalar_select %p351, %s22, 1
      %s353 = scalar_lea.vmem %s10, %s352
      %p354 = scmp.lt.s32.totalorder %s22, 1
      %s355 = scalar_select %p354, %s22, 1
      %s356 = smul.addr %s355, 2
      %s357 = smul.addr %s356, 8
      %s358 = scalar_lea.vmem %s0, %s357
      %p359 = scmp.lt.s32.totalorder %s22, 1
      %s360 = scalar_select %p359, %s22, 1
      %s361 = scalar_lea.vmem %s9, %s360
      %p362 = scmp.lt.s32.totalorder %s22, 1
      %s363 = scalar_select %p362, %s22, 1
      %s364 = scalar_lea.vmem %s10, %s363
      %v366 = vld [vmem:[%s358] sm:$0xff]
      %v367 = vld [vmem:[%s358 + $0x8] sm:$0x1f]
      %vm368 = vcmask 261120
      %v369 = vsel %vm368, %v366, 0.0
      %vm370 = vcmask 258048
      %v371 = vsel %vm370, %v367, 0.0
      %v372 = vadd.f32 %v369, %v371
      %v373 = vrot.slane %v372, 4
      %v374 = vadd.f32 %v372, %v373
      %v375 = vrot.slane %v374, 2
      %v376 = vadd.f32 %v374, %v375
      %v377 = vrot.slane %v376, 1
      %v378 = vadd.f32 %v376, %v377
      %v379 = vrcp.pop 13.0
      %v380 = vmul.f32 %v378, %v379
      %v381 = vsub.f32 %v366, %v380
      %v382 = vsub.f32 %v367, %v380
      %v383 = vmul.f32 %v381, %v381
      %v384 = vmul.f32 %v382, %v382
      %v385 = vsel %vm368, %v383, 0.0
      %v386 = vsel %vm370, %v384, 0.0
      %v387 = vadd.f32 %v385, %v386
      %v388 = vrot.slane %v387, 4
      %v389 = vadd.f32 %v387, %v388
      %v390 = vrot.slane %v389, 2
      %v391 = vadd.f32 %v389, %v390
      %v392 = vrot.slane %v391, 1
      %v393 = vadd.f32 %v391, %v392
      %v394 = vmul.f32 %v393, %v379
      %v395 = vmax.f32 %v394, 1e-12
      %v396 = vrsqrt.pop %v395
      %v397 = vmul.f32 %v395, %v396
      %vm398 = vcmp.eq.f32.partialorder %v395, inf
      %v399 = vsel %vm398, %v395, %v397
      %vm400 = vcmp.eq.f32.partialorder %v395, 0.0
      %v401 = vand.u32 %v395, 2147483648
      %v402 = vsel %vm400, %v401, %v399
      %v403 = vpack.c.bf16 %v367, %v366
      %v404 = vld [vmem:[%s1] sm:$0xf]
      %v405 = vld [vmem:[%s1 + $0x4] sm:$0xf]
      %v406 = vld [vmem:[%s1 + $0x8] sm:$0xf]
      %v407 = vld [vmem:[%s1 + $0xc] sm:$0xf]
      %v408 = vpack.c.bf16 %v380, %v380
      %v409 = vld [vmem:[%s2] sm:$0xf]
      %v410 = vld [vmem:[%s2 + $0x4] sm:$0xf]
      %v411 = vld [vmem:[%s2 + $0x8] sm:$0xf]
      %v412 = vld [vmem:[%s2 + $0xc] sm:$0xf]
      %v417 = vunpack.c.l.b16 %v409
      %v418 = vunpack.c.l.b16 %v410
      %v419 = vunpack.c.l.b16 %v411
      %v420 = vunpack.c.l.b16 %v412
      %v421 = vpack.c.b16 %v418, %v417
      %v422 = vpack.c.b16 %v420, %v419
      %v426 = vsel %vm368, %v408, 0
      %428 = vmatprep.subr.bf16.mxu0 0
      %429 = vmatpush1.bf16.msra.mxu0 0
      %430 = vmatprep.subr.bf16.mxu0 0
      %431 = vmatpush1.bf16.msra.mxu0 0
      %432 = vmatprep.subr.bf16.mxu0 0
      %433 = vmatpush1.bf16.msra.mxu0 0
      %434 = vmatprep.subr.bf16.mxu0 0
      %435 = vmatpush1.bf16.msra.mxu0 0
      %436 = vmatprep.subr.bf16.mxu0 0
      %437 = vmatpush1.bf16.msra.mxu0 0
      %438 = vmatprep.subr.bf16.mxu0 0
      %439 = vmatpush1.bf16.msra.mxu0 0
      %440 = vmatprep.subr.bf16.mxu0 0
      %441 = vmatpush1.bf16.msra.mxu0 %v422
      %442 = vmatprep.subr.bf16.mxu0 0
      %443 = vmatpush1.bf16.msra.mxu0 %v421
      %444 = vmatprep.subr.bf16.mxu0 0
      %445 = vmatpush2.bf16.msra.mxu0 0
      %446 = vmatprep.subr.bf16.mxu0 0
      %447 = vmatpush2.bf16.msra.mxu0 0
      %448 = vmatprep.subr.bf16.mxu0 0
      %449 = vmatpush2.bf16.msra.mxu0 0
      %450 = vmatprep.subr.bf16.mxu0 0
      %451 = vmatpush2.bf16.msra.mxu0 0
      %452 = vmatprep.subr.bf16.mxu0 0
      %453 = vmatpush2.bf16.msra.mxu0 0
      %454 = vmatprep.subr.bf16.mxu0 0
      %455 = vmatpush2.bf16.msra.mxu0 0
      %456 = vmatprep.subr.bf16.mxu0 0
      %457 = vmatpush2.bf16.msra.mxu0 0
      %458 = vmatprep.subr.bf16.mxu0 0
      %459 = vmatpush2.bf16.msra.mxu0 0
      %460 = vmatprep.mubr.bf16.mxu0 0
      %461 = vmatmul.mubr.bf16.gmra.mxu0 %v426
      %v462 = vpop.f32.mrf.mxu0
      %v463 = vadd.f32 0.0, %v462
      %v464 = vpop.f32.mrf.mxu0
      %v465 = vpop.f32.mrf.mxu0
      %v466 = vpop.f32.mrf.mxu0
      %467 = vdwg.mxu0
      %v468 = vlaneseq
      %v469 = vshrl.u32 %v468, 7
      %v470 = vsub.s32 0, %v469
      %v471 = vrot.slane %v463, %v470
      %v476 = vunpack.c.l.b16 %v404
      %v477 = vunpack.c.l.b16 %v405
      %v478 = vunpack.c.l.b16 %v406
      %v479 = vunpack.c.l.b16 %v407
      %v480 = vpack.c.b16 %v477, %v476
      %v481 = vpack.c.b16 %v479, %v478
      %v485 = vsel %vm368, %v403, 0
      %487 = vmatprep.subr.bf16.mxu0 0
      %488 = vmatpush1.bf16.msra.mxu0 0
      %489 = vmatprep.subr.bf16.mxu0 0
      %490 = vmatpush1.bf16.msra.mxu0 0
      %491 = vmatprep.subr.bf16.mxu0 0
      %492 = vmatpush1.bf16.msra.mxu0 0
      %493 = vmatprep.subr.bf16.mxu0 0
      %494 = vmatpush1.bf16.msra.mxu0 0
      %495 = vmatprep.subr.bf16.mxu0 0
      %496 = vmatpush1.bf16.msra.mxu0 0
      %497 = vmatprep.subr.bf16.mxu0 0
      %498 = vmatpush1.bf16.msra.mxu0 0
      %499 = vmatprep.subr.bf16.mxu0 0
      %500 = vmatpush1.bf16.msra.mxu0 %v481
      %501 = vmatprep.subr.bf16.mxu0 0
      %502 = vmatpush1.bf16.msra.mxu0 %v480
      %503 = vmatprep.subr.bf16.mxu0 0
      %504 = vmatpush2.bf16.msra.mxu0 0
      %505 = vmatprep.subr.bf16.mxu0 0
      %506 = vmatpush2.bf16.msra.mxu0 0
      %507 = vmatprep.subr.bf16.mxu0 0
      %508 = vmatpush2.bf16.msra.mxu0 0
      %509 = vmatprep.subr.bf16.mxu0 0
      %510 = vmatpush2.bf16.msra.mxu0 0
      %511 = vmatprep.subr.bf16.mxu0 0
      %512 = vmatpush2.bf16.msra.mxu0 0
      %513 = vmatprep.subr.bf16.mxu0 0
      %514 = vmatpush2.bf16.msra.mxu0 0
      %515 = vmatprep.subr.bf16.mxu0 0
      %516 = vmatpush2.bf16.msra.mxu0 0
      %517 = vmatprep.subr.bf16.mxu0 0
      %518 = vmatpush2.bf16.msra.mxu0 0
      %519 = vmatprep.mubr.bf16.mxu0 0
      %520 = vmatmul.mubr.bf16.gmra.mxu0 %v485
      %v521 = vpop.f32.mrf.mxu0
      %v522 = vadd.f32 %v471, %v521
      %v523 = vpop.f32.mrf.mxu0
      %v524 = vpop.f32.mrf.mxu0
      %v525 = vadd.f32 %v471, %v524
      %v526 = vpop.f32.mrf.mxu0
      %527 = vdwg.mxu0
      %v528 = vpack.c.bf16 %v402, %v402
      %v529 = vld [vmem:[%s3] sm:$0xf]
      %v530 = vld [vmem:[%s3 + $0x4] sm:$0xf]
      %v531 = vld [vmem:[%s3 + $0x8] sm:$0xf]
      %v532 = vld [vmem:[%s3 + $0xc] sm:$0xf]
      %v537 = vunpack.c.l.b16 %v529
      %v538 = vunpack.c.l.b16 %v530
      %v539 = vunpack.c.l.b16 %v531
      %v540 = vunpack.c.l.b16 %v532
      %v541 = vpack.c.b16 %v538, %v537
      %v542 = vpack.c.b16 %v540, %v539
      %v546 = vsel %vm368, %v528, 0
      %548 = vmatprep.subr.bf16.mxu0 0
      %549 = vmatpush1.bf16.msra.mxu0 0
      %550 = vmatprep.subr.bf16.mxu0 0
      %551 = vmatpush1.bf16.msra.mxu0 0
      %552 = vmatprep.subr.bf16.mxu0 0
      %553 = vmatpush1.bf16.msra.mxu0 0
      %554 = vmatprep.subr.bf16.mxu0 0
      %555 = vmatpush1.bf16.msra.mxu0 0
      %556 = vmatprep.subr.bf16.mxu0 0
      %557 = vmatpush1.bf16.msra.mxu0 0
      %558 = vmatprep.subr.bf16.mxu0 0
      %559 = vmatpush1.bf16.msra.mxu0 0
      %560 = vmatprep.subr.bf16.mxu0 0
      %561 = vmatpush1.bf16.msra.mxu0 %v542
      %562 = vmatprep.subr.bf16.mxu0 0
      %563 = vmatpush1.bf16.msra.mxu0 %v541
      %564 = vmatprep.subr.bf16.mxu0 0
      %565 = vmatpush2.bf16.msra.mxu0 0
      %566 = vmatprep.subr.bf16.mxu0 0
      %567 = vmatpush2.bf16.msra.mxu0 0
      %568 = vmatprep.subr.bf16.mxu0 0
      %569 = vmatpush2.bf16.msra.mxu0 0
      %570 = vmatprep.subr.bf16.mxu0 0
      %571 = vmatpush2.bf16.msra.mxu0 0
      %572 = vmatprep.subr.bf16.mxu0 0
      %573 = vmatpush2.bf16.msra.mxu0 0
      %574 = vmatprep.subr.bf16.mxu0 0
      %575 = vmatpush2.bf16.msra.mxu0 0
      %576 = vmatprep.subr.bf16.mxu0 0
      %577 = vmatpush2.bf16.msra.mxu0 0
      %578 = vmatprep.subr.bf16.mxu0 0
      %579 = vmatpush2.bf16.msra.mxu0 0
      %580 = vmatprep.mubr.bf16.mxu0 0
      %581 = vmatmul.mubr.bf16.gmra.mxu0 %v546
      %v582 = vpop.f32.mrf.mxu0
      %v583 = vadd.f32 0.0, %v582
      %v584 = vpop.f32.mrf.mxu0
      %v585 = vpop.f32.mrf.mxu0
      %v586 = vpop.f32.mrf.mxu0
      %587 = vdwg.mxu0
      %v588 = vlaneseq
      %v589 = vshrl.u32 %v588, 7
      %v590 = vsub.s32 0, %v589
      %v591 = vrot.slane %v583, %v590
      %v592 = vadd.f32 %v522, %v591
      %v593 = vadd.f32 %v525, %v591
      %v594 = vld [vmem:[%s4] sm:$0x1]
      %v596 = vlaneseq
      %v597 = vshrl.u32 %v596, 7
      %v598 = vsub.s32 0, %v597
      %v599 = vrot.slane %v594, %v598
      %v601 = vadd.f32 %v592, %v599
      %v602 = vadd.f32 %v593, %v599
      %v603 = vmax.f32 %v601, 0.0
      %v604 = vmax.f32 %v602, 0.0
      %v605 = vld [vmem:[%s5] sm:$0x1]
      %v607 = vlaneseq
      %v608 = vshrl.u32 %v607, 7
      %v609 = vsub.s32 0, %v608
      %v610 = vrot.slane %v605, %v609
      %v612 = vmul.f32 %v603, %v610
      %v613 = vmul.f32 %v604, %v610
      %v614 = vld [vmem:[%s6] sm:$0x1]
      %v616 = vlaneseq
      %v617 = vshrl.u32 %v616, 7
      %v618 = vsub.s32 0, %v617
      %v619 = vrot.slane %v614, %v618
      %v621 = vadd.f32 %v612, %v619
      %v622 = vadd.f32 %v613, %v619
      %v623 = vtanh.pop %v621
      %v624 = vtanh.pop %v622
      %v625 = vpack.c.bf16 %v624, %v623
      %v626 = vld [vmem:[%s7] sm:$0xf]
      %v627 = vld [vmem:[%s7 + $0x4] sm:$0xf]
      %v628 = vld [vmem:[%s8] sm:$0x1]
      %v630 = vlaneseq
      %v631 = vshrl.u32 %v630, 7
      %v632 = vsub.s32 0, %v631
      %v633 = vrot.slane %v628, %v632
      %v637 = vunpack.c.l.b16 %v626
      %v638 = vunpack.c.l.b16 %v627
      %v639 = vpack.c.b16 %v638, %v637
      %vm641 = vcmask 130048
      %v643 = vsel %vm641, %v625, 0
      %645 = vmatprep.subr.bf16.mxu0 0
      %646 = vmatpush1.bf16.msra.mxu0 0
      %647 = vmatprep.subr.bf16.mxu0 0
      %648 = vmatpush1.bf16.msra.mxu0 0
      %649 = vmatprep.subr.bf16.mxu0 0
      %650 = vmatpush1.bf16.msra.mxu0 0
      %651 = vmatprep.subr.bf16.mxu0 0
      %652 = vmatpush1.bf16.msra.mxu0 0
      %653 = vmatprep.subr.bf16.mxu0 0
      %654 = vmatpush1.bf16.msra.mxu0 0
      %655 = vmatprep.subr.bf16.mxu0 0
      %656 = vmatpush1.bf16.msra.mxu0 0
      %657 = vmatprep.subr.bf16.mxu0 0
      %658 = vmatpush1.bf16.msra.mxu0 0
      %659 = vmatprep.subr.bf16.mxu0 0
      %660 = vmatpush1.bf16.msra.mxu0 %v639
      %661 = vmatprep.subr.bf16.mxu0 0
      %662 = vmatpush2.bf16.msra.mxu0 0
      %663 = vmatprep.subr.bf16.mxu0 0
      %664 = vmatpush2.bf16.msra.mxu0 0
      %665 = vmatprep.subr.bf16.mxu0 0
      %666 = vmatpush2.bf16.msra.mxu0 0
      %667 = vmatprep.subr.bf16.mxu0 0
      %668 = vmatpush2.bf16.msra.mxu0 0
      %669 = vmatprep.subr.bf16.mxu0 0
      %670 = vmatpush2.bf16.msra.mxu0 0
      %671 = vmatprep.subr.bf16.mxu0 0
      %672 = vmatpush2.bf16.msra.mxu0 0
      %673 = vmatprep.subr.bf16.mxu0 0
      %674 = vmatpush2.bf16.msra.mxu0 0
      %675 = vmatprep.subr.bf16.mxu0 0
      %676 = vmatpush2.bf16.msra.mxu0 0
      %677 = vmatprep.mubr.bf16.mxu0 0
      %678 = vmatmul.mubr.bf16.gmra.mxu0 %v643
      %v679 = vpop.f32.mrf.mxu0
      %v680 = vadd.f32 %v633, %v679
      %v681 = vpop.f32.mrf.mxu0
      %v682 = vpop.f32.mrf.mxu0
      %v683 = vadd.f32 %v633, %v682
      %v684 = vpop.f32.mrf.mxu0
      %685 = vdwg.mxu0
      %v686 = vsel %vm368, %v680, -inf
      %v687 = vsel %vm370, %v683, -inf
      %v688 = vmax.f32 %v686, %v687
      %v689 = vrot.slane %v688, 4
      %v690 = vmax.f32 %v688, %v689
      %v691 = vrot.slane %v690, 2
      %v692 = vmax.f32 %v690, %v691
      %v693 = vrot.slane %v692, 1
      %v694 = vmax.f32 %v692, %v693
      %v695 = vsub.f32 %v680, %v694
      %v696 = vsub.f32 %v683, %v694
      %v697 = vmul.f32 %v695, 1.442695
      %v698 = vpow.pop %v697
      %v699 = vmul.f32 %v696, 1.442695
      %v700 = vpow.pop %v699
      %v701 = vsel %vm368, %v698, 0.0
      %v702 = vsel %vm370, %v700, 0.0
      %v703 = vadd.f32 %v701, %v702
      %v704 = vrot.slane %v703, 4
      %v705 = vadd.f32 %v703, %v704
      %v706 = vrot.slane %v705, 2
      %v707 = vadd.f32 %v705, %v706
      %v708 = vrot.slane %v707, 1
      %v709 = vadd.f32 %v707, %v708
      %v710 = vrcp.pop %v709
      %v711 = vmul.f32 %v698, %v710
      %v712 = vmul.f32 %v700, %v710
      %v713 = vmul.f32 %v711, %v366
      %v714 = vmul.f32 %v712, %v367
      %v715 = vsel %vm368, %v713, 0.0
      %v716 = vsel %vm370, %v714, 0.0
      %v717 = vadd.f32 %v715, %v716
      %v718 = vrot.slane %v717, 4
      %v719 = vadd.f32 %v717, %v718
      %v720 = vrot.slane %v719, 2
      %v721 = vadd.f32 %v719, %v720
      %v722 = vrot.slane %v721, 1
      %v723 = vadd.f32 %v721, %v722
      %v724 = vsub.f32 %v366, %v723
      %v725 = vsub.f32 %v367, %v723
      %v726 = vmul.f32 %v724, %v724
      %v727 = vmul.f32 %v725, %v725
      %v728 = vmul.f32 %v711, %v726
      %v729 = vmul.f32 %v712, %v727
      %v730 = vsel %vm368, %v728, 0.0
      %v731 = vsel %vm370, %v729, 0.0
      %v732 = vadd.f32 %v730, %v731
      %v733 = vrot.slane %v732, 4
      %v734 = vadd.f32 %v732, %v733
      %v735 = vrot.slane %v734, 2
      %v736 = vadd.f32 %v734, %v735
      %v737 = vrot.slane %v736, 1
      %v738 = vadd.f32 %v736, %v737
      %vm739 = vcmask 253952
      %740 = vst.msk [vmem:[%s361] sm:$0x1] %vm739, %v723
      %v741 = vmax.f32 %v738, 1e-12
      %v742 = vrsqrt.pop %v741
      %v743 = vmul.f32 %v741, %v742
      %vm744 = vcmp.eq.f32.partialorder %v741, inf
      %v745 = vsel %vm744, %v741, %v743
      %vm746 = vcmp.eq.f32.partialorder %v741, 0.0
      %v747 = vand.u32 %v741, 2147483648
      %v748 = vsel %vm746, %v747, %v745
      %749 = vst.msk [vmem:[%s364] sm:$0x1] %vm739, %v748
      %p750 = scmp.lt.s32.totalorder %s22, 1
      %s751 = scalar_select %p750, %s22, 1
      %s752 = scalar_lea.vmem %s9, %s751
      %p753 = scmp.lt.s32.totalorder %s22, 1
      %s754 = scalar_select %p753, %s22, 1
      %s755 = scalar_lea.vmem %s10, %s754
      // Predicated region
      $region57: #{_lambda_.38} parent=55 // pred_check
        %p756 = pneg %p234
      $region58: #{_lambda_.38} parent=55 // pred_check_branch
        %758 = sbr.rel (%p756) target = $region60
      $region59: #{_lambda_.38} parent=55 // pred_region
        _
      $region60: #{_lambda_.38} parent=55 // pred_fallthru
        _
      // Predicated region
      $region61: #{_lambda_.38} parent=55 // pred_check
        %p759 = pneg %p260
      $region62: #{_lambda_.38} parent=55 // pred_check_branch
        %761 = sbr.rel (%p759) target = $region64
      $region63: #{_lambda_.38} parent=55 // pred_region
        _
      $region64: #{_lambda_.38} parent=55 // pred_fallthru
        _
    $region56: #{_lambda_.38} parent=5 // pred_fallthru
      _
    %p762 = scmp.le.s32.totalorder 2, %s17
    // Predicated region
    $region65: #{_lambda_.38} parent=5 // pred_check
      %p763 = pneg %p762
    $region66: #{_lambda_.38} parent=5 // pred_check_branch
      %765 = sbr.rel (%p763) target = $region68
    $region67: #{_lambda_.38} parent=5 // pred_region
      %s766 = ssub.s32 %s17, 2
      // Predicated region
      $region69: #{_lambda_.38} parent=67 // pred_check
        %p767 = pneg %p240
      $region70: #{_lambda_.38} parent=67 // pred_check_branch
        %769 = sbr.rel (%p767) target = $region72
      $region71: #{_lambda_.38} parent=67 // pred_region
        %p770 = scmp.lt.s32.totalorder %s23, 1
        %s771 = scalar_select %p770, %s23, 1
        %s772 = scalar_lea.vmem %s9, %s771
      $region72: #{_lambda_.38} parent=67 // pred_fallthru
        _
      // Predicated region
      $region73: #{_lambda_.38} parent=67 // pred_check
        %p773 = pneg %p266
      $region74: #{_lambda_.38} parent=67 // pred_check_branch
        %775 = sbr.rel (%p773) target = $region76
      $region75: #{_lambda_.38} parent=67 // pred_region
        %p776 = scmp.lt.s32.totalorder %s23, 1
        %s777 = scalar_select %p776, %s23, 1
        %s778 = scalar_lea.vmem %s10, %s777
      $region76: #{_lambda_.38} parent=67 // pred_fallthru
        _
    $region68: #{_lambda_.38} parent=5 // pred_fallthru
      _
  $region6: #{_lambda_.38} parent=0 // loop_footer
    %s21 = sadd.s32 1, %s17
  $region7: #{_lambda_.38} parent=0 // loop_footer_branch
    %16 = sbr.rel target = $region3
  $region8: #{_lambda_.38} parent=0 // loop_exit
    _

// kernel: _lambda_.39
$region0: #{_lambda_.39}
  #allocation0 [shape = 'u32[]', space=smem, size = 0x4, offset = 0x4, fixed_abs, tag = 'smem constant byte address 0x4 - core index']
  #allocation1 [shape = 'u32[144,128]{1,0:T(1,128)}', space=vmem, size = 0x12000, scoped, tag = 'internal scratch']
  %s0 = inlined_call_operand.vmem [shape: f32[2,64], index: 0, kind: input, shape index: {}]
  %s1 = inlined_call_operand.vmem [shape: bf16[64,16], index: 1, kind: input, shape index: {}]
  %s2 = inlined_call_operand.vmem [shape: f32[1,16], index: 2, kind: input, shape index: {}]
  %s3 = inlined_call_operand.hbm [shape: f32[2,16], index: 3, kind: output, shape index: {}]
  %s4 = sld [smem:[#allocation0]]
  $region22: #{_lambda_.39} parent=0
    _
  %s6 = ssub.s32 1, %s4
  %s7 = scalar_select 0, %s6, %s4
  $region1: #{_lambda_.39} parent=0
    #allocation2 [shape = 'u8[1024]{0}', space=vmem, size = 0x400, scoped, tag = 'output window, operand 0, single buffered']
    #allocation3 [shape = 's32[1]{0}', space=sflag, size = 0x4, scoped, tag = 'scoped memory for _lambda_.39']
    %8 = vsyncpa [#allocation3], 0
    // Predicated region
    $region2: #{_lambda_.39} parent=1 // pred_check
      _
    $region3: #{_lambda_.39} parent=1 // pred_check_branch
      %10 = sbr.rel (0) target = $region5
    $region4: #{_lambda_.39} parent=1 // pred_region
      _
    $region5: #{_lambda_.39} parent=1 // pred_fallthru
      _
    // Predicated region
    $region6: #{_lambda_.39} parent=1 // pred_check
      _
    $region7: #{_lambda_.39} parent=1 // pred_check_branch
      %12 = sbr.rel (0) target = $region9
    $region8: #{_lambda_.39} parent=1 // pred_region
      _
    $region9: #{_lambda_.39} parent=1 // pred_fallthru
      _
    // Predicated region
    $region10: #{_lambda_.39} parent=1 // pred_check
      _
    $region11: #{_lambda_.39} parent=1 // pred_check_branch
      %14 = sbr.rel (0) target = $region13
    $region12: #{_lambda_.39} parent=1 // pred_region
      _
    $region13: #{_lambda_.39} parent=1 // pred_fallthru
      _
    %v16 = vld [vmem:[%s0] sm:$0x3]
    %v17 = vpack.c.bf16 %v16, %v16
    %v18 = vld [vmem:[%s1] sm:$0xf]
    %v19 = vld [vmem:[%s1 + $0x4] sm:$0xf]
    %v20 = vld [vmem:[%s1 + $0x8] sm:$0xf]
    %v21 = vld [vmem:[%s1 + $0xc] sm:$0xf]
    %v22 = vld [vmem:[%s1 + $0x10] sm:$0xf]
    %v23 = vld [vmem:[%s1 + $0x14] sm:$0xf]
    %v24 = vld [vmem:[%s1 + $0x18] sm:$0xf]
    %v25 = vld [vmem:[%s1 + $0x1c] sm:$0xf]
    %v26 = vld [vmem:[%s2] sm:$0x1]
    %v28 = vlaneseq
    %v29 = vshrl.u32 %v28, 7
    %v30 = vsub.s32 0, %v29
    %v31 = vrot.slane %v26, %v30
    %v41 = vunpack.c.l.b16 %v18
    %v42 = vunpack.c.l.b16 %v19
    %v43 = vunpack.c.l.b16 %v20
    %v44 = vunpack.c.l.b16 %v21
    %v45 = vunpack.c.l.b16 %v22
    %v46 = vunpack.c.l.b16 %v23
    %v47 = vunpack.c.l.b16 %v24
    %v48 = vunpack.c.l.b16 %v25
    %v49 = vpack.c.b16 %v42, %v41
    %v50 = vpack.c.b16 %v44, %v43
    %v51 = vpack.c.b16 %v46, %v45
    %v52 = vpack.c.b16 %v48, %v47
    %vm57 = vcmask 523264
    %v59 = vsel %vm57, %v17, 0
    %61 = vmatprep.subr.bf16.mxu0 0
    %62 = vmatpush1.bf16.msra.mxu0 0
    %63 = vmatprep.subr.bf16.mxu0 0
    %64 = vmatpush1.bf16.msra.mxu0 0
    %65 = vmatprep.subr.bf16.mxu0 0
    %66 = vmatpush1.bf16.msra.mxu0 0
    %67 = vmatprep.subr.bf16.mxu0 0
    %68 = vmatpush1.bf16.msra.mxu0 0
    %69 = vmatprep.subr.bf16.mxu0 0
    %70 = vmatpush1.bf16.msra.mxu0 %v52
    %71 = vmatprep.subr.bf16.mxu0 0
    %72 = vmatpush1.bf16.msra.mxu0 %v51
    %73 = vmatprep.subr.bf16.mxu0 0
    %74 = vmatpush1.bf16.msra.mxu0 %v50
    %75 = vmatprep.subr.bf16.mxu0 0
    %76 = vmatpush1.bf16.msra.mxu0 %v49
    %77 = vmatprep.subr.bf16.mxu0 0
    %78 = vmatpush2.bf16.msra.mxu0 0
    %79 = vmatprep.subr.bf16.mxu0 0
    %80 = vmatpush2.bf16.msra.mxu0 0
    %81 = vmatprep.subr.bf16.mxu0 0
    %82 = vmatpush2.bf16.msra.mxu0 0
    %83 = vmatprep.subr.bf16.mxu0 0
    %84 = vmatpush2.bf16.msra.mxu0 0
    %85 = vmatprep.subr.bf16.mxu0 0
    %86 = vmatpush2.bf16.msra.mxu0 0
    %87 = vmatprep.subr.bf16.mxu0 0
    %88 = vmatpush2.bf16.msra.mxu0 0
    %89 = vmatprep.subr.bf16.mxu0 0
    %90 = vmatpush2.bf16.msra.mxu0 0
    %91 = vmatprep.subr.bf16.mxu0 0
    %92 = vmatpush2.bf16.msra.mxu0 0
    %93 = vmatprep.mubr.bf16.mxu0 0
    %94 = vmatmul.mubr.bf16.gmra.mxu0 %v59
    %v95 = vpop.f32.mrf.mxu0
    %v96 = vadd.f32 %v31, %v95
    %v97 = vpop.f32.mrf.mxu0
    %v98 = vpop.f32.mrf.mxu0
    %v99 = vpop.f32.mrf.mxu0
    %100 = vdwg.mxu0
    %vm101 = vcmask 123904
    %102 = vst.msk [vmem:[#allocation2] sm:$0x3] %vm101, %v96
    // Predicated region
    $region14: #{_lambda_.39} parent=1 // pred_check
      _
    $region15: #{_lambda_.39} parent=1 // pred_check_branch
      %104 = sbr.rel (0) target = $region17
    $region16: #{_lambda_.39} parent=1 // pred_region
      %s106 = ssub.s32 32, 32
      %107 = vsyncadd [#allocation3], %s106
      %s109 = sshll.u32 [#allocation2], 4
      %s110 = int_to_ptr.vmem [resolvable:$true] %s109
      %112 = dma.vmem_to_hbm [thread:$0]  %s110, 32, %s3, [#allocation3]
    $region17: #{_lambda_.39} parent=1 // pred_fallthru
      _
    // Predicated region
    $region18: #{_lambda_.39} parent=1 // pred_check
      _
    $region19: #{_lambda_.39} parent=1 // pred_check_branch
      %114 = sbr.rel (0) target = $region21
    $region20: #{_lambda_.39} parent=1 // pred_region
      %115 = dma.done [#allocation3], 32
    $region21: #{_lambda_.39} parent=1 // pred_fallthru
      _
    %116 = vsyncpa [#allocation3], 1

</llo_original>
